<compile_context>
chip_gen: v6e
topology: v6e:2x2x1
jax: 0.10.0
libtpu: 0.0.40
codegen_flags: <defaults>
</compile_context>

<pallas_src>
import functools

import numpy as np

import jax
import jax.numpy as jnp
from jax import lax
from jax.experimental import pallas as pl
from jax.experimental.pallas import tpu as pltpu

_LN_EPS = 1e-5                          # torch.nn.LayerNorm default
_SQRT1_2 = 0.7071067811865476


# ---------------------------------------------------------------------------
# chip-aware defaults
# ---------------------------------------------------------------------------
@functools.lru_cache(maxsize=None)
def _vmem_limit_bytes():
    """Scoped VMEM limit: ~3/4 of physical, capped at 100 MiB.
    v7x (64 MiB physical) -> 48 MiB; v5e/v6e (128 MiB) -> 96 MiB."""
    try:
        info = pltpu.get_tpu_info()
        cap = getattr(info, "vmem_capacity_bytes", None)
        if cap:
            return int(min(100 * 2**20, (int(cap) * 3) // 4))
    except Exception:
        pass
    return 48 * 2**20


def _default_tile_m():
    # Smaller row tiles on VMEM-tight parts (v7x), large tiles on v5e/v6e.
    return 256 if _vmem_limit_bytes() <= 48 * 2**20 else 1024


def _compiler_params():
    return pltpu.CompilerParams(
        dimension_semantics=("parallel",),
        vmem_limit_bytes=_vmem_limit_bytes())


# ---------------------------------------------------------------------------
# helpers
# ---------------------------------------------------------------------------
def _round_up(x, m):
    return (x + m - 1) // m * m


def _pick_row_tile(m, tile_m):
    """Large row tile, padded via cdiv; keep >=2 grid steps when the row count
    allows it so both v7x TensorCores get work."""
    tm = min(tile_m, _round_up(m, 8))
    if _round_up(m, tm) // tm < 2 and m >= 16:
        tm = _round_up((m + 1) // 2, 8)
    return tm


def _pick_window_batch(nW, nB, N, target_rows=256):
    """Windows per attention grid step. Wb must divide nW so the per-image
    shift mask can be indexed with `block % (nW // Wb)`. Target >=256 MXU rows
    per step, but keep >=2 grid steps so both v7x TensorCores get work."""
    nWB = nW * nB
    divisors = [d for d in range(1, nW + 1) if nW % d == 0]
    wb = nW
    for d in divisors:
        if d * N >= target_rows:
            wb = d
            break
    while wb > 1 and (nWB // wb) < 2:
        wb = [d for d in divisors if d < wb][-1]
    return wb


def window_partition(x, ws):
    B, H, W, C = x.shape
    x = x.reshape(B, H // ws, ws, W // ws, ws, C)
    x = jnp.transpose(x, (0, 1, 3, 2, 4, 5))
    return x.reshape(-1, ws, ws, C)


def window_reverse(windows, ws, H, W):
    B = windows.shape[0] // (H * W // ws // ws)
    x = windows.reshape(B, H // ws, W // ws, ws, ws, -1)
    x = jnp.transpose(x, (0, 1, 3, 2, 4, 5))
    return x.reshape(B, H, W, -1)


def _relative_position_bias(table, window_size, num_heads):
    ws = window_size
    N = ws * ws
    coords = np.stack(np.meshgrid(np.arange(ws), np.arange(ws), indexing="ij"))
    cf = coords.reshape(2, -1)
    rel = (cf[:, :, None] - cf[:, None, :]).transpose(1, 2, 0)   # (N, N, 2)
    rel[:, :, 0] += ws - 1
    rel[:, :, 1] += ws - 1
    rel[:, :, 0] *= 2 * ws - 1
    idx = rel.sum(-1)                                            # (N, N)
    bias = table[idx.reshape(-1)]                                # (N*N, nh)
    bias = bias.reshape(N, N, num_heads)
    return jnp.transpose(bias, (2, 0, 1)).astype(jnp.float32)    # (nh, N, N)


def _shift_attn_mask(H, W, ws, ss):
    img = np.zeros((1, H, W, 1), np.float32)
    cnt = 0
    for hs in (slice(0, -ws), slice(-ws, -ss), slice(-ss, None)):
        for wsl in (slice(0, -ws), slice(-ws, -ss), slice(-ss, None)):
            img[:, hs, wsl, :] = cnt
            cnt += 1
    mw = img.reshape(1, H // ws, ws, W // ws, ws, 1)
    mw = mw.transpose(0, 1, 3, 2, 4, 5).reshape(-1, ws * ws)     # (nW, N)
    diff = mw[:, None, :] - mw[:, :, None]                       # (nW, N, N)
    return np.where(diff != 0, -100.0, 0.0).astype(np.float32)


# ---------------------------------------------------------------------------
# Kernel 1: LN1 + window attention (+ output projection), Wb windows / step
# ---------------------------------------------------------------------------
def _window_attention_kernel(x_ref, g1_ref, b1_ref, wqkv_ref, bqkv_ref,
                             wo_ref, bo_ref, rpb_ref, *rest,
                             num_heads, scale, eps, has_mask, approx_softmax):
    if has_mask:
        mask_ref, o_ref = rest
    else:
        (o_ref,) = rest

    wb, n, c = x_ref.shape
    rows = wb * n
    dh = c // num_heads
    cd = wqkv_ref.dtype

    # LayerNorm over channels (f32 math)
    x = x_ref[...].astype(jnp.float32).reshape(rows, c)
    mu = jnp.mean(x, axis=-1, keepdims=True)
    var = jnp.mean(jnp.square(x - mu), axis=-1, keepdims=True)
    xn = (x - mu) * lax.rsqrt(var + eps)
    xn = xn * g1_ref[...].astype(jnp.float32) + b1_ref[...].astype(jnp.float32)

    # one fused full-width QKV matmul (f32 accumulation)
    qkv = jnp.dot(xn.astype(cd), wqkv_ref[...],
                  preferred_element_type=jnp.float32)
    qkv = qkv + bqkv_ref[...].astype(jnp.float32)                # (rows, 3C)
    q = (qkv[:, :c] * scale).reshape(wb, n, c)
    k = qkv[:, c:2 * c].reshape(wb, n, c)
    v = qkv[:, 2 * c:].reshape(wb, n, c)

    if has_mask:
        mask = mask_ref[...].astype(jnp.float32)                 # (wb, n, n)

    head_outs = []
    for h in range(num_heads):
        lo, hi = h * dh, (h + 1) * dh
        s = jnp.einsum('wnd,wmd->wnm',
                       q[:, :, lo:hi].astype(cd), k[:, :, lo:hi].astype(cd),
                       preferred_element_type=jnp.float32)       # (wb, n, n)
        s = s + rpb_ref[h].astype(jnp.float32)
        if has_mask:
            s = s + mask
        s = s - jnp.max(s, axis=-1, keepdims=True)
        p = jnp.exp(s)
        denom = jnp.sum(p, axis=-1, keepdims=True)
        if approx_softmax:
            p = p * pl.reciprocal(denom, approx=True)            # EUP slot
        else:
            p = p / denom                                        # exact (f32 verify)
        head_outs.append(jnp.einsum('wnm,wmd->wnd',
                                    p.astype(cd), v[:, :, lo:hi].astype(cd),
                                    preferred_element_type=jnp.float32))

    # single full-width output projection over concatenated heads
    y = jnp.concatenate(head_outs, axis=-1).reshape(rows, c)
    y = jnp.dot(y.astype(cd), wo_ref[...],
                preferred_element_type=jnp.float32) + bo_ref[...].astype(jnp.float32)
    o_ref[...] = y.reshape(wb, n, c).astype(o_ref.dtype)


def window_attention_pallas(x_windows, *, ln_g, ln_b, wqkv, bqkv, wo, bo,
                            rel_pos_bias, mask_nw, num_heads,
                            num_windows_per_image,
                            compute_dtype=jnp.bfloat16):
    nWB, N, C = x_windows.shape
    nW = num_windows_per_image
    has_mask = mask_nw is not None
    Wb = _pick_window_batch(nW, nWB // nW, N)
    scale = float((C // num_heads) ** -0.5)
    approx_softmax = np.dtype(compute_dtype) != np.dtype(np.float32)
    cd = compute_dtype

    kernel = functools.partial(_window_attention_kernel,
                               num_heads=num_heads, scale=scale, eps=_LN_EPS,
                               has_mask=has_mask, approx_softmax=approx_softmax)

    in_specs = [
        pl.BlockSpec((Wb, N, C), lambda i: (i, 0, 0)),             # x windows
        pl.BlockSpec((1, C), lambda i: (0, 0)),                    # ln1 gamma
        pl.BlockSpec((1, C), lambda i: (0, 0)),                    # ln1 beta
        pl.BlockSpec((C, 3 * C), lambda i: (0, 0)),                # fused wqkv
        pl.BlockSpec((1, 3 * C), lambda i: (0, 0)),                # fused bqkv
        pl.BlockSpec((C, C), lambda i: (0, 0)),                    # wo
        pl.BlockSpec((1, C), lambda i: (0, 0)),                    # bo
        pl.BlockSpec((num_heads, N, N), lambda i: (0, 0, 0)),      # rel bias
    ]
    args = [
        x_windows,
        ln_g.reshape(1, C).astype(jnp.float32),
        ln_b.reshape(1, C).astype(jnp.float32),
        wqkv.astype(cd),
        bqkv.reshape(1, 3 * C).astype(jnp.float32),
        wo.astype(cd),
        bo.reshape(1, C).astype(jnp.float32),
        rel_pos_bias.astype(jnp.float32),
    ]
    if has_mask:
        nblk = nW // Wb
        in_specs.append(
            pl.BlockSpec((Wb, N, N), lambda i, nblk=nblk: (i % nblk, 0, 0)))
        args.append(mask_nw.astype(jnp.float32))

    return pl.pallas_call(
        kernel,
        out_shape=jax.ShapeDtypeStruct((nWB, N, C), x_windows.dtype),
        grid_spec=pltpu.PrefetchScalarGridSpec(
            num_scalar_prefetch=0,
            grid=(nWB // Wb,),
            in_specs=in_specs,
            out_specs=pl.BlockSpec((Wb, N, C), lambda i: (i, 0, 0)),
        ),
        compiler_params=_compiler_params(),
    )(*args)


# ---------------------------------------------------------------------------
# Kernel 2: residual + LN2 + MLP(GELU) + residual, tiled over token rows
# ---------------------------------------------------------------------------
def _block_mlp_kernel(short_ref, attn_ref, g2_ref, b2_ref,
                      w1_ref, bb1_ref, w2_ref, bb2_ref, o_ref, *, eps):
    x = short_ref[...].astype(jnp.float32) + attn_ref[...].astype(jnp.float32)
    mu = jnp.mean(x, axis=-1, keepdims=True)
    var = jnp.mean(jnp.square(x - mu), axis=-1, keepdims=True)
    xn = (x - mu) * lax.rsqrt(var + eps)
    xn = xn * g2_ref[...].astype(jnp.float32) + b2_ref[...].astype(jnp.float32)
    h = jnp.dot(xn.astype(w1_ref.dtype), w1_ref[...],
                preferred_element_type=jnp.float32) + bb1_ref[...].astype(jnp.float32)
    # exact GELU (erf form), f32 math
    h = 0.5 * h * (1.0 + lax.erf(h * _SQRT1_2))
    y = jnp.dot(h.astype(w2_ref.dtype), w2_ref[...],
                preferred_element_type=jnp.float32) + bb2_ref[...].astype(jnp.float32)
    o_ref[...] = (x + y).astype(o_ref.dtype)


def block_mlp_pallas(shortcut2d, attn2d, *, ln_g, ln_b, w1, b1, w2, b2,
                     compute_dtype=jnp.bfloat16, tile_m=None):
    m, C = shortcut2d.shape
    Hd = w1.shape[1]
    tile_m = _default_tile_m() if tile_m is None else tile_m
    tm = _pick_row_tile(m, tile_m)
    m_pad = _round_up(m, tm)
    if m_pad != m:
        pad = ((0, m_pad - m), (0, 0))
        shortcut2d = jnp.pad(shortcut2d, pad)
        attn2d = jnp.pad(attn2d, pad)
    kernel = functools.partial(_block_mlp_kernel, eps=_LN_EPS)
    out = pl.pallas_call(
        kernel,
        out_shape=jax.ShapeDtypeStruct((m_pad, C), shortcut2d.dtype),
        grid_spec=pltpu.PrefetchScalarGridSpec(
            num_scalar_prefetch=0,
            grid=(m_pad // tm,),
            in_specs=[
                pl.BlockSpec((tm, C), lambda i: (i, 0)),   # shortcut rows
                pl.BlockSpec((tm, C), lambda i: (i, 0)),   # attention rows
                pl.BlockSpec((1, C), lambda i: (0, 0)),    # ln2 gamma
                pl.BlockSpec((1, C), lambda i: (0, 0)),    # ln2 beta
                pl.BlockSpec((C, Hd), lambda i: (0, 0)),   # fc1 weight (resident)
                pl.BlockSpec((1, Hd), lambda i: (0, 0)),   # fc1 bias
                pl.BlockSpec((Hd, C), lambda i: (0, 0)),   # fc2 weight (resident)
                pl.BlockSpec((1, C), lambda i: (0, 0)),    # fc2 bias
            ],
            out_specs=pl.BlockSpec((tm, C), lambda i: (i, 0)),
        ),
        compiler_params=_compiler_params(),
    )(shortcut2d, attn2d,
      ln_g.reshape(1, C).astype(jnp.float32), ln_b.reshape(1, C).astype(jnp.float32),
      w1.astype(compute_dtype), b1.reshape(1, Hd).astype(jnp.float32),
      w2.astype(compute_dtype), b2.reshape(1, C).astype(jnp.float32))
    return out[:m]


# ---------------------------------------------------------------------------
# Kernel 3: PatchExpand linear (no bias) + per-group LayerNorm
# ---------------------------------------------------------------------------
def _patch_expand_kernel(x_ref, we_ref, g_ref, b_ref, o_ref, *, groups, eps):
    y = jnp.dot(x_ref[...].astype(we_ref.dtype), we_ref[...],
                preferred_element_type=jnp.float32)              # (tm, 2C)
    c2 = y.shape[-1] // groups
    g = g_ref[...].astype(jnp.float32)
    b = b_ref[...].astype(jnp.float32)
    # direct lane-slice stores (no concatenate temp)
    for j in range(groups):
        s = y[:, j * c2:(j + 1) * c2]
        mu = jnp.mean(s, axis=-1, keepdims=True)
        var = jnp.mean(jnp.square(s - mu), axis=-1, keepdims=True)
        o_ref[:, j * c2:(j + 1) * c2] = (
            (s - mu) * lax.rsqrt(var + eps) * g + b).astype(o_ref.dtype)


def patch_expand_pallas(x, *, w_expand, ln_g, ln_b, input_resolution,
                        compute_dtype=jnp.bfloat16, tile_m=None):
    H, W = input_resolution
    B, L, C = x.shape
    assert L == H * W, "input feature has wrong size"
    C2 = C // 2
    x2d = x.reshape(-1, C)
    m = x2d.shape[0]
    tile_m = _default_tile_m() if tile_m is None else tile_m
    tm = _pick_row_tile(m, tile_m)
    m_pad = _round_up(m, tm)
    if m_pad != m:
        x2d = jnp.pad(x2d, ((0, m_pad - m), (0, 0)))
    kernel = functools.partial(_patch_expand_kernel, groups=4, eps=_LN_EPS)
    y2d = pl.pallas_call(
        kernel,
        out_shape=jax.ShapeDtypeStruct((m_pad, 2 * C), x.dtype),
        grid_spec=pltpu.PrefetchScalarGridSpec(
            num_scalar_prefetch=0,
            grid=(m_pad // tm,),
            in_specs=[
                pl.BlockSpec((tm, C), lambda i: (i, 0)),
                pl.BlockSpec((C, 2 * C), lambda i: (0, 0)),
                pl.BlockSpec((1, C2), lambda i: (0, 0)),
                pl.BlockSpec((1, C2), lambda i: (0, 0)),
            ],
            out_specs=pl.BlockSpec((tm, 2 * C), lambda i: (i, 0)),
        ),
        compiler_params=_compiler_params(),
    )(x2d, w_expand.astype(compute_dtype),
      ln_g.reshape(1, C2).astype(jnp.float32), ln_b.reshape(1, C2).astype(jnp.float32))
    y2d = y2d[:m]
    # 2x2 pixel-shuffle rearrange (pure layout; LN already applied per new token)
    y = y2d.reshape(B, H, W, 2, 2, C2)
    y = jnp.transpose(y, (0, 1, 3, 2, 4, 5)).reshape(B, 4 * L, C2)
    return y


# ---------------------------------------------------------------------------
# Full module forward (Pallas)
# ---------------------------------------------------------------------------
def swin_block_pallas(x, p, *, input_resolution, num_heads, window_size,
                      shift_size, compute_dtype=jnp.bfloat16, tile_m=None):
    H, W = input_resolution
    B, L, C = x.shape
    assert L == H * W, "input feature has wrong size"
    ws = window_size
    N = ws * ws
    nW = (H // ws) * (W // ws)
    shortcut = x
    xr = x.reshape(B, H, W, C)
    if shift_size > 0:
        xr = jnp.roll(xr, (-shift_size, -shift_size), axis=(1, 2))
    xw = window_partition(xr, ws).reshape(-1, N, C)
    attn_w = window_attention_pallas(
        xw, ln_g=p["ln1_g"], ln_b=p["ln1_b"],
        wqkv=p["wqkv"], bqkv=p["bqkv"], wo=p["wo"], bo=p["bo"],
        rel_pos_bias=p["rpb"],
        mask_nw=p["mask_nw"] if shift_size > 0 else None,
        num_heads=num_heads, num_windows_per_image=nW,
        compute_dtype=compute_dtype)
    attn_w = attn_w.reshape(-1, ws, ws, C)
    sx = window_reverse(attn_w, ws, H, W)
    if shift_size > 0:
        sx = jnp.roll(sx, (shift_size, shift_size), axis=(1, 2))
    attn_out = sx.reshape(B, L, C)
    # TODO(synk): for shift==0 blocks the (un)partition could be folded into the
    # MLP kernel's index_map to avoid one XLA transpose pass over HBM.
    out2d = block_mlp_pallas(
        shortcut.reshape(-1, C), attn_out.reshape(-1, C),
        ln_g=p["ln2_g"], ln_b=p["ln2_b"],
        w1=p["w1"], b1=p["b1"], w2=p["w2"], b2=p["b2"],
        compute_dtype=compute_dtype, tile_m=tile_m)
    return out2d.reshape(B, L, C)


def basic_layer_up_pallas(x, params, *, input_resolution, num_heads, window_size,
                          compute_dtype=jnp.bfloat16, tile_m=None):
    for p in params["blocks"]:
        x = swin_block_pallas(x, p, input_resolution=input_resolution,
                              num_heads=num_heads, window_size=window_size,
                              shift_size=p["shift"],
                              compute_dtype=compute_dtype, tile_m=tile_m)
    x = patch_expand_pallas(x, w_expand=params["pe_w"], ln_g=params["pe_g"],
                            ln_b=params["pe_b"], input_resolution=input_resolution,
                            compute_dtype=compute_dtype, tile_m=tile_m)
    return x


# ---------------------------------------------------------------------------
# Parameter construction (deterministic, synthetic)
# ---------------------------------------------------------------------------
def _init_block_params(key, *, dim, num_heads, window_size, mlp_ratio,
                       shift_size, input_resolution):
    C = dim
    Hd = int(dim * mlp_ratio)
    ws = window_size
    ks = jax.random.split(key, 13)
    nrm = jax.random.normal
    p = {
        "shift": shift_size,
        "ln1_g": 1.0 + 0.02 * nrm(ks[0], (C,), jnp.float32),
        "ln1_b": 0.02 * nrm(ks[1], (C,), jnp.float32),
        "wqkv": 0.02 * nrm(ks[2], (C, 3 * C), jnp.float32),      # fused q|k|v
        "bqkv": 0.02 * nrm(ks[3], (3 * C,), jnp.float32),
        "wo": 0.02 * nrm(ks[4], (C, C), jnp.float32),
        "bo": 0.02 * nrm(ks[5], (C,), jnp.float32),
        "ln2_g": 1.0 + 0.02 * nrm(ks[6], (C,), jnp.float32),
        "ln2_b": 0.02 * nrm(ks[7], (C,), jnp.float32),
        "w1": 0.02 * nrm(ks[8], (C, Hd), jnp.float32),
        "b1": 0.02 * nrm(ks[9], (Hd,), jnp.float32),
        "w2": 0.02 * nrm(ks[10], (Hd, C), jnp.float32),
        "b2": 0.02 * nrm(ks[11], (C,), jnp.float32),
    }
    table = 0.02 * nrm(ks[12], ((2 * ws - 1) * (2 * ws - 1), num_heads), jnp.float32)
    p["rpb"] = _relative_position_bias(table, ws, num_heads)     # (nh, N, N)
    H, W = input_resolution
    p["mask_nw"] = (jnp.asarray(_shift_attn_mask(H, W, ws, shift_size))
                    if shift_size > 0 else None)
    return p


def init_basic_layer_up_params(key, *, dim, depth, num_heads, window_size,
                               mlp_ratio, input_resolution):
    keys = jax.random.split(key, depth + 3)
    blocks = []
    for i in range(depth):
        shift = 0 if i % 2 == 0 else window_size // 2
        blocks.append(_init_block_params(
            keys[i], dim=dim, num_heads=num_heads, window_size=window_size,
            mlp_ratio=mlp_ratio, shift_size=shift, input_resolution=input_resolution))
    C2 = dim // 2
    return {
        "blocks": blocks,
        "pe_w": 0.02 * jax.random.normal(keys[depth], (dim, 2 * dim), jnp.float32),
        "pe_g": 1.0 + 0.02 * jax.random.normal(keys[depth + 1], (C2,), jnp.float32),
        "pe_b": 0.02 * jax.random.normal(keys[depth + 2], (C2,), jnp.float32),
    }


# ---------------------------------------------------------------------------
# Plain-JAX reference (mirrors the PyTorch forward)
# ---------------------------------------------------------------------------
def _ref_layernorm(x, g, b, eps=_LN_EPS):
    mu = x.mean(-1, keepdims=True)
    var = ((x - mu) ** 2).mean(-1, keepdims=True)
    return (x - mu) / jnp.sqrt(var + eps) * g + b


def _ref_swin_block(x, p, H, W, num_heads, window_size, shift_size):
    B, L, C = x.shape
    ws = window_size
    N = ws * ws
    shortcut = x
    xn = _ref_layernorm(x, p["ln1_g"], p["ln1_b"])
    xr = xn.reshape(B, H, W, C)
    if shift_size > 0:
        xr = jnp.roll(xr, (-shift_size, -shift_size), axis=(1, 2))
    xw = window_partition(xr, ws).reshape(-1, N, C)
    nWB = xw.shape[0]
    Dh = C // num_heads
    scale = Dh ** -0.5

    def heads(t):
        return t.reshape(nWB, N, num_heads, Dh).transpose(0, 2, 1, 3)

    q = heads(xw @ p["wqkv"][:, :C] + p["bqkv"][:C])
    k = heads(xw @ p["wqkv"][:, C:2 * C] + p["bqkv"][C:2 * C])
    v = heads(xw @ p["wqkv"][:, 2 * C:] + p["bqkv"][2 * C:])
    attn = (q * scale) @ jnp.swapaxes(k, -1, -2)                 # (nWB, nh, N, N)
    attn = attn + p["rpb"][None]
    if p["mask_nw"] is not None:
        mask = jnp.tile(p["mask_nw"], (B, 1, 1))
        attn = attn + mask[:, None]
    attn = jax.nn.softmax(attn, axis=-1)
    out = (attn @ v).transpose(0, 2, 1, 3).reshape(nWB, N, C)
    out = out @ p["wo"] + p["bo"]
    out = out.reshape(-1, ws, ws, C)
    sx = window_reverse(out, ws, H, W)
    if shift_size > 0:
        sx = jnp.roll(sx, (shift_size, shift_size), axis=(1, 2))
    x = shortcut + sx.reshape(B, L, C)
    xn2 = _ref_layernorm(x, p["ln2_g"], p["ln2_b"])
    h = xn2 @ p["w1"] + p["b1"]
    h = 0.5 * h * (1.0 + lax.erf(h * _SQRT1_2))
    return x + (h @ p["w2"] + p["b2"])


def _ref_patch_expand(x, params, H, W):
    B, L, C = x.shape
    y = x @ params["pe_w"]
    C2 = C // 2
    y = y.reshape(B, H, W, 2, 2, C2)
    y = jnp.transpose(y, (0, 1, 3, 2, 4, 5)).reshape(B, 4 * L, C2)
    return _ref_layernorm(y, params["pe_g"], params["pe_b"])


def basic_layer_up_ref(x, params, *, input_resolution, num_heads, window_size):
    H, W = input_resolution
    for p in params["blocks"]:
        x = _ref_swin_block(x, p, H, W, num_heads, window_size, p["shift"])
    return _ref_patch_expand(x, params, H, W)


# ---------------------------------------------------------------------------
if __name__ == "__main__":
    B = 2
    H = W = 8
    dim = 32
    depth = 2                 # block 0: no shift, block 1: shifted (masked) attention
    num_heads = 2
    window_size = 4
    mlp_ratio = 4.0

    key = jax.random.PRNGKey(0)
    key, kx = jax.random.split(key)
    x = jax.random.normal(kx, (B, H * W, dim), jnp.float32)

    params = init_basic_layer_up_params(
        key, dim=dim, depth=depth, num_heads=num_heads,
        window_size=window_size, mlp_ratio=mlp_ratio, input_resolution=(H, W))

    run = functools.partial(basic_layer_up_pallas, input_resolution=(H, W),
                            num_heads=num_heads, window_size=window_size)

    # f32 verification path: 'highest' matmul precision scoped to this block only.
    with jax.default_matmul_precision("highest"):
        y = run(x, params, compute_dtype=jnp.float32)
        jax.block_until_ready(y)
        y_ref = basic_layer_up_ref(x, params, input_resolution=(H, W),
                                   num_heads=num_heads, window_size=window_size)
        jax.block_until_ready(y_ref)
    assert y.shape == (B, 4 * H * W, dim // 2), "wrong output shape"
    assert jnp.allclose(y, y_ref, atol=5e-4, rtol=5e-4), "f32 mismatch vs reference"

    # bf16 default compute path (native MXU rate; f32 accumulation inside kernels)
    y_bf16 = run(x.astype(jnp.bfloat16), params)
    jax.block_until_ready(y_bf16)
    y_bf16_f32 = y_bf16.astype(jnp.float32)
    assert bool(jnp.isfinite(y_bf16_f32).all()), "bf16 path produced non-finite values"
    assert float(jnp.max(jnp.abs(y_bf16_f32 - y_ref))) < 0.3, "bf16 path drifted too far"

    print("KERNEL_OK")
</pallas_src>

<mosaic_0001>
module attributes {stable_mosaic.version = 11 : i64} {
  func.func @_window_attention_kernel(%arg0: i32, %arg1: memref<4x16x32xf32, #tpu.memory_space<vmem>>, %arg2: memref<1x32xf32, #tpu.memory_space<vmem>>, %arg3: memref<1x32xf32, #tpu.memory_space<vmem>>, %arg4: memref<32x96xf32, #tpu.memory_space<vmem>>, %arg5: memref<1x96xf32, #tpu.memory_space<vmem>>, %arg6: memref<32x32xf32, #tpu.memory_space<vmem>>, %arg7: memref<1x32xf32, #tpu.memory_space<vmem>>, %arg8: memref<2x16x16xf32, #tpu.memory_space<vmem>>, %arg9: memref<4x16x32xf32, #tpu.memory_space<vmem>>) attributes {dimension_semantics = [#tpu.dimension_semantics<parallel>], iteration_bounds = array<i64: 2>, scalar_prefetch = 0 : i64, scratch_operands = 0 : i64, tpu.core_type = #tpu.core_type<tc>, window_params = [{transform_indices = @transform_0, window_bounds = array<i64: 4, 16, 32>}, {pipeline_mode = #tpu.pipeline_mode<synchronous>, transform_indices = @transform_1, window_bounds = array<i64: 1, 32>}, {pipeline_mode = #tpu.pipeline_mode<synchronous>, transform_indices = @transform_2, window_bounds = array<i64: 1, 32>}, {pipeline_mode = #tpu.pipeline_mode<synchronous>, transform_indices = @transform_3, window_bounds = array<i64: 32, 96>}, {pipeline_mode = #tpu.pipeline_mode<synchronous>, transform_indices = @transform_4, window_bounds = array<i64: 1, 96>}, {pipeline_mode = #tpu.pipeline_mode<synchronous>, transform_indices = @transform_5, window_bounds = array<i64: 32, 32>}, {pipeline_mode = #tpu.pipeline_mode<synchronous>, transform_indices = @transform_6, window_bounds = array<i64: 1, 32>}, {pipeline_mode = #tpu.pipeline_mode<synchronous>, transform_indices = @transform_7, window_bounds = array<i64: 2, 16, 16>}, {transform_indices = @transform_8, window_bounds = array<i64: 4, 16, 32>}]} {
    %c0 = arith.constant 0 : index
    %c0_0 = arith.constant 0 : index
    %c0_1 = arith.constant 0 : index
    %0 = vector.load %arg1[%c0, %c0_0, %c0_1] : memref<4x16x32xf32, #tpu.memory_space<vmem>>, vector<4x16x32xf32>
    %1 = vector.shape_cast %0 : vector<4x16x32xf32> to vector<64x32xf32>
    %cst = arith.constant dense<0.000000e+00> : vector<64xf32>
    %2 = vector.multi_reduction <add>, %1, %cst [1] : vector<64x32xf32> to vector<64xf32>
    %3 = vector.shape_cast %2 : vector<64xf32> to vector<64x1xf32>
    %cst_2 = arith.constant 3.200000e+01 : f32
    %4 = vector.broadcast %cst_2 : f32 to vector<64x1xf32>
    %5 = arith.divf %3, %4 : vector<64x1xf32>
    %6 = vector.broadcast %5 : vector<64x1xf32> to vector<64x32xf32>
    %7 = arith.subf %1, %6 : vector<64x32xf32>
    %8 = arith.mulf %7, %7 : vector<64x32xf32>
    %cst_3 = arith.constant dense<0.000000e+00> : vector<64xf32>
    %9 = vector.multi_reduction <add>, %8, %cst_3 [1] : vector<64x32xf32> to vector<64xf32>
    %10 = vector.shape_cast %9 : vector<64xf32> to vector<64x1xf32>
    %cst_4 = arith.constant 3.200000e+01 : f32
    %11 = vector.broadcast %cst_4 : f32 to vector<64x1xf32>
    %12 = arith.divf %10, %11 : vector<64x1xf32>
    %13 = vector.broadcast %5 : vector<64x1xf32> to vector<64x32xf32>
    %14 = arith.subf %1, %13 : vector<64x32xf32>
    %cst_5 = arith.constant 9.99999974E-6 : f32
    %15 = vector.broadcast %cst_5 : f32 to vector<64x1xf32>
    %16 = arith.addf %12, %15 : vector<64x1xf32>
    %17 = math.rsqrt %16 : vector<64x1xf32>
    %18 = vector.broadcast %17 : vector<64x1xf32> to vector<64x32xf32>
    %19 = arith.mulf %14, %18 : vector<64x32xf32>
    %c0_6 = arith.constant 0 : index
    %c0_7 = arith.constant 0 : index
    %20 = vector.load %arg2[%c0_6, %c0_7] : memref<1x32xf32, #tpu.memory_space<vmem>>, vector<1x32xf32>
    %21 = vector.broadcast %20 : vector<1x32xf32> to vector<64x32xf32>
    %22 = arith.mulf %19, %21 : vector<64x32xf32>
    %c0_8 = arith.constant 0 : index
    %c0_9 = arith.constant 0 : index
    %23 = vector.load %arg3[%c0_8, %c0_9] : memref<1x32xf32, #tpu.memory_space<vmem>>, vector<1x32xf32>
    %24 = vector.broadcast %23 : vector<1x32xf32> to vector<64x32xf32>
    %25 = arith.addf %22, %24 : vector<64x32xf32>
    %c0_10 = arith.constant 0 : index
    %c0_11 = arith.constant 0 : index
    %26 = vector.load %arg4[%c0_10, %c0_11] : memref<32x96xf32, #tpu.memory_space<vmem>>, vector<32x96xf32>
    %cst_12 = arith.constant dense<0.000000e+00> : vector<64x96xf32>
    %27 = tpu.matmul %25, %26, %cst_12 {dimension_numbers = #tpu.dot_dimension_numbers<[1], [0], [0], [1], [0, 0, 1, 1], [], []>, precision = #tpu.contract_precision<fp32>} : vector<64x32xf32>, vector<32x96xf32>, vector<64x96xf32> -> vector<64x96xf32>
    %c0_13 = arith.constant 0 : index
    %c0_14 = arith.constant 0 : index
    %28 = vector.load %arg5[%c0_13, %c0_14] : memref<1x96xf32, #tpu.memory_space<vmem>>, vector<1x96xf32>
    %29 = vector.broadcast %28 : vector<1x96xf32> to vector<64x96xf32>
    %30 = arith.addf %27, %29 : vector<64x96xf32>
    %31 = vector.extract_strided_slice %30 {offsets = [0, 0], sizes = [64, 32], strides = [1, 1]} : vector<64x96xf32> to vector<64x32xf32>
    %cst_15 = arith.constant 2.500000e-01 : f32
    %32 = vector.broadcast %cst_15 : f32 to vector<64x32xf32>
    %33 = arith.mulf %31, %32 : vector<64x32xf32>
    %34 = vector.shape_cast %33 : vector<64x32xf32> to vector<4x16x32xf32>
    %35 = vector.extract_strided_slice %30 {offsets = [0, 32], sizes = [64, 32], strides = [1, 1]} : vector<64x96xf32> to vector<64x32xf32>
    %36 = vector.shape_cast %35 : vector<64x32xf32> to vector<4x16x32xf32>
    %37 = vector.extract_strided_slice %30 {offsets = [0, 64], sizes = [64, 32], strides = [1, 1]} : vector<64x96xf32> to vector<64x32xf32>
    %38 = vector.shape_cast %37 : vector<64x32xf32> to vector<4x16x32xf32>
    %39 = vector.extract_strided_slice %34 {offsets = [0, 0, 0], sizes = [4, 16, 16], strides = [1, 1, 1]} : vector<4x16x32xf32> to vector<4x16x16xf32>
    %40 = vector.extract_strided_slice %36 {offsets = [0, 0, 0], sizes = [4, 16, 16], strides = [1, 1, 1]} : vector<4x16x32xf32> to vector<4x16x16xf32>
    "tpu.trace_start"() <{level = 10 : i32, message = "wnd,wmd->wnm"}> : () -> ()
    %cst_16 = arith.constant dense<0.000000e+00> : vector<4x16x16xf32>
    %41 = tpu.matmul %39, %40, %cst_16 {dimension_numbers = #tpu.dot_dimension_numbers<[2], [2], [1], [1], [0, 0, 0, 1, 1, 1], [0], [0]>, precision = #tpu.contract_precision<fp32>} : vector<4x16x16xf32>, vector<4x16x16xf32>, vector<4x16x16xf32> -> vector<4x16x16xf32>
    "tpu.trace_stop"() : () -> ()
    %c0_17 = arith.constant 0 : index
    %c0_18 = arith.constant 0 : index
    %c0_19 = arith.constant 0 : index
    %42 = vector.load %arg8[%c0_17, %c0_18, %c0_19] : memref<2x16x16xf32, #tpu.memory_space<vmem>>, vector<1x16x16xf32>
    %43 = vector.shape_cast %42 : vector<1x16x16xf32> to vector<16x16xf32>
    %44 = vector.shape_cast %43 : vector<16x16xf32> to vector<1x16x16xf32>
    %45 = vector.broadcast %44 : vector<1x16x16xf32> to vector<4x16x16xf32>
    %46 = arith.addf %41, %45 : vector<4x16x16xf32>
    %cst_20 = arith.constant dense<0xFF800000> : vector<4x16xf32>
    %47 = vector.multi_reduction <maximumf>, %46, %cst_20 [2] : vector<4x16x16xf32> to vector<4x16xf32>
    %48 = vector.shape_cast %47 : vector<4x16xf32> to vector<4x16x1xf32>
    %49 = vector.broadcast %48 : vector<4x16x1xf32> to vector<4x16x16xf32>
    %50 = arith.subf %46, %49 : vector<4x16x16xf32>
    %51 = math.exp %50 : vector<4x16x16xf32>
    %cst_21 = arith.constant dense<0.000000e+00> : vector<4x16xf32>
    %52 = vector.multi_reduction <add>, %51, %cst_21 [2] : vector<4x16x16xf32> to vector<4x16xf32>
    %53 = vector.shape_cast %52 : vector<4x16xf32> to vector<4x16x1xf32>
    %54 = vector.broadcast %53 : vector<4x16x1xf32> to vector<4x16x16xf32>
    %55 = arith.divf %51, %54 : vector<4x16x16xf32>
    %56 = vector.extract_strided_slice %38 {offsets = [0, 0, 0], sizes = [4, 16, 16], strides = [1, 1, 1]} : vector<4x16x32xf32> to vector<4x16x16xf32>
    "tpu.trace_start"() <{level = 10 : i32, message = "wnm,wmd->wnd"}> : () -> ()
    %cst_22 = arith.constant dense<0.000000e+00> : vector<4x16x16xf32>
    %57 = tpu.matmul %55, %56, %cst_22 {dimension_numbers = #tpu.dot_dimension_numbers<[2], [1], [1], [2], [0, 0, 0, 1, 1, 2], [0], [0]>, precision = #tpu.contract_precision<fp32>} : vector<4x16x16xf32>, vector<4x16x16xf32>, vector<4x16x16xf32> -> vector<4x16x16xf32>
    "tpu.trace_stop"() : () -> ()
    %58 = vector.extract_strided_slice %34 {offsets = [0, 0, 16], sizes = [4, 16, 16], strides = [1, 1, 1]} : vector<4x16x32xf32> to vector<4x16x16xf32>
    %59 = vector.extract_strided_slice %36 {offsets = [0, 0, 16], sizes = [4, 16, 16], strides = [1, 1, 1]} : vector<4x16x32xf32> to vector<4x16x16xf32>
    "tpu.trace_start"() <{level = 10 : i32, message = "wnd,wmd->wnm"}> : () -> ()
    %cst_23 = arith.constant dense<0.000000e+00> : vector<4x16x16xf32>
    %60 = tpu.matmul %58, %59, %cst_23 {dimension_numbers = #tpu.dot_dimension_numbers<[2], [2], [1], [1], [0, 0, 0, 1, 1, 1], [0], [0]>, precision = #tpu.contract_precision<fp32>} : vector<4x16x16xf32>, vector<4x16x16xf32>, vector<4x16x16xf32> -> vector<4x16x16xf32>
    "tpu.trace_stop"() : () -> ()
    %c1 = arith.constant 1 : index
    %c0_24 = arith.constant 0 : index
    %c0_25 = arith.constant 0 : index
    %61 = vector.load %arg8[%c1, %c0_24, %c0_25] : memref<2x16x16xf32, #tpu.memory_space<vmem>>, vector<1x16x16xf32>
    %62 = vector.shape_cast %61 : vector<1x16x16xf32> to vector<16x16xf32>
    %63 = vector.shape_cast %62 : vector<16x16xf32> to vector<1x16x16xf32>
    %64 = vector.broadcast %63 : vector<1x16x16xf32> to vector<4x16x16xf32>
    %65 = arith.addf %60, %64 : vector<4x16x16xf32>
    %cst_26 = arith.constant dense<0xFF800000> : vector<4x16xf32>
    %66 = vector.multi_reduction <maximumf>, %65, %cst_26 [2] : vector<4x16x16xf32> to vector<4x16xf32>
    %67 = vector.shape_cast %66 : vector<4x16xf32> to vector<4x16x1xf32>
    %68 = vector.broadcast %67 : vector<4x16x1xf32> to vector<4x16x16xf32>
    %69 = arith.subf %65, %68 : vector<4x16x16xf32>
    %70 = math.exp %69 : vector<4x16x16xf32>
    %cst_27 = arith.constant dense<0.000000e+00> : vector<4x16xf32>
    %71 = vector.multi_reduction <add>, %70, %cst_27 [2] : vector<4x16x16xf32> to vector<4x16xf32>
    %72 = vector.shape_cast %71 : vector<4x16xf32> to vector<4x16x1xf32>
    %73 = vector.broadcast %72 : vector<4x16x1xf32> to vector<4x16x16xf32>
    %74 = arith.divf %70, %73 : vector<4x16x16xf32>
    %75 = vector.extract_strided_slice %38 {offsets = [0, 0, 16], sizes = [4, 16, 16], strides = [1, 1, 1]} : vector<4x16x32xf32> to vector<4x16x16xf32>
    "tpu.trace_start"() <{level = 10 : i32, message = "wnm,wmd->wnd"}> : () -> ()
    %cst_28 = arith.constant dense<0.000000e+00> : vector<4x16x16xf32>
    %76 = tpu.matmul %74, %75, %cst_28 {dimension_numbers = #tpu.dot_dimension_numbers<[2], [1], [1], [2], [0, 0, 0, 1, 1, 2], [0], [0]>, precision = #tpu.contract_precision<fp32>} : vector<4x16x16xf32>, vector<4x16x16xf32>, vector<4x16x16xf32> -> vector<4x16x16xf32>
    "tpu.trace_stop"() : () -> ()
    %77 = tpu.concatenate %57, %76 in 2 : vector<4x16x16xf32>, vector<4x16x16xf32> -> vector<4x16x32xf32>
    %78 = vector.shape_cast %77 : vector<4x16x32xf32> to vector<64x32xf32>
    %c0_29 = arith.constant 0 : index
    %c0_30 = arith.constant 0 : index
    %79 = vector.load %arg6[%c0_29, %c0_30] : memref<32x32xf32, #tpu.memory_space<vmem>>, vector<32x32xf32>
    %cst_31 = arith.constant dense<0.000000e+00> : vector<64x32xf32>
    %80 = tpu.matmul %78, %79, %cst_31 {dimension_numbers = #tpu.dot_dimension_numbers<[1], [0], [0], [1], [0, 0, 1, 1], [], []>, precision = #tpu.contract_precision<fp32>} : vector<64x32xf32>, vector<32x32xf32>, vector<64x32xf32> -> vector<64x32xf32>
    %c0_32 = arith.constant 0 : index
    %c0_33 = arith.constant 0 : index
    %81 = vector.load %arg7[%c0_32, %c0_33] : memref<1x32xf32, #tpu.memory_space<vmem>>, vector<1x32xf32>
    %82 = vector.broadcast %81 : vector<1x32xf32> to vector<64x32xf32>
    %83 = arith.addf %80, %82 : vector<64x32xf32>
    %84 = vector.shape_cast %83 : vector<64x32xf32> to vector<4x16x32xf32>
    %c0_34 = arith.constant 0 : index
    %c0_35 = arith.constant 0 : index
    %c0_36 = arith.constant 0 : index
    %85 = vector.load %arg9[%c0_34, %c0_35, %c0_36] : memref<4x16x32xf32, #tpu.memory_space<vmem>>, vector<4x16x32xf32>
    tpu.vector_store %arg9[%c0_34, %c0_35, %c0_36], %84 {strides = array<i32>} : memref<4x16x32xf32, #tpu.memory_space<vmem>>, vector<4x16x32xf32>,
    return
  }
  func.func @transform_0(%arg0: i32) -> (i32, i32, i32) {
    %c0_i32 = arith.constant 0 : i32
    %c0_i32_0 = arith.constant 0 : i32
    %c0_i32_1 = arith.constant 0 : i32
    return %arg0, %c0_i32, %c0_i32_0 : i32, i32, i32
  }
  func.func @transform_1(%arg0: i32) -> (i32, i32) {
    %c0_i32 = arith.constant 0 : i32
    %c0_i32_0 = arith.constant 0 : i32
    %c0_i32_1 = arith.constant 0 : i32
    return %c0_i32, %c0_i32_0 : i32, i32
  }
  func.func @transform_2(%arg0: i32) -> (i32, i32) {
    %c0_i32 = arith.constant 0 : i32
    %c0_i32_0 = arith.constant 0 : i32
    %c0_i32_1 = arith.constant 0 : i32
    return %c0_i32, %c0_i32_0 : i32, i32
  }
  func.func @transform_3(%arg0: i32) -> (i32, i32) {
    %c0_i32 = arith.constant 0 : i32
    %c0_i32_0 = arith.constant 0 : i32
    %c0_i32_1 = arith.constant 0 : i32
    return %c0_i32, %c0_i32_0 : i32, i32
  }
  func.func @transform_4(%arg0: i32) -> (i32, i32) {
    %c0_i32 = arith.constant 0 : i32
    %c0_i32_0 = arith.constant 0 : i32
    %c0_i32_1 = arith.constant 0 : i32
    return %c0_i32, %c0_i32_0 : i32, i32
  }
  func.func @transform_5(%arg0: i32) -> (i32, i32) {
    %c0_i32 = arith.constant 0 : i32
    %c0_i32_0 = arith.constant 0 : i32
    %c0_i32_1 = arith.constant 0 : i32
    return %c0_i32, %c0_i32_0 : i32, i32
  }
  func.func @transform_6(%arg0: i32) -> (i32, i32) {
    %c0_i32 = arith.constant 0 : i32
    %c0_i32_0 = arith.constant 0 : i32
    %c0_i32_1 = arith.constant 0 : i32
    return %c0_i32, %c0_i32_0 : i32, i32
  }
  func.func @transform_7(%arg0: i32) -> (i32, i32, i32) {
    %c0_i32 = arith.constant 0 : i32
    %c0_i32_0 = arith.constant 0 : i32
    %c0_i32_1 = arith.constant 0 : i32
    %c0_i32_2 = arith.constant 0 : i32
    return %c0_i32, %c0_i32_0, %c0_i32_1 : i32, i32, i32
  }
  func.func @transform_8(%arg0: i32) -> (i32, i32, i32) {
    %c0_i32 = arith.constant 0 : i32
    %c0_i32_0 = arith.constant 0 : i32
    %c0_i32_1 = arith.constant 0 : i32
    return %arg0, %c0_i32, %c0_i32_0 : i32, i32, i32
  }
}

</mosaic_0001>

<llo_original>
// kernel: tpu_custom_call.1
$region0: #{tpu_custom_call.1}
  #allocation0 [shape = 'u32[]', space=smem, size = 0x4, offset = 0x4, fixed_abs, tag = 'smem constant byte address 0x4 - core index']
  #allocation1 [shape = 'u32[144,128]{1,0:T(1,128)}', space=vmem, size = 0x12000, scoped, tag = 'internal scratch']
  %s0 = inlined_call_operand.hbm [shape: f32[8,16,32], index: 0, kind: input, shape index: {}]
  %s1 = inlined_call_operand.vmem [shape: f32[1,32], index: 1, kind: input, shape index: {}]
  %s2 = inlined_call_operand.vmem [shape: f32[1,32], index: 2, kind: input, shape index: {}]
  %s3 = inlined_call_operand.hbm [shape: f32[32,96], index: 3, kind: input, shape index: {}]
  %s4 = inlined_call_operand.vmem [shape: f32[1,96], index: 4, kind: input, shape index: {}]
  %s5 = inlined_call_operand.hbm [shape: f32[32,32], index: 5, kind: input, shape index: {}]
  %s6 = inlined_call_operand.vmem [shape: f32[1,32], index: 6, kind: input, shape index: {}]
  %s7 = inlined_call_operand.hbm [shape: f32[2,16,16], index: 7, kind: input, shape index: {}]
  %s8 = inlined_call_operand.hbm [shape: f32[8,16,32], index: 8, kind: output, shape index: {}]
  %s9 = sld [smem:[#allocation0]]
  $region81: #{tpu_custom_call.1} parent=0
    _
  %s11 = ssub.s32 1, %s9
  %s12 = scalar_select 0, %s11, %s9
  $region1: #{tpu_custom_call.1} parent=0
    #allocation2 [shape = 'u8[65536]{0}', space=vmem, size = 0x10000, scoped, tag = 'input window, operand 0']
    #allocation3 [shape = 's32[2]{0}', space=sflag, size = 0x8, scoped, tag = 'scoped memory for tpu_custom_call.1']
    #allocation4 [shape = 's32[2]{0}', space=sflag, size = 0x8, scoped, tag = 'scoped memory for tpu_custom_call.1']
    #allocation5 [shape = 'u8[16384]{0}', space=vmem, size = 0x4000, scoped, tag = 'input window, operand 3, single buffered']
    #allocation6 [shape = 's32[1]{0}', space=sflag, size = 0x4, scoped, tag = 'scoped memory for tpu_custom_call.1']
    #allocation7 [shape = 'u8[16384]{0}', space=vmem, size = 0x4000, scoped, tag = 'input window, operand 5, single buffered']
    #allocation8 [shape = 'u8[16384]{0}', space=vmem, size = 0x4000, scoped, tag = 'input window, operand 7, single buffered']
    #allocation9 [shape = 's32[1]{0}', space=sflag, size = 0x4, scoped, tag = 'scoped memory for tpu_custom_call.1']
    #allocation10 [shape = 'u8[65536]{0}', space=vmem, size = 0x10000, scoped, tag = 'output window, operand 0']
    %13 = vsyncpa [#allocation3], 0
    %s14 = scalar_lea.sflag [#allocation3], 1
    %15 = vsyncpa %s14, 0
    %16 = vsyncpa [#allocation6], 0
    %17 = vsyncpa [#allocation9], 0
    %18 = vsyncpa [#allocation4], 0
    %s19 = scalar_lea.sflag [#allocation4], 1
    %20 = vsyncpa %s19, 0
    loop: start=0, step=1, limit=4
    $region2: #{tpu_custom_call.1} parent=1 // loop_pre_header
      _
    $region3: #{tpu_custom_call.1} parent=1 // loop_header
      %s22 = sphi 0, %s26
      %p23 = scmp.ge.s32.totalorder %s22, 4
      %s32 = sphi 0, %s34
      %s35 = sphi 0, %s32
      %s36 = sphi 0, %s35
      %s52 = sphi 0, %s36
      %s56 = sphi 0, %s56
      %s58 = sphi 0, %s56
      %s59 = sphi 0, %s58
      %s73 = sphi 0, %s59
      %s77 = sphi 0, %s77
      %s79 = sphi 0, %s77
      %s80 = sphi 0, %s79
      %s94 = sphi 0, %s80
      %s98 = sphi 0, %s98
      %s100 = sphi 0, %s98
      %s101 = sphi 0, %s100
      %s115 = sphi 0, %s101
      %s119 = sphi 0, %s119
      %s121 = sphi 0, %s119
      %s122 = sphi 0, %s121
      %s136 = sphi 0, %s122
      %s140 = sphi 0, %s140
      %s142 = sphi 0, %s140
      %s143 = sphi 0, %s142
      %s157 = sphi 0, %s143
      %s161 = sphi 0, %s161
      %s163 = sphi 0, %s161
      %s164 = sphi 0, %s163
      %s178 = sphi 0, %s164
      %s182 = sphi 0, %s182
      %s184 = sphi 0, %s182
      %s185 = sphi 0, %s184
      %s199 = sphi 0, %s185
      %s205 = sphi 0, %s207
      %s208 = sphi 0, %s205
      %s209 = sphi 0, %s208
      %s225 = sphi 0, %s209
    $region4: #{tpu_custom_call.1} parent=1 // loop_header_branch
      %25 = sbr.rel (%p23) target = $region8
    $region5: #{tpu_custom_call.1} parent=1 // loop_body
      %s27 = ssub.s32 %s22, 1
      %s28 = ssub.s32 %s22, 2
      %s29 = sadd.s32 %s22, 1
      %s30 = ssub.s32 %s22, %s29
      %p31 = scmp.eq.s32.totalorder %s30, 0
      %s33 = sadd.s32 %s32, 1
      %s34 = scalar_select %p31, %s32, %s33
      %p37 = pneg %p31
      %p38 = scmp.eq.s32.totalorder %s22, 1
      %p39 = por %p37, %p38
      %p40 = scmp.ne.s32.totalorder %s32, %s35
      %p41 = scmp.eq.s32.totalorder %s22, 0
      %p42 = por %p40, %p41
      %p43 = scmp.ne.s32.totalorder %s32, %s35
      %p44 = scmp.eq.s32.totalorder %s27, 1
      %p45 = por %p43, %p44
      %p46 = scmp.ne.s32.totalorder %s35, %s36
      %p47 = scmp.eq.s32.totalorder %s27, 0
      %p48 = por %p46, %p47
      %p49 = scmp.ne.s32.totalorder %s35, %s36
      %p50 = scmp.eq.s32.totalorder %s28, 1
      %p51 = por %p49, %p50
      %p53 = scmp.ne.s32.totalorder %s36, %s52
      %p54 = scmp.eq.s32.totalorder %s28, 0
      %p55 = por %p53, %p54
      %s57 = sadd.s32 %s56, 1
      %p60 = scmp.eq.s32.totalorder %s22, 1
      %p61 = scmp.ne.s32.totalorder %s56, %s58
      %p62 = scmp.eq.s32.totalorder %s22, 0
      %p63 = por %p61, %p62
      %p64 = scmp.ne.s32.totalorder %s56, %s58
      %p65 = scmp.eq.s32.totalorder %s27, 1
      %p66 = por %p64, %p65
      %p67 = scmp.ne.s32.totalorder %s58, %s59
      %p68 = scmp.eq.s32.totalorder %s27, 0
      %p69 = por %p67, %p68
      %p70 = scmp.ne.s32.totalorder %s58, %s59
      %p71 = scmp.eq.s32.totalorder %s28, 1
      %p72 = por %p70, %p71
      %p74 = scmp.ne.s32.totalorder %s59, %s73
      %p75 = scmp.eq.s32.totalorder %s28, 0
      %p76 = por %p74, %p75
      %s78 = sadd.s32 %s77, 1
      %p81 = scmp.eq.s32.totalorder %s22, 1
      %p82 = scmp.ne.s32.totalorder %s77, %s79
      %p83 = scmp.eq.s32.totalorder %s22, 0
      %p84 = por %p82, %p83
      %p85 = scmp.ne.s32.totalorder %s77, %s79
      %p86 = scmp.eq.s32.totalorder %s27, 1
      %p87 = por %p85, %p86
      %p88 = scmp.ne.s32.totalorder %s79, %s80
      %p89 = scmp.eq.s32.totalorder %s27, 0
      %p90 = por %p88, %p89
      %p91 = scmp.ne.s32.totalorder %s79, %s80
      %p92 = scmp.eq.s32.totalorder %s28, 1
      %p93 = por %p91, %p92
      %p95 = scmp.ne.s32.totalorder %s80, %s94
      %p96 = scmp.eq.s32.totalorder %s28, 0
      %p97 = por %p95, %p96
      %s99 = sadd.s32 %s98, 1
      %p102 = scmp.eq.s32.totalorder %s22, 1
      %p103 = scmp.ne.s32.totalorder %s98, %s100
      %p104 = scmp.eq.s32.totalorder %s22, 0
      %p105 = por %p103, %p104
      %p106 = scmp.ne.s32.totalorder %s98, %s100
      %p107 = scmp.eq.s32.totalorder %s27, 1
      %p108 = por %p106, %p107
      %p109 = scmp.ne.s32.totalorder %s100, %s101
      %p110 = scmp.eq.s32.totalorder %s27, 0
      %p111 = por %p109, %p110
      %p112 = scmp.ne.s32.totalorder %s100, %s101
      %p113 = scmp.eq.s32.totalorder %s28, 1
      %p114 = por %p112, %p113
      %p116 = scmp.ne.s32.totalorder %s101, %s115
      %p117 = scmp.eq.s32.totalorder %s28, 0
      %p118 = por %p116, %p117
      %s120 = sadd.s32 %s119, 1
      %p123 = scmp.eq.s32.totalorder %s22, 1
      %p124 = scmp.ne.s32.totalorder %s119, %s121
      %p125 = scmp.eq.s32.totalorder %s22, 0
      %p126 = por %p124, %p125
      %p127 = scmp.ne.s32.totalorder %s119, %s121
      %p128 = scmp.eq.s32.totalorder %s27, 1
      %p129 = por %p127, %p128
      %p130 = scmp.ne.s32.totalorder %s121, %s122
      %p131 = scmp.eq.s32.totalorder %s27, 0
      %p132 = por %p130, %p131
      %p133 = scmp.ne.s32.totalorder %s121, %s122
      %p134 = scmp.eq.s32.totalorder %s28, 1
      %p135 = por %p133, %p134
      %p137 = scmp.ne.s32.totalorder %s122, %s136
      %p138 = scmp.eq.s32.totalorder %s28, 0
      %p139 = por %p137, %p138
      %s141 = sadd.s32 %s140, 1
      %p144 = scmp.eq.s32.totalorder %s22, 1
      %p145 = scmp.ne.s32.totalorder %s140, %s142
      %p146 = scmp.eq.s32.totalorder %s22, 0
      %p147 = por %p145, %p146
      %p148 = scmp.ne.s32.totalorder %s140, %s142
      %p149 = scmp.eq.s32.totalorder %s27, 1
      %p150 = por %p148, %p149
      %p151 = scmp.ne.s32.totalorder %s142, %s143
      %p152 = scmp.eq.s32.totalorder %s27, 0
      %p153 = por %p151, %p152
      %p154 = scmp.ne.s32.totalorder %s142, %s143
      %p155 = scmp.eq.s32.totalorder %s28, 1
      %p156 = por %p154, %p155
      %p158 = scmp.ne.s32.totalorder %s143, %s157
      %p159 = scmp.eq.s32.totalorder %s28, 0
      %p160 = por %p158, %p159
      %s162 = sadd.s32 %s161, 1
      %p165 = scmp.eq.s32.totalorder %s22, 1
      %p166 = scmp.ne.s32.totalorder %s161, %s163
      %p167 = scmp.eq.s32.totalorder %s22, 0
      %p168 = por %p166, %p167
      %p169 = scmp.ne.s32.totalorder %s161, %s163
      %p170 = scmp.eq.s32.totalorder %s27, 1
      %p171 = por %p169, %p170
      %p172 = scmp.ne.s32.totalorder %s163, %s164
      %p173 = scmp.eq.s32.totalorder %s27, 0
      %p174 = por %p172, %p173
      %p175 = scmp.ne.s32.totalorder %s163, %s164
      %p176 = scmp.eq.s32.totalorder %s28, 1
      %p177 = por %p175, %p176
      %p179 = scmp.ne.s32.totalorder %s164, %s178
      %p180 = scmp.eq.s32.totalorder %s28, 0
      %p181 = por %p179, %p180
      %s183 = sadd.s32 %s182, 1
      %p186 = scmp.eq.s32.totalorder %s22, 1
      %p187 = scmp.ne.s32.totalorder %s182, %s184
      %p188 = scmp.eq.s32.totalorder %s22, 0
      %p189 = por %p187, %p188
      %p190 = scmp.ne.s32.totalorder %s182, %s184
      %p191 = scmp.eq.s32.totalorder %s27, 1
      %p192 = por %p190, %p191
      %p193 = scmp.ne.s32.totalorder %s184, %s185
      %p194 = scmp.eq.s32.totalorder %s27, 0
      %p195 = por %p193, %p194
      %p196 = scmp.ne.s32.totalorder %s184, %s185
      %p197 = scmp.eq.s32.totalorder %s28, 1
      %p198 = por %p196, %p197
      %p200 = scmp.ne.s32.totalorder %s185, %s199
      %p201 = scmp.eq.s32.totalorder %s28, 0
      %p202 = por %p200, %p201
      %s203 = ssub.s32 %s22, %s29
      %p204 = scmp.eq.s32.totalorder %s203, 0
      %s206 = sadd.s32 %s205, 1
      %s207 = scalar_select %p204, %s205, %s206
      %p210 = pneg %p204
      %p211 = scmp.eq.s32.totalorder %s22, 1
      %p212 = por %p210, %p211
      %p213 = scmp.ne.s32.totalorder %s205, %s208
      %p214 = scmp.eq.s32.totalorder %s22, 0
      %p215 = por %p213, %p214
      %p216 = scmp.ne.s32.totalorder %s205, %s208
      %p217 = scmp.eq.s32.totalorder %s27, 1
      %p218 = por %p216, %p217
      %p219 = scmp.ne.s32.totalorder %s208, %s209
      %p220 = scmp.eq.s32.totalorder %s27, 0
      %p221 = por %p219, %p220
      %p222 = scmp.ne.s32.totalorder %s208, %s209
      %p223 = scmp.eq.s32.totalorder %s28, 1
      %p224 = por %p222, %p223
      %p226 = scmp.ne.s32.totalorder %s209, %s225
      %p227 = scmp.eq.s32.totalorder %s28, 0
      %p228 = por %p226, %p227
      %p229 = scmp.le.s32.totalorder 1, %s22
      %p230 = scmp.lt.s32.totalorder %s22, 3
      %p231 = pnand %p229, %p230
      %p232 = pneg %p231
      // Predicated region
      $region9: #{tpu_custom_call.1} parent=5 // pred_check
        _
      $region10: #{tpu_custom_call.1} parent=5 // pred_check_branch
        %234 = sbr.rel (%p231) target = $region12
      $region11: #{tpu_custom_call.1} parent=5 // pred_region
        %s235 = ssub.s32 %s22, 1
        // Predicated region
        $region13: #{tpu_custom_call.1} parent=11 // pred_check
          %p236 = pneg %p69
        $region14: #{tpu_custom_call.1} parent=11 // pred_check_branch
          %238 = sbr.rel (%p236) target = $region16
        $region15: #{tpu_custom_call.1} parent=11 // pred_region
          _
        $region16: #{tpu_custom_call.1} parent=11 // pred_fallthru
          _
        // Predicated region
        $region17: #{tpu_custom_call.1} parent=11 // pred_check
          %p239 = pneg %p90
        $region18: #{tpu_custom_call.1} parent=11 // pred_check_branch
          %241 = sbr.rel (%p239) target = $region20
        $region19: #{tpu_custom_call.1} parent=11 // pred_region
          _
        $region20: #{tpu_custom_call.1} parent=11 // pred_fallthru
          _
        // Predicated region
        $region21: #{tpu_custom_call.1} parent=11 // pred_check
          %p242 = pneg %p111
        $region22: #{tpu_custom_call.1} parent=11 // pred_check_branch
          %244 = sbr.rel (%p242) target = $region24
        $region23: #{tpu_custom_call.1} parent=11 // pred_region
          %s246 = ssub.s32 512, 512
          %247 = vsyncadd [#allocation6], %s246
          %s248 = sshll.u32 [#allocation5], 4
          %s249 = int_to_ptr.vmem [resolvable:$true] %s248
          %254 = dma.hbm_to_vmem [thread:$0]  %s3, 512, %s249, [#allocation6], 128, 128, 8
        $region24: #{tpu_custom_call.1} parent=11 // pred_fallthru
          _
        // Predicated region
        $region25: #{tpu_custom_call.1} parent=11 // pred_check
          %p255 = pneg %p132
        $region26: #{tpu_custom_call.1} parent=11 // pred_check_branch
          %257 = sbr.rel (%p255) target = $region28
        $region27: #{tpu_custom_call.1} parent=11 // pred_region
          _
        $region28: #{tpu_custom_call.1} parent=11 // pred_fallthru
          _
        // Predicated region
        $region29: #{tpu_custom_call.1} parent=11 // pred_check
          %p258 = pneg %p153
        $region30: #{tpu_custom_call.1} parent=11 // pred_check_branch
          %260 = sbr.rel (%p258) target = $region32
        $region31: #{tpu_custom_call.1} parent=11 // pred_region
          %s262 = ssub.s32 512, 512
          %263 = vsyncadd [#allocation6], %s262
          %s264 = sshll.u32 [#allocation7], 4
          %s265 = int_to_ptr.vmem [resolvable:$true] %s264
          %270 = dma.hbm_to_vmem [thread:$0]  %s5, 512, %s265, [#allocation6], 128, 128, 8
        $region32: #{tpu_custom_call.1} parent=11 // pred_fallthru
          _
        // Predicated region
        $region33: #{tpu_custom_call.1} parent=11 // pred_check
          %p271 = pneg %p174
        $region34: #{tpu_custom_call.1} parent=11 // pred_check_branch
          %273 = sbr.rel (%p271) target = $region36
        $region35: #{tpu_custom_call.1} parent=11 // pred_region
          _
        $region36: #{tpu_custom_call.1} parent=11 // pred_fallthru
          _
        // Predicated region
        $region37: #{tpu_custom_call.1} parent=11 // pred_check
          %p274 = pneg %p195
        $region38: #{tpu_custom_call.1} parent=11 // pred_check_branch
          %276 = sbr.rel (%p274) target = $region40
        $region39: #{tpu_custom_call.1} parent=11 // pred_region
          %s278 = ssub.s32 512, 512
          %279 = vsyncadd [#allocation9], %s278
          %s280 = sshll.u32 [#allocation8], 4
          %s281 = int_to_ptr.vmem [resolvable:$true] %s280
          %286 = dma.hbm_to_vmem [thread:$0]  %s7, 512, %s281, [#allocation9], 128, 128, 8
        $region40: #{tpu_custom_call.1} parent=11 // pred_fallthru
          _
      $region12: #{tpu_custom_call.1} parent=5 // pred_fallthru
        _
      %p287 = scmp.lt.s32.totalorder %s22, 2
      // Predicated region
      $region41: #{tpu_custom_call.1} parent=5 // pred_check
        %p288 = pneg %p287
      $region42: #{tpu_custom_call.1} parent=5 // pred_check_branch
        %290 = sbr.rel (%p288) target = $region44
      $region43: #{tpu_custom_call.1} parent=5 // pred_region
        // Predicated region
        $region45: #{tpu_custom_call.1} parent=43 // pred_check
          %p291 = pneg %p42
        $region46: #{tpu_custom_call.1} parent=43 // pred_check_branch
          %293 = sbr.rel (%p291) target = $region48
        $region47: #{tpu_custom_call.1} parent=43 // pred_region
          %s294 = sand.u32 %s32, 1
          %s295 = scalar_lea.sflag [#allocation3], %s294
          %s296 = sand.u32 %s32, 1
          %s297 = smul.addr %s296, 64
          %s298 = scalar_lea.vmem [#allocation2], %s297
          %s299 = smul.u32 4, %s22
          %s301 = ssub.s32 1024, 1024
          %302 = vsyncadd %s295, %s301
          %s303 = smul.addr %s299, 2
          %s304 = smul.addr %s303, 128
          %s305 = scalar_lea.hbm %s0, %s304
          %s306 = sshll.u32 %s298, 4
          %s307 = int_to_ptr.vmem [resolvable:$true] %s306
          %312 = dma.hbm_to_vmem [thread:$0]  %s305, 1024, %s307, %s295, 128, 128, 8
        $region48: #{tpu_custom_call.1} parent=43 // pred_fallthru
          _
      $region44: #{tpu_custom_call.1} parent=5 // pred_fallthru
        _
      %p313 = scmp.le.s32.totalorder 1, %s22
      %p314 = scmp.lt.s32.totalorder %s22, 3
      %p315 = pnand %p313, %p314
      %p316 = pneg %p315
      // Predicated region
      $region49: #{tpu_custom_call.1} parent=5 // pred_check
        _
      $region50: #{tpu_custom_call.1} parent=5 // pred_check_branch
        %318 = sbr.rel (%p315) target = $region52
      $region51: #{tpu_custom_call.1} parent=5 // pred_region
        %s319 = ssub.s32 %s22, 1
        %s320 = sand.u32 %s35, 1
        %s321 = scalar_lea.sflag [#allocation3], %s320
        %s322 = sand.u32 %s35, 1
        %s323 = smul.addr %s322, 64
        %s324 = scalar_lea.vmem [#allocation2], %s323
        // Predicated region
        $region53: #{tpu_custom_call.1} parent=51 // pred_check
          %p325 = pneg %p48
        $region54: #{tpu_custom_call.1} parent=51 // pred_check_branch
          %327 = sbr.rel (%p325) target = $region56
        $region55: #{tpu_custom_call.1} parent=51 // pred_region
          %328 = dma.done %s321, 1024
        $region56: #{tpu_custom_call.1} parent=51 // pred_fallthru
          _
        // Predicated region
        $region57: #{tpu_custom_call.1} parent=51 // pred_check
          %p329 = pneg %p111
        $region58: #{tpu_custom_call.1} parent=51 // pred_check_branch
          %331 = sbr.rel (%p329) target = $region60
        $region59: #{tpu_custom_call.1} parent=51 // pred_region
          %332 = dma.done [#allocation6], 512
        $region60: #{tpu_custom_call.1} parent=51 // pred_fallthru
          _
        // Predicated region
        $region61: #{tpu_custom_call.1} parent=51 // pred_check
          %p333 = pneg %p153
        $region62: #{tpu_custom_call.1} parent=51 // pred_check_branch
          %335 = sbr.rel (%p333) target = $region64
        $region63: #{tpu_custom_call.1} parent=51 // pred_region
          %336 = dma.done [#allocation6], 512
        $region64: #{tpu_custom_call.1} parent=51 // pred_fallthru
          _
        // Predicated region
        $region65: #{tpu_custom_call.1} parent=51 // pred_check
          %p337 = pneg %p195
        $region66: #{tpu_custom_call.1} parent=51 // pred_check_branch
          %339 = sbr.rel (%p337) target = $region68
        $region67: #{tpu_custom_call.1} parent=51 // pred_region
          %340 = dma.done [#allocation9], 512
        $region68: #{tpu_custom_call.1} parent=51 // pred_fallthru
          _
        %s341 = sand.u32 %s35, 1
        %s342 = scalar_lea.sflag [#allocation3], %s341
        %s343 = sand.u32 %s35, 1
        %s344 = smul.addr %s343, 64
        %s345 = scalar_lea.vmem [#allocation2], %s344
        %p346 = pneg %p48
        %p347 = pneg %p45
        %p348 = pneg %p69
        %p349 = pneg %p66
        %p350 = pneg %p90
        %p351 = pneg %p87
        %p352 = pneg %p111
        %p353 = pneg %p108
        %p354 = pneg %p132
        %p355 = pneg %p129
        %p356 = pneg %p153
        %p357 = pneg %p150
        %p358 = pneg %p174
        %p359 = pneg %p171
        %p360 = pneg %p195
        %p361 = pneg %p192
        %p362 = pneg %p221
        %p363 = pneg %p218
        %s364 = sand.u32 %s208, 1
        %s365 = scalar_lea.sflag [#allocation4], %s364
        %s366 = sand.u32 %s208, 1
        %s367 = smul.addr %s366, 64
        %s368 = scalar_lea.vmem [#allocation10], %s367
        %s369 = smul.u32 4, %s27
        %s370 = smul.u32 4, %s27
        %v371 = vld [vmem:[%s324] sm:$0xff]
        %v372 = vld [vmem:[%s324 + $0x8] sm:$0xff]
        %v373 = vld [vmem:[%s324 + $0x10] sm:$0xff]
        %v374 = vld [vmem:[%s324 + $0x18] sm:$0xff]
        %v375 = vld [vmem:[%s324 + $0x20] sm:$0xff]
        %v376 = vld [vmem:[%s324 + $0x28] sm:$0xff]
        %v377 = vld [vmem:[%s324 + $0x30] sm:$0xff]
        %v378 = vld [vmem:[%s324 + $0x38] sm:$0xff]
        %vm379 = vcmask 261120
        %v380 = vsel %vm379, %v371, 0.0
        %381 = vadd.xlane.f32.xlu0 %v380
        %v382 = vpop.xlane.xlu0 %381
        %v383 = vsel %vm379, %v372, 0.0
        %384 = vadd.xlane.f32.xlu0 %v383
        %v385 = vpop.xlane.xlu0 %384
        %v386 = vsel %vm379, %v373, 0.0
        %387 = vadd.xlane.f32.xlu0 %v386
        %v388 = vpop.xlane.xlu0 %387
        %v389 = vsel %vm379, %v374, 0.0
        %390 = vadd.xlane.f32.xlu0 %v389
        %v391 = vpop.xlane.xlu0 %390
        %v392 = vsel %vm379, %v375, 0.0
        %393 = vadd.xlane.f32.xlu0 %v392
        %v394 = vpop.xlane.xlu0 %393
        %v395 = vsel %vm379, %v376, 0.0
        %396 = vadd.xlane.f32.xlu0 %v395
        %v397 = vpop.xlane.xlu0 %396
        %v398 = vsel %vm379, %v377, 0.0
        %399 = vadd.xlane.f32.xlu0 %v398
        %v400 = vpop.xlane.xlu0 %399
        %v401 = vsel %vm379, %v378, 0.0
        %402 = vadd.xlane.f32.xlu0 %v401
        %v403 = vpop.xlane.xlu0 %402
        %v404 = vrcp.pop 32.0
        %v405 = vmul.f32 %v382, %v404
        %v406 = vmul.f32 %v385, %v404
        %v407 = vmul.f32 %v388, %v404
        %v408 = vmul.f32 %v391, %v404
        %v409 = vmul.f32 %v394, %v404
        %v410 = vmul.f32 %v397, %v404
        %v411 = vmul.f32 %v400, %v404
        %v412 = vmul.f32 %v403, %v404
        %v413 = vsub.f32 %v371, %v405
        %v414 = vsub.f32 %v372, %v406
        %v415 = vsub.f32 %v373, %v407
        %v416 = vsub.f32 %v374, %v408
        %v417 = vsub.f32 %v375, %v409
        %v418 = vsub.f32 %v376, %v410
        %v419 = vsub.f32 %v377, %v411
        %v420 = vsub.f32 %v378, %v412
        %v421 = vmul.f32 %v413, %v413
        %v422 = vmul.f32 %v414, %v414
        %v423 = vmul.f32 %v415, %v415
        %v424 = vmul.f32 %v416, %v416
        %v425 = vmul.f32 %v417, %v417
        %v426 = vmul.f32 %v418, %v418
        %v427 = vmul.f32 %v419, %v419
        %v428 = vmul.f32 %v420, %v420
        %v429 = vsel %vm379, %v421, 0.0
        %430 = vadd.xlane.f32.xlu0 %v429
        %v431 = vpop.xlane.xlu0 %430
        %v432 = vsel %vm379, %v422, 0.0
        %433 = vadd.xlane.f32.xlu0 %v432
        %v434 = vpop.xlane.xlu0 %433
        %v435 = vsel %vm379, %v423, 0.0
        %436 = vadd.xlane.f32.xlu0 %v435
        %v437 = vpop.xlane.xlu0 %436
        %v438 = vsel %vm379, %v424, 0.0
        %439 = vadd.xlane.f32.xlu0 %v438
        %v440 = vpop.xlane.xlu0 %439
        %v441 = vsel %vm379, %v425, 0.0
        %442 = vadd.xlane.f32.xlu0 %v441
        %v443 = vpop.xlane.xlu0 %442
        %v444 = vsel %vm379, %v426, 0.0
        %445 = vadd.xlane.f32.xlu0 %v444
        %v446 = vpop.xlane.xlu0 %445
        %v447 = vsel %vm379, %v427, 0.0
        %448 = vadd.xlane.f32.xlu0 %v447
        %v449 = vpop.xlane.xlu0 %448
        %v450 = vsel %vm379, %v428, 0.0
        %451 = vadd.xlane.f32.xlu0 %v450
        %v452 = vpop.xlane.xlu0 %451
        %v453 = vmul.f32 %v431, %v404
        %v454 = vmul.f32 %v434, %v404
        %v455 = vmul.f32 %v437, %v404
        %v456 = vmul.f32 %v440, %v404
        %v457 = vmul.f32 %v443, %v404
        %v458 = vmul.f32 %v446, %v404
        %v459 = vmul.f32 %v449, %v404
        %v460 = vmul.f32 %v452, %v404
        %v461 = vadd.f32 %v453, 1e-05
        %v462 = vadd.f32 %v454, 1e-05
        %v463 = vadd.f32 %v455, 1e-05
        %v464 = vadd.f32 %v456, 1e-05
        %v465 = vadd.f32 %v457, 1e-05
        %v466 = vadd.f32 %v458, 1e-05
        %v467 = vadd.f32 %v459, 1e-05
        %v468 = vadd.f32 %v460, 1e-05
        %v469 = vrsqrt.pop %v461
        %v470 = vrsqrt.pop %v462
        %v471 = vrsqrt.pop %v463
        %v472 = vrsqrt.pop %v464
        %v473 = vrsqrt.pop %v465
        %v474 = vrsqrt.pop %v466
        %v475 = vrsqrt.pop %v467
        %v476 = vrsqrt.pop %v468
        %v477 = vmul.f32 %v413, %v469
        %v478 = vmul.f32 %v414, %v470
        %v479 = vmul.f32 %v415, %v471
        %v480 = vmul.f32 %v416, %v472
        %v481 = vmul.f32 %v417, %v473
        %v482 = vmul.f32 %v418, %v474
        %v483 = vmul.f32 %v419, %v475
        %v484 = vmul.f32 %v420, %v476
        %v485 = vld [vmem:[%s1] sm:$0x1]
        %v487 = vlaneseq
        %v488 = vshrl.u32 %v487, 7
        %v489 = vsub.s32 0, %v488
        %v490 = vrot.slane %v485, %v489
        %v492 = vmul.f32 %v477, %v490
        %v493 = vmul.f32 %v478, %v490
        %v494 = vmul.f32 %v479, %v490
        %v495 = vmul.f32 %v480, %v490
        %v496 = vmul.f32 %v481, %v490
        %v497 = vmul.f32 %v482, %v490
        %v498 = vmul.f32 %v483, %v490
        %v499 = vmul.f32 %v484, %v490
        %v500 = vld [vmem:[%s2] sm:$0x1]
        %v502 = vlaneseq
        %v503 = vshrl.u32 %v502, 7
        %v504 = vsub.s32 0, %v503
        %v505 = vrot.slane %v500, %v504
        %v507 = vadd.f32 %v492, %v505
        %v508 = vadd.f32 %v493, %v505
        %v509 = vadd.f32 %v494, %v505
        %v510 = vadd.f32 %v495, %v505
        %v511 = vadd.f32 %v496, %v505
        %v512 = vadd.f32 %v497, %v505
        %v513 = vadd.f32 %v498, %v505
        %v514 = vadd.f32 %v499, %v505
        %v515 = vld [vmem:[#allocation5] sm:$0xff]
        %v516 = vld [vmem:[#allocation5 + $0x8] sm:$0xff]
        %v517 = vld [vmem:[#allocation5 + $0x10] sm:$0xff]
        %v518 = vld [vmem:[#allocation5 + $0x18] sm:$0xff]
        %v519 = vld [vmem:[%s4] sm:$0x1]
        %v521 = vlaneseq
        %v522 = vshrl.u32 %v521, 7
        %v523 = vsub.s32 0, %v522
        %v524 = vrot.slane %v519, %v523
        %v527 = vsel %vm379, %v507, 0
        %v530 = vsel %vm379, %v508, 0
        %v533 = vsel %vm379, %v509, 0
        %v536 = vsel %vm379, %v510, 0
        %v539 = vsel %vm379, %v511, 0
        %v542 = vsel %vm379, %v512, 0
        %v545 = vsel %vm379, %v513, 0
        %v548 = vsel %vm379, %v514, 0
        %550 = vmatprep.subr.mxu0 0.0
        %551 = vmatpush1.msra.mxu0 0.0
        %552 = vmatprep.subr.mxu0 0.0
        %553 = vmatpush1.msra.mxu0 0.0
        %554 = vmatprep.subr.mxu0 0.0
        %555 = vmatpush1.msra.mxu0 0.0
        %556 = vmatprep.subr.mxu0 0.0
        %557 = vmatpush1.msra.mxu0 0.0
        %558 = vmatprep.subr.mxu0 0.0
        %559 = vmatpush1.msra.mxu0 0.0
        %560 = vmatprep.subr.mxu0 0.0
        %561 = vmatpush1.msra.mxu0 0.0
        %562 = vmatprep.subr.mxu0 0.0
        %563 = vmatpush1.msra.mxu0 0.0
        %564 = vmatprep.subr.mxu0 0.0
        %565 = vmatpush1.msra.mxu0 0.0
        %566 = vmatprep.subr.mxu0 0.0
        %567 = vmatpush1.msra.mxu0 0.0
        %568 = vmatprep.subr.mxu0 0.0
        %569 = vmatpush1.msra.mxu0 0.0
        %570 = vmatprep.subr.mxu0 0.0
        %571 = vmatpush1.msra.mxu0 0.0
        %572 = vmatprep.subr.mxu0 0.0
        %573 = vmatpush1.msra.mxu0 0.0
        %574 = vmatprep.subr.mxu0 0.0
        %v575 = vand.u32 %v518, 4294901760
        %576 = vmatpush1.msra.mxu0 %v575
        %577 = vmatprep.subr.mxu0 0.0
        %v578 = vand.u32 %v517, 4294901760
        %579 = vmatpush1.msra.mxu0 %v578
        %580 = vmatprep.subr.mxu0 0.0
        %v581 = vand.u32 %v516, 4294901760
        %582 = vmatpush1.msra.mxu0 %v581
        %583 = vmatprep.subr.mxu0 0.0
        %v584 = vand.u32 %v515, 4294901760
        %585 = vmatpush1.msra.mxu0 %v584
        %586 = vmatprep.subr.mxu0 0.0
        %587 = vmatpush2.msra.mxu0 0.0
        %588 = vmatprep.subr.mxu0 0.0
        %589 = vmatpush2.msra.mxu0 0.0
        %590 = vmatprep.subr.mxu0 0.0
        %591 = vmatpush2.msra.mxu0 0.0
        %592 = vmatprep.subr.mxu0 0.0
        %593 = vmatpush2.msra.mxu0 0.0
        %594 = vmatprep.subr.mxu0 0.0
        %595 = vmatpush2.msra.mxu0 0.0
        %596 = vmatprep.subr.mxu0 0.0
        %597 = vmatpush2.msra.mxu0 0.0
        %598 = vmatprep.subr.mxu0 0.0
        %599 = vmatpush2.msra.mxu0 0.0
        %600 = vmatprep.subr.mxu0 0.0
        %601 = vmatpush2.msra.mxu0 0.0
        %602 = vmatprep.subr.mxu0 0.0
        %603 = vmatpush2.msra.mxu0 0.0
        %604 = vmatprep.subr.mxu0 0.0
        %605 = vmatpush2.msra.mxu0 0.0
        %606 = vmatprep.subr.mxu0 0.0
        %607 = vmatpush2.msra.mxu0 0.0
        %608 = vmatprep.subr.mxu0 0.0
        %609 = vmatpush2.msra.mxu0 0.0
        %610 = vmatprep.subr.mxu0 0.0
        %611 = vmatpush2.msra.mxu0 0.0
        %612 = vmatprep.subr.mxu0 0.0
        %613 = vmatpush2.msra.mxu0 0.0
        %614 = vmatprep.subr.mxu0 0.0
        %615 = vmatpush2.msra.mxu0 0.0
        %616 = vmatprep.subr.mxu0 0.0
        %617 = vmatpush2.msra.mxu0 0.0
        %618 = vmatprep.mubr.f32.mxu0 0.0
        %v619 = vand.u32 %v527, 4294901760
        %v620 = vsub.f32 %v527, %v619
        %v621 = vand.u32 %v620, 4294901760
        %v622 = vsub.f32 %v620, %v621
        %v623 = vand.u32 %v622, 4294901760
        %624 = vmatmul.mubr.f32.gmra.mxu0 %v623
        %v625 = vpop.f32.mrf.mxu0
        %v626 = vadd.f32 %v524, %v625
        %v627 = vpop.f32.mrf.mxu0
        %628 = vmatprep.mubr.f32.mxu0 0.0
        %v629 = vand.u32 %v530, 4294901760
        %v630 = vsub.f32 %v530, %v629
        %v631 = vand.u32 %v630, 4294901760
        %v632 = vsub.f32 %v630, %v631
        %v633 = vand.u32 %v632, 4294901760
        %634 = vmatmul.mubr.f32.gmra.mxu0 %v633
        %v635 = vpop.f32.mrf.mxu0
        %v636 = vadd.f32 %v524, %v635
        %v637 = vpop.f32.mrf.mxu0
        %638 = vmatprep.mubr.f32.mxu0 0.0
        %v639 = vand.u32 %v533, 4294901760
        %v640 = vsub.f32 %v533, %v639
        %v641 = vand.u32 %v640, 4294901760
        %v642 = vsub.f32 %v640, %v641
        %v643 = vand.u32 %v642, 4294901760
        %644 = vmatmul.mubr.f32.gmra.mxu0 %v643
        %v645 = vpop.f32.mrf.mxu0
        %v646 = vadd.f32 %v524, %v645
        %v647 = vpop.f32.mrf.mxu0
        %648 = vmatprep.mubr.f32.mxu0 0.0
        %v649 = vand.u32 %v536, 4294901760
        %v650 = vsub.f32 %v536, %v649
        %v651 = vand.u32 %v650, 4294901760
        %v652 = vsub.f32 %v650, %v651
        %v653 = vand.u32 %v652, 4294901760
        %654 = vmatmul.mubr.f32.gmra.mxu0 %v653
        %v655 = vpop.f32.mrf.mxu0
        %v656 = vadd.f32 %v524, %v655
        %v657 = vpop.f32.mrf.mxu0
        %658 = vmatprep.mubr.f32.mxu0 0.0
        %v659 = vand.u32 %v539, 4294901760
        %v660 = vsub.f32 %v539, %v659
        %v661 = vand.u32 %v660, 4294901760
        %v662 = vsub.f32 %v660, %v661
        %v663 = vand.u32 %v662, 4294901760
        %664 = vmatmul.mubr.f32.gmra.mxu0 %v663
        %v665 = vpop.f32.mrf.mxu0
        %v666 = vadd.f32 %v524, %v665
        %v667 = vpop.f32.mrf.mxu0
        %668 = vmatprep.mubr.f32.mxu0 0.0
        %v669 = vand.u32 %v542, 4294901760
        %v670 = vsub.f32 %v542, %v669
        %v671 = vand.u32 %v670, 4294901760
        %v672 = vsub.f32 %v670, %v671
        %v673 = vand.u32 %v672, 4294901760
        %674 = vmatmul.mubr.f32.gmra.mxu0 %v673
        %v675 = vpop.f32.mrf.mxu0
        %v676 = vadd.f32 %v524, %v675
        %v677 = vpop.f32.mrf.mxu0
        %678 = vmatprep.mubr.f32.mxu0 0.0
        %v679 = vand.u32 %v545, 4294901760
        %v680 = vsub.f32 %v545, %v679
        %v681 = vand.u32 %v680, 4294901760
        %v682 = vsub.f32 %v680, %v681
        %v683 = vand.u32 %v682, 4294901760
        %684 = vmatmul.mubr.f32.gmra.mxu0 %v683
        %v685 = vpop.f32.mrf.mxu0
        %v686 = vadd.f32 %v524, %v685
        %v687 = vpop.f32.mrf.mxu0
        %688 = vmatprep.mubr.f32.mxu0 0.0
        %v689 = vand.u32 %v548, 4294901760
        %v690 = vsub.f32 %v548, %v689
        %v691 = vand.u32 %v690, 4294901760
        %v692 = vsub.f32 %v690, %v691
        %v693 = vand.u32 %v692, 4294901760
        %694 = vmatmul.mubr.f32.gmra.mxu0 %v693
        %v695 = vpop.f32.mrf.mxu0
        %v696 = vadd.f32 %v524, %v695
        %v697 = vpop.f32.mrf.mxu0
        %698 = vdwg.mxu0
        %699 = vmatprep.subr.mxu0 0.0
        %700 = vmatpush1.msra.mxu0 0.0
        %701 = vmatprep.subr.mxu0 0.0
        %702 = vmatpush1.msra.mxu0 0.0
        %703 = vmatprep.subr.mxu0 0.0
        %704 = vmatpush1.msra.mxu0 0.0
        %705 = vmatprep.subr.mxu0 0.0
        %706 = vmatpush1.msra.mxu0 0.0
        %707 = vmatprep.subr.mxu0 0.0
        %708 = vmatpush1.msra.mxu0 0.0
        %709 = vmatprep.subr.mxu0 0.0
        %710 = vmatpush1.msra.mxu0 0.0
        %711 = vmatprep.subr.mxu0 0.0
        %712 = vmatpush1.msra.mxu0 0.0
        %713 = vmatprep.subr.mxu0 0.0
        %714 = vmatpush1.msra.mxu0 0.0
        %715 = vmatprep.subr.mxu0 0.0
        %716 = vmatpush1.msra.mxu0 0.0
        %717 = vmatprep.subr.mxu0 0.0
        %718 = vmatpush1.msra.mxu0 0.0
        %719 = vmatprep.subr.mxu0 0.0
        %720 = vmatpush1.msra.mxu0 0.0
        %721 = vmatprep.subr.mxu0 0.0
        %722 = vmatpush1.msra.mxu0 0.0
        %723 = vmatprep.subr.mxu0 0.0
        %v724 = vand.u32 %v518, 4294901760
        %v725 = vsub.f32 %v518, %v724
        %v726 = vand.u32 %v725, 4294901760
        %v727 = vsub.f32 %v725, %v726
        %v728 = vand.u32 %v727, 4294901760
        %729 = vmatpush1.msra.mxu0 %v728
        %730 = vmatprep.subr.mxu0 0.0
        %v731 = vand.u32 %v517, 4294901760
        %v732 = vsub.f32 %v517, %v731
        %v733 = vand.u32 %v732, 4294901760
        %v734 = vsub.f32 %v732, %v733
        %v735 = vand.u32 %v734, 4294901760
        %736 = vmatpush1.msra.mxu0 %v735
        %737 = vmatprep.subr.mxu0 0.0
        %v738 = vand.u32 %v516, 4294901760
        %v739 = vsub.f32 %v516, %v738
        %v740 = vand.u32 %v739, 4294901760
        %v741 = vsub.f32 %v739, %v740
        %v742 = vand.u32 %v741, 4294901760
        %743 = vmatpush1.msra.mxu0 %v742
        %744 = vmatprep.subr.mxu0 0.0
        %v745 = vand.u32 %v515, 4294901760
        %v746 = vsub.f32 %v515, %v745
        %v747 = vand.u32 %v746, 4294901760
        %v748 = vsub.f32 %v746, %v747
        %v749 = vand.u32 %v748, 4294901760
        %750 = vmatpush1.msra.mxu0 %v749
        %751 = vmatprep.subr.mxu0 0.0
        %752 = vmatpush2.msra.mxu0 0.0
        %753 = vmatprep.subr.mxu0 0.0
        %754 = vmatpush2.msra.mxu0 0.0
        %755 = vmatprep.subr.mxu0 0.0
        %756 = vmatpush2.msra.mxu0 0.0
        %757 = vmatprep.subr.mxu0 0.0
        %758 = vmatpush2.msra.mxu0 0.0
        %759 = vmatprep.subr.mxu0 0.0
        %760 = vmatpush2.msra.mxu0 0.0
        %761 = vmatprep.subr.mxu0 0.0
        %762 = vmatpush2.msra.mxu0 0.0
        %763 = vmatprep.subr.mxu0 0.0
        %764 = vmatpush2.msra.mxu0 0.0
        %765 = vmatprep.subr.mxu0 0.0
        %766 = vmatpush2.msra.mxu0 0.0
        %767 = vmatprep.subr.mxu0 0.0
        %768 = vmatpush2.msra.mxu0 0.0
        %769 = vmatprep.subr.mxu0 0.0
        %770 = vmatpush2.msra.mxu0 0.0
        %771 = vmatprep.subr.mxu0 0.0
        %772 = vmatpush2.msra.mxu0 0.0
        %773 = vmatprep.subr.mxu0 0.0
        %774 = vmatpush2.msra.mxu0 0.0
        %775 = vmatprep.subr.mxu0 0.0
        %776 = vmatpush2.msra.mxu0 0.0
        %777 = vmatprep.subr.mxu0 0.0
        %778 = vmatpush2.msra.mxu0 0.0
        %779 = vmatprep.subr.mxu0 0.0
        %780 = vmatpush2.msra.mxu0 0.0
        %781 = vmatprep.subr.mxu0 0.0
        %782 = vmatpush2.msra.mxu0 0.0
        %783 = vmatprep.mubr.f32.mxu0 0.0
        %v784 = vand.u32 %v527, 4294901760
        %785 = vmatmul.mubr.f32.gmra.mxu0 %v784
        %v786 = vpop.f32.mrf.mxu0
        %v787 = vadd.f32 %v626, %v786
        %v788 = vpop.f32.mrf.mxu0
        %789 = vmatprep.mubr.f32.mxu0 0.0
        %v790 = vand.u32 %v530, 4294901760
        %791 = vmatmul.mubr.f32.gmra.mxu0 %v790
        %v792 = vpop.f32.mrf.mxu0
        %v793 = vadd.f32 %v636, %v792
        %v794 = vpop.f32.mrf.mxu0
        %795 = vmatprep.mubr.f32.mxu0 0.0
        %v796 = vand.u32 %v533, 4294901760
        %797 = vmatmul.mubr.f32.gmra.mxu0 %v796
        %v798 = vpop.f32.mrf.mxu0
        %v799 = vadd.f32 %v646, %v798
        %v800 = vpop.f32.mrf.mxu0
        %801 = vmatprep.mubr.f32.mxu0 0.0
        %v802 = vand.u32 %v536, 4294901760
        %803 = vmatmul.mubr.f32.gmra.mxu0 %v802
        %v804 = vpop.f32.mrf.mxu0
        %v805 = vadd.f32 %v656, %v804
        %v806 = vpop.f32.mrf.mxu0
        %807 = vmatprep.mubr.f32.mxu0 0.0
        %v808 = vand.u32 %v539, 4294901760
        %809 = vmatmul.mubr.f32.gmra.mxu0 %v808
        %v810 = vpop.f32.mrf.mxu0
        %v811 = vadd.f32 %v666, %v810
        %v812 = vpop.f32.mrf.mxu0
        %813 = vmatprep.mubr.f32.mxu0 0.0
        %v814 = vand.u32 %v542, 4294901760
        %815 = vmatmul.mubr.f32.gmra.mxu0 %v814
        %v816 = vpop.f32.mrf.mxu0
        %v817 = vadd.f32 %v676, %v816
        %v818 = vpop.f32.mrf.mxu0
        %819 = vmatprep.mubr.f32.mxu0 0.0
        %v820 = vand.u32 %v545, 4294901760
        %821 = vmatmul.mubr.f32.gmra.mxu0 %v820
        %v822 = vpop.f32.mrf.mxu0
        %v823 = vadd.f32 %v686, %v822
        %v824 = vpop.f32.mrf.mxu0
        %825 = vmatprep.mubr.f32.mxu0 0.0
        %v826 = vand.u32 %v548, 4294901760
        %827 = vmatmul.mubr.f32.gmra.mxu0 %v826
        %v828 = vpop.f32.mrf.mxu0
        %v829 = vadd.f32 %v696, %v828
        %v830 = vpop.f32.mrf.mxu0
        %831 = vdwg.mxu0
        %832 = vmatprep.subr.mxu0 0.0
        %833 = vmatpush1.msra.mxu0 0.0
        %834 = vmatprep.subr.mxu0 0.0
        %835 = vmatpush1.msra.mxu0 0.0
        %836 = vmatprep.subr.mxu0 0.0
        %837 = vmatpush1.msra.mxu0 0.0
        %838 = vmatprep.subr.mxu0 0.0
        %839 = vmatpush1.msra.mxu0 0.0
        %840 = vmatprep.subr.mxu0 0.0
        %841 = vmatpush1.msra.mxu0 0.0
        %842 = vmatprep.subr.mxu0 0.0
        %843 = vmatpush1.msra.mxu0 0.0
        %844 = vmatprep.subr.mxu0 0.0
        %845 = vmatpush1.msra.mxu0 0.0
        %846 = vmatprep.subr.mxu0 0.0
        %847 = vmatpush1.msra.mxu0 0.0
        %848 = vmatprep.subr.mxu0 0.0
        %849 = vmatpush1.msra.mxu0 0.0
        %850 = vmatprep.subr.mxu0 0.0
        %851 = vmatpush1.msra.mxu0 0.0
        %852 = vmatprep.subr.mxu0 0.0
        %853 = vmatpush1.msra.mxu0 0.0
        %854 = vmatprep.subr.mxu0 0.0
        %855 = vmatpush1.msra.mxu0 0.0
        %856 = vmatprep.subr.mxu0 0.0
        %v857 = vand.u32 %v518, 4294901760
        %v858 = vsub.f32 %v518, %v857
        %859 = vmatpush1.msra.mxu0 %v858
        %860 = vmatprep.subr.mxu0 0.0
        %v861 = vand.u32 %v517, 4294901760
        %v862 = vsub.f32 %v517, %v861
        %863 = vmatpush1.msra.mxu0 %v862
        %864 = vmatprep.subr.mxu0 0.0
        %v865 = vand.u32 %v516, 4294901760
        %v866 = vsub.f32 %v516, %v865
        %867 = vmatpush1.msra.mxu0 %v866
        %868 = vmatprep.subr.mxu0 0.0
        %v869 = vand.u32 %v515, 4294901760
        %v870 = vsub.f32 %v515, %v869
        %871 = vmatpush1.msra.mxu0 %v870
        %872 = vmatprep.subr.mxu0 0.0
        %873 = vmatpush2.msra.mxu0 0.0
        %874 = vmatprep.subr.mxu0 0.0
        %875 = vmatpush2.msra.mxu0 0.0
        %876 = vmatprep.subr.mxu0 0.0
        %877 = vmatpush2.msra.mxu0 0.0
        %878 = vmatprep.subr.mxu0 0.0
        %879 = vmatpush2.msra.mxu0 0.0
        %880 = vmatprep.subr.mxu0 0.0
        %881 = vmatpush2.msra.mxu0 0.0
        %882 = vmatprep.subr.mxu0 0.0
        %883 = vmatpush2.msra.mxu0 0.0
        %884 = vmatprep.subr.mxu0 0.0
        %885 = vmatpush2.msra.mxu0 0.0
        %886 = vmatprep.subr.mxu0 0.0
        %887 = vmatpush2.msra.mxu0 0.0
        %888 = vmatprep.subr.mxu0 0.0
        %889 = vmatpush2.msra.mxu0 0.0
        %890 = vmatprep.subr.mxu0 0.0
        %891 = vmatpush2.msra.mxu0 0.0
        %892 = vmatprep.subr.mxu0 0.0
        %893 = vmatpush2.msra.mxu0 0.0
        %894 = vmatprep.subr.mxu0 0.0
        %895 = vmatpush2.msra.mxu0 0.0
        %896 = vmatprep.subr.mxu0 0.0
        %897 = vmatpush2.msra.mxu0 0.0
        %898 = vmatprep.subr.mxu0 0.0
        %899 = vmatpush2.msra.mxu0 0.0
        %900 = vmatprep.subr.mxu0 0.0
        %901 = vmatpush2.msra.mxu0 0.0
        %902 = vmatprep.subr.mxu0 0.0
        %903 = vmatpush2.msra.mxu0 0.0
        %904 = vmatprep.mubr.f32.mxu0 0.0
        %v905 = vand.u32 %v527, 4294901760
        %v906 = vsub.f32 %v527, %v905
        %907 = vmatmul.mubr.f32.gmra.mxu0 %v906
        %v908 = vpop.f32.mrf.mxu0
        %v909 = vadd.f32 %v787, %v908
        %v910 = vpop.f32.mrf.mxu0
        %911 = vmatprep.mubr.f32.mxu0 0.0
        %v912 = vand.u32 %v530, 4294901760
        %v913 = vsub.f32 %v530, %v912
        %914 = vmatmul.mubr.f32.gmra.mxu0 %v913
        %v915 = vpop.f32.mrf.mxu0
        %v916 = vadd.f32 %v793, %v915
        %v917 = vpop.f32.mrf.mxu0
        %918 = vmatprep.mubr.f32.mxu0 0.0
        %v919 = vand.u32 %v533, 4294901760
        %v920 = vsub.f32 %v533, %v919
        %921 = vmatmul.mubr.f32.gmra.mxu0 %v920
        %v922 = vpop.f32.mrf.mxu0
        %v923 = vadd.f32 %v799, %v922
        %v924 = vpop.f32.mrf.mxu0
        %925 = vmatprep.mubr.f32.mxu0 0.0
        %v926 = vand.u32 %v536, 4294901760
        %v927 = vsub.f32 %v536, %v926
        %928 = vmatmul.mubr.f32.gmra.mxu0 %v927
        %v929 = vpop.f32.mrf.mxu0
        %v930 = vadd.f32 %v805, %v929
        %v931 = vpop.f32.mrf.mxu0
        %932 = vmatprep.mubr.f32.mxu0 0.0
        %v933 = vand.u32 %v539, 4294901760
        %v934 = vsub.f32 %v539, %v933
        %935 = vmatmul.mubr.f32.gmra.mxu0 %v934
        %v936 = vpop.f32.mrf.mxu0
        %v937 = vadd.f32 %v811, %v936
        %v938 = vpop.f32.mrf.mxu0
        %939 = vmatprep.mubr.f32.mxu0 0.0
        %v940 = vand.u32 %v542, 4294901760
        %v941 = vsub.f32 %v542, %v940
        %942 = vmatmul.mubr.f32.gmra.mxu0 %v941
        %v943 = vpop.f32.mrf.mxu0
        %v944 = vadd.f32 %v817, %v943
        %v945 = vpop.f32.mrf.mxu0
        %946 = vmatprep.mubr.f32.mxu0 0.0
        %v947 = vand.u32 %v545, 4294901760
        %v948 = vsub.f32 %v545, %v947
        %949 = vmatmul.mubr.f32.gmra.mxu0 %v948
        %v950 = vpop.f32.mrf.mxu0
        %v951 = vadd.f32 %v823, %v950
        %v952 = vpop.f32.mrf.mxu0
        %953 = vmatprep.mubr.f32.mxu0 0.0
        %v954 = vand.u32 %v548, 4294901760
        %v955 = vsub.f32 %v548, %v954
        %956 = vmatmul.mubr.f32.gmra.mxu0 %v955
        %v957 = vpop.f32.mrf.mxu0
        %v958 = vadd.f32 %v829, %v957
        %v959 = vpop.f32.mrf.mxu0
        %960 = vdwg.mxu0
        %961 = vmatprep.subr.mxu0 0.0
        %962 = vmatpush1.msra.mxu0 0.0
        %963 = vmatprep.subr.mxu0 0.0
        %964 = vmatpush1.msra.mxu0 0.0
        %965 = vmatprep.subr.mxu0 0.0
        %966 = vmatpush1.msra.mxu0 0.0
        %967 = vmatprep.subr.mxu0 0.0
        %968 = vmatpush1.msra.mxu0 0.0
        %969 = vmatprep.subr.mxu0 0.0
        %970 = vmatpush1.msra.mxu0 0.0
        %971 = vmatprep.subr.mxu0 0.0
        %972 = vmatpush1.msra.mxu0 0.0
        %973 = vmatprep.subr.mxu0 0.0
        %974 = vmatpush1.msra.mxu0 0.0
        %975 = vmatprep.subr.mxu0 0.0
        %976 = vmatpush1.msra.mxu0 0.0
        %977 = vmatprep.subr.mxu0 0.0
        %978 = vmatpush1.msra.mxu0 0.0
        %979 = vmatprep.subr.mxu0 0.0
        %980 = vmatpush1.msra.mxu0 0.0
        %981 = vmatprep.subr.mxu0 0.0
        %982 = vmatpush1.msra.mxu0 0.0
        %983 = vmatprep.subr.mxu0 0.0
        %984 = vmatpush1.msra.mxu0 0.0
        %985 = vmatprep.subr.mxu0 0.0
        %v986 = vand.u32 %v518, 4294901760
        %987 = vmatpush1.msra.mxu0 %v986
        %988 = vmatprep.subr.mxu0 0.0
        %v989 = vand.u32 %v517, 4294901760
        %990 = vmatpush1.msra.mxu0 %v989
        %991 = vmatprep.subr.mxu0 0.0
        %v992 = vand.u32 %v516, 4294901760
        %993 = vmatpush1.msra.mxu0 %v992
        %994 = vmatprep.subr.mxu0 0.0
        %v995 = vand.u32 %v515, 4294901760
        %996 = vmatpush1.msra.mxu0 %v995
        %997 = vmatprep.subr.mxu0 0.0
        %998 = vmatpush2.msra.mxu0 0.0
        %999 = vmatprep.subr.mxu0 0.0
        %1000 = vmatpush2.msra.mxu0 0.0
        %1001 = vmatprep.subr.mxu0 0.0
        %1002 = vmatpush2.msra.mxu0 0.0
        %1003 = vmatprep.subr.mxu0 0.0
        %1004 = vmatpush2.msra.mxu0 0.0
        %1005 = vmatprep.subr.mxu0 0.0
        %1006 = vmatpush2.msra.mxu0 0.0
        %1007 = vmatprep.subr.mxu0 0.0
        %1008 = vmatpush2.msra.mxu0 0.0
        %1009 = vmatprep.subr.mxu0 0.0
        %1010 = vmatpush2.msra.mxu0 0.0
        %1011 = vmatprep.subr.mxu0 0.0
        %1012 = vmatpush2.msra.mxu0 0.0
        %1013 = vmatprep.subr.mxu0 0.0
        %1014 = vmatpush2.msra.mxu0 0.0
        %1015 = vmatprep.subr.mxu0 0.0
        %1016 = vmatpush2.msra.mxu0 0.0
        %1017 = vmatprep.subr.mxu0 0.0
        %1018 = vmatpush2.msra.mxu0 0.0
        %1019 = vmatprep.subr.mxu0 0.0
        %1020 = vmatpush2.msra.mxu0 0.0
        %1021 = vmatprep.subr.mxu0 0.0
        %1022 = vmatpush2.msra.mxu0 0.0
        %1023 = vmatprep.subr.mxu0 0.0
        %1024 = vmatpush2.msra.mxu0 0.0
        %1025 = vmatprep.subr.mxu0 0.0
        %1026 = vmatpush2.msra.mxu0 0.0
        %1027 = vmatprep.subr.mxu0 0.0
        %1028 = vmatpush2.msra.mxu0 0.0
        %1029 = vmatprep.mubr.f32.mxu0 0.0
        %v1030 = vand.u32 %v527, 4294901760
        %v1031 = vsub.f32 %v527, %v1030
        %v1032 = vand.u32 %v1031, 4294901760
        %1033 = vmatmul.mubr.f32.gmra.mxu0 %v1032
        %v1034 = vpop.f32.mrf.mxu0
        %v1035 = vadd.f32 %v909, %v1034
        %v1036 = vpop.f32.mrf.mxu0
        %1037 = vmatprep.mubr.f32.mxu0 0.0
        %v1038 = vand.u32 %v530, 4294901760
        %v1039 = vsub.f32 %v530, %v1038
        %v1040 = vand.u32 %v1039, 4294901760
        %1041 = vmatmul.mubr.f32.gmra.mxu0 %v1040
        %v1042 = vpop.f32.mrf.mxu0
        %v1043 = vadd.f32 %v916, %v1042
        %v1044 = vpop.f32.mrf.mxu0
        %1045 = vmatprep.mubr.f32.mxu0 0.0
        %v1046 = vand.u32 %v533, 4294901760
        %v1047 = vsub.f32 %v533, %v1046
        %v1048 = vand.u32 %v1047, 4294901760
        %1049 = vmatmul.mubr.f32.gmra.mxu0 %v1048
        %v1050 = vpop.f32.mrf.mxu0
        %v1051 = vadd.f32 %v923, %v1050
        %v1052 = vpop.f32.mrf.mxu0
        %1053 = vmatprep.mubr.f32.mxu0 0.0
        %v1054 = vand.u32 %v536, 4294901760
        %v1055 = vsub.f32 %v536, %v1054
        %v1056 = vand.u32 %v1055, 4294901760
        %1057 = vmatmul.mubr.f32.gmra.mxu0 %v1056
        %v1058 = vpop.f32.mrf.mxu0
        %v1059 = vadd.f32 %v930, %v1058
        %v1060 = vpop.f32.mrf.mxu0
        %1061 = vmatprep.mubr.f32.mxu0 0.0
        %v1062 = vand.u32 %v539, 4294901760
        %v1063 = vsub.f32 %v539, %v1062
        %v1064 = vand.u32 %v1063, 4294901760
        %1065 = vmatmul.mubr.f32.gmra.mxu0 %v1064
        %v1066 = vpop.f32.mrf.mxu0
        %v1067 = vadd.f32 %v937, %v1066
        %v1068 = vpop.f32.mrf.mxu0
        %1069 = vmatprep.mubr.f32.mxu0 0.0
        %v1070 = vand.u32 %v542, 4294901760
        %v1071 = vsub.f32 %v542, %v1070
        %v1072 = vand.u32 %v1071, 4294901760
        %1073 = vmatmul.mubr.f32.gmra.mxu0 %v1072
        %v1074 = vpop.f32.mrf.mxu0
        %v1075 = vadd.f32 %v944, %v1074
        %v1076 = vpop.f32.mrf.mxu0
        %1077 = vmatprep.mubr.f32.mxu0 0.0
        %v1078 = vand.u32 %v545, 4294901760
        %v1079 = vsub.f32 %v545, %v1078
        %v1080 = vand.u32 %v1079, 4294901760
        %1081 = vmatmul.mubr.f32.gmra.mxu0 %v1080
        %v1082 = vpop.f32.mrf.mxu0
        %v1083 = vadd.f32 %v951, %v1082
        %v1084 = vpop.f32.mrf.mxu0
        %1085 = vmatprep.mubr.f32.mxu0 0.0
        %v1086 = vand.u32 %v548, 4294901760
        %v1087 = vsub.f32 %v548, %v1086
        %v1088 = vand.u32 %v1087, 4294901760
        %1089 = vmatmul.mubr.f32.gmra.mxu0 %v1088
        %v1090 = vpop.f32.mrf.mxu0
        %v1091 = vadd.f32 %v958, %v1090
        %v1092 = vpop.f32.mrf.mxu0
        %1093 = vdwg.mxu0
        %1094 = vmatprep.subr.mxu0 0.0
        %1095 = vmatpush1.msra.mxu0 0.0
        %1096 = vmatprep.subr.mxu0 0.0
        %1097 = vmatpush1.msra.mxu0 0.0
        %1098 = vmatprep.subr.mxu0 0.0
        %1099 = vmatpush1.msra.mxu0 0.0
        %1100 = vmatprep.subr.mxu0 0.0
        %1101 = vmatpush1.msra.mxu0 0.0
        %1102 = vmatprep.subr.mxu0 0.0
        %1103 = vmatpush1.msra.mxu0 0.0
        %1104 = vmatprep.subr.mxu0 0.0
        %1105 = vmatpush1.msra.mxu0 0.0
        %1106 = vmatprep.subr.mxu0 0.0
        %1107 = vmatpush1.msra.mxu0 0.0
        %1108 = vmatprep.subr.mxu0 0.0
        %1109 = vmatpush1.msra.mxu0 0.0
        %1110 = vmatprep.subr.mxu0 0.0
        %1111 = vmatpush1.msra.mxu0 0.0
        %1112 = vmatprep.subr.mxu0 0.0
        %1113 = vmatpush1.msra.mxu0 0.0
        %1114 = vmatprep.subr.mxu0 0.0
        %1115 = vmatpush1.msra.mxu0 0.0
        %1116 = vmatprep.subr.mxu0 0.0
        %1117 = vmatpush1.msra.mxu0 0.0
        %1118 = vmatprep.subr.mxu0 0.0
        %v1119 = vand.u32 %v518, 4294901760
        %v1120 = vsub.f32 %v518, %v1119
        %v1121 = vand.u32 %v1120, 4294901760
        %1122 = vmatpush1.msra.mxu0 %v1121
        %1123 = vmatprep.subr.mxu0 0.0
        %v1124 = vand.u32 %v517, 4294901760
        %v1125 = vsub.f32 %v517, %v1124
        %v1126 = vand.u32 %v1125, 4294901760
        %1127 = vmatpush1.msra.mxu0 %v1126
        %1128 = vmatprep.subr.mxu0 0.0
        %v1129 = vand.u32 %v516, 4294901760
        %v1130 = vsub.f32 %v516, %v1129
        %v1131 = vand.u32 %v1130, 4294901760
        %1132 = vmatpush1.msra.mxu0 %v1131
        %1133 = vmatprep.subr.mxu0 0.0
        %v1134 = vand.u32 %v515, 4294901760
        %v1135 = vsub.f32 %v515, %v1134
        %v1136 = vand.u32 %v1135, 4294901760
        %1137 = vmatpush1.msra.mxu0 %v1136
        %1138 = vmatprep.subr.mxu0 0.0
        %1139 = vmatpush2.msra.mxu0 0.0
        %1140 = vmatprep.subr.mxu0 0.0
        %1141 = vmatpush2.msra.mxu0 0.0
        %1142 = vmatprep.subr.mxu0 0.0
        %1143 = vmatpush2.msra.mxu0 0.0
        %1144 = vmatprep.subr.mxu0 0.0
        %1145 = vmatpush2.msra.mxu0 0.0
        %1146 = vmatprep.subr.mxu0 0.0
        %1147 = vmatpush2.msra.mxu0 0.0
        %1148 = vmatprep.subr.mxu0 0.0
        %1149 = vmatpush2.msra.mxu0 0.0
        %1150 = vmatprep.subr.mxu0 0.0
        %1151 = vmatpush2.msra.mxu0 0.0
        %1152 = vmatprep.subr.mxu0 0.0
        %1153 = vmatpush2.msra.mxu0 0.0
        %1154 = vmatprep.subr.mxu0 0.0
        %1155 = vmatpush2.msra.mxu0 0.0
        %1156 = vmatprep.subr.mxu0 0.0
        %1157 = vmatpush2.msra.mxu0 0.0
        %1158 = vmatprep.subr.mxu0 0.0
        %1159 = vmatpush2.msra.mxu0 0.0
        %1160 = vmatprep.subr.mxu0 0.0
        %1161 = vmatpush2.msra.mxu0 0.0
        %1162 = vmatprep.subr.mxu0 0.0
        %1163 = vmatpush2.msra.mxu0 0.0
        %1164 = vmatprep.subr.mxu0 0.0
        %1165 = vmatpush2.msra.mxu0 0.0
        %1166 = vmatprep.subr.mxu0 0.0
        %1167 = vmatpush2.msra.mxu0 0.0
        %1168 = vmatprep.subr.mxu0 0.0
        %1169 = vmatpush2.msra.mxu0 0.0
        %1170 = vmatprep.mubr.f32.mxu0 0.0
        %v1171 = vand.u32 %v527, 4294901760
        %1172 = vmatmul.mubr.f32.gmra.mxu0 %v1171
        %v1173 = vpop.f32.mrf.mxu0
        %v1174 = vadd.f32 %v1035, %v1173
        %v1175 = vpop.f32.mrf.mxu0
        %1176 = vmatprep.mubr.f32.mxu0 0.0
        %v1177 = vand.u32 %v530, 4294901760
        %1178 = vmatmul.mubr.f32.gmra.mxu0 %v1177
        %v1179 = vpop.f32.mrf.mxu0
        %v1180 = vadd.f32 %v1043, %v1179
        %v1181 = vpop.f32.mrf.mxu0
        %1182 = vmatprep.mubr.f32.mxu0 0.0
        %v1183 = vand.u32 %v533, 4294901760
        %1184 = vmatmul.mubr.f32.gmra.mxu0 %v1183
        %v1185 = vpop.f32.mrf.mxu0
        %v1186 = vadd.f32 %v1051, %v1185
        %v1187 = vpop.f32.mrf.mxu0
        %1188 = vmatprep.mubr.f32.mxu0 0.0
        %v1189 = vand.u32 %v536, 4294901760
        %1190 = vmatmul.mubr.f32.gmra.mxu0 %v1189
        %v1191 = vpop.f32.mrf.mxu0
        %v1192 = vadd.f32 %v1059, %v1191
        %v1193 = vpop.f32.mrf.mxu0
        %1194 = vmatprep.mubr.f32.mxu0 0.0
        %v1195 = vand.u32 %v539, 4294901760
        %1196 = vmatmul.mubr.f32.gmra.mxu0 %v1195
        %v1197 = vpop.f32.mrf.mxu0
        %v1198 = vadd.f32 %v1067, %v1197
        %v1199 = vpop.f32.mrf.mxu0
        %1200 = vmatprep.mubr.f32.mxu0 0.0
        %v1201 = vand.u32 %v542, 4294901760
        %1202 = vmatmul.mubr.f32.gmra.mxu0 %v1201
        %v1203 = vpop.f32.mrf.mxu0
        %v1204 = vadd.f32 %v1075, %v1203
        %v1205 = vpop.f32.mrf.mxu0
        %1206 = vmatprep.mubr.f32.mxu0 0.0
        %v1207 = vand.u32 %v545, 4294901760
        %1208 = vmatmul.mubr.f32.gmra.mxu0 %v1207
        %v1209 = vpop.f32.mrf.mxu0
        %v1210 = vadd.f32 %v1083, %v1209
        %v1211 = vpop.f32.mrf.mxu0
        %1212 = vmatprep.mubr.f32.mxu0 0.0
        %v1213 = vand.u32 %v548, 4294901760
        %1214 = vmatmul.mubr.f32.gmra.mxu0 %v1213
        %v1215 = vpop.f32.mrf.mxu0
        %v1216 = vadd.f32 %v1091, %v1215
        %v1217 = vpop.f32.mrf.mxu0
        %1218 = vdwg.mxu0
        %1219 = vmatprep.subr.mxu0 0.0
        %1220 = vmatpush1.msra.mxu0 0.0
        %1221 = vmatprep.subr.mxu0 0.0
        %1222 = vmatpush1.msra.mxu0 0.0
        %1223 = vmatprep.subr.mxu0 0.0
        %1224 = vmatpush1.msra.mxu0 0.0
        %1225 = vmatprep.subr.mxu0 0.0
        %1226 = vmatpush1.msra.mxu0 0.0
        %1227 = vmatprep.subr.mxu0 0.0
        %1228 = vmatpush1.msra.mxu0 0.0
        %1229 = vmatprep.subr.mxu0 0.0
        %1230 = vmatpush1.msra.mxu0 0.0
        %1231 = vmatprep.subr.mxu0 0.0
        %1232 = vmatpush1.msra.mxu0 0.0
        %1233 = vmatprep.subr.mxu0 0.0
        %1234 = vmatpush1.msra.mxu0 0.0
        %1235 = vmatprep.subr.mxu0 0.0
        %1236 = vmatpush1.msra.mxu0 0.0
        %1237 = vmatprep.subr.mxu0 0.0
        %1238 = vmatpush1.msra.mxu0 0.0
        %1239 = vmatprep.subr.mxu0 0.0
        %1240 = vmatpush1.msra.mxu0 0.0
        %1241 = vmatprep.subr.mxu0 0.0
        %1242 = vmatpush1.msra.mxu0 0.0
        %1243 = vmatprep.subr.mxu0 0.0
        %v1244 = vand.u32 %v518, 4294901760
        %1245 = vmatpush1.msra.mxu0 %v1244
        %1246 = vmatprep.subr.mxu0 0.0
        %v1247 = vand.u32 %v517, 4294901760
        %1248 = vmatpush1.msra.mxu0 %v1247
        %1249 = vmatprep.subr.mxu0 0.0
        %v1250 = vand.u32 %v516, 4294901760
        %1251 = vmatpush1.msra.mxu0 %v1250
        %1252 = vmatprep.subr.mxu0 0.0
        %v1253 = vand.u32 %v515, 4294901760
        %1254 = vmatpush1.msra.mxu0 %v1253
        %1255 = vmatprep.subr.mxu0 0.0
        %1256 = vmatpush2.msra.mxu0 0.0
        %1257 = vmatprep.subr.mxu0 0.0
        %1258 = vmatpush2.msra.mxu0 0.0
        %1259 = vmatprep.subr.mxu0 0.0
        %1260 = vmatpush2.msra.mxu0 0.0
        %1261 = vmatprep.subr.mxu0 0.0
        %1262 = vmatpush2.msra.mxu0 0.0
        %1263 = vmatprep.subr.mxu0 0.0
        %1264 = vmatpush2.msra.mxu0 0.0
        %1265 = vmatprep.subr.mxu0 0.0
        %1266 = vmatpush2.msra.mxu0 0.0
        %1267 = vmatprep.subr.mxu0 0.0
        %1268 = vmatpush2.msra.mxu0 0.0
        %1269 = vmatprep.subr.mxu0 0.0
        %1270 = vmatpush2.msra.mxu0 0.0
        %1271 = vmatprep.subr.mxu0 0.0
        %1272 = vmatpush2.msra.mxu0 0.0
        %1273 = vmatprep.subr.mxu0 0.0
        %1274 = vmatpush2.msra.mxu0 0.0
        %1275 = vmatprep.subr.mxu0 0.0
        %1276 = vmatpush2.msra.mxu0 0.0
        %1277 = vmatprep.subr.mxu0 0.0
        %1278 = vmatpush2.msra.mxu0 0.0
        %1279 = vmatprep.subr.mxu0 0.0
        %1280 = vmatpush2.msra.mxu0 0.0
        %1281 = vmatprep.subr.mxu0 0.0
        %1282 = vmatpush2.msra.mxu0 0.0
        %1283 = vmatprep.subr.mxu0 0.0
        %1284 = vmatpush2.msra.mxu0 0.0
        %1285 = vmatprep.subr.mxu0 0.0
        %1286 = vmatpush2.msra.mxu0 0.0
        %1287 = vmatprep.mubr.f32.mxu0 0.0
        %v1288 = vand.u32 %v527, 4294901760
        %1289 = vmatmul.mubr.f32.gmra.mxu0 %v1288
        %v1290 = vpop.f32.mrf.mxu0
        %v1291 = vadd.f32 %v1174, %v1290
        %v1292 = vpop.f32.mrf.mxu0
        %1293 = vmatprep.mubr.f32.mxu0 0.0
        %v1294 = vand.u32 %v530, 4294901760
        %1295 = vmatmul.mubr.f32.gmra.mxu0 %v1294
        %v1296 = vpop.f32.mrf.mxu0
        %v1297 = vadd.f32 %v1180, %v1296
        %v1298 = vpop.f32.mrf.mxu0
        %1299 = vmatprep.mubr.f32.mxu0 0.0
        %v1300 = vand.u32 %v533, 4294901760
        %1301 = vmatmul.mubr.f32.gmra.mxu0 %v1300
        %v1302 = vpop.f32.mrf.mxu0
        %v1303 = vadd.f32 %v1186, %v1302
        %v1304 = vpop.f32.mrf.mxu0
        %1305 = vmatprep.mubr.f32.mxu0 0.0
        %v1306 = vand.u32 %v536, 4294901760
        %1307 = vmatmul.mubr.f32.gmra.mxu0 %v1306
        %v1308 = vpop.f32.mrf.mxu0
        %v1309 = vadd.f32 %v1192, %v1308
        %v1310 = vpop.f32.mrf.mxu0
        %1311 = vmatprep.mubr.f32.mxu0 0.0
        %v1312 = vand.u32 %v539, 4294901760
        %1313 = vmatmul.mubr.f32.gmra.mxu0 %v1312
        %v1314 = vpop.f32.mrf.mxu0
        %v1315 = vadd.f32 %v1198, %v1314
        %v1316 = vpop.f32.mrf.mxu0
        %1317 = vmatprep.mubr.f32.mxu0 0.0
        %v1318 = vand.u32 %v542, 4294901760
        %1319 = vmatmul.mubr.f32.gmra.mxu0 %v1318
        %v1320 = vpop.f32.mrf.mxu0
        %v1321 = vadd.f32 %v1204, %v1320
        %v1322 = vpop.f32.mrf.mxu0
        %1323 = vmatprep.mubr.f32.mxu0 0.0
        %v1324 = vand.u32 %v545, 4294901760
        %1325 = vmatmul.mubr.f32.gmra.mxu0 %v1324
        %v1326 = vpop.f32.mrf.mxu0
        %v1327 = vadd.f32 %v1210, %v1326
        %v1328 = vpop.f32.mrf.mxu0
        %1329 = vmatprep.mubr.f32.mxu0 0.0
        %v1330 = vand.u32 %v548, 4294901760
        %1331 = vmatmul.mubr.f32.gmra.mxu0 %v1330
        %v1332 = vpop.f32.mrf.mxu0
        %v1333 = vadd.f32 %v1216, %v1332
        %v1334 = vpop.f32.mrf.mxu0
        %1335 = vdwg.mxu0
        %v1336 = vmul.f32 %v1291, 0.25
        %v1337 = vmul.f32 %v1297, 0.25
        %v1338 = vmul.f32 %v1303, 0.25
        %v1339 = vmul.f32 %v1309, 0.25
        %v1340 = vmul.f32 %v1315, 0.25
        %v1341 = vmul.f32 %v1321, 0.25
        %v1342 = vmul.f32 %v1327, 0.25
        %v1343 = vmul.f32 %v1333, 0.25
        %v1344 = vld [vmem:[#allocation8] sm:$0xff]
        %v1345 = vld [vmem:[#allocation8 + $0x8] sm:$0xff]
        %1348 = vrot.lane.b32.xlu0 %v1291, 96
        %v1349 = vpop.permute.xlu0 %1348
        %1350 = vrot.lane.b32.xlu0 %v1297, 96
        %v1351 = vpop.permute.xlu0 %1350
        %vm1352 = vcmask 130048
        %v1354 = vsel %vm1352, %v1336, 0
        %v1357 = vsel %vm1352, %v1337, 0
        %v1359 = vsel %vm1352, %v1349, 0
        %v1361 = vsel %vm1352, %v1351, 0
        %1363 = vmatprep.subr.mxu0 0.0
        %1364 = vmatpush1.xpose.msra.mxu0 0.0
        %1365 = vmatprep.subr.mxu0 0.0
        %1366 = vmatpush1.xpose.msra.mxu0 0.0
        %1367 = vmatprep.subr.mxu0 0.0
        %1368 = vmatpush1.xpose.msra.mxu0 0.0
        %1369 = vmatprep.subr.mxu0 0.0
        %1370 = vmatpush1.xpose.msra.mxu0 0.0
        %1371 = vmatprep.subr.mxu0 0.0
        %1372 = vmatpush1.xpose.msra.mxu0 0.0
        %1373 = vmatprep.subr.mxu0 0.0
        %1374 = vmatpush1.xpose.msra.mxu0 0.0
        %1375 = vmatprep.subr.mxu0 0.0
        %1376 = vmatpush1.xpose.msra.mxu0 0.0
        %1377 = vmatprep.subr.mxu0 0.0
        %1378 = vmatpush1.xpose.msra.mxu0 0.0
        %1379 = vmatprep.subr.mxu0 0.0
        %1380 = vmatpush1.xpose.msra.mxu0 0.0
        %1381 = vmatprep.subr.mxu0 0.0
        %1382 = vmatpush1.xpose.msra.mxu0 0.0
        %1383 = vmatprep.subr.mxu0 0.0
        %1384 = vmatpush1.xpose.msra.mxu0 0.0
        %1385 = vmatprep.subr.mxu0 0.0
        %1386 = vmatpush1.xpose.msra.mxu0 0.0
        %1387 = vmatprep.subr.mxu0 0.0
        %1388 = vmatpush1.xpose.msra.mxu0 0.0
        %1389 = vmatprep.subr.mxu0 0.0
        %1390 = vmatpush1.xpose.msra.mxu0 0.0
        %1391 = vmatprep.subr.mxu0 0.0
        %v1392 = vand.u32 %v1361, 4294901760
        %1393 = vmatpush1.xpose.msra.mxu0 %v1392
        %1394 = vmatprep.subr.mxu0 0.0
        %v1395 = vand.u32 %v1359, 4294901760
        %1396 = vmatpush1.xpose.msra.mxu0 %v1395
        %1397 = vmatprep.subr.mxu0 0.0
        %1398 = vmatpush2.xpose.msra.mxu0 0.0
        %1399 = vmatprep.subr.mxu0 0.0
        %1400 = vmatpush2.xpose.msra.mxu0 0.0
        %1401 = vmatprep.subr.mxu0 0.0
        %1402 = vmatpush2.xpose.msra.mxu0 0.0
        %1403 = vmatprep.subr.mxu0 0.0
        %1404 = vmatpush2.xpose.msra.mxu0 0.0
        %1405 = vmatprep.subr.mxu0 0.0
        %1406 = vmatpush2.xpose.msra.mxu0 0.0
        %1407 = vmatprep.subr.mxu0 0.0
        %1408 = vmatpush2.xpose.msra.mxu0 0.0
        %1409 = vmatprep.subr.mxu0 0.0
        %1410 = vmatpush2.xpose.msra.mxu0 0.0
        %1411 = vmatprep.subr.mxu0 0.0
        %1412 = vmatpush2.xpose.msra.mxu0 0.0
        %1413 = vmatprep.subr.mxu0 0.0
        %1414 = vmatpush2.xpose.msra.mxu0 0.0
        %1415 = vmatprep.subr.mxu0 0.0
        %1416 = vmatpush2.xpose.msra.mxu0 0.0
        %1417 = vmatprep.subr.mxu0 0.0
        %1418 = vmatpush2.xpose.msra.mxu0 0.0
        %1419 = vmatprep.subr.mxu0 0.0
        %1420 = vmatpush2.xpose.msra.mxu0 0.0
        %1421 = vmatprep.subr.mxu0 0.0
        %1422 = vmatpush2.xpose.msra.mxu0 0.0
        %1423 = vmatprep.subr.mxu0 0.0
        %1424 = vmatpush2.xpose.msra.mxu0 0.0
        %1425 = vmatprep.subr.mxu0 0.0
        %1426 = vmatpush2.xpose.msra.mxu0 0.0
        %1427 = vmatprep.subr.mxu0 0.0
        %1428 = vmatpush2.xpose.msra.mxu0 0.0
        %1429 = vmatprep.mubr.f32.mxu0 0.0
        %v1430 = vand.u32 %v1354, 4294901760
        %v1431 = vsub.f32 %v1354, %v1430
        %v1432 = vand.u32 %v1431, 4294901760
        %v1433 = vsub.f32 %v1431, %v1432
        %v1434 = vand.u32 %v1433, 4294901760
        %1435 = vmatmul.mubr.f32.gmra.mxu0 %v1434
        %v1436 = vpop.f32.mrf.mxu0
        %v1437 = vadd.f32 %v1344, %v1436
        %v1438 = vpop.f32.mrf.mxu0
        %1439 = vmatprep.mubr.f32.mxu0 0.0
        %v1440 = vand.u32 %v1357, 4294901760
        %v1441 = vsub.f32 %v1357, %v1440
        %v1442 = vand.u32 %v1441, 4294901760
        %v1443 = vsub.f32 %v1441, %v1442
        %v1444 = vand.u32 %v1443, 4294901760
        %1445 = vmatmul.mubr.f32.gmra.mxu0 %v1444
        %v1446 = vpop.f32.mrf.mxu0
        %v1447 = vadd.f32 %v1345, %v1446
        %v1448 = vpop.f32.mrf.mxu0
        %1449 = vdwg.mxu0
        %1450 = vmatprep.subr.mxu0 0.0
        %1451 = vmatpush1.xpose.msra.mxu0 0.0
        %1452 = vmatprep.subr.mxu0 0.0
        %1453 = vmatpush1.xpose.msra.mxu0 0.0
        %1454 = vmatprep.subr.mxu0 0.0
        %1455 = vmatpush1.xpose.msra.mxu0 0.0
        %1456 = vmatprep.subr.mxu0 0.0
        %1457 = vmatpush1.xpose.msra.mxu0 0.0
        %1458 = vmatprep.subr.mxu0 0.0
        %1459 = vmatpush1.xpose.msra.mxu0 0.0
        %1460 = vmatprep.subr.mxu0 0.0
        %1461 = vmatpush1.xpose.msra.mxu0 0.0
        %1462 = vmatprep.subr.mxu0 0.0
        %1463 = vmatpush1.xpose.msra.mxu0 0.0
        %1464 = vmatprep.subr.mxu0 0.0
        %1465 = vmatpush1.xpose.msra.mxu0 0.0
        %1466 = vmatprep.subr.mxu0 0.0
        %1467 = vmatpush1.xpose.msra.mxu0 0.0
        %1468 = vmatprep.subr.mxu0 0.0
        %1469 = vmatpush1.xpose.msra.mxu0 0.0
        %1470 = vmatprep.subr.mxu0 0.0
        %1471 = vmatpush1.xpose.msra.mxu0 0.0
        %1472 = vmatprep.subr.mxu0 0.0
        %1473 = vmatpush1.xpose.msra.mxu0 0.0
        %1474 = vmatprep.subr.mxu0 0.0
        %1475 = vmatpush1.xpose.msra.mxu0 0.0
        %1476 = vmatprep.subr.mxu0 0.0
        %1477 = vmatpush1.xpose.msra.mxu0 0.0
        %1478 = vmatprep.subr.mxu0 0.0
        %v1479 = vand.u32 %v1361, 4294901760
        %v1480 = vsub.f32 %v1361, %v1479
        %v1481 = vand.u32 %v1480, 4294901760
        %v1482 = vsub.f32 %v1480, %v1481
        %v1483 = vand.u32 %v1482, 4294901760
        %1484 = vmatpush1.xpose.msra.mxu0 %v1483
        %1485 = vmatprep.subr.mxu0 0.0
        %v1486 = vand.u32 %v1359, 4294901760
        %v1487 = vsub.f32 %v1359, %v1486
        %v1488 = vand.u32 %v1487, 4294901760
        %v1489 = vsub.f32 %v1487, %v1488
        %v1490 = vand.u32 %v1489, 4294901760
        %1491 = vmatpush1.xpose.msra.mxu0 %v1490
        %1492 = vmatprep.subr.mxu0 0.0
        %1493 = vmatpush2.xpose.msra.mxu0 0.0
        %1494 = vmatprep.subr.mxu0 0.0
        %1495 = vmatpush2.xpose.msra.mxu0 0.0
        %1496 = vmatprep.subr.mxu0 0.0
        %1497 = vmatpush2.xpose.msra.mxu0 0.0
        %1498 = vmatprep.subr.mxu0 0.0
        %1499 = vmatpush2.xpose.msra.mxu0 0.0
        %1500 = vmatprep.subr.mxu0 0.0
        %1501 = vmatpush2.xpose.msra.mxu0 0.0
        %1502 = vmatprep.subr.mxu0 0.0
        %1503 = vmatpush2.xpose.msra.mxu0 0.0
        %1504 = vmatprep.subr.mxu0 0.0
        %1505 = vmatpush2.xpose.msra.mxu0 0.0
        %1506 = vmatprep.subr.mxu0 0.0
        %1507 = vmatpush2.xpose.msra.mxu0 0.0
        %1508 = vmatprep.subr.mxu0 0.0
        %1509 = vmatpush2.xpose.msra.mxu0 0.0
        %1510 = vmatprep.subr.mxu0 0.0
        %1511 = vmatpush2.xpose.msra.mxu0 0.0
        %1512 = vmatprep.subr.mxu0 0.0
        %1513 = vmatpush2.xpose.msra.mxu0 0.0
        %1514 = vmatprep.subr.mxu0 0.0
        %1515 = vmatpush2.xpose.msra.mxu0 0.0
        %1516 = vmatprep.subr.mxu0 0.0
        %1517 = vmatpush2.xpose.msra.mxu0 0.0
        %1518 = vmatprep.subr.mxu0 0.0
        %1519 = vmatpush2.xpose.msra.mxu0 0.0
        %1520 = vmatprep.subr.mxu0 0.0
        %1521 = vmatpush2.xpose.msra.mxu0 0.0
        %1522 = vmatprep.subr.mxu0 0.0
        %1523 = vmatpush2.xpose.msra.mxu0 0.0
        %1524 = vmatprep.mubr.f32.mxu0 0.0
        %v1525 = vand.u32 %v1354, 4294901760
        %1526 = vmatmul.mubr.f32.gmra.mxu0 %v1525
        %v1527 = vpop.f32.mrf.mxu0
        %v1528 = vadd.f32 %v1437, %v1527
        %v1529 = vpop.f32.mrf.mxu0
        %1530 = vmatprep.mubr.f32.mxu0 0.0
        %v1531 = vand.u32 %v1357, 4294901760
        %1532 = vmatmul.mubr.f32.gmra.mxu0 %v1531
        %v1533 = vpop.f32.mrf.mxu0
        %v1534 = vadd.f32 %v1447, %v1533
        %v1535 = vpop.f32.mrf.mxu0
        %1536 = vdwg.mxu0
        %1537 = vmatprep.subr.mxu0 0.0
        %1538 = vmatpush1.xpose.msra.mxu0 0.0
        %1539 = vmatprep.subr.mxu0 0.0
        %1540 = vmatpush1.xpose.msra.mxu0 0.0
        %1541 = vmatprep.subr.mxu0 0.0
        %1542 = vmatpush1.xpose.msra.mxu0 0.0
        %1543 = vmatprep.subr.mxu0 0.0
        %1544 = vmatpush1.xpose.msra.mxu0 0.0
        %1545 = vmatprep.subr.mxu0 0.0
        %1546 = vmatpush1.xpose.msra.mxu0 0.0
        %1547 = vmatprep.subr.mxu0 0.0
        %1548 = vmatpush1.xpose.msra.mxu0 0.0
        %1549 = vmatprep.subr.mxu0 0.0
        %1550 = vmatpush1.xpose.msra.mxu0 0.0
        %1551 = vmatprep.subr.mxu0 0.0
        %1552 = vmatpush1.xpose.msra.mxu0 0.0
        %1553 = vmatprep.subr.mxu0 0.0
        %1554 = vmatpush1.xpose.msra.mxu0 0.0
        %1555 = vmatprep.subr.mxu0 0.0
        %1556 = vmatpush1.xpose.msra.mxu0 0.0
        %1557 = vmatprep.subr.mxu0 0.0
        %1558 = vmatpush1.xpose.msra.mxu0 0.0
        %1559 = vmatprep.subr.mxu0 0.0
        %1560 = vmatpush1.xpose.msra.mxu0 0.0
        %1561 = vmatprep.subr.mxu0 0.0
        %1562 = vmatpush1.xpose.msra.mxu0 0.0
        %1563 = vmatprep.subr.mxu0 0.0
        %1564 = vmatpush1.xpose.msra.mxu0 0.0
        %1565 = vmatprep.subr.mxu0 0.0
        %v1566 = vand.u32 %v1361, 4294901760
        %v1567 = vsub.f32 %v1361, %v1566
        %1568 = vmatpush1.xpose.msra.mxu0 %v1567
        %1569 = vmatprep.subr.mxu0 0.0
        %v1570 = vand.u32 %v1359, 4294901760
        %v1571 = vsub.f32 %v1359, %v1570
        %1572 = vmatpush1.xpose.msra.mxu0 %v1571
        %1573 = vmatprep.subr.mxu0 0.0
        %1574 = vmatpush2.xpose.msra.mxu0 0.0
        %1575 = vmatprep.subr.mxu0 0.0
        %1576 = vmatpush2.xpose.msra.mxu0 0.0
        %1577 = vmatprep.subr.mxu0 0.0
        %1578 = vmatpush2.xpose.msra.mxu0 0.0
        %1579 = vmatprep.subr.mxu0 0.0
        %1580 = vmatpush2.xpose.msra.mxu0 0.0
        %1581 = vmatprep.subr.mxu0 0.0
        %1582 = vmatpush2.xpose.msra.mxu0 0.0
        %1583 = vmatprep.subr.mxu0 0.0
        %1584 = vmatpush2.xpose.msra.mxu0 0.0
        %1585 = vmatprep.subr.mxu0 0.0
        %1586 = vmatpush2.xpose.msra.mxu0 0.0
        %1587 = vmatprep.subr.mxu0 0.0
        %1588 = vmatpush2.xpose.msra.mxu0 0.0
        %1589 = vmatprep.subr.mxu0 0.0
        %1590 = vmatpush2.xpose.msra.mxu0 0.0
        %1591 = vmatprep.subr.mxu0 0.0
        %1592 = vmatpush2.xpose.msra.mxu0 0.0
        %1593 = vmatprep.subr.mxu0 0.0
        %1594 = vmatpush2.xpose.msra.mxu0 0.0
        %1595 = vmatprep.subr.mxu0 0.0
        %1596 = vmatpush2.xpose.msra.mxu0 0.0
        %1597 = vmatprep.subr.mxu0 0.0
        %1598 = vmatpush2.xpose.msra.mxu0 0.0
        %1599 = vmatprep.subr.mxu0 0.0
        %1600 = vmatpush2.xpose.msra.mxu0 0.0
        %1601 = vmatprep.subr.mxu0 0.0
        %1602 = vmatpush2.xpose.msra.mxu0 0.0
        %1603 = vmatprep.subr.mxu0 0.0
        %1604 = vmatpush2.xpose.msra.mxu0 0.0
        %1605 = vmatprep.mubr.f32.mxu0 0.0
        %v1606 = vand.u32 %v1354, 4294901760
        %v1607 = vsub.f32 %v1354, %v1606
        %1608 = vmatmul.mubr.f32.gmra.mxu0 %v1607
        %v1609 = vpop.f32.mrf.mxu0
        %v1610 = vadd.f32 %v1528, %v1609
        %v1611 = vpop.f32.mrf.mxu0
        %1612 = vmatprep.mubr.f32.mxu0 0.0
        %v1613 = vand.u32 %v1357, 4294901760
        %v1614 = vsub.f32 %v1357, %v1613
        %1615 = vmatmul.mubr.f32.gmra.mxu0 %v1614
        %v1616 = vpop.f32.mrf.mxu0
        %v1617 = vadd.f32 %v1534, %v1616
        %v1618 = vpop.f32.mrf.mxu0
        %1619 = vdwg.mxu0
        %1620 = vmatprep.subr.mxu0 0.0
        %1621 = vmatpush1.xpose.msra.mxu0 0.0
        %1622 = vmatprep.subr.mxu0 0.0
        %1623 = vmatpush1.xpose.msra.mxu0 0.0
        %1624 = vmatprep.subr.mxu0 0.0
        %1625 = vmatpush1.xpose.msra.mxu0 0.0
        %1626 = vmatprep.subr.mxu0 0.0
        %1627 = vmatpush1.xpose.msra.mxu0 0.0
        %1628 = vmatprep.subr.mxu0 0.0
        %1629 = vmatpush1.xpose.msra.mxu0 0.0
        %1630 = vmatprep.subr.mxu0 0.0
        %1631 = vmatpush1.xpose.msra.mxu0 0.0
        %1632 = vmatprep.subr.mxu0 0.0
        %1633 = vmatpush1.xpose.msra.mxu0 0.0
        %1634 = vmatprep.subr.mxu0 0.0
        %1635 = vmatpush1.xpose.msra.mxu0 0.0
        %1636 = vmatprep.subr.mxu0 0.0
        %1637 = vmatpush1.xpose.msra.mxu0 0.0
        %1638 = vmatprep.subr.mxu0 0.0
        %1639 = vmatpush1.xpose.msra.mxu0 0.0
        %1640 = vmatprep.subr.mxu0 0.0
        %1641 = vmatpush1.xpose.msra.mxu0 0.0
        %1642 = vmatprep.subr.mxu0 0.0
        %1643 = vmatpush1.xpose.msra.mxu0 0.0
        %1644 = vmatprep.subr.mxu0 0.0
        %1645 = vmatpush1.xpose.msra.mxu0 0.0
        %1646 = vmatprep.subr.mxu0 0.0
        %1647 = vmatpush1.xpose.msra.mxu0 0.0
        %1648 = vmatprep.subr.mxu0 0.0
        %v1649 = vand.u32 %v1361, 4294901760
        %1650 = vmatpush1.xpose.msra.mxu0 %v1649
        %1651 = vmatprep.subr.mxu0 0.0
        %v1652 = vand.u32 %v1359, 4294901760
        %1653 = vmatpush1.xpose.msra.mxu0 %v1652
        %1654 = vmatprep.subr.mxu0 0.0
        %1655 = vmatpush2.xpose.msra.mxu0 0.0
        %1656 = vmatprep.subr.mxu0 0.0
        %1657 = vmatpush2.xpose.msra.mxu0 0.0
        %1658 = vmatprep.subr.mxu0 0.0
        %1659 = vmatpush2.xpose.msra.mxu0 0.0
        %1660 = vmatprep.subr.mxu0 0.0
        %1661 = vmatpush2.xpose.msra.mxu0 0.0
        %1662 = vmatprep.subr.mxu0 0.0
        %1663 = vmatpush2.xpose.msra.mxu0 0.0
        %1664 = vmatprep.subr.mxu0 0.0
        %1665 = vmatpush2.xpose.msra.mxu0 0.0
        %1666 = vmatprep.subr.mxu0 0.0
        %1667 = vmatpush2.xpose.msra.mxu0 0.0
        %1668 = vmatprep.subr.mxu0 0.0
        %1669 = vmatpush2.xpose.msra.mxu0 0.0
        %1670 = vmatprep.subr.mxu0 0.0
        %1671 = vmatpush2.xpose.msra.mxu0 0.0
        %1672 = vmatprep.subr.mxu0 0.0
        %1673 = vmatpush2.xpose.msra.mxu0 0.0
        %1674 = vmatprep.subr.mxu0 0.0
        %1675 = vmatpush2.xpose.msra.mxu0 0.0
        %1676 = vmatprep.subr.mxu0 0.0
        %1677 = vmatpush2.xpose.msra.mxu0 0.0
        %1678 = vmatprep.subr.mxu0 0.0
        %1679 = vmatpush2.xpose.msra.mxu0 0.0
        %1680 = vmatprep.subr.mxu0 0.0
        %1681 = vmatpush2.xpose.msra.mxu0 0.0
        %1682 = vmatprep.subr.mxu0 0.0
        %1683 = vmatpush2.xpose.msra.mxu0 0.0
        %1684 = vmatprep.subr.mxu0 0.0
        %1685 = vmatpush2.xpose.msra.mxu0 0.0
        %1686 = vmatprep.mubr.f32.mxu0 0.0
        %v1687 = vand.u32 %v1354, 4294901760
        %v1688 = vsub.f32 %v1354, %v1687
        %v1689 = vand.u32 %v1688, 4294901760
        %1690 = vmatmul.mubr.f32.gmra.mxu0 %v1689
        %v1691 = vpop.f32.mrf.mxu0
        %v1692 = vadd.f32 %v1610, %v1691
        %v1693 = vpop.f32.mrf.mxu0
        %1694 = vmatprep.mubr.f32.mxu0 0.0
        %v1695 = vand.u32 %v1357, 4294901760
        %v1696 = vsub.f32 %v1357, %v1695
        %v1697 = vand.u32 %v1696, 4294901760
        %1698 = vmatmul.mubr.f32.gmra.mxu0 %v1697
        %v1699 = vpop.f32.mrf.mxu0
        %v1700 = vadd.f32 %v1617, %v1699
        %v1701 = vpop.f32.mrf.mxu0
        %1702 = vdwg.mxu0
        %1703 = vmatprep.subr.mxu0 0.0
        %1704 = vmatpush1.xpose.msra.mxu0 0.0
        %1705 = vmatprep.subr.mxu0 0.0
        %1706 = vmatpush1.xpose.msra.mxu0 0.0
        %1707 = vmatprep.subr.mxu0 0.0
        %1708 = vmatpush1.xpose.msra.mxu0 0.0
        %1709 = vmatprep.subr.mxu0 0.0
        %1710 = vmatpush1.xpose.msra.mxu0 0.0
        %1711 = vmatprep.subr.mxu0 0.0
        %1712 = vmatpush1.xpose.msra.mxu0 0.0
        %1713 = vmatprep.subr.mxu0 0.0
        %1714 = vmatpush1.xpose.msra.mxu0 0.0
        %1715 = vmatprep.subr.mxu0 0.0
        %1716 = vmatpush1.xpose.msra.mxu0 0.0
        %1717 = vmatprep.subr.mxu0 0.0
        %1718 = vmatpush1.xpose.msra.mxu0 0.0
        %1719 = vmatprep.subr.mxu0 0.0
        %1720 = vmatpush1.xpose.msra.mxu0 0.0
        %1721 = vmatprep.subr.mxu0 0.0
        %1722 = vmatpush1.xpose.msra.mxu0 0.0
        %1723 = vmatprep.subr.mxu0 0.0
        %1724 = vmatpush1.xpose.msra.mxu0 0.0
        %1725 = vmatprep.subr.mxu0 0.0
        %1726 = vmatpush1.xpose.msra.mxu0 0.0
        %1727 = vmatprep.subr.mxu0 0.0
        %1728 = vmatpush1.xpose.msra.mxu0 0.0
        %1729 = vmatprep.subr.mxu0 0.0
        %1730 = vmatpush1.xpose.msra.mxu0 0.0
        %1731 = vmatprep.subr.mxu0 0.0
        %v1732 = vand.u32 %v1361, 4294901760
        %v1733 = vsub.f32 %v1361, %v1732
        %v1734 = vand.u32 %v1733, 4294901760
        %1735 = vmatpush1.xpose.msra.mxu0 %v1734
        %1736 = vmatprep.subr.mxu0 0.0
        %v1737 = vand.u32 %v1359, 4294901760
        %v1738 = vsub.f32 %v1359, %v1737
        %v1739 = vand.u32 %v1738, 4294901760
        %1740 = vmatpush1.xpose.msra.mxu0 %v1739
        %1741 = vmatprep.subr.mxu0 0.0
        %1742 = vmatpush2.xpose.msra.mxu0 0.0
        %1743 = vmatprep.subr.mxu0 0.0
        %1744 = vmatpush2.xpose.msra.mxu0 0.0
        %1745 = vmatprep.subr.mxu0 0.0
        %1746 = vmatpush2.xpose.msra.mxu0 0.0
        %1747 = vmatprep.subr.mxu0 0.0
        %1748 = vmatpush2.xpose.msra.mxu0 0.0
        %1749 = vmatprep.subr.mxu0 0.0
        %1750 = vmatpush2.xpose.msra.mxu0 0.0
        %1751 = vmatprep.subr.mxu0 0.0
        %1752 = vmatpush2.xpose.msra.mxu0 0.0
        %1753 = vmatprep.subr.mxu0 0.0
        %1754 = vmatpush2.xpose.msra.mxu0 0.0
        %1755 = vmatprep.subr.mxu0 0.0
        %1756 = vmatpush2.xpose.msra.mxu0 0.0
        %1757 = vmatprep.subr.mxu0 0.0
        %1758 = vmatpush2.xpose.msra.mxu0 0.0
        %1759 = vmatprep.subr.mxu0 0.0
        %1760 = vmatpush2.xpose.msra.mxu0 0.0
        %1761 = vmatprep.subr.mxu0 0.0
        %1762 = vmatpush2.xpose.msra.mxu0 0.0
        %1763 = vmatprep.subr.mxu0 0.0
        %1764 = vmatpush2.xpose.msra.mxu0 0.0
        %1765 = vmatprep.subr.mxu0 0.0
        %1766 = vmatpush2.xpose.msra.mxu0 0.0
        %1767 = vmatprep.subr.mxu0 0.0
        %1768 = vmatpush2.xpose.msra.mxu0 0.0
        %1769 = vmatprep.subr.mxu0 0.0
        %1770 = vmatpush2.xpose.msra.mxu0 0.0
        %1771 = vmatprep.subr.mxu0 0.0
        %1772 = vmatpush2.xpose.msra.mxu0 0.0
        %1773 = vmatprep.mubr.f32.mxu0 0.0
        %v1774 = vand.u32 %v1354, 4294901760
        %1775 = vmatmul.mubr.f32.gmra.mxu0 %v1774
        %v1776 = vpop.f32.mrf.mxu0
        %v1777 = vadd.f32 %v1692, %v1776
        %v1778 = vpop.f32.mrf.mxu0
        %1779 = vmatprep.mubr.f32.mxu0 0.0
        %v1780 = vand.u32 %v1357, 4294901760
        %1781 = vmatmul.mubr.f32.gmra.mxu0 %v1780
        %v1782 = vpop.f32.mrf.mxu0
        %v1783 = vadd.f32 %v1700, %v1782
        %v1784 = vpop.f32.mrf.mxu0
        %1785 = vdwg.mxu0
        %1786 = vmatprep.subr.mxu0 0.0
        %1787 = vmatpush1.xpose.msra.mxu0 0.0
        %1788 = vmatprep.subr.mxu0 0.0
        %1789 = vmatpush1.xpose.msra.mxu0 0.0
        %1790 = vmatprep.subr.mxu0 0.0
        %1791 = vmatpush1.xpose.msra.mxu0 0.0
        %1792 = vmatprep.subr.mxu0 0.0
        %1793 = vmatpush1.xpose.msra.mxu0 0.0
        %1794 = vmatprep.subr.mxu0 0.0
        %1795 = vmatpush1.xpose.msra.mxu0 0.0
        %1796 = vmatprep.subr.mxu0 0.0
        %1797 = vmatpush1.xpose.msra.mxu0 0.0
        %1798 = vmatprep.subr.mxu0 0.0
        %1799 = vmatpush1.xpose.msra.mxu0 0.0
        %1800 = vmatprep.subr.mxu0 0.0
        %1801 = vmatpush1.xpose.msra.mxu0 0.0
        %1802 = vmatprep.subr.mxu0 0.0
        %1803 = vmatpush1.xpose.msra.mxu0 0.0
        %1804 = vmatprep.subr.mxu0 0.0
        %1805 = vmatpush1.xpose.msra.mxu0 0.0
        %1806 = vmatprep.subr.mxu0 0.0
        %1807 = vmatpush1.xpose.msra.mxu0 0.0
        %1808 = vmatprep.subr.mxu0 0.0
        %1809 = vmatpush1.xpose.msra.mxu0 0.0
        %1810 = vmatprep.subr.mxu0 0.0
        %1811 = vmatpush1.xpose.msra.mxu0 0.0
        %1812 = vmatprep.subr.mxu0 0.0
        %1813 = vmatpush1.xpose.msra.mxu0 0.0
        %1814 = vmatprep.subr.mxu0 0.0
        %v1815 = vand.u32 %v1361, 4294901760
        %1816 = vmatpush1.xpose.msra.mxu0 %v1815
        %1817 = vmatprep.subr.mxu0 0.0
        %v1818 = vand.u32 %v1359, 4294901760
        %1819 = vmatpush1.xpose.msra.mxu0 %v1818
        %1820 = vmatprep.subr.mxu0 0.0
        %1821 = vmatpush2.xpose.msra.mxu0 0.0
        %1822 = vmatprep.subr.mxu0 0.0
        %1823 = vmatpush2.xpose.msra.mxu0 0.0
        %1824 = vmatprep.subr.mxu0 0.0
        %1825 = vmatpush2.xpose.msra.mxu0 0.0
        %1826 = vmatprep.subr.mxu0 0.0
        %1827 = vmatpush2.xpose.msra.mxu0 0.0
        %1828 = vmatprep.subr.mxu0 0.0
        %1829 = vmatpush2.xpose.msra.mxu0 0.0
        %1830 = vmatprep.subr.mxu0 0.0
        %1831 = vmatpush2.xpose.msra.mxu0 0.0
        %1832 = vmatprep.subr.mxu0 0.0
        %1833 = vmatpush2.xpose.msra.mxu0 0.0
        %1834 = vmatprep.subr.mxu0 0.0
        %1835 = vmatpush2.xpose.msra.mxu0 0.0
        %1836 = vmatprep.subr.mxu0 0.0
        %1837 = vmatpush2.xpose.msra.mxu0 0.0
        %1838 = vmatprep.subr.mxu0 0.0
        %1839 = vmatpush2.xpose.msra.mxu0 0.0
        %1840 = vmatprep.subr.mxu0 0.0
        %1841 = vmatpush2.xpose.msra.mxu0 0.0
        %1842 = vmatprep.subr.mxu0 0.0
        %1843 = vmatpush2.xpose.msra.mxu0 0.0
        %1844 = vmatprep.subr.mxu0 0.0
        %1845 = vmatpush2.xpose.msra.mxu0 0.0
        %1846 = vmatprep.subr.mxu0 0.0
        %1847 = vmatpush2.xpose.msra.mxu0 0.0
        %1848 = vmatprep.subr.mxu0 0.0
        %1849 = vmatpush2.xpose.msra.mxu0 0.0
        %1850 = vmatprep.subr.mxu0 0.0
        %1851 = vmatpush2.xpose.msra.mxu0 0.0
        %1852 = vmatprep.mubr.f32.mxu0 0.0
        %v1853 = vand.u32 %v1354, 4294901760
        %1854 = vmatmul.mubr.f32.gmra.mxu0 %v1853
        %v1855 = vpop.f32.mrf.mxu0
        %v1856 = vadd.f32 %v1777, %v1855
        %v1857 = vpop.f32.mrf.mxu0
        %1858 = vmatprep.mubr.f32.mxu0 0.0
        %v1859 = vand.u32 %v1357, 4294901760
        %1860 = vmatmul.mubr.f32.gmra.mxu0 %v1859
        %v1861 = vpop.f32.mrf.mxu0
        %v1862 = vadd.f32 %v1783, %v1861
        %v1863 = vpop.f32.mrf.mxu0
        %1864 = vdwg.mxu0
        %1867 = vrot.lane.b32.xlu0 %v1303, 96
        %v1868 = vpop.permute.xlu0 %1867
        %1869 = vrot.lane.b32.xlu0 %v1309, 96
        %v1870 = vpop.permute.xlu0 %1869
        %v1872 = vsel %vm1352, %v1338, 0
        %v1875 = vsel %vm1352, %v1339, 0
        %v1877 = vsel %vm1352, %v1868, 0
        %v1879 = vsel %vm1352, %v1870, 0
        %1881 = vmatprep.subr.mxu0 0.0
        %1882 = vmatpush1.xpose.msra.mxu0 0.0
        %1883 = vmatprep.subr.mxu0 0.0
        %1884 = vmatpush1.xpose.msra.mxu0 0.0
        %1885 = vmatprep.subr.mxu0 0.0
        %1886 = vmatpush1.xpose.msra.mxu0 0.0
        %1887 = vmatprep.subr.mxu0 0.0
        %1888 = vmatpush1.xpose.msra.mxu0 0.0
        %1889 = vmatprep.subr.mxu0 0.0
        %1890 = vmatpush1.xpose.msra.mxu0 0.0
        %1891 = vmatprep.subr.mxu0 0.0
        %1892 = vmatpush1.xpose.msra.mxu0 0.0
        %1893 = vmatprep.subr.mxu0 0.0
        %1894 = vmatpush1.xpose.msra.mxu0 0.0
        %1895 = vmatprep.subr.mxu0 0.0
        %1896 = vmatpush1.xpose.msra.mxu0 0.0
        %1897 = vmatprep.subr.mxu0 0.0
        %1898 = vmatpush1.xpose.msra.mxu0 0.0
        %1899 = vmatprep.subr.mxu0 0.0
        %1900 = vmatpush1.xpose.msra.mxu0 0.0
        %1901 = vmatprep.subr.mxu0 0.0
        %1902 = vmatpush1.xpose.msra.mxu0 0.0
        %1903 = vmatprep.subr.mxu0 0.0
        %1904 = vmatpush1.xpose.msra.mxu0 0.0
        %1905 = vmatprep.subr.mxu0 0.0
        %1906 = vmatpush1.xpose.msra.mxu0 0.0
        %1907 = vmatprep.subr.mxu0 0.0
        %1908 = vmatpush1.xpose.msra.mxu0 0.0
        %1909 = vmatprep.subr.mxu0 0.0
        %v1910 = vand.u32 %v1879, 4294901760
        %1911 = vmatpush1.xpose.msra.mxu0 %v1910
        %1912 = vmatprep.subr.mxu0 0.0
        %v1913 = vand.u32 %v1877, 4294901760
        %1914 = vmatpush1.xpose.msra.mxu0 %v1913
        %1915 = vmatprep.subr.mxu0 0.0
        %1916 = vmatpush2.xpose.msra.mxu0 0.0
        %1917 = vmatprep.subr.mxu0 0.0
        %1918 = vmatpush2.xpose.msra.mxu0 0.0
        %1919 = vmatprep.subr.mxu0 0.0
        %1920 = vmatpush2.xpose.msra.mxu0 0.0
        %1921 = vmatprep.subr.mxu0 0.0
        %1922 = vmatpush2.xpose.msra.mxu0 0.0
        %1923 = vmatprep.subr.mxu0 0.0
        %1924 = vmatpush2.xpose.msra.mxu0 0.0
        %1925 = vmatprep.subr.mxu0 0.0
        %1926 = vmatpush2.xpose.msra.mxu0 0.0
        %1927 = vmatprep.subr.mxu0 0.0
        %1928 = vmatpush2.xpose.msra.mxu0 0.0
        %1929 = vmatprep.subr.mxu0 0.0
        %1930 = vmatpush2.xpose.msra.mxu0 0.0
        %1931 = vmatprep.subr.mxu0 0.0
        %1932 = vmatpush2.xpose.msra.mxu0 0.0
        %1933 = vmatprep.subr.mxu0 0.0
        %1934 = vmatpush2.xpose.msra.mxu0 0.0
        %1935 = vmatprep.subr.mxu0 0.0
        %1936 = vmatpush2.xpose.msra.mxu0 0.0
        %1937 = vmatprep.subr.mxu0 0.0
        %1938 = vmatpush2.xpose.msra.mxu0 0.0
        %1939 = vmatprep.subr.mxu0 0.0
        %1940 = vmatpush2.xpose.msra.mxu0 0.0
        %1941 = vmatprep.subr.mxu0 0.0
        %1942 = vmatpush2.xpose.msra.mxu0 0.0
        %1943 = vmatprep.subr.mxu0 0.0
        %1944 = vmatpush2.xpose.msra.mxu0 0.0
        %1945 = vmatprep.subr.mxu0 0.0
        %1946 = vmatpush2.xpose.msra.mxu0 0.0
        %1947 = vmatprep.mubr.f32.mxu0 0.0
        %v1948 = vand.u32 %v1872, 4294901760
        %v1949 = vsub.f32 %v1872, %v1948
        %v1950 = vand.u32 %v1949, 4294901760
        %v1951 = vsub.f32 %v1949, %v1950
        %v1952 = vand.u32 %v1951, 4294901760
        %1953 = vmatmul.mubr.f32.gmra.mxu0 %v1952
        %v1954 = vpop.f32.mrf.mxu0
        %v1955 = vadd.f32 %v1344, %v1954
        %v1956 = vpop.f32.mrf.mxu0
        %1957 = vmatprep.mubr.f32.mxu0 0.0
        %v1958 = vand.u32 %v1875, 4294901760
        %v1959 = vsub.f32 %v1875, %v1958
        %v1960 = vand.u32 %v1959, 4294901760
        %v1961 = vsub.f32 %v1959, %v1960
        %v1962 = vand.u32 %v1961, 4294901760
        %1963 = vmatmul.mubr.f32.gmra.mxu0 %v1962
        %v1964 = vpop.f32.mrf.mxu0
        %v1965 = vadd.f32 %v1345, %v1964
        %v1966 = vpop.f32.mrf.mxu0
        %1967 = vdwg.mxu0
        %1968 = vmatprep.subr.mxu0 0.0
        %1969 = vmatpush1.xpose.msra.mxu0 0.0
        %1970 = vmatprep.subr.mxu0 0.0
        %1971 = vmatpush1.xpose.msra.mxu0 0.0
        %1972 = vmatprep.subr.mxu0 0.0
        %1973 = vmatpush1.xpose.msra.mxu0 0.0
        %1974 = vmatprep.subr.mxu0 0.0
        %1975 = vmatpush1.xpose.msra.mxu0 0.0
        %1976 = vmatprep.subr.mxu0 0.0
        %1977 = vmatpush1.xpose.msra.mxu0 0.0
        %1978 = vmatprep.subr.mxu0 0.0
        %1979 = vmatpush1.xpose.msra.mxu0 0.0
        %1980 = vmatprep.subr.mxu0 0.0
        %1981 = vmatpush1.xpose.msra.mxu0 0.0
        %1982 = vmatprep.subr.mxu0 0.0
        %1983 = vmatpush1.xpose.msra.mxu0 0.0
        %1984 = vmatprep.subr.mxu0 0.0
        %1985 = vmatpush1.xpose.msra.mxu0 0.0
        %1986 = vmatprep.subr.mxu0 0.0
        %1987 = vmatpush1.xpose.msra.mxu0 0.0
        %1988 = vmatprep.subr.mxu0 0.0
        %1989 = vmatpush1.xpose.msra.mxu0 0.0
        %1990 = vmatprep.subr.mxu0 0.0
        %1991 = vmatpush1.xpose.msra.mxu0 0.0
        %1992 = vmatprep.subr.mxu0 0.0
        %1993 = vmatpush1.xpose.msra.mxu0 0.0
        %1994 = vmatprep.subr.mxu0 0.0
        %1995 = vmatpush1.xpose.msra.mxu0 0.0
        %1996 = vmatprep.subr.mxu0 0.0
        %v1997 = vand.u32 %v1879, 4294901760
        %v1998 = vsub.f32 %v1879, %v1997
        %v1999 = vand.u32 %v1998, 4294901760
        %v2000 = vsub.f32 %v1998, %v1999
        %v2001 = vand.u32 %v2000, 4294901760
        %2002 = vmatpush1.xpose.msra.mxu0 %v2001
        %2003 = vmatprep.subr.mxu0 0.0
        %v2004 = vand.u32 %v1877, 4294901760
        %v2005 = vsub.f32 %v1877, %v2004
        %v2006 = vand.u32 %v2005, 4294901760
        %v2007 = vsub.f32 %v2005, %v2006
        %v2008 = vand.u32 %v2007, 4294901760
        %2009 = vmatpush1.xpose.msra.mxu0 %v2008
        %2010 = vmatprep.subr.mxu0 0.0
        %2011 = vmatpush2.xpose.msra.mxu0 0.0
        %2012 = vmatprep.subr.mxu0 0.0
        %2013 = vmatpush2.xpose.msra.mxu0 0.0
        %2014 = vmatprep.subr.mxu0 0.0
        %2015 = vmatpush2.xpose.msra.mxu0 0.0
        %2016 = vmatprep.subr.mxu0 0.0
        %2017 = vmatpush2.xpose.msra.mxu0 0.0
        %2018 = vmatprep.subr.mxu0 0.0
        %2019 = vmatpush2.xpose.msra.mxu0 0.0
        %2020 = vmatprep.subr.mxu0 0.0
        %2021 = vmatpush2.xpose.msra.mxu0 0.0
        %2022 = vmatprep.subr.mxu0 0.0
        %2023 = vmatpush2.xpose.msra.mxu0 0.0
        %2024 = vmatprep.subr.mxu0 0.0
        %2025 = vmatpush2.xpose.msra.mxu0 0.0
        %2026 = vmatprep.subr.mxu0 0.0
        %2027 = vmatpush2.xpose.msra.mxu0 0.0
        %2028 = vmatprep.subr.mxu0 0.0
        %2029 = vmatpush2.xpose.msra.mxu0 0.0
        %2030 = vmatprep.subr.mxu0 0.0
        %2031 = vmatpush2.xpose.msra.mxu0 0.0
        %2032 = vmatprep.subr.mxu0 0.0
        %2033 = vmatpush2.xpose.msra.mxu0 0.0
        %2034 = vmatprep.subr.mxu0 0.0
        %2035 = vmatpush2.xpose.msra.mxu0 0.0
        %2036 = vmatprep.subr.mxu0 0.0
        %2037 = vmatpush2.xpose.msra.mxu0 0.0
        %2038 = vmatprep.subr.mxu0 0.0
        %2039 = vmatpush2.xpose.msra.mxu0 0.0
        %2040 = vmatprep.subr.mxu0 0.0
        %2041 = vmatpush2.xpose.msra.mxu0 0.0
        %2042 = vmatprep.mubr.f32.mxu0 0.0
        %v2043 = vand.u32 %v1872, 4294901760
        %2044 = vmatmul.mubr.f32.gmra.mxu0 %v2043
        %v2045 = vpop.f32.mrf.mxu0
        %v2046 = vadd.f32 %v1955, %v2045
        %v2047 = vpop.f32.mrf.mxu0
        %2048 = vmatprep.mubr.f32.mxu0 0.0
        %v2049 = vand.u32 %v1875, 4294901760
        %2050 = vmatmul.mubr.f32.gmra.mxu0 %v2049
        %v2051 = vpop.f32.mrf.mxu0
        %v2052 = vadd.f32 %v1965, %v2051
        %v2053 = vpop.f32.mrf.mxu0
        %2054 = vdwg.mxu0
        %2055 = vmatprep.subr.mxu0 0.0
        %2056 = vmatpush1.xpose.msra.mxu0 0.0
        %2057 = vmatprep.subr.mxu0 0.0
        %2058 = vmatpush1.xpose.msra.mxu0 0.0
        %2059 = vmatprep.subr.mxu0 0.0
        %2060 = vmatpush1.xpose.msra.mxu0 0.0
        %2061 = vmatprep.subr.mxu0 0.0
        %2062 = vmatpush1.xpose.msra.mxu0 0.0
        %2063 = vmatprep.subr.mxu0 0.0
        %2064 = vmatpush1.xpose.msra.mxu0 0.0
        %2065 = vmatprep.subr.mxu0 0.0
        %2066 = vmatpush1.xpose.msra.mxu0 0.0
        %2067 = vmatprep.subr.mxu0 0.0
        %2068 = vmatpush1.xpose.msra.mxu0 0.0
        %2069 = vmatprep.subr.mxu0 0.0
        %2070 = vmatpush1.xpose.msra.mxu0 0.0
        %2071 = vmatprep.subr.mxu0 0.0
        %2072 = vmatpush1.xpose.msra.mxu0 0.0
        %2073 = vmatprep.subr.mxu0 0.0
        %2074 = vmatpush1.xpose.msra.mxu0 0.0
        %2075 = vmatprep.subr.mxu0 0.0
        %2076 = vmatpush1.xpose.msra.mxu0 0.0
        %2077 = vmatprep.subr.mxu0 0.0
        %2078 = vmatpush1.xpose.msra.mxu0 0.0
        %2079 = vmatprep.subr.mxu0 0.0
        %2080 = vmatpush1.xpose.msra.mxu0 0.0
        %2081 = vmatprep.subr.mxu0 0.0
        %2082 = vmatpush1.xpose.msra.mxu0 0.0
        %2083 = vmatprep.subr.mxu0 0.0
        %v2084 = vand.u32 %v1879, 4294901760
        %v2085 = vsub.f32 %v1879, %v2084
        %2086 = vmatpush1.xpose.msra.mxu0 %v2085
        %2087 = vmatprep.subr.mxu0 0.0
        %v2088 = vand.u32 %v1877, 4294901760
        %v2089 = vsub.f32 %v1877, %v2088
        %2090 = vmatpush1.xpose.msra.mxu0 %v2089
        %2091 = vmatprep.subr.mxu0 0.0
        %2092 = vmatpush2.xpose.msra.mxu0 0.0
        %2093 = vmatprep.subr.mxu0 0.0
        %2094 = vmatpush2.xpose.msra.mxu0 0.0
        %2095 = vmatprep.subr.mxu0 0.0
        %2096 = vmatpush2.xpose.msra.mxu0 0.0
        %2097 = vmatprep.subr.mxu0 0.0
        %2098 = vmatpush2.xpose.msra.mxu0 0.0
        %2099 = vmatprep.subr.mxu0 0.0
        %2100 = vmatpush2.xpose.msra.mxu0 0.0
        %2101 = vmatprep.subr.mxu0 0.0
        %2102 = vmatpush2.xpose.msra.mxu0 0.0
        %2103 = vmatprep.subr.mxu0 0.0
        %2104 = vmatpush2.xpose.msra.mxu0 0.0
        %2105 = vmatprep.subr.mxu0 0.0
        %2106 = vmatpush2.xpose.msra.mxu0 0.0
        %2107 = vmatprep.subr.mxu0 0.0
        %2108 = vmatpush2.xpose.msra.mxu0 0.0
        %2109 = vmatprep.subr.mxu0 0.0
        %2110 = vmatpush2.xpose.msra.mxu0 0.0
        %2111 = vmatprep.subr.mxu0 0.0
        %2112 = vmatpush2.xpose.msra.mxu0 0.0
        %2113 = vmatprep.subr.mxu0 0.0
        %2114 = vmatpush2.xpose.msra.mxu0 0.0
        %2115 = vmatprep.subr.mxu0 0.0
        %2116 = vmatpush2.xpose.msra.mxu0 0.0
        %2117 = vmatprep.subr.mxu0 0.0
        %2118 = vmatpush2.xpose.msra.mxu0 0.0
        %2119 = vmatprep.subr.mxu0 0.0
        %2120 = vmatpush2.xpose.msra.mxu0 0.0
        %2121 = vmatprep.subr.mxu0 0.0
        %2122 = vmatpush2.xpose.msra.mxu0 0.0
        %2123 = vmatprep.mubr.f32.mxu0 0.0
        %v2124 = vand.u32 %v1872, 4294901760
        %v2125 = vsub.f32 %v1872, %v2124
        %2126 = vmatmul.mubr.f32.gmra.mxu0 %v2125
        %v2127 = vpop.f32.mrf.mxu0
        %v2128 = vadd.f32 %v2046, %v2127
        %v2129 = vpop.f32.mrf.mxu0
        %2130 = vmatprep.mubr.f32.mxu0 0.0
        %v2131 = vand.u32 %v1875, 4294901760
        %v2132 = vsub.f32 %v1875, %v2131
        %2133 = vmatmul.mubr.f32.gmra.mxu0 %v2132
        %v2134 = vpop.f32.mrf.mxu0
        %v2135 = vadd.f32 %v2052, %v2134
        %v2136 = vpop.f32.mrf.mxu0
        %2137 = vdwg.mxu0
        %2138 = vmatprep.subr.mxu0 0.0
        %2139 = vmatpush1.xpose.msra.mxu0 0.0
        %2140 = vmatprep.subr.mxu0 0.0
        %2141 = vmatpush1.xpose.msra.mxu0 0.0
        %2142 = vmatprep.subr.mxu0 0.0
        %2143 = vmatpush1.xpose.msra.mxu0 0.0
        %2144 = vmatprep.subr.mxu0 0.0
        %2145 = vmatpush1.xpose.msra.mxu0 0.0
        %2146 = vmatprep.subr.mxu0 0.0
        %2147 = vmatpush1.xpose.msra.mxu0 0.0
        %2148 = vmatprep.subr.mxu0 0.0
        %2149 = vmatpush1.xpose.msra.mxu0 0.0
        %2150 = vmatprep.subr.mxu0 0.0
        %2151 = vmatpush1.xpose.msra.mxu0 0.0
        %2152 = vmatprep.subr.mxu0 0.0
        %2153 = vmatpush1.xpose.msra.mxu0 0.0
        %2154 = vmatprep.subr.mxu0 0.0
        %2155 = vmatpush1.xpose.msra.mxu0 0.0
        %2156 = vmatprep.subr.mxu0 0.0
        %2157 = vmatpush1.xpose.msra.mxu0 0.0
        %2158 = vmatprep.subr.mxu0 0.0
        %2159 = vmatpush1.xpose.msra.mxu0 0.0
        %2160 = vmatprep.subr.mxu0 0.0
        %2161 = vmatpush1.xpose.msra.mxu0 0.0
        %2162 = vmatprep.subr.mxu0 0.0
        %2163 = vmatpush1.xpose.msra.mxu0 0.0
        %2164 = vmatprep.subr.mxu0 0.0
        %2165 = vmatpush1.xpose.msra.mxu0 0.0
        %2166 = vmatprep.subr.mxu0 0.0
        %v2167 = vand.u32 %v1879, 4294901760
        %2168 = vmatpush1.xpose.msra.mxu0 %v2167
        %2169 = vmatprep.subr.mxu0 0.0
        %v2170 = vand.u32 %v1877, 4294901760
        %2171 = vmatpush1.xpose.msra.mxu0 %v2170
        %2172 = vmatprep.subr.mxu0 0.0
        %2173 = vmatpush2.xpose.msra.mxu0 0.0
        %2174 = vmatprep.subr.mxu0 0.0
        %2175 = vmatpush2.xpose.msra.mxu0 0.0
        %2176 = vmatprep.subr.mxu0 0.0
        %2177 = vmatpush2.xpose.msra.mxu0 0.0
        %2178 = vmatprep.subr.mxu0 0.0
        %2179 = vmatpush2.xpose.msra.mxu0 0.0
        %2180 = vmatprep.subr.mxu0 0.0
        %2181 = vmatpush2.xpose.msra.mxu0 0.0
        %2182 = vmatprep.subr.mxu0 0.0
        %2183 = vmatpush2.xpose.msra.mxu0 0.0
        %2184 = vmatprep.subr.mxu0 0.0
        %2185 = vmatpush2.xpose.msra.mxu0 0.0
        %2186 = vmatprep.subr.mxu0 0.0
        %2187 = vmatpush2.xpose.msra.mxu0 0.0
        %2188 = vmatprep.subr.mxu0 0.0
        %2189 = vmatpush2.xpose.msra.mxu0 0.0
        %2190 = vmatprep.subr.mxu0 0.0
        %2191 = vmatpush2.xpose.msra.mxu0 0.0
        %2192 = vmatprep.subr.mxu0 0.0
        %2193 = vmatpush2.xpose.msra.mxu0 0.0
        %2194 = vmatprep.subr.mxu0 0.0
        %2195 = vmatpush2.xpose.msra.mxu0 0.0
        %2196 = vmatprep.subr.mxu0 0.0
        %2197 = vmatpush2.xpose.msra.mxu0 0.0
        %2198 = vmatprep.subr.mxu0 0.0
        %2199 = vmatpush2.xpose.msra.mxu0 0.0
        %2200 = vmatprep.subr.mxu0 0.0
        %2201 = vmatpush2.xpose.msra.mxu0 0.0
        %2202 = vmatprep.subr.mxu0 0.0
        %2203 = vmatpush2.xpose.msra.mxu0 0.0
        %2204 = vmatprep.mubr.f32.mxu0 0.0
        %v2205 = vand.u32 %v1872, 4294901760
        %v2206 = vsub.f32 %v1872, %v2205
        %v2207 = vand.u32 %v2206, 4294901760
        %2208 = vmatmul.mubr.f32.gmra.mxu0 %v2207
        %v2209 = vpop.f32.mrf.mxu0
        %v2210 = vadd.f32 %v2128, %v2209
        %v2211 = vpop.f32.mrf.mxu0
        %2212 = vmatprep.mubr.f32.mxu0 0.0
        %v2213 = vand.u32 %v1875, 4294901760
        %v2214 = vsub.f32 %v1875, %v2213
        %v2215 = vand.u32 %v2214, 4294901760
        %2216 = vmatmul.mubr.f32.gmra.mxu0 %v2215
        %v2217 = vpop.f32.mrf.mxu0
        %v2218 = vadd.f32 %v2135, %v2217
        %v2219 = vpop.f32.mrf.mxu0
        %2220 = vdwg.mxu0
        %2221 = vmatprep.subr.mxu0 0.0
        %2222 = vmatpush1.xpose.msra.mxu0 0.0
        %2223 = vmatprep.subr.mxu0 0.0
        %2224 = vmatpush1.xpose.msra.mxu0 0.0
        %2225 = vmatprep.subr.mxu0 0.0
        %2226 = vmatpush1.xpose.msra.mxu0 0.0
        %2227 = vmatprep.subr.mxu0 0.0
        %2228 = vmatpush1.xpose.msra.mxu0 0.0
        %2229 = vmatprep.subr.mxu0 0.0
        %2230 = vmatpush1.xpose.msra.mxu0 0.0
        %2231 = vmatprep.subr.mxu0 0.0
        %2232 = vmatpush1.xpose.msra.mxu0 0.0
        %2233 = vmatprep.subr.mxu0 0.0
        %2234 = vmatpush1.xpose.msra.mxu0 0.0
        %2235 = vmatprep.subr.mxu0 0.0
        %2236 = vmatpush1.xpose.msra.mxu0 0.0
        %2237 = vmatprep.subr.mxu0 0.0
        %2238 = vmatpush1.xpose.msra.mxu0 0.0
        %2239 = vmatprep.subr.mxu0 0.0
        %2240 = vmatpush1.xpose.msra.mxu0 0.0
        %2241 = vmatprep.subr.mxu0 0.0
        %2242 = vmatpush1.xpose.msra.mxu0 0.0
        %2243 = vmatprep.subr.mxu0 0.0
        %2244 = vmatpush1.xpose.msra.mxu0 0.0
        %2245 = vmatprep.subr.mxu0 0.0
        %2246 = vmatpush1.xpose.msra.mxu0 0.0
        %2247 = vmatprep.subr.mxu0 0.0
        %2248 = vmatpush1.xpose.msra.mxu0 0.0
        %2249 = vmatprep.subr.mxu0 0.0
        %v2250 = vand.u32 %v1879, 4294901760
        %v2251 = vsub.f32 %v1879, %v2250
        %v2252 = vand.u32 %v2251, 4294901760
        %2253 = vmatpush1.xpose.msra.mxu0 %v2252
        %2254 = vmatprep.subr.mxu0 0.0
        %v2255 = vand.u32 %v1877, 4294901760
        %v2256 = vsub.f32 %v1877, %v2255
        %v2257 = vand.u32 %v2256, 4294901760
        %2258 = vmatpush1.xpose.msra.mxu0 %v2257
        %2259 = vmatprep.subr.mxu0 0.0
        %2260 = vmatpush2.xpose.msra.mxu0 0.0
        %2261 = vmatprep.subr.mxu0 0.0
        %2262 = vmatpush2.xpose.msra.mxu0 0.0
        %2263 = vmatprep.subr.mxu0 0.0
        %2264 = vmatpush2.xpose.msra.mxu0 0.0
        %2265 = vmatprep.subr.mxu0 0.0
        %2266 = vmatpush2.xpose.msra.mxu0 0.0
        %2267 = vmatprep.subr.mxu0 0.0
        %2268 = vmatpush2.xpose.msra.mxu0 0.0
        %2269 = vmatprep.subr.mxu0 0.0
        %2270 = vmatpush2.xpose.msra.mxu0 0.0
        %2271 = vmatprep.subr.mxu0 0.0
        %2272 = vmatpush2.xpose.msra.mxu0 0.0
        %2273 = vmatprep.subr.mxu0 0.0
        %2274 = vmatpush2.xpose.msra.mxu0 0.0
        %2275 = vmatprep.subr.mxu0 0.0
        %2276 = vmatpush2.xpose.msra.mxu0 0.0
        %2277 = vmatprep.subr.mxu0 0.0
        %2278 = vmatpush2.xpose.msra.mxu0 0.0
        %2279 = vmatprep.subr.mxu0 0.0
        %2280 = vmatpush2.xpose.msra.mxu0 0.0
        %2281 = vmatprep.subr.mxu0 0.0
        %2282 = vmatpush2.xpose.msra.mxu0 0.0
        %2283 = vmatprep.subr.mxu0 0.0
        %2284 = vmatpush2.xpose.msra.mxu0 0.0
        %2285 = vmatprep.subr.mxu0 0.0
        %2286 = vmatpush2.xpose.msra.mxu0 0.0
        %2287 = vmatprep.subr.mxu0 0.0
        %2288 = vmatpush2.xpose.msra.mxu0 0.0
        %2289 = vmatprep.subr.mxu0 0.0
        %2290 = vmatpush2.xpose.msra.mxu0 0.0
        %2291 = vmatprep.mubr.f32.mxu0 0.0
        %v2292 = vand.u32 %v1872, 4294901760
        %2293 = vmatmul.mubr.f32.gmra.mxu0 %v2292
        %v2294 = vpop.f32.mrf.mxu0
        %v2295 = vadd.f32 %v2210, %v2294
        %v2296 = vpop.f32.mrf.mxu0
        %2297 = vmatprep.mubr.f32.mxu0 0.0
        %v2298 = vand.u32 %v1875, 4294901760
        %2299 = vmatmul.mubr.f32.gmra.mxu0 %v2298
        %v2300 = vpop.f32.mrf.mxu0
        %v2301 = vadd.f32 %v2218, %v2300
        %v2302 = vpop.f32.mrf.mxu0
        %2303 = vdwg.mxu0
        %2304 = vmatprep.subr.mxu0 0.0
        %2305 = vmatpush1.xpose.msra.mxu0 0.0
        %2306 = vmatprep.subr.mxu0 0.0
        %2307 = vmatpush1.xpose.msra.mxu0 0.0
        %2308 = vmatprep.subr.mxu0 0.0
        %2309 = vmatpush1.xpose.msra.mxu0 0.0
        %2310 = vmatprep.subr.mxu0 0.0
        %2311 = vmatpush1.xpose.msra.mxu0 0.0
        %2312 = vmatprep.subr.mxu0 0.0
        %2313 = vmatpush1.xpose.msra.mxu0 0.0
        %2314 = vmatprep.subr.mxu0 0.0
        %2315 = vmatpush1.xpose.msra.mxu0 0.0
        %2316 = vmatprep.subr.mxu0 0.0
        %2317 = vmatpush1.xpose.msra.mxu0 0.0
        %2318 = vmatprep.subr.mxu0 0.0
        %2319 = vmatpush1.xpose.msra.mxu0 0.0
        %2320 = vmatprep.subr.mxu0 0.0
        %2321 = vmatpush1.xpose.msra.mxu0 0.0
        %2322 = vmatprep.subr.mxu0 0.0
        %2323 = vmatpush1.xpose.msra.mxu0 0.0
        %2324 = vmatprep.subr.mxu0 0.0
        %2325 = vmatpush1.xpose.msra.mxu0 0.0
        %2326 = vmatprep.subr.mxu0 0.0
        %2327 = vmatpush1.xpose.msra.mxu0 0.0
        %2328 = vmatprep.subr.mxu0 0.0
        %2329 = vmatpush1.xpose.msra.mxu0 0.0
        %2330 = vmatprep.subr.mxu0 0.0
        %2331 = vmatpush1.xpose.msra.mxu0 0.0
        %2332 = vmatprep.subr.mxu0 0.0
        %v2333 = vand.u32 %v1879, 4294901760
        %2334 = vmatpush1.xpose.msra.mxu0 %v2333
        %2335 = vmatprep.subr.mxu0 0.0
        %v2336 = vand.u32 %v1877, 4294901760
        %2337 = vmatpush1.xpose.msra.mxu0 %v2336
        %2338 = vmatprep.subr.mxu0 0.0
        %2339 = vmatpush2.xpose.msra.mxu0 0.0
        %2340 = vmatprep.subr.mxu0 0.0
        %2341 = vmatpush2.xpose.msra.mxu0 0.0
        %2342 = vmatprep.subr.mxu0 0.0
        %2343 = vmatpush2.xpose.msra.mxu0 0.0
        %2344 = vmatprep.subr.mxu0 0.0
        %2345 = vmatpush2.xpose.msra.mxu0 0.0
        %2346 = vmatprep.subr.mxu0 0.0
        %2347 = vmatpush2.xpose.msra.mxu0 0.0
        %2348 = vmatprep.subr.mxu0 0.0
        %2349 = vmatpush2.xpose.msra.mxu0 0.0
        %2350 = vmatprep.subr.mxu0 0.0
        %2351 = vmatpush2.xpose.msra.mxu0 0.0
        %2352 = vmatprep.subr.mxu0 0.0
        %2353 = vmatpush2.xpose.msra.mxu0 0.0
        %2354 = vmatprep.subr.mxu0 0.0
        %2355 = vmatpush2.xpose.msra.mxu0 0.0
        %2356 = vmatprep.subr.mxu0 0.0
        %2357 = vmatpush2.xpose.msra.mxu0 0.0
        %2358 = vmatprep.subr.mxu0 0.0
        %2359 = vmatpush2.xpose.msra.mxu0 0.0
        %2360 = vmatprep.subr.mxu0 0.0
        %2361 = vmatpush2.xpose.msra.mxu0 0.0
        %2362 = vmatprep.subr.mxu0 0.0
        %2363 = vmatpush2.xpose.msra.mxu0 0.0
        %2364 = vmatprep.subr.mxu0 0.0
        %2365 = vmatpush2.xpose.msra.mxu0 0.0
        %2366 = vmatprep.subr.mxu0 0.0
        %2367 = vmatpush2.xpose.msra.mxu0 0.0
        %2368 = vmatprep.subr.mxu0 0.0
        %2369 = vmatpush2.xpose.msra.mxu0 0.0
        %2370 = vmatprep.mubr.f32.mxu0 0.0
        %v2371 = vand.u32 %v1872, 4294901760
        %2372 = vmatmul.mubr.f32.gmra.mxu0 %v2371
        %v2373 = vpop.f32.mrf.mxu0
        %v2374 = vadd.f32 %v2295, %v2373
        %v2375 = vpop.f32.mrf.mxu0
        %2376 = vmatprep.mubr.f32.mxu0 0.0
        %v2377 = vand.u32 %v1875, 4294901760
        %2378 = vmatmul.mubr.f32.gmra.mxu0 %v2377
        %v2379 = vpop.f32.mrf.mxu0
        %v2380 = vadd.f32 %v2301, %v2379
        %v2381 = vpop.f32.mrf.mxu0
        %2382 = vdwg.mxu0
        %2385 = vrot.lane.b32.xlu0 %v1315, 96
        %v2386 = vpop.permute.xlu0 %2385
        %2387 = vrot.lane.b32.xlu0 %v1321, 96
        %v2388 = vpop.permute.xlu0 %2387
        %v2390 = vsel %vm1352, %v1340, 0
        %v2393 = vsel %vm1352, %v1341, 0
        %v2395 = vsel %vm1352, %v2386, 0
        %v2397 = vsel %vm1352, %v2388, 0
        %2399 = vmatprep.subr.mxu0 0.0
        %2400 = vmatpush1.xpose.msra.mxu0 0.0
        %2401 = vmatprep.subr.mxu0 0.0
        %2402 = vmatpush1.xpose.msra.mxu0 0.0
        %2403 = vmatprep.subr.mxu0 0.0
        %2404 = vmatpush1.xpose.msra.mxu0 0.0
        %2405 = vmatprep.subr.mxu0 0.0
        %2406 = vmatpush1.xpose.msra.mxu0 0.0
        %2407 = vmatprep.subr.mxu0 0.0
        %2408 = vmatpush1.xpose.msra.mxu0 0.0
        %2409 = vmatprep.subr.mxu0 0.0
        %2410 = vmatpush1.xpose.msra.mxu0 0.0
        %2411 = vmatprep.subr.mxu0 0.0
        %2412 = vmatpush1.xpose.msra.mxu0 0.0
        %2413 = vmatprep.subr.mxu0 0.0
        %2414 = vmatpush1.xpose.msra.mxu0 0.0
        %2415 = vmatprep.subr.mxu0 0.0
        %2416 = vmatpush1.xpose.msra.mxu0 0.0
        %2417 = vmatprep.subr.mxu0 0.0
        %2418 = vmatpush1.xpose.msra.mxu0 0.0
        %2419 = vmatprep.subr.mxu0 0.0
        %2420 = vmatpush1.xpose.msra.mxu0 0.0
        %2421 = vmatprep.subr.mxu0 0.0
        %2422 = vmatpush1.xpose.msra.mxu0 0.0
        %2423 = vmatprep.subr.mxu0 0.0
        %2424 = vmatpush1.xpose.msra.mxu0 0.0
        %2425 = vmatprep.subr.mxu0 0.0
        %2426 = vmatpush1.xpose.msra.mxu0 0.0
        %2427 = vmatprep.subr.mxu0 0.0
        %v2428 = vand.u32 %v2397, 4294901760
        %2429 = vmatpush1.xpose.msra.mxu0 %v2428
        %2430 = vmatprep.subr.mxu0 0.0
        %v2431 = vand.u32 %v2395, 4294901760
        %2432 = vmatpush1.xpose.msra.mxu0 %v2431
        %2433 = vmatprep.subr.mxu0 0.0
        %2434 = vmatpush2.xpose.msra.mxu0 0.0
        %2435 = vmatprep.subr.mxu0 0.0
        %2436 = vmatpush2.xpose.msra.mxu0 0.0
        %2437 = vmatprep.subr.mxu0 0.0
        %2438 = vmatpush2.xpose.msra.mxu0 0.0
        %2439 = vmatprep.subr.mxu0 0.0
        %2440 = vmatpush2.xpose.msra.mxu0 0.0
        %2441 = vmatprep.subr.mxu0 0.0
        %2442 = vmatpush2.xpose.msra.mxu0 0.0
        %2443 = vmatprep.subr.mxu0 0.0
        %2444 = vmatpush2.xpose.msra.mxu0 0.0
        %2445 = vmatprep.subr.mxu0 0.0
        %2446 = vmatpush2.xpose.msra.mxu0 0.0
        %2447 = vmatprep.subr.mxu0 0.0
        %2448 = vmatpush2.xpose.msra.mxu0 0.0
        %2449 = vmatprep.subr.mxu0 0.0
        %2450 = vmatpush2.xpose.msra.mxu0 0.0
        %2451 = vmatprep.subr.mxu0 0.0
        %2452 = vmatpush2.xpose.msra.mxu0 0.0
        %2453 = vmatprep.subr.mxu0 0.0
        %2454 = vmatpush2.xpose.msra.mxu0 0.0
        %2455 = vmatprep.subr.mxu0 0.0
        %2456 = vmatpush2.xpose.msra.mxu0 0.0
        %2457 = vmatprep.subr.mxu0 0.0
        %2458 = vmatpush2.xpose.msra.mxu0 0.0
        %2459 = vmatprep.subr.mxu0 0.0
        %2460 = vmatpush2.xpose.msra.mxu0 0.0
        %2461 = vmatprep.subr.mxu0 0.0
        %2462 = vmatpush2.xpose.msra.mxu0 0.0
        %2463 = vmatprep.subr.mxu0 0.0
        %2464 = vmatpush2.xpose.msra.mxu0 0.0
        %2465 = vmatprep.mubr.f32.mxu0 0.0
        %v2466 = vand.u32 %v2390, 4294901760
        %v2467 = vsub.f32 %v2390, %v2466
        %v2468 = vand.u32 %v2467, 4294901760
        %v2469 = vsub.f32 %v2467, %v2468
        %v2470 = vand.u32 %v2469, 4294901760
        %2471 = vmatmul.mubr.f32.gmra.mxu0 %v2470
        %v2472 = vpop.f32.mrf.mxu0
        %v2473 = vadd.f32 %v1344, %v2472
        %v2474 = vpop.f32.mrf.mxu0
        %2475 = vmatprep.mubr.f32.mxu0 0.0
        %v2476 = vand.u32 %v2393, 4294901760
        %v2477 = vsub.f32 %v2393, %v2476
        %v2478 = vand.u32 %v2477, 4294901760
        %v2479 = vsub.f32 %v2477, %v2478
        %v2480 = vand.u32 %v2479, 4294901760
        %2481 = vmatmul.mubr.f32.gmra.mxu0 %v2480
        %v2482 = vpop.f32.mrf.mxu0
        %v2483 = vadd.f32 %v1345, %v2482
        %v2484 = vpop.f32.mrf.mxu0
        %2485 = vdwg.mxu0
        %2486 = vmatprep.subr.mxu0 0.0
        %2487 = vmatpush1.xpose.msra.mxu0 0.0
        %2488 = vmatprep.subr.mxu0 0.0
        %2489 = vmatpush1.xpose.msra.mxu0 0.0
        %2490 = vmatprep.subr.mxu0 0.0
        %2491 = vmatpush1.xpose.msra.mxu0 0.0
        %2492 = vmatprep.subr.mxu0 0.0
        %2493 = vmatpush1.xpose.msra.mxu0 0.0
        %2494 = vmatprep.subr.mxu0 0.0
        %2495 = vmatpush1.xpose.msra.mxu0 0.0
        %2496 = vmatprep.subr.mxu0 0.0
        %2497 = vmatpush1.xpose.msra.mxu0 0.0
        %2498 = vmatprep.subr.mxu0 0.0
        %2499 = vmatpush1.xpose.msra.mxu0 0.0
        %2500 = vmatprep.subr.mxu0 0.0
        %2501 = vmatpush1.xpose.msra.mxu0 0.0
        %2502 = vmatprep.subr.mxu0 0.0
        %2503 = vmatpush1.xpose.msra.mxu0 0.0
        %2504 = vmatprep.subr.mxu0 0.0
        %2505 = vmatpush1.xpose.msra.mxu0 0.0
        %2506 = vmatprep.subr.mxu0 0.0
        %2507 = vmatpush1.xpose.msra.mxu0 0.0
        %2508 = vmatprep.subr.mxu0 0.0
        %2509 = vmatpush1.xpose.msra.mxu0 0.0
        %2510 = vmatprep.subr.mxu0 0.0
        %2511 = vmatpush1.xpose.msra.mxu0 0.0
        %2512 = vmatprep.subr.mxu0 0.0
        %2513 = vmatpush1.xpose.msra.mxu0 0.0
        %2514 = vmatprep.subr.mxu0 0.0
        %v2515 = vand.u32 %v2397, 4294901760
        %v2516 = vsub.f32 %v2397, %v2515
        %v2517 = vand.u32 %v2516, 4294901760
        %v2518 = vsub.f32 %v2516, %v2517
        %v2519 = vand.u32 %v2518, 4294901760
        %2520 = vmatpush1.xpose.msra.mxu0 %v2519
        %2521 = vmatprep.subr.mxu0 0.0
        %v2522 = vand.u32 %v2395, 4294901760
        %v2523 = vsub.f32 %v2395, %v2522
        %v2524 = vand.u32 %v2523, 4294901760
        %v2525 = vsub.f32 %v2523, %v2524
        %v2526 = vand.u32 %v2525, 4294901760
        %2527 = vmatpush1.xpose.msra.mxu0 %v2526
        %2528 = vmatprep.subr.mxu0 0.0
        %2529 = vmatpush2.xpose.msra.mxu0 0.0
        %2530 = vmatprep.subr.mxu0 0.0
        %2531 = vmatpush2.xpose.msra.mxu0 0.0
        %2532 = vmatprep.subr.mxu0 0.0
        %2533 = vmatpush2.xpose.msra.mxu0 0.0
        %2534 = vmatprep.subr.mxu0 0.0
        %2535 = vmatpush2.xpose.msra.mxu0 0.0
        %2536 = vmatprep.subr.mxu0 0.0
        %2537 = vmatpush2.xpose.msra.mxu0 0.0
        %2538 = vmatprep.subr.mxu0 0.0
        %2539 = vmatpush2.xpose.msra.mxu0 0.0
        %2540 = vmatprep.subr.mxu0 0.0
        %2541 = vmatpush2.xpose.msra.mxu0 0.0
        %2542 = vmatprep.subr.mxu0 0.0
        %2543 = vmatpush2.xpose.msra.mxu0 0.0
        %2544 = vmatprep.subr.mxu0 0.0
        %2545 = vmatpush2.xpose.msra.mxu0 0.0
        %2546 = vmatprep.subr.mxu0 0.0
        %2547 = vmatpush2.xpose.msra.mxu0 0.0
        %2548 = vmatprep.subr.mxu0 0.0
        %2549 = vmatpush2.xpose.msra.mxu0 0.0
        %2550 = vmatprep.subr.mxu0 0.0
        %2551 = vmatpush2.xpose.msra.mxu0 0.0
        %2552 = vmatprep.subr.mxu0 0.0
        %2553 = vmatpush2.xpose.msra.mxu0 0.0
        %2554 = vmatprep.subr.mxu0 0.0
        %2555 = vmatpush2.xpose.msra.mxu0 0.0
        %2556 = vmatprep.subr.mxu0 0.0
        %2557 = vmatpush2.xpose.msra.mxu0 0.0
        %2558 = vmatprep.subr.mxu0 0.0
        %2559 = vmatpush2.xpose.msra.mxu0 0.0
        %2560 = vmatprep.mubr.f32.mxu0 0.0
        %v2561 = vand.u32 %v2390, 4294901760
        %2562 = vmatmul.mubr.f32.gmra.mxu0 %v2561
        %v2563 = vpop.f32.mrf.mxu0
        %v2564 = vadd.f32 %v2473, %v2563
        %v2565 = vpop.f32.mrf.mxu0
        %2566 = vmatprep.mubr.f32.mxu0 0.0
        %v2567 = vand.u32 %v2393, 4294901760
        %2568 = vmatmul.mubr.f32.gmra.mxu0 %v2567
        %v2569 = vpop.f32.mrf.mxu0
        %v2570 = vadd.f32 %v2483, %v2569
        %v2571 = vpop.f32.mrf.mxu0
        %2572 = vdwg.mxu0
        %2573 = vmatprep.subr.mxu0 0.0
        %2574 = vmatpush1.xpose.msra.mxu0 0.0
        %2575 = vmatprep.subr.mxu0 0.0
        %2576 = vmatpush1.xpose.msra.mxu0 0.0
        %2577 = vmatprep.subr.mxu0 0.0
        %2578 = vmatpush1.xpose.msra.mxu0 0.0
        %2579 = vmatprep.subr.mxu0 0.0
        %2580 = vmatpush1.xpose.msra.mxu0 0.0
        %2581 = vmatprep.subr.mxu0 0.0
        %2582 = vmatpush1.xpose.msra.mxu0 0.0
        %2583 = vmatprep.subr.mxu0 0.0
        %2584 = vmatpush1.xpose.msra.mxu0 0.0
        %2585 = vmatprep.subr.mxu0 0.0
        %2586 = vmatpush1.xpose.msra.mxu0 0.0
        %2587 = vmatprep.subr.mxu0 0.0
        %2588 = vmatpush1.xpose.msra.mxu0 0.0
        %2589 = vmatprep.subr.mxu0 0.0
        %2590 = vmatpush1.xpose.msra.mxu0 0.0
        %2591 = vmatprep.subr.mxu0 0.0
        %2592 = vmatpush1.xpose.msra.mxu0 0.0
        %2593 = vmatprep.subr.mxu0 0.0
        %2594 = vmatpush1.xpose.msra.mxu0 0.0
        %2595 = vmatprep.subr.mxu0 0.0
        %2596 = vmatpush1.xpose.msra.mxu0 0.0
        %2597 = vmatprep.subr.mxu0 0.0
        %2598 = vmatpush1.xpose.msra.mxu0 0.0
        %2599 = vmatprep.subr.mxu0 0.0
        %2600 = vmatpush1.xpose.msra.mxu0 0.0
        %2601 = vmatprep.subr.mxu0 0.0
        %v2602 = vand.u32 %v2397, 4294901760
        %v2603 = vsub.f32 %v2397, %v2602
        %2604 = vmatpush1.xpose.msra.mxu0 %v2603
        %2605 = vmatprep.subr.mxu0 0.0
        %v2606 = vand.u32 %v2395, 4294901760
        %v2607 = vsub.f32 %v2395, %v2606
        %2608 = vmatpush1.xpose.msra.mxu0 %v2607
        %2609 = vmatprep.subr.mxu0 0.0
        %2610 = vmatpush2.xpose.msra.mxu0 0.0
        %2611 = vmatprep.subr.mxu0 0.0
        %2612 = vmatpush2.xpose.msra.mxu0 0.0
        %2613 = vmatprep.subr.mxu0 0.0
        %2614 = vmatpush2.xpose.msra.mxu0 0.0
        %2615 = vmatprep.subr.mxu0 0.0
        %2616 = vmatpush2.xpose.msra.mxu0 0.0
        %2617 = vmatprep.subr.mxu0 0.0
        %2618 = vmatpush2.xpose.msra.mxu0 0.0
        %2619 = vmatprep.subr.mxu0 0.0
        %2620 = vmatpush2.xpose.msra.mxu0 0.0
        %2621 = vmatprep.subr.mxu0 0.0
        %2622 = vmatpush2.xpose.msra.mxu0 0.0
        %2623 = vmatprep.subr.mxu0 0.0
        %2624 = vmatpush2.xpose.msra.mxu0 0.0
        %2625 = vmatprep.subr.mxu0 0.0
        %2626 = vmatpush2.xpose.msra.mxu0 0.0
        %2627 = vmatprep.subr.mxu0 0.0
        %2628 = vmatpush2.xpose.msra.mxu0 0.0
        %2629 = vmatprep.subr.mxu0 0.0
        %2630 = vmatpush2.xpose.msra.mxu0 0.0
        %2631 = vmatprep.subr.mxu0 0.0
        %2632 = vmatpush2.xpose.msra.mxu0 0.0
        %2633 = vmatprep.subr.mxu0 0.0
        %2634 = vmatpush2.xpose.msra.mxu0 0.0
        %2635 = vmatprep.subr.mxu0 0.0
        %2636 = vmatpush2.xpose.msra.mxu0 0.0
        %2637 = vmatprep.subr.mxu0 0.0
        %2638 = vmatpush2.xpose.msra.mxu0 0.0
        %2639 = vmatprep.subr.mxu0 0.0
        %2640 = vmatpush2.xpose.msra.mxu0 0.0
        %2641 = vmatprep.mubr.f32.mxu0 0.0
        %v2642 = vand.u32 %v2390, 4294901760
        %v2643 = vsub.f32 %v2390, %v2642
        %2644 = vmatmul.mubr.f32.gmra.mxu0 %v2643
        %v2645 = vpop.f32.mrf.mxu0
        %v2646 = vadd.f32 %v2564, %v2645
        %v2647 = vpop.f32.mrf.mxu0
        %2648 = vmatprep.mubr.f32.mxu0 0.0
        %v2649 = vand.u32 %v2393, 4294901760
        %v2650 = vsub.f32 %v2393, %v2649
        %2651 = vmatmul.mubr.f32.gmra.mxu0 %v2650
        %v2652 = vpop.f32.mrf.mxu0
        %v2653 = vadd.f32 %v2570, %v2652
        %v2654 = vpop.f32.mrf.mxu0
        %2655 = vdwg.mxu0
        %2656 = vmatprep.subr.mxu0 0.0
        %2657 = vmatpush1.xpose.msra.mxu0 0.0
        %2658 = vmatprep.subr.mxu0 0.0
        %2659 = vmatpush1.xpose.msra.mxu0 0.0
        %2660 = vmatprep.subr.mxu0 0.0
        %2661 = vmatpush1.xpose.msra.mxu0 0.0
        %2662 = vmatprep.subr.mxu0 0.0
        %2663 = vmatpush1.xpose.msra.mxu0 0.0
        %2664 = vmatprep.subr.mxu0 0.0
        %2665 = vmatpush1.xpose.msra.mxu0 0.0
        %2666 = vmatprep.subr.mxu0 0.0
        %2667 = vmatpush1.xpose.msra.mxu0 0.0
        %2668 = vmatprep.subr.mxu0 0.0
        %2669 = vmatpush1.xpose.msra.mxu0 0.0
        %2670 = vmatprep.subr.mxu0 0.0
        %2671 = vmatpush1.xpose.msra.mxu0 0.0
        %2672 = vmatprep.subr.mxu0 0.0
        %2673 = vmatpush1.xpose.msra.mxu0 0.0
        %2674 = vmatprep.subr.mxu0 0.0
        %2675 = vmatpush1.xpose.msra.mxu0 0.0
        %2676 = vmatprep.subr.mxu0 0.0
        %2677 = vmatpush1.xpose.msra.mxu0 0.0
        %2678 = vmatprep.subr.mxu0 0.0
        %2679 = vmatpush1.xpose.msra.mxu0 0.0
        %2680 = vmatprep.subr.mxu0 0.0
        %2681 = vmatpush1.xpose.msra.mxu0 0.0
        %2682 = vmatprep.subr.mxu0 0.0
        %2683 = vmatpush1.xpose.msra.mxu0 0.0
        %2684 = vmatprep.subr.mxu0 0.0
        %v2685 = vand.u32 %v2397, 4294901760
        %2686 = vmatpush1.xpose.msra.mxu0 %v2685
        %2687 = vmatprep.subr.mxu0 0.0
        %v2688 = vand.u32 %v2395, 4294901760
        %2689 = vmatpush1.xpose.msra.mxu0 %v2688
        %2690 = vmatprep.subr.mxu0 0.0
        %2691 = vmatpush2.xpose.msra.mxu0 0.0
        %2692 = vmatprep.subr.mxu0 0.0
        %2693 = vmatpush2.xpose.msra.mxu0 0.0
        %2694 = vmatprep.subr.mxu0 0.0
        %2695 = vmatpush2.xpose.msra.mxu0 0.0
        %2696 = vmatprep.subr.mxu0 0.0
        %2697 = vmatpush2.xpose.msra.mxu0 0.0
        %2698 = vmatprep.subr.mxu0 0.0
        %2699 = vmatpush2.xpose.msra.mxu0 0.0
        %2700 = vmatprep.subr.mxu0 0.0
        %2701 = vmatpush2.xpose.msra.mxu0 0.0
        %2702 = vmatprep.subr.mxu0 0.0
        %2703 = vmatpush2.xpose.msra.mxu0 0.0
        %2704 = vmatprep.subr.mxu0 0.0
        %2705 = vmatpush2.xpose.msra.mxu0 0.0
        %2706 = vmatprep.subr.mxu0 0.0
        %2707 = vmatpush2.xpose.msra.mxu0 0.0
        %2708 = vmatprep.subr.mxu0 0.0
        %2709 = vmatpush2.xpose.msra.mxu0 0.0
        %2710 = vmatprep.subr.mxu0 0.0
        %2711 = vmatpush2.xpose.msra.mxu0 0.0
        %2712 = vmatprep.subr.mxu0 0.0
        %2713 = vmatpush2.xpose.msra.mxu0 0.0
        %2714 = vmatprep.subr.mxu0 0.0
        %2715 = vmatpush2.xpose.msra.mxu0 0.0
        %2716 = vmatprep.subr.mxu0 0.0
        %2717 = vmatpush2.xpose.msra.mxu0 0.0
        %2718 = vmatprep.subr.mxu0 0.0
        %2719 = vmatpush2.xpose.msra.mxu0 0.0
        %2720 = vmatprep.subr.mxu0 0.0
        %2721 = vmatpush2.xpose.msra.mxu0 0.0
        %2722 = vmatprep.mubr.f32.mxu0 0.0
        %v2723 = vand.u32 %v2390, 4294901760
        %v2724 = vsub.f32 %v2390, %v2723
        %v2725 = vand.u32 %v2724, 4294901760
        %2726 = vmatmul.mubr.f32.gmra.mxu0 %v2725
        %v2727 = vpop.f32.mrf.mxu0
        %v2728 = vadd.f32 %v2646, %v2727
        %v2729 = vpop.f32.mrf.mxu0
        %2730 = vmatprep.mubr.f32.mxu0 0.0
        %v2731 = vand.u32 %v2393, 4294901760
        %v2732 = vsub.f32 %v2393, %v2731
        %v2733 = vand.u32 %v2732, 4294901760
        %2734 = vmatmul.mubr.f32.gmra.mxu0 %v2733
        %v2735 = vpop.f32.mrf.mxu0
        %v2736 = vadd.f32 %v2653, %v2735
        %v2737 = vpop.f32.mrf.mxu0
        %2738 = vdwg.mxu0
        %2739 = vmatprep.subr.mxu0 0.0
        %2740 = vmatpush1.xpose.msra.mxu0 0.0
        %2741 = vmatprep.subr.mxu0 0.0
        %2742 = vmatpush1.xpose.msra.mxu0 0.0
        %2743 = vmatprep.subr.mxu0 0.0
        %2744 = vmatpush1.xpose.msra.mxu0 0.0
        %2745 = vmatprep.subr.mxu0 0.0
        %2746 = vmatpush1.xpose.msra.mxu0 0.0
        %2747 = vmatprep.subr.mxu0 0.0
        %2748 = vmatpush1.xpose.msra.mxu0 0.0
        %2749 = vmatprep.subr.mxu0 0.0
        %2750 = vmatpush1.xpose.msra.mxu0 0.0
        %2751 = vmatprep.subr.mxu0 0.0
        %2752 = vmatpush1.xpose.msra.mxu0 0.0
        %2753 = vmatprep.subr.mxu0 0.0
        %2754 = vmatpush1.xpose.msra.mxu0 0.0
        %2755 = vmatprep.subr.mxu0 0.0
        %2756 = vmatpush1.xpose.msra.mxu0 0.0
        %2757 = vmatprep.subr.mxu0 0.0
        %2758 = vmatpush1.xpose.msra.mxu0 0.0
        %2759 = vmatprep.subr.mxu0 0.0
        %2760 = vmatpush1.xpose.msra.mxu0 0.0
        %2761 = vmatprep.subr.mxu0 0.0
        %2762 = vmatpush1.xpose.msra.mxu0 0.0
        %2763 = vmatprep.subr.mxu0 0.0
        %2764 = vmatpush1.xpose.msra.mxu0 0.0
        %2765 = vmatprep.subr.mxu0 0.0
        %2766 = vmatpush1.xpose.msra.mxu0 0.0
        %2767 = vmatprep.subr.mxu0 0.0
        %v2768 = vand.u32 %v2397, 4294901760
        %v2769 = vsub.f32 %v2397, %v2768
        %v2770 = vand.u32 %v2769, 4294901760
        %2771 = vmatpush1.xpose.msra.mxu0 %v2770
        %2772 = vmatprep.subr.mxu0 0.0
        %v2773 = vand.u32 %v2395, 4294901760
        %v2774 = vsub.f32 %v2395, %v2773
        %v2775 = vand.u32 %v2774, 4294901760
        %2776 = vmatpush1.xpose.msra.mxu0 %v2775
        %2777 = vmatprep.subr.mxu0 0.0
        %2778 = vmatpush2.xpose.msra.mxu0 0.0
        %2779 = vmatprep.subr.mxu0 0.0
        %2780 = vmatpush2.xpose.msra.mxu0 0.0
        %2781 = vmatprep.subr.mxu0 0.0
        %2782 = vmatpush2.xpose.msra.mxu0 0.0
        %2783 = vmatprep.subr.mxu0 0.0
        %2784 = vmatpush2.xpose.msra.mxu0 0.0
        %2785 = vmatprep.subr.mxu0 0.0
        %2786 = vmatpush2.xpose.msra.mxu0 0.0
        %2787 = vmatprep.subr.mxu0 0.0
        %2788 = vmatpush2.xpose.msra.mxu0 0.0
        %2789 = vmatprep.subr.mxu0 0.0
        %2790 = vmatpush2.xpose.msra.mxu0 0.0
        %2791 = vmatprep.subr.mxu0 0.0
        %2792 = vmatpush2.xpose.msra.mxu0 0.0
        %2793 = vmatprep.subr.mxu0 0.0
        %2794 = vmatpush2.xpose.msra.mxu0 0.0
        %2795 = vmatprep.subr.mxu0 0.0
        %2796 = vmatpush2.xpose.msra.mxu0 0.0
        %2797 = vmatprep.subr.mxu0 0.0
        %2798 = vmatpush2.xpose.msra.mxu0 0.0
        %2799 = vmatprep.subr.mxu0 0.0
        %2800 = vmatpush2.xpose.msra.mxu0 0.0
        %2801 = vmatprep.subr.mxu0 0.0
        %2802 = vmatpush2.xpose.msra.mxu0 0.0
        %2803 = vmatprep.subr.mxu0 0.0
        %2804 = vmatpush2.xpose.msra.mxu0 0.0
        %2805 = vmatprep.subr.mxu0 0.0
        %2806 = vmatpush2.xpose.msra.mxu0 0.0
        %2807 = vmatprep.subr.mxu0 0.0
        %2808 = vmatpush2.xpose.msra.mxu0 0.0
        %2809 = vmatprep.mubr.f32.mxu0 0.0
        %v2810 = vand.u32 %v2390, 4294901760
        %2811 = vmatmul.mubr.f32.gmra.mxu0 %v2810
        %v2812 = vpop.f32.mrf.mxu0
        %v2813 = vadd.f32 %v2728, %v2812
        %v2814 = vpop.f32.mrf.mxu0
        %2815 = vmatprep.mubr.f32.mxu0 0.0
        %v2816 = vand.u32 %v2393, 4294901760
        %2817 = vmatmul.mubr.f32.gmra.mxu0 %v2816
        %v2818 = vpop.f32.mrf.mxu0
        %v2819 = vadd.f32 %v2736, %v2818
        %v2820 = vpop.f32.mrf.mxu0
        %2821 = vdwg.mxu0
        %2822 = vmatprep.subr.mxu0 0.0
        %2823 = vmatpush1.xpose.msra.mxu0 0.0
        %2824 = vmatprep.subr.mxu0 0.0
        %2825 = vmatpush1.xpose.msra.mxu0 0.0
        %2826 = vmatprep.subr.mxu0 0.0
        %2827 = vmatpush1.xpose.msra.mxu0 0.0
        %2828 = vmatprep.subr.mxu0 0.0
        %2829 = vmatpush1.xpose.msra.mxu0 0.0
        %2830 = vmatprep.subr.mxu0 0.0
        %2831 = vmatpush1.xpose.msra.mxu0 0.0
        %2832 = vmatprep.subr.mxu0 0.0
        %2833 = vmatpush1.xpose.msra.mxu0 0.0
        %2834 = vmatprep.subr.mxu0 0.0
        %2835 = vmatpush1.xpose.msra.mxu0 0.0
        %2836 = vmatprep.subr.mxu0 0.0
        %2837 = vmatpush1.xpose.msra.mxu0 0.0
        %2838 = vmatprep.subr.mxu0 0.0
        %2839 = vmatpush1.xpose.msra.mxu0 0.0
        %2840 = vmatprep.subr.mxu0 0.0
        %2841 = vmatpush1.xpose.msra.mxu0 0.0
        %2842 = vmatprep.subr.mxu0 0.0
        %2843 = vmatpush1.xpose.msra.mxu0 0.0
        %2844 = vmatprep.subr.mxu0 0.0
        %2845 = vmatpush1.xpose.msra.mxu0 0.0
        %2846 = vmatprep.subr.mxu0 0.0
        %2847 = vmatpush1.xpose.msra.mxu0 0.0
        %2848 = vmatprep.subr.mxu0 0.0
        %2849 = vmatpush1.xpose.msra.mxu0 0.0
        %2850 = vmatprep.subr.mxu0 0.0
        %v2851 = vand.u32 %v2397, 4294901760
        %2852 = vmatpush1.xpose.msra.mxu0 %v2851
        %2853 = vmatprep.subr.mxu0 0.0
        %v2854 = vand.u32 %v2395, 4294901760
        %2855 = vmatpush1.xpose.msra.mxu0 %v2854
        %2856 = vmatprep.subr.mxu0 0.0
        %2857 = vmatpush2.xpose.msra.mxu0 0.0
        %2858 = vmatprep.subr.mxu0 0.0
        %2859 = vmatpush2.xpose.msra.mxu0 0.0
        %2860 = vmatprep.subr.mxu0 0.0
        %2861 = vmatpush2.xpose.msra.mxu0 0.0
        %2862 = vmatprep.subr.mxu0 0.0
        %2863 = vmatpush2.xpose.msra.mxu0 0.0
        %2864 = vmatprep.subr.mxu0 0.0
        %2865 = vmatpush2.xpose.msra.mxu0 0.0
        %2866 = vmatprep.subr.mxu0 0.0
        %2867 = vmatpush2.xpose.msra.mxu0 0.0
        %2868 = vmatprep.subr.mxu0 0.0
        %2869 = vmatpush2.xpose.msra.mxu0 0.0
        %2870 = vmatprep.subr.mxu0 0.0
        %2871 = vmatpush2.xpose.msra.mxu0 0.0
        %2872 = vmatprep.subr.mxu0 0.0
        %2873 = vmatpush2.xpose.msra.mxu0 0.0
        %2874 = vmatprep.subr.mxu0 0.0
        %2875 = vmatpush2.xpose.msra.mxu0 0.0
        %2876 = vmatprep.subr.mxu0 0.0
        %2877 = vmatpush2.xpose.msra.mxu0 0.0
        %2878 = vmatprep.subr.mxu0 0.0
        %2879 = vmatpush2.xpose.msra.mxu0 0.0
        %2880 = vmatprep.subr.mxu0 0.0
        %2881 = vmatpush2.xpose.msra.mxu0 0.0
        %2882 = vmatprep.subr.mxu0 0.0
        %2883 = vmatpush2.xpose.msra.mxu0 0.0
        %2884 = vmatprep.subr.mxu0 0.0
        %2885 = vmatpush2.xpose.msra.mxu0 0.0
        %2886 = vmatprep.subr.mxu0 0.0
        %2887 = vmatpush2.xpose.msra.mxu0 0.0
        %2888 = vmatprep.mubr.f32.mxu0 0.0
        %v2889 = vand.u32 %v2390, 4294901760
        %2890 = vmatmul.mubr.f32.gmra.mxu0 %v2889
        %v2891 = vpop.f32.mrf.mxu0
        %v2892 = vadd.f32 %v2813, %v2891
        %v2893 = vpop.f32.mrf.mxu0
        %2894 = vmatprep.mubr.f32.mxu0 0.0
        %v2895 = vand.u32 %v2393, 4294901760
        %2896 = vmatmul.mubr.f32.gmra.mxu0 %v2895
        %v2897 = vpop.f32.mrf.mxu0
        %v2898 = vadd.f32 %v2819, %v2897
        %v2899 = vpop.f32.mrf.mxu0
        %2900 = vdwg.mxu0
        %2903 = vrot.lane.b32.xlu0 %v1327, 96
        %v2904 = vpop.permute.xlu0 %2903
        %2905 = vrot.lane.b32.xlu0 %v1333, 96
        %v2906 = vpop.permute.xlu0 %2905
        %v2908 = vsel %vm1352, %v1342, 0
        %v2911 = vsel %vm1352, %v1343, 0
        %v2913 = vsel %vm1352, %v2904, 0
        %v2915 = vsel %vm1352, %v2906, 0
        %2917 = vmatprep.subr.mxu0 0.0
        %2918 = vmatpush1.xpose.msra.mxu0 0.0
        %2919 = vmatprep.subr.mxu0 0.0
        %2920 = vmatpush1.xpose.msra.mxu0 0.0
        %2921 = vmatprep.subr.mxu0 0.0
        %2922 = vmatpush1.xpose.msra.mxu0 0.0
        %2923 = vmatprep.subr.mxu0 0.0
        %2924 = vmatpush1.xpose.msra.mxu0 0.0
        %2925 = vmatprep.subr.mxu0 0.0
        %2926 = vmatpush1.xpose.msra.mxu0 0.0
        %2927 = vmatprep.subr.mxu0 0.0
        %2928 = vmatpush1.xpose.msra.mxu0 0.0
        %2929 = vmatprep.subr.mxu0 0.0
        %2930 = vmatpush1.xpose.msra.mxu0 0.0
        %2931 = vmatprep.subr.mxu0 0.0
        %2932 = vmatpush1.xpose.msra.mxu0 0.0
        %2933 = vmatprep.subr.mxu0 0.0
        %2934 = vmatpush1.xpose.msra.mxu0 0.0
        %2935 = vmatprep.subr.mxu0 0.0
        %2936 = vmatpush1.xpose.msra.mxu0 0.0
        %2937 = vmatprep.subr.mxu0 0.0
        %2938 = vmatpush1.xpose.msra.mxu0 0.0
        %2939 = vmatprep.subr.mxu0 0.0
        %2940 = vmatpush1.xpose.msra.mxu0 0.0
        %2941 = vmatprep.subr.mxu0 0.0
        %2942 = vmatpush1.xpose.msra.mxu0 0.0
        %2943 = vmatprep.subr.mxu0 0.0
        %2944 = vmatpush1.xpose.msra.mxu0 0.0
        %2945 = vmatprep.subr.mxu0 0.0
        %v2946 = vand.u32 %v2915, 4294901760
        %2947 = vmatpush1.xpose.msra.mxu0 %v2946
        %2948 = vmatprep.subr.mxu0 0.0
        %v2949 = vand.u32 %v2913, 4294901760
        %2950 = vmatpush1.xpose.msra.mxu0 %v2949
        %2951 = vmatprep.subr.mxu0 0.0
        %2952 = vmatpush2.xpose.msra.mxu0 0.0
        %2953 = vmatprep.subr.mxu0 0.0
        %2954 = vmatpush2.xpose.msra.mxu0 0.0
        %2955 = vmatprep.subr.mxu0 0.0
        %2956 = vmatpush2.xpose.msra.mxu0 0.0
        %2957 = vmatprep.subr.mxu0 0.0
        %2958 = vmatpush2.xpose.msra.mxu0 0.0
        %2959 = vmatprep.subr.mxu0 0.0
        %2960 = vmatpush2.xpose.msra.mxu0 0.0
        %2961 = vmatprep.subr.mxu0 0.0
        %2962 = vmatpush2.xpose.msra.mxu0 0.0
        %2963 = vmatprep.subr.mxu0 0.0
        %2964 = vmatpush2.xpose.msra.mxu0 0.0
        %2965 = vmatprep.subr.mxu0 0.0
        %2966 = vmatpush2.xpose.msra.mxu0 0.0
        %2967 = vmatprep.subr.mxu0 0.0
        %2968 = vmatpush2.xpose.msra.mxu0 0.0
        %2969 = vmatprep.subr.mxu0 0.0
        %2970 = vmatpush2.xpose.msra.mxu0 0.0
        %2971 = vmatprep.subr.mxu0 0.0
        %2972 = vmatpush2.xpose.msra.mxu0 0.0
        %2973 = vmatprep.subr.mxu0 0.0
        %2974 = vmatpush2.xpose.msra.mxu0 0.0
        %2975 = vmatprep.subr.mxu0 0.0
        %2976 = vmatpush2.xpose.msra.mxu0 0.0
        %2977 = vmatprep.subr.mxu0 0.0
        %2978 = vmatpush2.xpose.msra.mxu0 0.0
        %2979 = vmatprep.subr.mxu0 0.0
        %2980 = vmatpush2.xpose.msra.mxu0 0.0
        %2981 = vmatprep.subr.mxu0 0.0
        %2982 = vmatpush2.xpose.msra.mxu0 0.0
        %2983 = vmatprep.mubr.f32.mxu0 0.0
        %v2984 = vand.u32 %v2908, 4294901760
        %v2985 = vsub.f32 %v2908, %v2984
        %v2986 = vand.u32 %v2985, 4294901760
        %v2987 = vsub.f32 %v2985, %v2986
        %v2988 = vand.u32 %v2987, 4294901760
        %2989 = vmatmul.mubr.f32.gmra.mxu0 %v2988
        %v2990 = vpop.f32.mrf.mxu0
        %v2991 = vadd.f32 %v1344, %v2990
        %v2992 = vpop.f32.mrf.mxu0
        %2993 = vmatprep.mubr.f32.mxu0 0.0
        %v2994 = vand.u32 %v2911, 4294901760
        %v2995 = vsub.f32 %v2911, %v2994
        %v2996 = vand.u32 %v2995, 4294901760
        %v2997 = vsub.f32 %v2995, %v2996
        %v2998 = vand.u32 %v2997, 4294901760
        %2999 = vmatmul.mubr.f32.gmra.mxu0 %v2998
        %v3000 = vpop.f32.mrf.mxu0
        %v3001 = vadd.f32 %v1345, %v3000
        %v3002 = vpop.f32.mrf.mxu0
        %3003 = vdwg.mxu0
        %3004 = vmatprep.subr.mxu0 0.0
        %3005 = vmatpush1.xpose.msra.mxu0 0.0
        %3006 = vmatprep.subr.mxu0 0.0
        %3007 = vmatpush1.xpose.msra.mxu0 0.0
        %3008 = vmatprep.subr.mxu0 0.0
        %3009 = vmatpush1.xpose.msra.mxu0 0.0
        %3010 = vmatprep.subr.mxu0 0.0
        %3011 = vmatpush1.xpose.msra.mxu0 0.0
        %3012 = vmatprep.subr.mxu0 0.0
        %3013 = vmatpush1.xpose.msra.mxu0 0.0
        %3014 = vmatprep.subr.mxu0 0.0
        %3015 = vmatpush1.xpose.msra.mxu0 0.0
        %3016 = vmatprep.subr.mxu0 0.0
        %3017 = vmatpush1.xpose.msra.mxu0 0.0
        %3018 = vmatprep.subr.mxu0 0.0
        %3019 = vmatpush1.xpose.msra.mxu0 0.0
        %3020 = vmatprep.subr.mxu0 0.0
        %3021 = vmatpush1.xpose.msra.mxu0 0.0
        %3022 = vmatprep.subr.mxu0 0.0
        %3023 = vmatpush1.xpose.msra.mxu0 0.0
        %3024 = vmatprep.subr.mxu0 0.0
        %3025 = vmatpush1.xpose.msra.mxu0 0.0
        %3026 = vmatprep.subr.mxu0 0.0
        %3027 = vmatpush1.xpose.msra.mxu0 0.0
        %3028 = vmatprep.subr.mxu0 0.0
        %3029 = vmatpush1.xpose.msra.mxu0 0.0
        %3030 = vmatprep.subr.mxu0 0.0
        %3031 = vmatpush1.xpose.msra.mxu0 0.0
        %3032 = vmatprep.subr.mxu0 0.0
        %v3033 = vand.u32 %v2915, 4294901760
        %v3034 = vsub.f32 %v2915, %v3033
        %v3035 = vand.u32 %v3034, 4294901760
        %v3036 = vsub.f32 %v3034, %v3035
        %v3037 = vand.u32 %v3036, 4294901760
        %3038 = vmatpush1.xpose.msra.mxu0 %v3037
        %3039 = vmatprep.subr.mxu0 0.0
        %v3040 = vand.u32 %v2913, 4294901760
        %v3041 = vsub.f32 %v2913, %v3040
        %v3042 = vand.u32 %v3041, 4294901760
        %v3043 = vsub.f32 %v3041, %v3042
        %v3044 = vand.u32 %v3043, 4294901760
        %3045 = vmatpush1.xpose.msra.mxu0 %v3044
        %3046 = vmatprep.subr.mxu0 0.0
        %3047 = vmatpush2.xpose.msra.mxu0 0.0
        %3048 = vmatprep.subr.mxu0 0.0
        %3049 = vmatpush2.xpose.msra.mxu0 0.0
        %3050 = vmatprep.subr.mxu0 0.0
        %3051 = vmatpush2.xpose.msra.mxu0 0.0
        %3052 = vmatprep.subr.mxu0 0.0
        %3053 = vmatpush2.xpose.msra.mxu0 0.0
        %3054 = vmatprep.subr.mxu0 0.0
        %3055 = vmatpush2.xpose.msra.mxu0 0.0
        %3056 = vmatprep.subr.mxu0 0.0
        %3057 = vmatpush2.xpose.msra.mxu0 0.0
        %3058 = vmatprep.subr.mxu0 0.0
        %3059 = vmatpush2.xpose.msra.mxu0 0.0
        %3060 = vmatprep.subr.mxu0 0.0
        %3061 = vmatpush2.xpose.msra.mxu0 0.0
        %3062 = vmatprep.subr.mxu0 0.0
        %3063 = vmatpush2.xpose.msra.mxu0 0.0
        %3064 = vmatprep.subr.mxu0 0.0
        %3065 = vmatpush2.xpose.msra.mxu0 0.0
        %3066 = vmatprep.subr.mxu0 0.0
        %3067 = vmatpush2.xpose.msra.mxu0 0.0
        %3068 = vmatprep.subr.mxu0 0.0
        %3069 = vmatpush2.xpose.msra.mxu0 0.0
        %3070 = vmatprep.subr.mxu0 0.0
        %3071 = vmatpush2.xpose.msra.mxu0 0.0
        %3072 = vmatprep.subr.mxu0 0.0
        %3073 = vmatpush2.xpose.msra.mxu0 0.0
        %3074 = vmatprep.subr.mxu0 0.0
        %3075 = vmatpush2.xpose.msra.mxu0 0.0
        %3076 = vmatprep.subr.mxu0 0.0
        %3077 = vmatpush2.xpose.msra.mxu0 0.0
        %3078 = vmatprep.mubr.f32.mxu0 0.0
        %v3079 = vand.u32 %v2908, 4294901760
        %3080 = vmatmul.mubr.f32.gmra.mxu0 %v3079
        %v3081 = vpop.f32.mrf.mxu0
        %v3082 = vadd.f32 %v2991, %v3081
        %v3083 = vpop.f32.mrf.mxu0
        %3084 = vmatprep.mubr.f32.mxu0 0.0
        %v3085 = vand.u32 %v2911, 4294901760
        %3086 = vmatmul.mubr.f32.gmra.mxu0 %v3085
        %v3087 = vpop.f32.mrf.mxu0
        %v3088 = vadd.f32 %v3001, %v3087
        %v3089 = vpop.f32.mrf.mxu0
        %3090 = vdwg.mxu0
        %3091 = vmatprep.subr.mxu0 0.0
        %3092 = vmatpush1.xpose.msra.mxu0 0.0
        %3093 = vmatprep.subr.mxu0 0.0
        %3094 = vmatpush1.xpose.msra.mxu0 0.0
        %3095 = vmatprep.subr.mxu0 0.0
        %3096 = vmatpush1.xpose.msra.mxu0 0.0
        %3097 = vmatprep.subr.mxu0 0.0
        %3098 = vmatpush1.xpose.msra.mxu0 0.0
        %3099 = vmatprep.subr.mxu0 0.0
        %3100 = vmatpush1.xpose.msra.mxu0 0.0
        %3101 = vmatprep.subr.mxu0 0.0
        %3102 = vmatpush1.xpose.msra.mxu0 0.0
        %3103 = vmatprep.subr.mxu0 0.0
        %3104 = vmatpush1.xpose.msra.mxu0 0.0
        %3105 = vmatprep.subr.mxu0 0.0
        %3106 = vmatpush1.xpose.msra.mxu0 0.0
        %3107 = vmatprep.subr.mxu0 0.0
        %3108 = vmatpush1.xpose.msra.mxu0 0.0
        %3109 = vmatprep.subr.mxu0 0.0
        %3110 = vmatpush1.xpose.msra.mxu0 0.0
        %3111 = vmatprep.subr.mxu0 0.0
        %3112 = vmatpush1.xpose.msra.mxu0 0.0
        %3113 = vmatprep.subr.mxu0 0.0
        %3114 = vmatpush1.xpose.msra.mxu0 0.0
        %3115 = vmatprep.subr.mxu0 0.0
        %3116 = vmatpush1.xpose.msra.mxu0 0.0
        %3117 = vmatprep.subr.mxu0 0.0
        %3118 = vmatpush1.xpose.msra.mxu0 0.0
        %3119 = vmatprep.subr.mxu0 0.0
        %v3120 = vand.u32 %v2915, 4294901760
        %v3121 = vsub.f32 %v2915, %v3120
        %3122 = vmatpush1.xpose.msra.mxu0 %v3121
        %3123 = vmatprep.subr.mxu0 0.0
        %v3124 = vand.u32 %v2913, 4294901760
        %v3125 = vsub.f32 %v2913, %v3124
        %3126 = vmatpush1.xpose.msra.mxu0 %v3125
        %3127 = vmatprep.subr.mxu0 0.0
        %3128 = vmatpush2.xpose.msra.mxu0 0.0
        %3129 = vmatprep.subr.mxu0 0.0
        %3130 = vmatpush2.xpose.msra.mxu0 0.0
        %3131 = vmatprep.subr.mxu0 0.0
        %3132 = vmatpush2.xpose.msra.mxu0 0.0
        %3133 = vmatprep.subr.mxu0 0.0
        %3134 = vmatpush2.xpose.msra.mxu0 0.0
        %3135 = vmatprep.subr.mxu0 0.0
        %3136 = vmatpush2.xpose.msra.mxu0 0.0
        %3137 = vmatprep.subr.mxu0 0.0
        %3138 = vmatpush2.xpose.msra.mxu0 0.0
        %3139 = vmatprep.subr.mxu0 0.0
        %3140 = vmatpush2.xpose.msra.mxu0 0.0
        %3141 = vmatprep.subr.mxu0 0.0
        %3142 = vmatpush2.xpose.msra.mxu0 0.0
        %3143 = vmatprep.subr.mxu0 0.0
        %3144 = vmatpush2.xpose.msra.mxu0 0.0
        %3145 = vmatprep.subr.mxu0 0.0
        %3146 = vmatpush2.xpose.msra.mxu0 0.0
        %3147 = vmatprep.subr.mxu0 0.0
        %3148 = vmatpush2.xpose.msra.mxu0 0.0
        %3149 = vmatprep.subr.mxu0 0.0
        %3150 = vmatpush2.xpose.msra.mxu0 0.0
        %3151 = vmatprep.subr.mxu0 0.0
        %3152 = vmatpush2.xpose.msra.mxu0 0.0
        %3153 = vmatprep.subr.mxu0 0.0
        %3154 = vmatpush2.xpose.msra.mxu0 0.0
        %3155 = vmatprep.subr.mxu0 0.0
        %3156 = vmatpush2.xpose.msra.mxu0 0.0
        %3157 = vmatprep.subr.mxu0 0.0
        %3158 = vmatpush2.xpose.msra.mxu0 0.0
        %3159 = vmatprep.mubr.f32.mxu0 0.0
        %v3160 = vand.u32 %v2908, 4294901760
        %v3161 = vsub.f32 %v2908, %v3160
        %3162 = vmatmul.mubr.f32.gmra.mxu0 %v3161
        %v3163 = vpop.f32.mrf.mxu0
        %v3164 = vadd.f32 %v3082, %v3163
        %v3165 = vpop.f32.mrf.mxu0
        %3166 = vmatprep.mubr.f32.mxu0 0.0
        %v3167 = vand.u32 %v2911, 4294901760
        %v3168 = vsub.f32 %v2911, %v3167
        %3169 = vmatmul.mubr.f32.gmra.mxu0 %v3168
        %v3170 = vpop.f32.mrf.mxu0
        %v3171 = vadd.f32 %v3088, %v3170
        %v3172 = vpop.f32.mrf.mxu0
        %3173 = vdwg.mxu0
        %3174 = vmatprep.subr.mxu0 0.0
        %3175 = vmatpush1.xpose.msra.mxu0 0.0
        %3176 = vmatprep.subr.mxu0 0.0
        %3177 = vmatpush1.xpose.msra.mxu0 0.0
        %3178 = vmatprep.subr.mxu0 0.0
        %3179 = vmatpush1.xpose.msra.mxu0 0.0
        %3180 = vmatprep.subr.mxu0 0.0
        %3181 = vmatpush1.xpose.msra.mxu0 0.0
        %3182 = vmatprep.subr.mxu0 0.0
        %3183 = vmatpush1.xpose.msra.mxu0 0.0
        %3184 = vmatprep.subr.mxu0 0.0
        %3185 = vmatpush1.xpose.msra.mxu0 0.0
        %3186 = vmatprep.subr.mxu0 0.0
        %3187 = vmatpush1.xpose.msra.mxu0 0.0
        %3188 = vmatprep.subr.mxu0 0.0
        %3189 = vmatpush1.xpose.msra.mxu0 0.0
        %3190 = vmatprep.subr.mxu0 0.0
        %3191 = vmatpush1.xpose.msra.mxu0 0.0
        %3192 = vmatprep.subr.mxu0 0.0
        %3193 = vmatpush1.xpose.msra.mxu0 0.0
        %3194 = vmatprep.subr.mxu0 0.0
        %3195 = vmatpush1.xpose.msra.mxu0 0.0
        %3196 = vmatprep.subr.mxu0 0.0
        %3197 = vmatpush1.xpose.msra.mxu0 0.0
        %3198 = vmatprep.subr.mxu0 0.0
        %3199 = vmatpush1.xpose.msra.mxu0 0.0
        %3200 = vmatprep.subr.mxu0 0.0
        %3201 = vmatpush1.xpose.msra.mxu0 0.0
        %3202 = vmatprep.subr.mxu0 0.0
        %v3203 = vand.u32 %v2915, 4294901760
        %3204 = vmatpush1.xpose.msra.mxu0 %v3203
        %3205 = vmatprep.subr.mxu0 0.0
        %v3206 = vand.u32 %v2913, 4294901760
        %3207 = vmatpush1.xpose.msra.mxu0 %v3206
        %3208 = vmatprep.subr.mxu0 0.0
        %3209 = vmatpush2.xpose.msra.mxu0 0.0
        %3210 = vmatprep.subr.mxu0 0.0
        %3211 = vmatpush2.xpose.msra.mxu0 0.0
        %3212 = vmatprep.subr.mxu0 0.0
        %3213 = vmatpush2.xpose.msra.mxu0 0.0
        %3214 = vmatprep.subr.mxu0 0.0
        %3215 = vmatpush2.xpose.msra.mxu0 0.0
        %3216 = vmatprep.subr.mxu0 0.0
        %3217 = vmatpush2.xpose.msra.mxu0 0.0
        %3218 = vmatprep.subr.mxu0 0.0
        %3219 = vmatpush2.xpose.msra.mxu0 0.0
        %3220 = vmatprep.subr.mxu0 0.0
        %3221 = vmatpush2.xpose.msra.mxu0 0.0
        %3222 = vmatprep.subr.mxu0 0.0
        %3223 = vmatpush2.xpose.msra.mxu0 0.0
        %3224 = vmatprep.subr.mxu0 0.0
        %3225 = vmatpush2.xpose.msra.mxu0 0.0
        %3226 = vmatprep.subr.mxu0 0.0
        %3227 = vmatpush2.xpose.msra.mxu0 0.0
        %3228 = vmatprep.subr.mxu0 0.0
        %3229 = vmatpush2.xpose.msra.mxu0 0.0
        %3230 = vmatprep.subr.mxu0 0.0
        %3231 = vmatpush2.xpose.msra.mxu0 0.0
        %3232 = vmatprep.subr.mxu0 0.0
        %3233 = vmatpush2.xpose.msra.mxu0 0.0
        %3234 = vmatprep.subr.mxu0 0.0
        %3235 = vmatpush2.xpose.msra.mxu0 0.0
        %3236 = vmatprep.subr.mxu0 0.0
        %3237 = vmatpush2.xpose.msra.mxu0 0.0
        %3238 = vmatprep.subr.mxu0 0.0
        %3239 = vmatpush2.xpose.msra.mxu0 0.0
        %3240 = vmatprep.mubr.f32.mxu0 0.0
        %v3241 = vand.u32 %v2908, 4294901760
        %v3242 = vsub.f32 %v2908, %v3241
        %v3243 = vand.u32 %v3242, 4294901760
        %3244 = vmatmul.mubr.f32.gmra.mxu0 %v3243
        %v3245 = vpop.f32.mrf.mxu0
        %v3246 = vadd.f32 %v3164, %v3245
        %v3247 = vpop.f32.mrf.mxu0
        %3248 = vmatprep.mubr.f32.mxu0 0.0
        %v3249 = vand.u32 %v2911, 4294901760
        %v3250 = vsub.f32 %v2911, %v3249
        %v3251 = vand.u32 %v3250, 4294901760
        %3252 = vmatmul.mubr.f32.gmra.mxu0 %v3251
        %v3253 = vpop.f32.mrf.mxu0
        %v3254 = vadd.f32 %v3171, %v3253
        %v3255 = vpop.f32.mrf.mxu0
        %3256 = vdwg.mxu0
        %3257 = vmatprep.subr.mxu0 0.0
        %3258 = vmatpush1.xpose.msra.mxu0 0.0
        %3259 = vmatprep.subr.mxu0 0.0
        %3260 = vmatpush1.xpose.msra.mxu0 0.0
        %3261 = vmatprep.subr.mxu0 0.0
        %3262 = vmatpush1.xpose.msra.mxu0 0.0
        %3263 = vmatprep.subr.mxu0 0.0
        %3264 = vmatpush1.xpose.msra.mxu0 0.0
        %3265 = vmatprep.subr.mxu0 0.0
        %3266 = vmatpush1.xpose.msra.mxu0 0.0
        %3267 = vmatprep.subr.mxu0 0.0
        %3268 = vmatpush1.xpose.msra.mxu0 0.0
        %3269 = vmatprep.subr.mxu0 0.0
        %3270 = vmatpush1.xpose.msra.mxu0 0.0
        %3271 = vmatprep.subr.mxu0 0.0
        %3272 = vmatpush1.xpose.msra.mxu0 0.0
        %3273 = vmatprep.subr.mxu0 0.0
        %3274 = vmatpush1.xpose.msra.mxu0 0.0
        %3275 = vmatprep.subr.mxu0 0.0
        %3276 = vmatpush1.xpose.msra.mxu0 0.0
        %3277 = vmatprep.subr.mxu0 0.0
        %3278 = vmatpush1.xpose.msra.mxu0 0.0
        %3279 = vmatprep.subr.mxu0 0.0
        %3280 = vmatpush1.xpose.msra.mxu0 0.0
        %3281 = vmatprep.subr.mxu0 0.0
        %3282 = vmatpush1.xpose.msra.mxu0 0.0
        %3283 = vmatprep.subr.mxu0 0.0
        %3284 = vmatpush1.xpose.msra.mxu0 0.0
        %3285 = vmatprep.subr.mxu0 0.0
        %v3286 = vand.u32 %v2915, 4294901760
        %v3287 = vsub.f32 %v2915, %v3286
        %v3288 = vand.u32 %v3287, 4294901760
        %3289 = vmatpush1.xpose.msra.mxu0 %v3288
        %3290 = vmatprep.subr.mxu0 0.0
        %v3291 = vand.u32 %v2913, 4294901760
        %v3292 = vsub.f32 %v2913, %v3291
        %v3293 = vand.u32 %v3292, 4294901760
        %3294 = vmatpush1.xpose.msra.mxu0 %v3293
        %3295 = vmatprep.subr.mxu0 0.0
        %3296 = vmatpush2.xpose.msra.mxu0 0.0
        %3297 = vmatprep.subr.mxu0 0.0
        %3298 = vmatpush2.xpose.msra.mxu0 0.0
        %3299 = vmatprep.subr.mxu0 0.0
        %3300 = vmatpush2.xpose.msra.mxu0 0.0
        %3301 = vmatprep.subr.mxu0 0.0
        %3302 = vmatpush2.xpose.msra.mxu0 0.0
        %3303 = vmatprep.subr.mxu0 0.0
        %3304 = vmatpush2.xpose.msra.mxu0 0.0
        %3305 = vmatprep.subr.mxu0 0.0
        %3306 = vmatpush2.xpose.msra.mxu0 0.0
        %3307 = vmatprep.subr.mxu0 0.0
        %3308 = vmatpush2.xpose.msra.mxu0 0.0
        %3309 = vmatprep.subr.mxu0 0.0
        %3310 = vmatpush2.xpose.msra.mxu0 0.0
        %3311 = vmatprep.subr.mxu0 0.0
        %3312 = vmatpush2.xpose.msra.mxu0 0.0
        %3313 = vmatprep.subr.mxu0 0.0
        %3314 = vmatpush2.xpose.msra.mxu0 0.0
        %3315 = vmatprep.subr.mxu0 0.0
        %3316 = vmatpush2.xpose.msra.mxu0 0.0
        %3317 = vmatprep.subr.mxu0 0.0
        %3318 = vmatpush2.xpose.msra.mxu0 0.0
        %3319 = vmatprep.subr.mxu0 0.0
        %3320 = vmatpush2.xpose.msra.mxu0 0.0
        %3321 = vmatprep.subr.mxu0 0.0
        %3322 = vmatpush2.xpose.msra.mxu0 0.0
        %3323 = vmatprep.subr.mxu0 0.0
        %3324 = vmatpush2.xpose.msra.mxu0 0.0
        %3325 = vmatprep.subr.mxu0 0.0
        %3326 = vmatpush2.xpose.msra.mxu0 0.0
        %3327 = vmatprep.mubr.f32.mxu0 0.0
        %v3328 = vand.u32 %v2908, 4294901760
        %3329 = vmatmul.mubr.f32.gmra.mxu0 %v3328
        %v3330 = vpop.f32.mrf.mxu0
        %v3331 = vadd.f32 %v3246, %v3330
        %v3332 = vpop.f32.mrf.mxu0
        %3333 = vmatprep.mubr.f32.mxu0 0.0
        %v3334 = vand.u32 %v2911, 4294901760
        %3335 = vmatmul.mubr.f32.gmra.mxu0 %v3334
        %v3336 = vpop.f32.mrf.mxu0
        %v3337 = vadd.f32 %v3254, %v3336
        %v3338 = vpop.f32.mrf.mxu0
        %3339 = vdwg.mxu0
        %3340 = vmatprep.subr.mxu0 0.0
        %3341 = vmatpush1.xpose.msra.mxu0 0.0
        %3342 = vmatprep.subr.mxu0 0.0
        %3343 = vmatpush1.xpose.msra.mxu0 0.0
        %3344 = vmatprep.subr.mxu0 0.0
        %3345 = vmatpush1.xpose.msra.mxu0 0.0
        %3346 = vmatprep.subr.mxu0 0.0
        %3347 = vmatpush1.xpose.msra.mxu0 0.0
        %3348 = vmatprep.subr.mxu0 0.0
        %3349 = vmatpush1.xpose.msra.mxu0 0.0
        %3350 = vmatprep.subr.mxu0 0.0
        %3351 = vmatpush1.xpose.msra.mxu0 0.0
        %3352 = vmatprep.subr.mxu0 0.0
        %3353 = vmatpush1.xpose.msra.mxu0 0.0
        %3354 = vmatprep.subr.mxu0 0.0
        %3355 = vmatpush1.xpose.msra.mxu0 0.0
        %3356 = vmatprep.subr.mxu0 0.0
        %3357 = vmatpush1.xpose.msra.mxu0 0.0
        %3358 = vmatprep.subr.mxu0 0.0
        %3359 = vmatpush1.xpose.msra.mxu0 0.0
        %3360 = vmatprep.subr.mxu0 0.0
        %3361 = vmatpush1.xpose.msra.mxu0 0.0
        %3362 = vmatprep.subr.mxu0 0.0
        %3363 = vmatpush1.xpose.msra.mxu0 0.0
        %3364 = vmatprep.subr.mxu0 0.0
        %3365 = vmatpush1.xpose.msra.mxu0 0.0
        %3366 = vmatprep.subr.mxu0 0.0
        %3367 = vmatpush1.xpose.msra.mxu0 0.0
        %3368 = vmatprep.subr.mxu0 0.0
        %v3369 = vand.u32 %v2915, 4294901760
        %3370 = vmatpush1.xpose.msra.mxu0 %v3369
        %3371 = vmatprep.subr.mxu0 0.0
        %v3372 = vand.u32 %v2913, 4294901760
        %3373 = vmatpush1.xpose.msra.mxu0 %v3372
        %3374 = vmatprep.subr.mxu0 0.0
        %3375 = vmatpush2.xpose.msra.mxu0 0.0
        %3376 = vmatprep.subr.mxu0 0.0
        %3377 = vmatpush2.xpose.msra.mxu0 0.0
        %3378 = vmatprep.subr.mxu0 0.0
        %3379 = vmatpush2.xpose.msra.mxu0 0.0
        %3380 = vmatprep.subr.mxu0 0.0
        %3381 = vmatpush2.xpose.msra.mxu0 0.0
        %3382 = vmatprep.subr.mxu0 0.0
        %3383 = vmatpush2.xpose.msra.mxu0 0.0
        %3384 = vmatprep.subr.mxu0 0.0
        %3385 = vmatpush2.xpose.msra.mxu0 0.0
        %3386 = vmatprep.subr.mxu0 0.0
        %3387 = vmatpush2.xpose.msra.mxu0 0.0
        %3388 = vmatprep.subr.mxu0 0.0
        %3389 = vmatpush2.xpose.msra.mxu0 0.0
        %3390 = vmatprep.subr.mxu0 0.0
        %3391 = vmatpush2.xpose.msra.mxu0 0.0
        %3392 = vmatprep.subr.mxu0 0.0
        %3393 = vmatpush2.xpose.msra.mxu0 0.0
        %3394 = vmatprep.subr.mxu0 0.0
        %3395 = vmatpush2.xpose.msra.mxu0 0.0
        %3396 = vmatprep.subr.mxu0 0.0
        %3397 = vmatpush2.xpose.msra.mxu0 0.0
        %3398 = vmatprep.subr.mxu0 0.0
        %3399 = vmatpush2.xpose.msra.mxu0 0.0
        %3400 = vmatprep.subr.mxu0 0.0
        %3401 = vmatpush2.xpose.msra.mxu0 0.0
        %3402 = vmatprep.subr.mxu0 0.0
        %3403 = vmatpush2.xpose.msra.mxu0 0.0
        %3404 = vmatprep.subr.mxu0 0.0
        %3405 = vmatpush2.xpose.msra.mxu0 0.0
        %3406 = vmatprep.mubr.f32.mxu0 0.0
        %v3407 = vand.u32 %v2908, 4294901760
        %3408 = vmatmul.mubr.f32.gmra.mxu0 %v3407
        %v3409 = vpop.f32.mrf.mxu0
        %v3410 = vadd.f32 %v3331, %v3409
        %v3411 = vpop.f32.mrf.mxu0
        %3412 = vmatprep.mubr.f32.mxu0 0.0
        %v3413 = vand.u32 %v2911, 4294901760
        %3414 = vmatmul.mubr.f32.gmra.mxu0 %v3413
        %v3415 = vpop.f32.mrf.mxu0
        %v3416 = vadd.f32 %v3337, %v3415
        %v3417 = vpop.f32.mrf.mxu0
        %3418 = vdwg.mxu0
        %v3419 = vsel %vm1352, %v1856, -inf
        %3420 = vmax.xlane.f32.xlu0 %v3419
        %v3421 = vpop.xlane.xlu0 %3420
        %v3422 = vsel %vm1352, %v1862, -inf
        %3423 = vmax.xlane.f32.xlu0 %v3422
        %v3424 = vpop.xlane.xlu0 %3423
        %v3425 = vsel %vm1352, %v2374, -inf
        %3426 = vmax.xlane.f32.xlu0 %v3425
        %v3427 = vpop.xlane.xlu0 %3426
        %v3428 = vsel %vm1352, %v2380, -inf
        %3429 = vmax.xlane.f32.xlu0 %v3428
        %v3430 = vpop.xlane.xlu0 %3429
        %v3431 = vsel %vm1352, %v2892, -inf
        %3432 = vmax.xlane.f32.xlu0 %v3431
        %v3433 = vpop.xlane.xlu0 %3432
        %v3434 = vsel %vm1352, %v2898, -inf
        %3435 = vmax.xlane.f32.xlu0 %v3434
        %v3436 = vpop.xlane.xlu0 %3435
        %v3437 = vsel %vm1352, %v3410, -inf
        %3438 = vmax.xlane.f32.xlu0 %v3437
        %v3439 = vpop.xlane.xlu0 %3438
        %v3440 = vsel %vm1352, %v3416, -inf
        %3441 = vmax.xlane.f32.xlu0 %v3440
        %v3442 = vpop.xlane.xlu0 %3441
        %v3443 = vsub.f32 %v1856, %v3421
        %v3444 = vsub.f32 %v1862, %v3424
        %v3445 = vsub.f32 %v2374, %v3427
        %v3446 = vsub.f32 %v2380, %v3430
        %v3447 = vsub.f32 %v2892, %v3433
        %v3448 = vsub.f32 %v2898, %v3436
        %v3449 = vsub.f32 %v3410, %v3439
        %v3450 = vsub.f32 %v3416, %v3442
        %v3451 = vmul.f32 %v3443, 1.442695
        %v3452 = vpow.pop %v3451
        %v3453 = vmul.f32 %v3444, 1.442695
        %v3454 = vpow.pop %v3453
        %v3455 = vmul.f32 %v3445, 1.442695
        %v3456 = vpow.pop %v3455
        %v3457 = vmul.f32 %v3446, 1.442695
        %v3458 = vpow.pop %v3457
        %v3459 = vmul.f32 %v3447, 1.442695
        %v3460 = vpow.pop %v3459
        %v3461 = vmul.f32 %v3448, 1.442695
        %v3462 = vpow.pop %v3461
        %v3463 = vmul.f32 %v3449, 1.442695
        %v3464 = vpow.pop %v3463
        %v3465 = vmul.f32 %v3450, 1.442695
        %v3466 = vpow.pop %v3465
        %v3467 = vsel %vm1352, %v3452, 0.0
        %3468 = vadd.xlane.f32.xlu0 %v3467
        %v3469 = vpop.xlane.xlu0 %3468
        %v3470 = vsel %vm1352, %v3454, 0.0
        %3471 = vadd.xlane.f32.xlu0 %v3470
        %v3472 = vpop.xlane.xlu0 %3471
        %v3473 = vsel %vm1352, %v3456, 0.0
        %3474 = vadd.xlane.f32.xlu0 %v3473
        %v3475 = vpop.xlane.xlu0 %3474
        %v3476 = vsel %vm1352, %v3458, 0.0
        %3477 = vadd.xlane.f32.xlu0 %v3476
        %v3478 = vpop.xlane.xlu0 %3477
        %v3479 = vsel %vm1352, %v3460, 0.0
        %3480 = vadd.xlane.f32.xlu0 %v3479
        %v3481 = vpop.xlane.xlu0 %3480
        %v3482 = vsel %vm1352, %v3462, 0.0
        %3483 = vadd.xlane.f32.xlu0 %v3482
        %v3484 = vpop.xlane.xlu0 %3483
        %v3485 = vsel %vm1352, %v3464, 0.0
        %3486 = vadd.xlane.f32.xlu0 %v3485
        %v3487 = vpop.xlane.xlu0 %3486
        %v3488 = vsel %vm1352, %v3466, 0.0
        %3489 = vadd.xlane.f32.xlu0 %v3488
        %v3490 = vpop.xlane.xlu0 %3489
        %v3491 = vrcp.pop %v3469
        %v3492 = vmul.f32 %v3452, %v3491
        %v3493 = vrcp.pop %v3472
        %v3494 = vmul.f32 %v3454, %v3493
        %v3495 = vrcp.pop %v3475
        %v3496 = vmul.f32 %v3456, %v3495
        %v3497 = vrcp.pop %v3478
        %v3498 = vmul.f32 %v3458, %v3497
        %v3499 = vrcp.pop %v3481
        %v3500 = vmul.f32 %v3460, %v3499
        %v3501 = vrcp.pop %v3484
        %v3502 = vmul.f32 %v3462, %v3501
        %v3503 = vrcp.pop %v3487
        %v3504 = vmul.f32 %v3464, %v3503
        %v3505 = vrcp.pop %v3490
        %v3506 = vmul.f32 %v3466, %v3505
        %3507 = vrot.lane.b32.xlu0 %v1291, 64
        %v3508 = vpop.permute.xlu0 %3507
        %3509 = vrot.lane.b32.xlu0 %v1297, 64
        %v3510 = vpop.permute.xlu0 %3509
        %v3514 = vsel %vm1352, %v3492, 0
        %v3517 = vsel %vm1352, %v3494, 0
        %3519 = vmatprep.subr.mxu0 0.0
        %3520 = vmatpush1.msra.mxu0 0.0
        %3521 = vmatprep.subr.mxu0 0.0
        %3522 = vmatpush1.msra.mxu0 0.0
        %3523 = vmatprep.subr.mxu0 0.0
        %3524 = vmatpush1.msra.mxu0 0.0
        %3525 = vmatprep.subr.mxu0 0.0
        %3526 = vmatpush1.msra.mxu0 0.0
        %3527 = vmatprep.subr.mxu0 0.0
        %3528 = vmatpush1.msra.mxu0 0.0
        %3529 = vmatprep.subr.mxu0 0.0
        %3530 = vmatpush1.msra.mxu0 0.0
        %3531 = vmatprep.subr.mxu0 0.0
        %3532 = vmatpush1.msra.mxu0 0.0
        %3533 = vmatprep.subr.mxu0 0.0
        %3534 = vmatpush1.msra.mxu0 0.0
        %3535 = vmatprep.subr.mxu0 0.0
        %3536 = vmatpush1.msra.mxu0 0.0
        %3537 = vmatprep.subr.mxu0 0.0
        %3538 = vmatpush1.msra.mxu0 0.0
        %3539 = vmatprep.subr.mxu0 0.0
        %3540 = vmatpush1.msra.mxu0 0.0
        %3541 = vmatprep.subr.mxu0 0.0
        %3542 = vmatpush1.msra.mxu0 0.0
        %3543 = vmatprep.subr.mxu0 0.0
        %3544 = vmatpush1.msra.mxu0 0.0
        %3545 = vmatprep.subr.mxu0 0.0
        %3546 = vmatpush1.msra.mxu0 0.0
        %3547 = vmatprep.subr.mxu0 0.0
        %v3548 = vand.u32 %v3510, 4294901760
        %3549 = vmatpush1.msra.mxu0 %v3548
        %3550 = vmatprep.subr.mxu0 0.0
        %v3551 = vand.u32 %v3508, 4294901760
        %3552 = vmatpush1.msra.mxu0 %v3551
        %3553 = vmatprep.subr.mxu0 0.0
        %3554 = vmatpush2.msra.mxu0 0.0
        %3555 = vmatprep.subr.mxu0 0.0
        %3556 = vmatpush2.msra.mxu0 0.0
        %3557 = vmatprep.subr.mxu0 0.0
        %3558 = vmatpush2.msra.mxu0 0.0
        %3559 = vmatprep.subr.mxu0 0.0
        %3560 = vmatpush2.msra.mxu0 0.0
        %3561 = vmatprep.subr.mxu0 0.0
        %3562 = vmatpush2.msra.mxu0 0.0
        %3563 = vmatprep.subr.mxu0 0.0
        %3564 = vmatpush2.msra.mxu0 0.0
        %3565 = vmatprep.subr.mxu0 0.0
        %3566 = vmatpush2.msra.mxu0 0.0
        %3567 = vmatprep.subr.mxu0 0.0
        %3568 = vmatpush2.msra.mxu0 0.0
        %3569 = vmatprep.subr.mxu0 0.0
        %3570 = vmatpush2.msra.mxu0 0.0
        %3571 = vmatprep.subr.mxu0 0.0
        %3572 = vmatpush2.msra.mxu0 0.0
        %3573 = vmatprep.subr.mxu0 0.0
        %3574 = vmatpush2.msra.mxu0 0.0
        %3575 = vmatprep.subr.mxu0 0.0
        %3576 = vmatpush2.msra.mxu0 0.0
        %3577 = vmatprep.subr.mxu0 0.0
        %3578 = vmatpush2.msra.mxu0 0.0
        %3579 = vmatprep.subr.mxu0 0.0
        %3580 = vmatpush2.msra.mxu0 0.0
        %3581 = vmatprep.subr.mxu0 0.0
        %3582 = vmatpush2.msra.mxu0 0.0
        %3583 = vmatprep.subr.mxu0 0.0
        %3584 = vmatpush2.msra.mxu0 0.0
        %3585 = vmatprep.mubr.f32.mxu0 0.0
        %v3586 = vand.u32 %v3514, 4294901760
        %v3587 = vsub.f32 %v3514, %v3586
        %v3588 = vand.u32 %v3587, 4294901760
        %v3589 = vsub.f32 %v3587, %v3588
        %v3590 = vand.u32 %v3589, 4294901760
        %3591 = vmatmul.mubr.f32.gmra.mxu0 %v3590
        %v3592 = vpop.f32.mrf.mxu0
        %v3593 = vadd.f32 0.0, %v3592
        %v3594 = vpop.f32.mrf.mxu0
        %3595 = vmatprep.mubr.f32.mxu0 0.0
        %v3596 = vand.u32 %v3517, 4294901760
        %v3597 = vsub.f32 %v3517, %v3596
        %v3598 = vand.u32 %v3597, 4294901760
        %v3599 = vsub.f32 %v3597, %v3598
        %v3600 = vand.u32 %v3599, 4294901760
        %3601 = vmatmul.mubr.f32.gmra.mxu0 %v3600
        %v3602 = vpop.f32.mrf.mxu0
        %v3603 = vadd.f32 0.0, %v3602
        %v3604 = vpop.f32.mrf.mxu0
        %3605 = vdwg.mxu0
        %3606 = vmatprep.subr.mxu0 0.0
        %3607 = vmatpush1.msra.mxu0 0.0
        %3608 = vmatprep.subr.mxu0 0.0
        %3609 = vmatpush1.msra.mxu0 0.0
        %3610 = vmatprep.subr.mxu0 0.0
        %3611 = vmatpush1.msra.mxu0 0.0
        %3612 = vmatprep.subr.mxu0 0.0
        %3613 = vmatpush1.msra.mxu0 0.0
        %3614 = vmatprep.subr.mxu0 0.0
        %3615 = vmatpush1.msra.mxu0 0.0
        %3616 = vmatprep.subr.mxu0 0.0
        %3617 = vmatpush1.msra.mxu0 0.0
        %3618 = vmatprep.subr.mxu0 0.0
        %3619 = vmatpush1.msra.mxu0 0.0
        %3620 = vmatprep.subr.mxu0 0.0
        %3621 = vmatpush1.msra.mxu0 0.0
        %3622 = vmatprep.subr.mxu0 0.0
        %3623 = vmatpush1.msra.mxu0 0.0
        %3624 = vmatprep.subr.mxu0 0.0
        %3625 = vmatpush1.msra.mxu0 0.0
        %3626 = vmatprep.subr.mxu0 0.0
        %3627 = vmatpush1.msra.mxu0 0.0
        %3628 = vmatprep.subr.mxu0 0.0
        %3629 = vmatpush1.msra.mxu0 0.0
        %3630 = vmatprep.subr.mxu0 0.0
        %3631 = vmatpush1.msra.mxu0 0.0
        %3632 = vmatprep.subr.mxu0 0.0
        %3633 = vmatpush1.msra.mxu0 0.0
        %3634 = vmatprep.subr.mxu0 0.0
        %v3635 = vand.u32 %v3510, 4294901760
        %v3636 = vsub.f32 %v3510, %v3635
        %v3637 = vand.u32 %v3636, 4294901760
        %v3638 = vsub.f32 %v3636, %v3637
        %v3639 = vand.u32 %v3638, 4294901760
        %3640 = vmatpush1.msra.mxu0 %v3639
        %3641 = vmatprep.subr.mxu0 0.0
        %v3642 = vand.u32 %v3508, 4294901760
        %v3643 = vsub.f32 %v3508, %v3642
        %v3644 = vand.u32 %v3643, 4294901760
        %v3645 = vsub.f32 %v3643, %v3644
        %v3646 = vand.u32 %v3645, 4294901760
        %3647 = vmatpush1.msra.mxu0 %v3646
        %3648 = vmatprep.subr.mxu0 0.0
        %3649 = vmatpush2.msra.mxu0 0.0
        %3650 = vmatprep.subr.mxu0 0.0
        %3651 = vmatpush2.msra.mxu0 0.0
        %3652 = vmatprep.subr.mxu0 0.0
        %3653 = vmatpush2.msra.mxu0 0.0
        %3654 = vmatprep.subr.mxu0 0.0
        %3655 = vmatpush2.msra.mxu0 0.0
        %3656 = vmatprep.subr.mxu0 0.0
        %3657 = vmatpush2.msra.mxu0 0.0
        %3658 = vmatprep.subr.mxu0 0.0
        %3659 = vmatpush2.msra.mxu0 0.0
        %3660 = vmatprep.subr.mxu0 0.0
        %3661 = vmatpush2.msra.mxu0 0.0
        %3662 = vmatprep.subr.mxu0 0.0
        %3663 = vmatpush2.msra.mxu0 0.0
        %3664 = vmatprep.subr.mxu0 0.0
        %3665 = vmatpush2.msra.mxu0 0.0
        %3666 = vmatprep.subr.mxu0 0.0
        %3667 = vmatpush2.msra.mxu0 0.0
        %3668 = vmatprep.subr.mxu0 0.0
        %3669 = vmatpush2.msra.mxu0 0.0
        %3670 = vmatprep.subr.mxu0 0.0
        %3671 = vmatpush2.msra.mxu0 0.0
        %3672 = vmatprep.subr.mxu0 0.0
        %3673 = vmatpush2.msra.mxu0 0.0
        %3674 = vmatprep.subr.mxu0 0.0
        %3675 = vmatpush2.msra.mxu0 0.0
        %3676 = vmatprep.subr.mxu0 0.0
        %3677 = vmatpush2.msra.mxu0 0.0
        %3678 = vmatprep.subr.mxu0 0.0
        %3679 = vmatpush2.msra.mxu0 0.0
        %3680 = vmatprep.mubr.f32.mxu0 0.0
        %v3681 = vand.u32 %v3514, 4294901760
        %3682 = vmatmul.mubr.f32.gmra.mxu0 %v3681
        %v3683 = vpop.f32.mrf.mxu0
        %v3684 = vadd.f32 %v3593, %v3683
        %v3685 = vpop.f32.mrf.mxu0
        %3686 = vmatprep.mubr.f32.mxu0 0.0
        %v3687 = vand.u32 %v3517, 4294901760
        %3688 = vmatmul.mubr.f32.gmra.mxu0 %v3687
        %v3689 = vpop.f32.mrf.mxu0
        %v3690 = vadd.f32 %v3603, %v3689
        %v3691 = vpop.f32.mrf.mxu0
        %3692 = vdwg.mxu0
        %3693 = vmatprep.subr.mxu0 0.0
        %3694 = vmatpush1.msra.mxu0 0.0
        %3695 = vmatprep.subr.mxu0 0.0
        %3696 = vmatpush1.msra.mxu0 0.0
        %3697 = vmatprep.subr.mxu0 0.0
        %3698 = vmatpush1.msra.mxu0 0.0
        %3699 = vmatprep.subr.mxu0 0.0
        %3700 = vmatpush1.msra.mxu0 0.0
        %3701 = vmatprep.subr.mxu0 0.0
        %3702 = vmatpush1.msra.mxu0 0.0
        %3703 = vmatprep.subr.mxu0 0.0
        %3704 = vmatpush1.msra.mxu0 0.0
        %3705 = vmatprep.subr.mxu0 0.0
        %3706 = vmatpush1.msra.mxu0 0.0
        %3707 = vmatprep.subr.mxu0 0.0
        %3708 = vmatpush1.msra.mxu0 0.0
        %3709 = vmatprep.subr.mxu0 0.0
        %3710 = vmatpush1.msra.mxu0 0.0
        %3711 = vmatprep.subr.mxu0 0.0
        %3712 = vmatpush1.msra.mxu0 0.0
        %3713 = vmatprep.subr.mxu0 0.0
        %3714 = vmatpush1.msra.mxu0 0.0
        %3715 = vmatprep.subr.mxu0 0.0
        %3716 = vmatpush1.msra.mxu0 0.0
        %3717 = vmatprep.subr.mxu0 0.0
        %3718 = vmatpush1.msra.mxu0 0.0
        %3719 = vmatprep.subr.mxu0 0.0
        %3720 = vmatpush1.msra.mxu0 0.0
        %3721 = vmatprep.subr.mxu0 0.0
        %v3722 = vand.u32 %v3510, 4294901760
        %v3723 = vsub.f32 %v3510, %v3722
        %3724 = vmatpush1.msra.mxu0 %v3723
        %3725 = vmatprep.subr.mxu0 0.0
        %v3726 = vand.u32 %v3508, 4294901760
        %v3727 = vsub.f32 %v3508, %v3726
        %3728 = vmatpush1.msra.mxu0 %v3727
        %3729 = vmatprep.subr.mxu0 0.0
        %3730 = vmatpush2.msra.mxu0 0.0
        %3731 = vmatprep.subr.mxu0 0.0
        %3732 = vmatpush2.msra.mxu0 0.0
        %3733 = vmatprep.subr.mxu0 0.0
        %3734 = vmatpush2.msra.mxu0 0.0
        %3735 = vmatprep.subr.mxu0 0.0
        %3736 = vmatpush2.msra.mxu0 0.0
        %3737 = vmatprep.subr.mxu0 0.0
        %3738 = vmatpush2.msra.mxu0 0.0
        %3739 = vmatprep.subr.mxu0 0.0
        %3740 = vmatpush2.msra.mxu0 0.0
        %3741 = vmatprep.subr.mxu0 0.0
        %3742 = vmatpush2.msra.mxu0 0.0
        %3743 = vmatprep.subr.mxu0 0.0
        %3744 = vmatpush2.msra.mxu0 0.0
        %3745 = vmatprep.subr.mxu0 0.0
        %3746 = vmatpush2.msra.mxu0 0.0
        %3747 = vmatprep.subr.mxu0 0.0
        %3748 = vmatpush2.msra.mxu0 0.0
        %3749 = vmatprep.subr.mxu0 0.0
        %3750 = vmatpush2.msra.mxu0 0.0
        %3751 = vmatprep.subr.mxu0 0.0
        %3752 = vmatpush2.msra.mxu0 0.0
        %3753 = vmatprep.subr.mxu0 0.0
        %3754 = vmatpush2.msra.mxu0 0.0
        %3755 = vmatprep.subr.mxu0 0.0
        %3756 = vmatpush2.msra.mxu0 0.0
        %3757 = vmatprep.subr.mxu0 0.0
        %3758 = vmatpush2.msra.mxu0 0.0
        %3759 = vmatprep.subr.mxu0 0.0
        %3760 = vmatpush2.msra.mxu0 0.0
        %3761 = vmatprep.mubr.f32.mxu0 0.0
        %v3762 = vand.u32 %v3514, 4294901760
        %v3763 = vsub.f32 %v3514, %v3762
        %3764 = vmatmul.mubr.f32.gmra.mxu0 %v3763
        %v3765 = vpop.f32.mrf.mxu0
        %v3766 = vadd.f32 %v3684, %v3765
        %v3767 = vpop.f32.mrf.mxu0
        %3768 = vmatprep.mubr.f32.mxu0 0.0
        %v3769 = vand.u32 %v3517, 4294901760
        %v3770 = vsub.f32 %v3517, %v3769
        %3771 = vmatmul.mubr.f32.gmra.mxu0 %v3770
        %v3772 = vpop.f32.mrf.mxu0
        %v3773 = vadd.f32 %v3690, %v3772
        %v3774 = vpop.f32.mrf.mxu0
        %3775 = vdwg.mxu0
        %3776 = vmatprep.subr.mxu0 0.0
        %3777 = vmatpush1.msra.mxu0 0.0
        %3778 = vmatprep.subr.mxu0 0.0
        %3779 = vmatpush1.msra.mxu0 0.0
        %3780 = vmatprep.subr.mxu0 0.0
        %3781 = vmatpush1.msra.mxu0 0.0
        %3782 = vmatprep.subr.mxu0 0.0
        %3783 = vmatpush1.msra.mxu0 0.0
        %3784 = vmatprep.subr.mxu0 0.0
        %3785 = vmatpush1.msra.mxu0 0.0
        %3786 = vmatprep.subr.mxu0 0.0
        %3787 = vmatpush1.msra.mxu0 0.0
        %3788 = vmatprep.subr.mxu0 0.0
        %3789 = vmatpush1.msra.mxu0 0.0
        %3790 = vmatprep.subr.mxu0 0.0
        %3791 = vmatpush1.msra.mxu0 0.0
        %3792 = vmatprep.subr.mxu0 0.0
        %3793 = vmatpush1.msra.mxu0 0.0
        %3794 = vmatprep.subr.mxu0 0.0
        %3795 = vmatpush1.msra.mxu0 0.0
        %3796 = vmatprep.subr.mxu0 0.0
        %3797 = vmatpush1.msra.mxu0 0.0
        %3798 = vmatprep.subr.mxu0 0.0
        %3799 = vmatpush1.msra.mxu0 0.0
        %3800 = vmatprep.subr.mxu0 0.0
        %3801 = vmatpush1.msra.mxu0 0.0
        %3802 = vmatprep.subr.mxu0 0.0
        %3803 = vmatpush1.msra.mxu0 0.0
        %3804 = vmatprep.subr.mxu0 0.0
        %v3805 = vand.u32 %v3510, 4294901760
        %3806 = vmatpush1.msra.mxu0 %v3805
        %3807 = vmatprep.subr.mxu0 0.0
        %v3808 = vand.u32 %v3508, 4294901760
        %3809 = vmatpush1.msra.mxu0 %v3808
        %3810 = vmatprep.subr.mxu0 0.0
        %3811 = vmatpush2.msra.mxu0 0.0
        %3812 = vmatprep.subr.mxu0 0.0
        %3813 = vmatpush2.msra.mxu0 0.0
        %3814 = vmatprep.subr.mxu0 0.0
        %3815 = vmatpush2.msra.mxu0 0.0
        %3816 = vmatprep.subr.mxu0 0.0
        %3817 = vmatpush2.msra.mxu0 0.0
        %3818 = vmatprep.subr.mxu0 0.0
        %3819 = vmatpush2.msra.mxu0 0.0
        %3820 = vmatprep.subr.mxu0 0.0
        %3821 = vmatpush2.msra.mxu0 0.0
        %3822 = vmatprep.subr.mxu0 0.0
        %3823 = vmatpush2.msra.mxu0 0.0
        %3824 = vmatprep.subr.mxu0 0.0
        %3825 = vmatpush2.msra.mxu0 0.0
        %3826 = vmatprep.subr.mxu0 0.0
        %3827 = vmatpush2.msra.mxu0 0.0
        %3828 = vmatprep.subr.mxu0 0.0
        %3829 = vmatpush2.msra.mxu0 0.0
        %3830 = vmatprep.subr.mxu0 0.0
        %3831 = vmatpush2.msra.mxu0 0.0
        %3832 = vmatprep.subr.mxu0 0.0
        %3833 = vmatpush2.msra.mxu0 0.0
        %3834 = vmatprep.subr.mxu0 0.0
        %3835 = vmatpush2.msra.mxu0 0.0
        %3836 = vmatprep.subr.mxu0 0.0
        %3837 = vmatpush2.msra.mxu0 0.0
        %3838 = vmatprep.subr.mxu0 0.0
        %3839 = vmatpush2.msra.mxu0 0.0
        %3840 = vmatprep.subr.mxu0 0.0
        %3841 = vmatpush2.msra.mxu0 0.0
        %3842 = vmatprep.mubr.f32.mxu0 0.0
        %v3843 = vand.u32 %v3514, 4294901760
        %v3844 = vsub.f32 %v3514, %v3843
        %v3845 = vand.u32 %v3844, 4294901760
        %3846 = vmatmul.mubr.f32.gmra.mxu0 %v3845
        %v3847 = vpop.f32.mrf.mxu0
        %v3848 = vadd.f32 %v3766, %v3847
        %v3849 = vpop.f32.mrf.mxu0
        %3850 = vmatprep.mubr.f32.mxu0 0.0
        %v3851 = vand.u32 %v3517, 4294901760
        %v3852 = vsub.f32 %v3517, %v3851
        %v3853 = vand.u32 %v3852, 4294901760
        %3854 = vmatmul.mubr.f32.gmra.mxu0 %v3853
        %v3855 = vpop.f32.mrf.mxu0
        %v3856 = vadd.f32 %v3773, %v3855
        %v3857 = vpop.f32.mrf.mxu0
        %3858 = vdwg.mxu0
        %3859 = vmatprep.subr.mxu0 0.0
        %3860 = vmatpush1.msra.mxu0 0.0
        %3861 = vmatprep.subr.mxu0 0.0
        %3862 = vmatpush1.msra.mxu0 0.0
        %3863 = vmatprep.subr.mxu0 0.0
        %3864 = vmatpush1.msra.mxu0 0.0
        %3865 = vmatprep.subr.mxu0 0.0
        %3866 = vmatpush1.msra.mxu0 0.0
        %3867 = vmatprep.subr.mxu0 0.0
        %3868 = vmatpush1.msra.mxu0 0.0
        %3869 = vmatprep.subr.mxu0 0.0
        %3870 = vmatpush1.msra.mxu0 0.0
        %3871 = vmatprep.subr.mxu0 0.0
        %3872 = vmatpush1.msra.mxu0 0.0
        %3873 = vmatprep.subr.mxu0 0.0
        %3874 = vmatpush1.msra.mxu0 0.0
        %3875 = vmatprep.subr.mxu0 0.0
        %3876 = vmatpush1.msra.mxu0 0.0
        %3877 = vmatprep.subr.mxu0 0.0
        %3878 = vmatpush1.msra.mxu0 0.0
        %3879 = vmatprep.subr.mxu0 0.0
        %3880 = vmatpush1.msra.mxu0 0.0
        %3881 = vmatprep.subr.mxu0 0.0
        %3882 = vmatpush1.msra.mxu0 0.0
        %3883 = vmatprep.subr.mxu0 0.0
        %3884 = vmatpush1.msra.mxu0 0.0
        %3885 = vmatprep.subr.mxu0 0.0
        %3886 = vmatpush1.msra.mxu0 0.0
        %3887 = vmatprep.subr.mxu0 0.0
        %v3888 = vand.u32 %v3510, 4294901760
        %v3889 = vsub.f32 %v3510, %v3888
        %v3890 = vand.u32 %v3889, 4294901760
        %3891 = vmatpush1.msra.mxu0 %v3890
        %3892 = vmatprep.subr.mxu0 0.0
        %v3893 = vand.u32 %v3508, 4294901760
        %v3894 = vsub.f32 %v3508, %v3893
        %v3895 = vand.u32 %v3894, 4294901760
        %3896 = vmatpush1.msra.mxu0 %v3895
        %3897 = vmatprep.subr.mxu0 0.0
        %3898 = vmatpush2.msra.mxu0 0.0
        %3899 = vmatprep.subr.mxu0 0.0
        %3900 = vmatpush2.msra.mxu0 0.0
        %3901 = vmatprep.subr.mxu0 0.0
        %3902 = vmatpush2.msra.mxu0 0.0
        %3903 = vmatprep.subr.mxu0 0.0
        %3904 = vmatpush2.msra.mxu0 0.0
        %3905 = vmatprep.subr.mxu0 0.0
        %3906 = vmatpush2.msra.mxu0 0.0
        %3907 = vmatprep.subr.mxu0 0.0
        %3908 = vmatpush2.msra.mxu0 0.0
        %3909 = vmatprep.subr.mxu0 0.0
        %3910 = vmatpush2.msra.mxu0 0.0
        %3911 = vmatprep.subr.mxu0 0.0
        %3912 = vmatpush2.msra.mxu0 0.0
        %3913 = vmatprep.subr.mxu0 0.0
        %3914 = vmatpush2.msra.mxu0 0.0
        %3915 = vmatprep.subr.mxu0 0.0
        %3916 = vmatpush2.msra.mxu0 0.0
        %3917 = vmatprep.subr.mxu0 0.0
        %3918 = vmatpush2.msra.mxu0 0.0
        %3919 = vmatprep.subr.mxu0 0.0
        %3920 = vmatpush2.msra.mxu0 0.0
        %3921 = vmatprep.subr.mxu0 0.0
        %3922 = vmatpush2.msra.mxu0 0.0
        %3923 = vmatprep.subr.mxu0 0.0
        %3924 = vmatpush2.msra.mxu0 0.0
        %3925 = vmatprep.subr.mxu0 0.0
        %3926 = vmatpush2.msra.mxu0 0.0
        %3927 = vmatprep.subr.mxu0 0.0
        %3928 = vmatpush2.msra.mxu0 0.0
        %3929 = vmatprep.mubr.f32.mxu0 0.0
        %v3930 = vand.u32 %v3514, 4294901760
        %3931 = vmatmul.mubr.f32.gmra.mxu0 %v3930
        %v3932 = vpop.f32.mrf.mxu0
        %v3933 = vadd.f32 %v3848, %v3932
        %v3934 = vpop.f32.mrf.mxu0
        %3935 = vmatprep.mubr.f32.mxu0 0.0
        %v3936 = vand.u32 %v3517, 4294901760
        %3937 = vmatmul.mubr.f32.gmra.mxu0 %v3936
        %v3938 = vpop.f32.mrf.mxu0
        %v3939 = vadd.f32 %v3856, %v3938
        %v3940 = vpop.f32.mrf.mxu0
        %3941 = vdwg.mxu0
        %3942 = vmatprep.subr.mxu0 0.0
        %3943 = vmatpush1.msra.mxu0 0.0
        %3944 = vmatprep.subr.mxu0 0.0
        %3945 = vmatpush1.msra.mxu0 0.0
        %3946 = vmatprep.subr.mxu0 0.0
        %3947 = vmatpush1.msra.mxu0 0.0
        %3948 = vmatprep.subr.mxu0 0.0
        %3949 = vmatpush1.msra.mxu0 0.0
        %3950 = vmatprep.subr.mxu0 0.0
        %3951 = vmatpush1.msra.mxu0 0.0
        %3952 = vmatprep.subr.mxu0 0.0
        %3953 = vmatpush1.msra.mxu0 0.0
        %3954 = vmatprep.subr.mxu0 0.0
        %3955 = vmatpush1.msra.mxu0 0.0
        %3956 = vmatprep.subr.mxu0 0.0
        %3957 = vmatpush1.msra.mxu0 0.0
        %3958 = vmatprep.subr.mxu0 0.0
        %3959 = vmatpush1.msra.mxu0 0.0
        %3960 = vmatprep.subr.mxu0 0.0
        %3961 = vmatpush1.msra.mxu0 0.0
        %3962 = vmatprep.subr.mxu0 0.0
        %3963 = vmatpush1.msra.mxu0 0.0
        %3964 = vmatprep.subr.mxu0 0.0
        %3965 = vmatpush1.msra.mxu0 0.0
        %3966 = vmatprep.subr.mxu0 0.0
        %3967 = vmatpush1.msra.mxu0 0.0
        %3968 = vmatprep.subr.mxu0 0.0
        %3969 = vmatpush1.msra.mxu0 0.0
        %3970 = vmatprep.subr.mxu0 0.0
        %v3971 = vand.u32 %v3510, 4294901760
        %3972 = vmatpush1.msra.mxu0 %v3971
        %3973 = vmatprep.subr.mxu0 0.0
        %v3974 = vand.u32 %v3508, 4294901760
        %3975 = vmatpush1.msra.mxu0 %v3974
        %3976 = vmatprep.subr.mxu0 0.0
        %3977 = vmatpush2.msra.mxu0 0.0
        %3978 = vmatprep.subr.mxu0 0.0
        %3979 = vmatpush2.msra.mxu0 0.0
        %3980 = vmatprep.subr.mxu0 0.0
        %3981 = vmatpush2.msra.mxu0 0.0
        %3982 = vmatprep.subr.mxu0 0.0
        %3983 = vmatpush2.msra.mxu0 0.0
        %3984 = vmatprep.subr.mxu0 0.0
        %3985 = vmatpush2.msra.mxu0 0.0
        %3986 = vmatprep.subr.mxu0 0.0
        %3987 = vmatpush2.msra.mxu0 0.0
        %3988 = vmatprep.subr.mxu0 0.0
        %3989 = vmatpush2.msra.mxu0 0.0
        %3990 = vmatprep.subr.mxu0 0.0
        %3991 = vmatpush2.msra.mxu0 0.0
        %3992 = vmatprep.subr.mxu0 0.0
        %3993 = vmatpush2.msra.mxu0 0.0
        %3994 = vmatprep.subr.mxu0 0.0
        %3995 = vmatpush2.msra.mxu0 0.0
        %3996 = vmatprep.subr.mxu0 0.0
        %3997 = vmatpush2.msra.mxu0 0.0
        %3998 = vmatprep.subr.mxu0 0.0
        %3999 = vmatpush2.msra.mxu0 0.0
        %4000 = vmatprep.subr.mxu0 0.0
        %4001 = vmatpush2.msra.mxu0 0.0
        %4002 = vmatprep.subr.mxu0 0.0
        %4003 = vmatpush2.msra.mxu0 0.0
        %4004 = vmatprep.subr.mxu0 0.0
        %4005 = vmatpush2.msra.mxu0 0.0
        %4006 = vmatprep.subr.mxu0 0.0
        %4007 = vmatpush2.msra.mxu0 0.0
        %4008 = vmatprep.mubr.f32.mxu0 0.0
        %v4009 = vand.u32 %v3514, 4294901760
        %4010 = vmatmul.mubr.f32.gmra.mxu0 %v4009
        %v4011 = vpop.f32.mrf.mxu0
        %v4012 = vadd.f32 %v3933, %v4011
        %v4013 = vpop.f32.mrf.mxu0
        %4014 = vmatprep.mubr.f32.mxu0 0.0
        %v4015 = vand.u32 %v3517, 4294901760
        %4016 = vmatmul.mubr.f32.gmra.mxu0 %v4015
        %v4017 = vpop.f32.mrf.mxu0
        %v4018 = vadd.f32 %v3939, %v4017
        %v4019 = vpop.f32.mrf.mxu0
        %4020 = vdwg.mxu0
        %4021 = vrot.lane.b32.xlu0 %v1303, 64
        %v4022 = vpop.permute.xlu0 %4021
        %4023 = vrot.lane.b32.xlu0 %v1309, 64
        %v4024 = vpop.permute.xlu0 %4023
        %v4028 = vsel %vm1352, %v3496, 0
        %v4031 = vsel %vm1352, %v3498, 0
        %4033 = vmatprep.subr.mxu0 0.0
        %4034 = vmatpush1.msra.mxu0 0.0
        %4035 = vmatprep.subr.mxu0 0.0
        %4036 = vmatpush1.msra.mxu0 0.0
        %4037 = vmatprep.subr.mxu0 0.0
        %4038 = vmatpush1.msra.mxu0 0.0
        %4039 = vmatprep.subr.mxu0 0.0
        %4040 = vmatpush1.msra.mxu0 0.0
        %4041 = vmatprep.subr.mxu0 0.0
        %4042 = vmatpush1.msra.mxu0 0.0
        %4043 = vmatprep.subr.mxu0 0.0
        %4044 = vmatpush1.msra.mxu0 0.0
        %4045 = vmatprep.subr.mxu0 0.0
        %4046 = vmatpush1.msra.mxu0 0.0
        %4047 = vmatprep.subr.mxu0 0.0
        %4048 = vmatpush1.msra.mxu0 0.0
        %4049 = vmatprep.subr.mxu0 0.0
        %4050 = vmatpush1.msra.mxu0 0.0
        %4051 = vmatprep.subr.mxu0 0.0
        %4052 = vmatpush1.msra.mxu0 0.0
        %4053 = vmatprep.subr.mxu0 0.0
        %4054 = vmatpush1.msra.mxu0 0.0
        %4055 = vmatprep.subr.mxu0 0.0
        %4056 = vmatpush1.msra.mxu0 0.0
        %4057 = vmatprep.subr.mxu0 0.0
        %4058 = vmatpush1.msra.mxu0 0.0
        %4059 = vmatprep.subr.mxu0 0.0
        %4060 = vmatpush1.msra.mxu0 0.0
        %4061 = vmatprep.subr.mxu0 0.0
        %v4062 = vand.u32 %v4024, 4294901760
        %4063 = vmatpush1.msra.mxu0 %v4062
        %4064 = vmatprep.subr.mxu0 0.0
        %v4065 = vand.u32 %v4022, 4294901760
        %4066 = vmatpush1.msra.mxu0 %v4065
        %4067 = vmatprep.subr.mxu0 0.0
        %4068 = vmatpush2.msra.mxu0 0.0
        %4069 = vmatprep.subr.mxu0 0.0
        %4070 = vmatpush2.msra.mxu0 0.0
        %4071 = vmatprep.subr.mxu0 0.0
        %4072 = vmatpush2.msra.mxu0 0.0
        %4073 = vmatprep.subr.mxu0 0.0
        %4074 = vmatpush2.msra.mxu0 0.0
        %4075 = vmatprep.subr.mxu0 0.0
        %4076 = vmatpush2.msra.mxu0 0.0
        %4077 = vmatprep.subr.mxu0 0.0
        %4078 = vmatpush2.msra.mxu0 0.0
        %4079 = vmatprep.subr.mxu0 0.0
        %4080 = vmatpush2.msra.mxu0 0.0
        %4081 = vmatprep.subr.mxu0 0.0
        %4082 = vmatpush2.msra.mxu0 0.0
        %4083 = vmatprep.subr.mxu0 0.0
        %4084 = vmatpush2.msra.mxu0 0.0
        %4085 = vmatprep.subr.mxu0 0.0
        %4086 = vmatpush2.msra.mxu0 0.0
        %4087 = vmatprep.subr.mxu0 0.0
        %4088 = vmatpush2.msra.mxu0 0.0
        %4089 = vmatprep.subr.mxu0 0.0
        %4090 = vmatpush2.msra.mxu0 0.0
        %4091 = vmatprep.subr.mxu0 0.0
        %4092 = vmatpush2.msra.mxu0 0.0
        %4093 = vmatprep.subr.mxu0 0.0
        %4094 = vmatpush2.msra.mxu0 0.0
        %4095 = vmatprep.subr.mxu0 0.0
        %4096 = vmatpush2.msra.mxu0 0.0
        %4097 = vmatprep.subr.mxu0 0.0
        %4098 = vmatpush2.msra.mxu0 0.0
        %4099 = vmatprep.mubr.f32.mxu0 0.0
        %v4100 = vand.u32 %v4028, 4294901760
        %v4101 = vsub.f32 %v4028, %v4100
        %v4102 = vand.u32 %v4101, 4294901760
        %v4103 = vsub.f32 %v4101, %v4102
        %v4104 = vand.u32 %v4103, 4294901760
        %4105 = vmatmul.mubr.f32.gmra.mxu0 %v4104
        %v4106 = vpop.f32.mrf.mxu0
        %v4107 = vadd.f32 0.0, %v4106
        %v4108 = vpop.f32.mrf.mxu0
        %4109 = vmatprep.mubr.f32.mxu0 0.0
        %v4110 = vand.u32 %v4031, 4294901760
        %v4111 = vsub.f32 %v4031, %v4110
        %v4112 = vand.u32 %v4111, 4294901760
        %v4113 = vsub.f32 %v4111, %v4112
        %v4114 = vand.u32 %v4113, 4294901760
        %4115 = vmatmul.mubr.f32.gmra.mxu0 %v4114
        %v4116 = vpop.f32.mrf.mxu0
        %v4117 = vadd.f32 0.0, %v4116
        %v4118 = vpop.f32.mrf.mxu0
        %4119 = vdwg.mxu0
        %4120 = vmatprep.subr.mxu0 0.0
        %4121 = vmatpush1.msra.mxu0 0.0
        %4122 = vmatprep.subr.mxu0 0.0
        %4123 = vmatpush1.msra.mxu0 0.0
        %4124 = vmatprep.subr.mxu0 0.0
        %4125 = vmatpush1.msra.mxu0 0.0
        %4126 = vmatprep.subr.mxu0 0.0
        %4127 = vmatpush1.msra.mxu0 0.0
        %4128 = vmatprep.subr.mxu0 0.0
        %4129 = vmatpush1.msra.mxu0 0.0
        %4130 = vmatprep.subr.mxu0 0.0
        %4131 = vmatpush1.msra.mxu0 0.0
        %4132 = vmatprep.subr.mxu0 0.0
        %4133 = vmatpush1.msra.mxu0 0.0
        %4134 = vmatprep.subr.mxu0 0.0
        %4135 = vmatpush1.msra.mxu0 0.0
        %4136 = vmatprep.subr.mxu0 0.0
        %4137 = vmatpush1.msra.mxu0 0.0
        %4138 = vmatprep.subr.mxu0 0.0
        %4139 = vmatpush1.msra.mxu0 0.0
        %4140 = vmatprep.subr.mxu0 0.0
        %4141 = vmatpush1.msra.mxu0 0.0
        %4142 = vmatprep.subr.mxu0 0.0
        %4143 = vmatpush1.msra.mxu0 0.0
        %4144 = vmatprep.subr.mxu0 0.0
        %4145 = vmatpush1.msra.mxu0 0.0
        %4146 = vmatprep.subr.mxu0 0.0
        %4147 = vmatpush1.msra.mxu0 0.0
        %4148 = vmatprep.subr.mxu0 0.0
        %v4149 = vand.u32 %v4024, 4294901760
        %v4150 = vsub.f32 %v4024, %v4149
        %v4151 = vand.u32 %v4150, 4294901760
        %v4152 = vsub.f32 %v4150, %v4151
        %v4153 = vand.u32 %v4152, 4294901760
        %4154 = vmatpush1.msra.mxu0 %v4153
        %4155 = vmatprep.subr.mxu0 0.0
        %v4156 = vand.u32 %v4022, 4294901760
        %v4157 = vsub.f32 %v4022, %v4156
        %v4158 = vand.u32 %v4157, 4294901760
        %v4159 = vsub.f32 %v4157, %v4158
        %v4160 = vand.u32 %v4159, 4294901760
        %4161 = vmatpush1.msra.mxu0 %v4160
        %4162 = vmatprep.subr.mxu0 0.0
        %4163 = vmatpush2.msra.mxu0 0.0
        %4164 = vmatprep.subr.mxu0 0.0
        %4165 = vmatpush2.msra.mxu0 0.0
        %4166 = vmatprep.subr.mxu0 0.0
        %4167 = vmatpush2.msra.mxu0 0.0
        %4168 = vmatprep.subr.mxu0 0.0
        %4169 = vmatpush2.msra.mxu0 0.0
        %4170 = vmatprep.subr.mxu0 0.0
        %4171 = vmatpush2.msra.mxu0 0.0
        %4172 = vmatprep.subr.mxu0 0.0
        %4173 = vmatpush2.msra.mxu0 0.0
        %4174 = vmatprep.subr.mxu0 0.0
        %4175 = vmatpush2.msra.mxu0 0.0
        %4176 = vmatprep.subr.mxu0 0.0
        %4177 = vmatpush2.msra.mxu0 0.0
        %4178 = vmatprep.subr.mxu0 0.0
        %4179 = vmatpush2.msra.mxu0 0.0
        %4180 = vmatprep.subr.mxu0 0.0
        %4181 = vmatpush2.msra.mxu0 0.0
        %4182 = vmatprep.subr.mxu0 0.0
        %4183 = vmatpush2.msra.mxu0 0.0
        %4184 = vmatprep.subr.mxu0 0.0
        %4185 = vmatpush2.msra.mxu0 0.0
        %4186 = vmatprep.subr.mxu0 0.0
        %4187 = vmatpush2.msra.mxu0 0.0
        %4188 = vmatprep.subr.mxu0 0.0
        %4189 = vmatpush2.msra.mxu0 0.0
        %4190 = vmatprep.subr.mxu0 0.0
        %4191 = vmatpush2.msra.mxu0 0.0
        %4192 = vmatprep.subr.mxu0 0.0
        %4193 = vmatpush2.msra.mxu0 0.0
        %4194 = vmatprep.mubr.f32.mxu0 0.0
        %v4195 = vand.u32 %v4028, 4294901760
        %4196 = vmatmul.mubr.f32.gmra.mxu0 %v4195
        %v4197 = vpop.f32.mrf.mxu0
        %v4198 = vadd.f32 %v4107, %v4197
        %v4199 = vpop.f32.mrf.mxu0
        %4200 = vmatprep.mubr.f32.mxu0 0.0
        %v4201 = vand.u32 %v4031, 4294901760
        %4202 = vmatmul.mubr.f32.gmra.mxu0 %v4201
        %v4203 = vpop.f32.mrf.mxu0
        %v4204 = vadd.f32 %v4117, %v4203
        %v4205 = vpop.f32.mrf.mxu0
        %4206 = vdwg.mxu0
        %4207 = vmatprep.subr.mxu0 0.0
        %4208 = vmatpush1.msra.mxu0 0.0
        %4209 = vmatprep.subr.mxu0 0.0
        %4210 = vmatpush1.msra.mxu0 0.0
        %4211 = vmatprep.subr.mxu0 0.0
        %4212 = vmatpush1.msra.mxu0 0.0
        %4213 = vmatprep.subr.mxu0 0.0
        %4214 = vmatpush1.msra.mxu0 0.0
        %4215 = vmatprep.subr.mxu0 0.0
        %4216 = vmatpush1.msra.mxu0 0.0
        %4217 = vmatprep.subr.mxu0 0.0
        %4218 = vmatpush1.msra.mxu0 0.0
        %4219 = vmatprep.subr.mxu0 0.0
        %4220 = vmatpush1.msra.mxu0 0.0
        %4221 = vmatprep.subr.mxu0 0.0
        %4222 = vmatpush1.msra.mxu0 0.0
        %4223 = vmatprep.subr.mxu0 0.0
        %4224 = vmatpush1.msra.mxu0 0.0
        %4225 = vmatprep.subr.mxu0 0.0
        %4226 = vmatpush1.msra.mxu0 0.0
        %4227 = vmatprep.subr.mxu0 0.0
        %4228 = vmatpush1.msra.mxu0 0.0
        %4229 = vmatprep.subr.mxu0 0.0
        %4230 = vmatpush1.msra.mxu0 0.0
        %4231 = vmatprep.subr.mxu0 0.0
        %4232 = vmatpush1.msra.mxu0 0.0
        %4233 = vmatprep.subr.mxu0 0.0
        %4234 = vmatpush1.msra.mxu0 0.0
        %4235 = vmatprep.subr.mxu0 0.0
        %v4236 = vand.u32 %v4024, 4294901760
        %v4237 = vsub.f32 %v4024, %v4236
        %4238 = vmatpush1.msra.mxu0 %v4237
        %4239 = vmatprep.subr.mxu0 0.0
        %v4240 = vand.u32 %v4022, 4294901760
        %v4241 = vsub.f32 %v4022, %v4240
        %4242 = vmatpush1.msra.mxu0 %v4241
        %4243 = vmatprep.subr.mxu0 0.0
        %4244 = vmatpush2.msra.mxu0 0.0
        %4245 = vmatprep.subr.mxu0 0.0
        %4246 = vmatpush2.msra.mxu0 0.0
        %4247 = vmatprep.subr.mxu0 0.0
        %4248 = vmatpush2.msra.mxu0 0.0
        %4249 = vmatprep.subr.mxu0 0.0
        %4250 = vmatpush2.msra.mxu0 0.0
        %4251 = vmatprep.subr.mxu0 0.0
        %4252 = vmatpush2.msra.mxu0 0.0
        %4253 = vmatprep.subr.mxu0 0.0
        %4254 = vmatpush2.msra.mxu0 0.0
        %4255 = vmatprep.subr.mxu0 0.0
        %4256 = vmatpush2.msra.mxu0 0.0
        %4257 = vmatprep.subr.mxu0 0.0
        %4258 = vmatpush2.msra.mxu0 0.0
        %4259 = vmatprep.subr.mxu0 0.0
        %4260 = vmatpush2.msra.mxu0 0.0
        %4261 = vmatprep.subr.mxu0 0.0
        %4262 = vmatpush2.msra.mxu0 0.0
        %4263 = vmatprep.subr.mxu0 0.0
        %4264 = vmatpush2.msra.mxu0 0.0
        %4265 = vmatprep.subr.mxu0 0.0
        %4266 = vmatpush2.msra.mxu0 0.0
        %4267 = vmatprep.subr.mxu0 0.0
        %4268 = vmatpush2.msra.mxu0 0.0
        %4269 = vmatprep.subr.mxu0 0.0
        %4270 = vmatpush2.msra.mxu0 0.0
        %4271 = vmatprep.subr.mxu0 0.0
        %4272 = vmatpush2.msra.mxu0 0.0
        %4273 = vmatprep.subr.mxu0 0.0
        %4274 = vmatpush2.msra.mxu0 0.0
        %4275 = vmatprep.mubr.f32.mxu0 0.0
        %v4276 = vand.u32 %v4028, 4294901760
        %v4277 = vsub.f32 %v4028, %v4276
        %4278 = vmatmul.mubr.f32.gmra.mxu0 %v4277
        %v4279 = vpop.f32.mrf.mxu0
        %v4280 = vadd.f32 %v4198, %v4279
        %v4281 = vpop.f32.mrf.mxu0
        %4282 = vmatprep.mubr.f32.mxu0 0.0
        %v4283 = vand.u32 %v4031, 4294901760
        %v4284 = vsub.f32 %v4031, %v4283
        %4285 = vmatmul.mubr.f32.gmra.mxu0 %v4284
        %v4286 = vpop.f32.mrf.mxu0
        %v4287 = vadd.f32 %v4204, %v4286
        %v4288 = vpop.f32.mrf.mxu0
        %4289 = vdwg.mxu0
        %4290 = vmatprep.subr.mxu0 0.0
        %4291 = vmatpush1.msra.mxu0 0.0
        %4292 = vmatprep.subr.mxu0 0.0
        %4293 = vmatpush1.msra.mxu0 0.0
        %4294 = vmatprep.subr.mxu0 0.0
        %4295 = vmatpush1.msra.mxu0 0.0
        %4296 = vmatprep.subr.mxu0 0.0
        %4297 = vmatpush1.msra.mxu0 0.0
        %4298 = vmatprep.subr.mxu0 0.0
        %4299 = vmatpush1.msra.mxu0 0.0
        %4300 = vmatprep.subr.mxu0 0.0
        %4301 = vmatpush1.msra.mxu0 0.0
        %4302 = vmatprep.subr.mxu0 0.0
        %4303 = vmatpush1.msra.mxu0 0.0
        %4304 = vmatprep.subr.mxu0 0.0
        %4305 = vmatpush1.msra.mxu0 0.0
        %4306 = vmatprep.subr.mxu0 0.0
        %4307 = vmatpush1.msra.mxu0 0.0
        %4308 = vmatprep.subr.mxu0 0.0
        %4309 = vmatpush1.msra.mxu0 0.0
        %4310 = vmatprep.subr.mxu0 0.0
        %4311 = vmatpush1.msra.mxu0 0.0
        %4312 = vmatprep.subr.mxu0 0.0
        %4313 = vmatpush1.msra.mxu0 0.0
        %4314 = vmatprep.subr.mxu0 0.0
        %4315 = vmatpush1.msra.mxu0 0.0
        %4316 = vmatprep.subr.mxu0 0.0
        %4317 = vmatpush1.msra.mxu0 0.0
        %4318 = vmatprep.subr.mxu0 0.0
        %v4319 = vand.u32 %v4024, 4294901760
        %4320 = vmatpush1.msra.mxu0 %v4319
        %4321 = vmatprep.subr.mxu0 0.0
        %v4322 = vand.u32 %v4022, 4294901760
        %4323 = vmatpush1.msra.mxu0 %v4322
        %4324 = vmatprep.subr.mxu0 0.0
        %4325 = vmatpush2.msra.mxu0 0.0
        %4326 = vmatprep.subr.mxu0 0.0
        %4327 = vmatpush2.msra.mxu0 0.0
        %4328 = vmatprep.subr.mxu0 0.0
        %4329 = vmatpush2.msra.mxu0 0.0
        %4330 = vmatprep.subr.mxu0 0.0
        %4331 = vmatpush2.msra.mxu0 0.0
        %4332 = vmatprep.subr.mxu0 0.0
        %4333 = vmatpush2.msra.mxu0 0.0
        %4334 = vmatprep.subr.mxu0 0.0
        %4335 = vmatpush2.msra.mxu0 0.0
        %4336 = vmatprep.subr.mxu0 0.0
        %4337 = vmatpush2.msra.mxu0 0.0
        %4338 = vmatprep.subr.mxu0 0.0
        %4339 = vmatpush2.msra.mxu0 0.0
        %4340 = vmatprep.subr.mxu0 0.0
        %4341 = vmatpush2.msra.mxu0 0.0
        %4342 = vmatprep.subr.mxu0 0.0
        %4343 = vmatpush2.msra.mxu0 0.0
        %4344 = vmatprep.subr.mxu0 0.0
        %4345 = vmatpush2.msra.mxu0 0.0
        %4346 = vmatprep.subr.mxu0 0.0
        %4347 = vmatpush2.msra.mxu0 0.0
        %4348 = vmatprep.subr.mxu0 0.0
        %4349 = vmatpush2.msra.mxu0 0.0
        %4350 = vmatprep.subr.mxu0 0.0
        %4351 = vmatpush2.msra.mxu0 0.0
        %4352 = vmatprep.subr.mxu0 0.0
        %4353 = vmatpush2.msra.mxu0 0.0
        %4354 = vmatprep.subr.mxu0 0.0
        %4355 = vmatpush2.msra.mxu0 0.0
        %4356 = vmatprep.mubr.f32.mxu0 0.0
        %v4357 = vand.u32 %v4028, 4294901760
        %v4358 = vsub.f32 %v4028, %v4357
        %v4359 = vand.u32 %v4358, 4294901760
        %4360 = vmatmul.mubr.f32.gmra.mxu0 %v4359
        %v4361 = vpop.f32.mrf.mxu0
        %v4362 = vadd.f32 %v4280, %v4361
        %v4363 = vpop.f32.mrf.mxu0
        %4364 = vmatprep.mubr.f32.mxu0 0.0
        %v4365 = vand.u32 %v4031, 4294901760
        %v4366 = vsub.f32 %v4031, %v4365
        %v4367 = vand.u32 %v4366, 4294901760
        %4368 = vmatmul.mubr.f32.gmra.mxu0 %v4367
        %v4369 = vpop.f32.mrf.mxu0
        %v4370 = vadd.f32 %v4287, %v4369
        %v4371 = vpop.f32.mrf.mxu0
        %4372 = vdwg.mxu0
        %4373 = vmatprep.subr.mxu0 0.0
        %4374 = vmatpush1.msra.mxu0 0.0
        %4375 = vmatprep.subr.mxu0 0.0
        %4376 = vmatpush1.msra.mxu0 0.0
        %4377 = vmatprep.subr.mxu0 0.0
        %4378 = vmatpush1.msra.mxu0 0.0
        %4379 = vmatprep.subr.mxu0 0.0
        %4380 = vmatpush1.msra.mxu0 0.0
        %4381 = vmatprep.subr.mxu0 0.0
        %4382 = vmatpush1.msra.mxu0 0.0
        %4383 = vmatprep.subr.mxu0 0.0
        %4384 = vmatpush1.msra.mxu0 0.0
        %4385 = vmatprep.subr.mxu0 0.0
        %4386 = vmatpush1.msra.mxu0 0.0
        %4387 = vmatprep.subr.mxu0 0.0
        %4388 = vmatpush1.msra.mxu0 0.0
        %4389 = vmatprep.subr.mxu0 0.0
        %4390 = vmatpush1.msra.mxu0 0.0
        %4391 = vmatprep.subr.mxu0 0.0
        %4392 = vmatpush1.msra.mxu0 0.0
        %4393 = vmatprep.subr.mxu0 0.0
        %4394 = vmatpush1.msra.mxu0 0.0
        %4395 = vmatprep.subr.mxu0 0.0
        %4396 = vmatpush1.msra.mxu0 0.0
        %4397 = vmatprep.subr.mxu0 0.0
        %4398 = vmatpush1.msra.mxu0 0.0
        %4399 = vmatprep.subr.mxu0 0.0
        %4400 = vmatpush1.msra.mxu0 0.0
        %4401 = vmatprep.subr.mxu0 0.0
        %v4402 = vand.u32 %v4024, 4294901760
        %v4403 = vsub.f32 %v4024, %v4402
        %v4404 = vand.u32 %v4403, 4294901760
        %4405 = vmatpush1.msra.mxu0 %v4404
        %4406 = vmatprep.subr.mxu0 0.0
        %v4407 = vand.u32 %v4022, 4294901760
        %v4408 = vsub.f32 %v4022, %v4407
        %v4409 = vand.u32 %v4408, 4294901760
        %4410 = vmatpush1.msra.mxu0 %v4409
        %4411 = vmatprep.subr.mxu0 0.0
        %4412 = vmatpush2.msra.mxu0 0.0
        %4413 = vmatprep.subr.mxu0 0.0
        %4414 = vmatpush2.msra.mxu0 0.0
        %4415 = vmatprep.subr.mxu0 0.0
        %4416 = vmatpush2.msra.mxu0 0.0
        %4417 = vmatprep.subr.mxu0 0.0
        %4418 = vmatpush2.msra.mxu0 0.0
        %4419 = vmatprep.subr.mxu0 0.0
        %4420 = vmatpush2.msra.mxu0 0.0
        %4421 = vmatprep.subr.mxu0 0.0
        %4422 = vmatpush2.msra.mxu0 0.0
        %4423 = vmatprep.subr.mxu0 0.0
        %4424 = vmatpush2.msra.mxu0 0.0
        %4425 = vmatprep.subr.mxu0 0.0
        %4426 = vmatpush2.msra.mxu0 0.0
        %4427 = vmatprep.subr.mxu0 0.0
        %4428 = vmatpush2.msra.mxu0 0.0
        %4429 = vmatprep.subr.mxu0 0.0
        %4430 = vmatpush2.msra.mxu0 0.0
        %4431 = vmatprep.subr.mxu0 0.0
        %4432 = vmatpush2.msra.mxu0 0.0
        %4433 = vmatprep.subr.mxu0 0.0
        %4434 = vmatpush2.msra.mxu0 0.0
        %4435 = vmatprep.subr.mxu0 0.0
        %4436 = vmatpush2.msra.mxu0 0.0
        %4437 = vmatprep.subr.mxu0 0.0
        %4438 = vmatpush2.msra.mxu0 0.0
        %4439 = vmatprep.subr.mxu0 0.0
        %4440 = vmatpush2.msra.mxu0 0.0
        %4441 = vmatprep.subr.mxu0 0.0
        %4442 = vmatpush2.msra.mxu0 0.0
        %4443 = vmatprep.mubr.f32.mxu0 0.0
        %v4444 = vand.u32 %v4028, 4294901760
        %4445 = vmatmul.mubr.f32.gmra.mxu0 %v4444
        %v4446 = vpop.f32.mrf.mxu0
        %v4447 = vadd.f32 %v4362, %v4446
        %v4448 = vpop.f32.mrf.mxu0
        %4449 = vmatprep.mubr.f32.mxu0 0.0
        %v4450 = vand.u32 %v4031, 4294901760
        %4451 = vmatmul.mubr.f32.gmra.mxu0 %v4450
        %v4452 = vpop.f32.mrf.mxu0
        %v4453 = vadd.f32 %v4370, %v4452
        %v4454 = vpop.f32.mrf.mxu0
        %4455 = vdwg.mxu0
        %4456 = vmatprep.subr.mxu0 0.0
        %4457 = vmatpush1.msra.mxu0 0.0
        %4458 = vmatprep.subr.mxu0 0.0
        %4459 = vmatpush1.msra.mxu0 0.0
        %4460 = vmatprep.subr.mxu0 0.0
        %4461 = vmatpush1.msra.mxu0 0.0
        %4462 = vmatprep.subr.mxu0 0.0
        %4463 = vmatpush1.msra.mxu0 0.0
        %4464 = vmatprep.subr.mxu0 0.0
        %4465 = vmatpush1.msra.mxu0 0.0
        %4466 = vmatprep.subr.mxu0 0.0
        %4467 = vmatpush1.msra.mxu0 0.0
        %4468 = vmatprep.subr.mxu0 0.0
        %4469 = vmatpush1.msra.mxu0 0.0
        %4470 = vmatprep.subr.mxu0 0.0
        %4471 = vmatpush1.msra.mxu0 0.0
        %4472 = vmatprep.subr.mxu0 0.0
        %4473 = vmatpush1.msra.mxu0 0.0
        %4474 = vmatprep.subr.mxu0 0.0
        %4475 = vmatpush1.msra.mxu0 0.0
        %4476 = vmatprep.subr.mxu0 0.0
        %4477 = vmatpush1.msra.mxu0 0.0
        %4478 = vmatprep.subr.mxu0 0.0
        %4479 = vmatpush1.msra.mxu0 0.0
        %4480 = vmatprep.subr.mxu0 0.0
        %4481 = vmatpush1.msra.mxu0 0.0
        %4482 = vmatprep.subr.mxu0 0.0
        %4483 = vmatpush1.msra.mxu0 0.0
        %4484 = vmatprep.subr.mxu0 0.0
        %v4485 = vand.u32 %v4024, 4294901760
        %4486 = vmatpush1.msra.mxu0 %v4485
        %4487 = vmatprep.subr.mxu0 0.0
        %v4488 = vand.u32 %v4022, 4294901760
        %4489 = vmatpush1.msra.mxu0 %v4488
        %4490 = vmatprep.subr.mxu0 0.0
        %4491 = vmatpush2.msra.mxu0 0.0
        %4492 = vmatprep.subr.mxu0 0.0
        %4493 = vmatpush2.msra.mxu0 0.0
        %4494 = vmatprep.subr.mxu0 0.0
        %4495 = vmatpush2.msra.mxu0 0.0
        %4496 = vmatprep.subr.mxu0 0.0
        %4497 = vmatpush2.msra.mxu0 0.0
        %4498 = vmatprep.subr.mxu0 0.0
        %4499 = vmatpush2.msra.mxu0 0.0
        %4500 = vmatprep.subr.mxu0 0.0
        %4501 = vmatpush2.msra.mxu0 0.0
        %4502 = vmatprep.subr.mxu0 0.0
        %4503 = vmatpush2.msra.mxu0 0.0
        %4504 = vmatprep.subr.mxu0 0.0
        %4505 = vmatpush2.msra.mxu0 0.0
        %4506 = vmatprep.subr.mxu0 0.0
        %4507 = vmatpush2.msra.mxu0 0.0
        %4508 = vmatprep.subr.mxu0 0.0
        %4509 = vmatpush2.msra.mxu0 0.0
        %4510 = vmatprep.subr.mxu0 0.0
        %4511 = vmatpush2.msra.mxu0 0.0
        %4512 = vmatprep.subr.mxu0 0.0
        %4513 = vmatpush2.msra.mxu0 0.0
        %4514 = vmatprep.subr.mxu0 0.0
        %4515 = vmatpush2.msra.mxu0 0.0
        %4516 = vmatprep.subr.mxu0 0.0
        %4517 = vmatpush2.msra.mxu0 0.0
        %4518 = vmatprep.subr.mxu0 0.0
        %4519 = vmatpush2.msra.mxu0 0.0
        %4520 = vmatprep.subr.mxu0 0.0
        %4521 = vmatpush2.msra.mxu0 0.0
        %4522 = vmatprep.mubr.f32.mxu0 0.0
        %v4523 = vand.u32 %v4028, 4294901760
        %4524 = vmatmul.mubr.f32.gmra.mxu0 %v4523
        %v4525 = vpop.f32.mrf.mxu0
        %v4526 = vadd.f32 %v4447, %v4525
        %v4527 = vpop.f32.mrf.mxu0
        %4528 = vmatprep.mubr.f32.mxu0 0.0
        %v4529 = vand.u32 %v4031, 4294901760
        %4530 = vmatmul.mubr.f32.gmra.mxu0 %v4529
        %v4531 = vpop.f32.mrf.mxu0
        %v4532 = vadd.f32 %v4453, %v4531
        %v4533 = vpop.f32.mrf.mxu0
        %4534 = vdwg.mxu0
        %4535 = vrot.lane.b32.xlu0 %v1315, 64
        %v4536 = vpop.permute.xlu0 %4535
        %4537 = vrot.lane.b32.xlu0 %v1321, 64
        %v4538 = vpop.permute.xlu0 %4537
        %v4542 = vsel %vm1352, %v3500, 0
        %v4545 = vsel %vm1352, %v3502, 0
        %4547 = vmatprep.subr.mxu0 0.0
        %4548 = vmatpush1.msra.mxu0 0.0
        %4549 = vmatprep.subr.mxu0 0.0
        %4550 = vmatpush1.msra.mxu0 0.0
        %4551 = vmatprep.subr.mxu0 0.0
        %4552 = vmatpush1.msra.mxu0 0.0
        %4553 = vmatprep.subr.mxu0 0.0
        %4554 = vmatpush1.msra.mxu0 0.0
        %4555 = vmatprep.subr.mxu0 0.0
        %4556 = vmatpush1.msra.mxu0 0.0
        %4557 = vmatprep.subr.mxu0 0.0
        %4558 = vmatpush1.msra.mxu0 0.0
        %4559 = vmatprep.subr.mxu0 0.0
        %4560 = vmatpush1.msra.mxu0 0.0
        %4561 = vmatprep.subr.mxu0 0.0
        %4562 = vmatpush1.msra.mxu0 0.0
        %4563 = vmatprep.subr.mxu0 0.0
        %4564 = vmatpush1.msra.mxu0 0.0
        %4565 = vmatprep.subr.mxu0 0.0
        %4566 = vmatpush1.msra.mxu0 0.0
        %4567 = vmatprep.subr.mxu0 0.0
        %4568 = vmatpush1.msra.mxu0 0.0
        %4569 = vmatprep.subr.mxu0 0.0
        %4570 = vmatpush1.msra.mxu0 0.0
        %4571 = vmatprep.subr.mxu0 0.0
        %4572 = vmatpush1.msra.mxu0 0.0
        %4573 = vmatprep.subr.mxu0 0.0
        %4574 = vmatpush1.msra.mxu0 0.0
        %4575 = vmatprep.subr.mxu0 0.0
        %v4576 = vand.u32 %v4538, 4294901760
        %4577 = vmatpush1.msra.mxu0 %v4576
        %4578 = vmatprep.subr.mxu0 0.0
        %v4579 = vand.u32 %v4536, 4294901760
        %4580 = vmatpush1.msra.mxu0 %v4579
        %4581 = vmatprep.subr.mxu0 0.0
        %4582 = vmatpush2.msra.mxu0 0.0
        %4583 = vmatprep.subr.mxu0 0.0
        %4584 = vmatpush2.msra.mxu0 0.0
        %4585 = vmatprep.subr.mxu0 0.0
        %4586 = vmatpush2.msra.mxu0 0.0
        %4587 = vmatprep.subr.mxu0 0.0
        %4588 = vmatpush2.msra.mxu0 0.0
        %4589 = vmatprep.subr.mxu0 0.0
        %4590 = vmatpush2.msra.mxu0 0.0
        %4591 = vmatprep.subr.mxu0 0.0
        %4592 = vmatpush2.msra.mxu0 0.0
        %4593 = vmatprep.subr.mxu0 0.0
        %4594 = vmatpush2.msra.mxu0 0.0
        %4595 = vmatprep.subr.mxu0 0.0
        %4596 = vmatpush2.msra.mxu0 0.0
        %4597 = vmatprep.subr.mxu0 0.0
        %4598 = vmatpush2.msra.mxu0 0.0
        %4599 = vmatprep.subr.mxu0 0.0
        %4600 = vmatpush2.msra.mxu0 0.0
        %4601 = vmatprep.subr.mxu0 0.0
        %4602 = vmatpush2.msra.mxu0 0.0
        %4603 = vmatprep.subr.mxu0 0.0
        %4604 = vmatpush2.msra.mxu0 0.0
        %4605 = vmatprep.subr.mxu0 0.0
        %4606 = vmatpush2.msra.mxu0 0.0
        %4607 = vmatprep.subr.mxu0 0.0
        %4608 = vmatpush2.msra.mxu0 0.0
        %4609 = vmatprep.subr.mxu0 0.0
        %4610 = vmatpush2.msra.mxu0 0.0
        %4611 = vmatprep.subr.mxu0 0.0
        %4612 = vmatpush2.msra.mxu0 0.0
        %4613 = vmatprep.mubr.f32.mxu0 0.0
        %v4614 = vand.u32 %v4542, 4294901760
        %v4615 = vsub.f32 %v4542, %v4614
        %v4616 = vand.u32 %v4615, 4294901760
        %v4617 = vsub.f32 %v4615, %v4616
        %v4618 = vand.u32 %v4617, 4294901760
        %4619 = vmatmul.mubr.f32.gmra.mxu0 %v4618
        %v4620 = vpop.f32.mrf.mxu0
        %v4621 = vadd.f32 0.0, %v4620
        %v4622 = vpop.f32.mrf.mxu0
        %4623 = vmatprep.mubr.f32.mxu0 0.0
        %v4624 = vand.u32 %v4545, 4294901760
        %v4625 = vsub.f32 %v4545, %v4624
        %v4626 = vand.u32 %v4625, 4294901760
        %v4627 = vsub.f32 %v4625, %v4626
        %v4628 = vand.u32 %v4627, 4294901760
        %4629 = vmatmul.mubr.f32.gmra.mxu0 %v4628
        %v4630 = vpop.f32.mrf.mxu0
        %v4631 = vadd.f32 0.0, %v4630
        %v4632 = vpop.f32.mrf.mxu0
        %4633 = vdwg.mxu0
        %4634 = vmatprep.subr.mxu0 0.0
        %4635 = vmatpush1.msra.mxu0 0.0
        %4636 = vmatprep.subr.mxu0 0.0
        %4637 = vmatpush1.msra.mxu0 0.0
        %4638 = vmatprep.subr.mxu0 0.0
        %4639 = vmatpush1.msra.mxu0 0.0
        %4640 = vmatprep.subr.mxu0 0.0
        %4641 = vmatpush1.msra.mxu0 0.0
        %4642 = vmatprep.subr.mxu0 0.0
        %4643 = vmatpush1.msra.mxu0 0.0
        %4644 = vmatprep.subr.mxu0 0.0
        %4645 = vmatpush1.msra.mxu0 0.0
        %4646 = vmatprep.subr.mxu0 0.0
        %4647 = vmatpush1.msra.mxu0 0.0
        %4648 = vmatprep.subr.mxu0 0.0
        %4649 = vmatpush1.msra.mxu0 0.0
        %4650 = vmatprep.subr.mxu0 0.0
        %4651 = vmatpush1.msra.mxu0 0.0
        %4652 = vmatprep.subr.mxu0 0.0
        %4653 = vmatpush1.msra.mxu0 0.0
        %4654 = vmatprep.subr.mxu0 0.0
        %4655 = vmatpush1.msra.mxu0 0.0
        %4656 = vmatprep.subr.mxu0 0.0
        %4657 = vmatpush1.msra.mxu0 0.0
        %4658 = vmatprep.subr.mxu0 0.0
        %4659 = vmatpush1.msra.mxu0 0.0
        %4660 = vmatprep.subr.mxu0 0.0
        %4661 = vmatpush1.msra.mxu0 0.0
        %4662 = vmatprep.subr.mxu0 0.0
        %v4663 = vand.u32 %v4538, 4294901760
        %v4664 = vsub.f32 %v4538, %v4663
        %v4665 = vand.u32 %v4664, 4294901760
        %v4666 = vsub.f32 %v4664, %v4665
        %v4667 = vand.u32 %v4666, 4294901760
        %4668 = vmatpush1.msra.mxu0 %v4667
        %4669 = vmatprep.subr.mxu0 0.0
        %v4670 = vand.u32 %v4536, 4294901760
        %v4671 = vsub.f32 %v4536, %v4670
        %v4672 = vand.u32 %v4671, 4294901760
        %v4673 = vsub.f32 %v4671, %v4672
        %v4674 = vand.u32 %v4673, 4294901760
        %4675 = vmatpush1.msra.mxu0 %v4674
        %4676 = vmatprep.subr.mxu0 0.0
        %4677 = vmatpush2.msra.mxu0 0.0
        %4678 = vmatprep.subr.mxu0 0.0
        %4679 = vmatpush2.msra.mxu0 0.0
        %4680 = vmatprep.subr.mxu0 0.0
        %4681 = vmatpush2.msra.mxu0 0.0
        %4682 = vmatprep.subr.mxu0 0.0
        %4683 = vmatpush2.msra.mxu0 0.0
        %4684 = vmatprep.subr.mxu0 0.0
        %4685 = vmatpush2.msra.mxu0 0.0
        %4686 = vmatprep.subr.mxu0 0.0
        %4687 = vmatpush2.msra.mxu0 0.0
        %4688 = vmatprep.subr.mxu0 0.0
        %4689 = vmatpush2.msra.mxu0 0.0
        %4690 = vmatprep.subr.mxu0 0.0
        %4691 = vmatpush2.msra.mxu0 0.0
        %4692 = vmatprep.subr.mxu0 0.0
        %4693 = vmatpush2.msra.mxu0 0.0
        %4694 = vmatprep.subr.mxu0 0.0
        %4695 = vmatpush2.msra.mxu0 0.0
        %4696 = vmatprep.subr.mxu0 0.0
        %4697 = vmatpush2.msra.mxu0 0.0
        %4698 = vmatprep.subr.mxu0 0.0
        %4699 = vmatpush2.msra.mxu0 0.0
        %4700 = vmatprep.subr.mxu0 0.0
        %4701 = vmatpush2.msra.mxu0 0.0
        %4702 = vmatprep.subr.mxu0 0.0
        %4703 = vmatpush2.msra.mxu0 0.0
        %4704 = vmatprep.subr.mxu0 0.0
        %4705 = vmatpush2.msra.mxu0 0.0
        %4706 = vmatprep.subr.mxu0 0.0
        %4707 = vmatpush2.msra.mxu0 0.0
        %4708 = vmatprep.mubr.f32.mxu0 0.0
        %v4709 = vand.u32 %v4542, 4294901760
        %4710 = vmatmul.mubr.f32.gmra.mxu0 %v4709
        %v4711 = vpop.f32.mrf.mxu0
        %v4712 = vadd.f32 %v4621, %v4711
        %v4713 = vpop.f32.mrf.mxu0
        %4714 = vmatprep.mubr.f32.mxu0 0.0
        %v4715 = vand.u32 %v4545, 4294901760
        %4716 = vmatmul.mubr.f32.gmra.mxu0 %v4715
        %v4717 = vpop.f32.mrf.mxu0
        %v4718 = vadd.f32 %v4631, %v4717
        %v4719 = vpop.f32.mrf.mxu0
        %4720 = vdwg.mxu0
        %4721 = vmatprep.subr.mxu0 0.0
        %4722 = vmatpush1.msra.mxu0 0.0
        %4723 = vmatprep.subr.mxu0 0.0
        %4724 = vmatpush1.msra.mxu0 0.0
        %4725 = vmatprep.subr.mxu0 0.0
        %4726 = vmatpush1.msra.mxu0 0.0
        %4727 = vmatprep.subr.mxu0 0.0
        %4728 = vmatpush1.msra.mxu0 0.0
        %4729 = vmatprep.subr.mxu0 0.0
        %4730 = vmatpush1.msra.mxu0 0.0
        %4731 = vmatprep.subr.mxu0 0.0
        %4732 = vmatpush1.msra.mxu0 0.0
        %4733 = vmatprep.subr.mxu0 0.0
        %4734 = vmatpush1.msra.mxu0 0.0
        %4735 = vmatprep.subr.mxu0 0.0
        %4736 = vmatpush1.msra.mxu0 0.0
        %4737 = vmatprep.subr.mxu0 0.0
        %4738 = vmatpush1.msra.mxu0 0.0
        %4739 = vmatprep.subr.mxu0 0.0
        %4740 = vmatpush1.msra.mxu0 0.0
        %4741 = vmatprep.subr.mxu0 0.0
        %4742 = vmatpush1.msra.mxu0 0.0
        %4743 = vmatprep.subr.mxu0 0.0
        %4744 = vmatpush1.msra.mxu0 0.0
        %4745 = vmatprep.subr.mxu0 0.0
        %4746 = vmatpush1.msra.mxu0 0.0
        %4747 = vmatprep.subr.mxu0 0.0
        %4748 = vmatpush1.msra.mxu0 0.0
        %4749 = vmatprep.subr.mxu0 0.0
        %v4750 = vand.u32 %v4538, 4294901760
        %v4751 = vsub.f32 %v4538, %v4750
        %4752 = vmatpush1.msra.mxu0 %v4751
        %4753 = vmatprep.subr.mxu0 0.0
        %v4754 = vand.u32 %v4536, 4294901760
        %v4755 = vsub.f32 %v4536, %v4754
        %4756 = vmatpush1.msra.mxu0 %v4755
        %4757 = vmatprep.subr.mxu0 0.0
        %4758 = vmatpush2.msra.mxu0 0.0
        %4759 = vmatprep.subr.mxu0 0.0
        %4760 = vmatpush2.msra.mxu0 0.0
        %4761 = vmatprep.subr.mxu0 0.0
        %4762 = vmatpush2.msra.mxu0 0.0
        %4763 = vmatprep.subr.mxu0 0.0
        %4764 = vmatpush2.msra.mxu0 0.0
        %4765 = vmatprep.subr.mxu0 0.0
        %4766 = vmatpush2.msra.mxu0 0.0
        %4767 = vmatprep.subr.mxu0 0.0
        %4768 = vmatpush2.msra.mxu0 0.0
        %4769 = vmatprep.subr.mxu0 0.0
        %4770 = vmatpush2.msra.mxu0 0.0
        %4771 = vmatprep.subr.mxu0 0.0
        %4772 = vmatpush2.msra.mxu0 0.0
        %4773 = vmatprep.subr.mxu0 0.0
        %4774 = vmatpush2.msra.mxu0 0.0
        %4775 = vmatprep.subr.mxu0 0.0
        %4776 = vmatpush2.msra.mxu0 0.0
        %4777 = vmatprep.subr.mxu0 0.0
        %4778 = vmatpush2.msra.mxu0 0.0
        %4779 = vmatprep.subr.mxu0 0.0
        %4780 = vmatpush2.msra.mxu0 0.0
        %4781 = vmatprep.subr.mxu0 0.0
        %4782 = vmatpush2.msra.mxu0 0.0
        %4783 = vmatprep.subr.mxu0 0.0
        %4784 = vmatpush2.msra.mxu0 0.0
        %4785 = vmatprep.subr.mxu0 0.0
        %4786 = vmatpush2.msra.mxu0 0.0
        %4787 = vmatprep.subr.mxu0 0.0
        %4788 = vmatpush2.msra.mxu0 0.0
        %4789 = vmatprep.mubr.f32.mxu0 0.0
        %v4790 = vand.u32 %v4542, 4294901760
        %v4791 = vsub.f32 %v4542, %v4790
        %4792 = vmatmul.mubr.f32.gmra.mxu0 %v4791
        %v4793 = vpop.f32.mrf.mxu0
        %v4794 = vadd.f32 %v4712, %v4793
        %v4795 = vpop.f32.mrf.mxu0
        %4796 = vmatprep.mubr.f32.mxu0 0.0
        %v4797 = vand.u32 %v4545, 4294901760
        %v4798 = vsub.f32 %v4545, %v4797
        %4799 = vmatmul.mubr.f32.gmra.mxu0 %v4798
        %v4800 = vpop.f32.mrf.mxu0
        %v4801 = vadd.f32 %v4718, %v4800
        %v4802 = vpop.f32.mrf.mxu0
        %4803 = vdwg.mxu0
        %4804 = vmatprep.subr.mxu0 0.0
        %4805 = vmatpush1.msra.mxu0 0.0
        %4806 = vmatprep.subr.mxu0 0.0
        %4807 = vmatpush1.msra.mxu0 0.0
        %4808 = vmatprep.subr.mxu0 0.0
        %4809 = vmatpush1.msra.mxu0 0.0
        %4810 = vmatprep.subr.mxu0 0.0
        %4811 = vmatpush1.msra.mxu0 0.0
        %4812 = vmatprep.subr.mxu0 0.0
        %4813 = vmatpush1.msra.mxu0 0.0
        %4814 = vmatprep.subr.mxu0 0.0
        %4815 = vmatpush1.msra.mxu0 0.0
        %4816 = vmatprep.subr.mxu0 0.0
        %4817 = vmatpush1.msra.mxu0 0.0
        %4818 = vmatprep.subr.mxu0 0.0
        %4819 = vmatpush1.msra.mxu0 0.0
        %4820 = vmatprep.subr.mxu0 0.0
        %4821 = vmatpush1.msra.mxu0 0.0
        %4822 = vmatprep.subr.mxu0 0.0
        %4823 = vmatpush1.msra.mxu0 0.0
        %4824 = vmatprep.subr.mxu0 0.0
        %4825 = vmatpush1.msra.mxu0 0.0
        %4826 = vmatprep.subr.mxu0 0.0
        %4827 = vmatpush1.msra.mxu0 0.0
        %4828 = vmatprep.subr.mxu0 0.0
        %4829 = vmatpush1.msra.mxu0 0.0
        %4830 = vmatprep.subr.mxu0 0.0
        %4831 = vmatpush1.msra.mxu0 0.0
        %4832 = vmatprep.subr.mxu0 0.0
        %v4833 = vand.u32 %v4538, 4294901760
        %4834 = vmatpush1.msra.mxu0 %v4833
        %4835 = vmatprep.subr.mxu0 0.0
        %v4836 = vand.u32 %v4536, 4294901760
        %4837 = vmatpush1.msra.mxu0 %v4836
        %4838 = vmatprep.subr.mxu0 0.0
        %4839 = vmatpush2.msra.mxu0 0.0
        %4840 = vmatprep.subr.mxu0 0.0
        %4841 = vmatpush2.msra.mxu0 0.0
        %4842 = vmatprep.subr.mxu0 0.0
        %4843 = vmatpush2.msra.mxu0 0.0
        %4844 = vmatprep.subr.mxu0 0.0
        %4845 = vmatpush2.msra.mxu0 0.0
        %4846 = vmatprep.subr.mxu0 0.0
        %4847 = vmatpush2.msra.mxu0 0.0
        %4848 = vmatprep.subr.mxu0 0.0
        %4849 = vmatpush2.msra.mxu0 0.0
        %4850 = vmatprep.subr.mxu0 0.0
        %4851 = vmatpush2.msra.mxu0 0.0
        %4852 = vmatprep.subr.mxu0 0.0
        %4853 = vmatpush2.msra.mxu0 0.0
        %4854 = vmatprep.subr.mxu0 0.0
        %4855 = vmatpush2.msra.mxu0 0.0
        %4856 = vmatprep.subr.mxu0 0.0
        %4857 = vmatpush2.msra.mxu0 0.0
        %4858 = vmatprep.subr.mxu0 0.0
        %4859 = vmatpush2.msra.mxu0 0.0
        %4860 = vmatprep.subr.mxu0 0.0
        %4861 = vmatpush2.msra.mxu0 0.0
        %4862 = vmatprep.subr.mxu0 0.0
        %4863 = vmatpush2.msra.mxu0 0.0
        %4864 = vmatprep.subr.mxu0 0.0
        %4865 = vmatpush2.msra.mxu0 0.0
        %4866 = vmatprep.subr.mxu0 0.0
        %4867 = vmatpush2.msra.mxu0 0.0
        %4868 = vmatprep.subr.mxu0 0.0
        %4869 = vmatpush2.msra.mxu0 0.0
        %4870 = vmatprep.mubr.f32.mxu0 0.0
        %v4871 = vand.u32 %v4542, 4294901760
        %v4872 = vsub.f32 %v4542, %v4871
        %v4873 = vand.u32 %v4872, 4294901760
        %4874 = vmatmul.mubr.f32.gmra.mxu0 %v4873
        %v4875 = vpop.f32.mrf.mxu0
        %v4876 = vadd.f32 %v4794, %v4875
        %v4877 = vpop.f32.mrf.mxu0
        %4878 = vmatprep.mubr.f32.mxu0 0.0
        %v4879 = vand.u32 %v4545, 4294901760
        %v4880 = vsub.f32 %v4545, %v4879
        %v4881 = vand.u32 %v4880, 4294901760
        %4882 = vmatmul.mubr.f32.gmra.mxu0 %v4881
        %v4883 = vpop.f32.mrf.mxu0
        %v4884 = vadd.f32 %v4801, %v4883
        %v4885 = vpop.f32.mrf.mxu0
        %4886 = vdwg.mxu0
        %4887 = vmatprep.subr.mxu0 0.0
        %4888 = vmatpush1.msra.mxu0 0.0
        %4889 = vmatprep.subr.mxu0 0.0
        %4890 = vmatpush1.msra.mxu0 0.0
        %4891 = vmatprep.subr.mxu0 0.0
        %4892 = vmatpush1.msra.mxu0 0.0
        %4893 = vmatprep.subr.mxu0 0.0
        %4894 = vmatpush1.msra.mxu0 0.0
        %4895 = vmatprep.subr.mxu0 0.0
        %4896 = vmatpush1.msra.mxu0 0.0
        %4897 = vmatprep.subr.mxu0 0.0
        %4898 = vmatpush1.msra.mxu0 0.0
        %4899 = vmatprep.subr.mxu0 0.0
        %4900 = vmatpush1.msra.mxu0 0.0
        %4901 = vmatprep.subr.mxu0 0.0
        %4902 = vmatpush1.msra.mxu0 0.0
        %4903 = vmatprep.subr.mxu0 0.0
        %4904 = vmatpush1.msra.mxu0 0.0
        %4905 = vmatprep.subr.mxu0 0.0
        %4906 = vmatpush1.msra.mxu0 0.0
        %4907 = vmatprep.subr.mxu0 0.0
        %4908 = vmatpush1.msra.mxu0 0.0
        %4909 = vmatprep.subr.mxu0 0.0
        %4910 = vmatpush1.msra.mxu0 0.0
        %4911 = vmatprep.subr.mxu0 0.0
        %4912 = vmatpush1.msra.mxu0 0.0
        %4913 = vmatprep.subr.mxu0 0.0
        %4914 = vmatpush1.msra.mxu0 0.0
        %4915 = vmatprep.subr.mxu0 0.0
        %v4916 = vand.u32 %v4538, 4294901760
        %v4917 = vsub.f32 %v4538, %v4916
        %v4918 = vand.u32 %v4917, 4294901760
        %4919 = vmatpush1.msra.mxu0 %v4918
        %4920 = vmatprep.subr.mxu0 0.0
        %v4921 = vand.u32 %v4536, 4294901760
        %v4922 = vsub.f32 %v4536, %v4921
        %v4923 = vand.u32 %v4922, 4294901760
        %4924 = vmatpush1.msra.mxu0 %v4923
        %4925 = vmatprep.subr.mxu0 0.0
        %4926 = vmatpush2.msra.mxu0 0.0
        %4927 = vmatprep.subr.mxu0 0.0
        %4928 = vmatpush2.msra.mxu0 0.0
        %4929 = vmatprep.subr.mxu0 0.0
        %4930 = vmatpush2.msra.mxu0 0.0
        %4931 = vmatprep.subr.mxu0 0.0
        %4932 = vmatpush2.msra.mxu0 0.0
        %4933 = vmatprep.subr.mxu0 0.0
        %4934 = vmatpush2.msra.mxu0 0.0
        %4935 = vmatprep.subr.mxu0 0.0
        %4936 = vmatpush2.msra.mxu0 0.0
        %4937 = vmatprep.subr.mxu0 0.0
        %4938 = vmatpush2.msra.mxu0 0.0
        %4939 = vmatprep.subr.mxu0 0.0
        %4940 = vmatpush2.msra.mxu0 0.0
        %4941 = vmatprep.subr.mxu0 0.0
        %4942 = vmatpush2.msra.mxu0 0.0
        %4943 = vmatprep.subr.mxu0 0.0
        %4944 = vmatpush2.msra.mxu0 0.0
        %4945 = vmatprep.subr.mxu0 0.0
        %4946 = vmatpush2.msra.mxu0 0.0
        %4947 = vmatprep.subr.mxu0 0.0
        %4948 = vmatpush2.msra.mxu0 0.0
        %4949 = vmatprep.subr.mxu0 0.0
        %4950 = vmatpush2.msra.mxu0 0.0
        %4951 = vmatprep.subr.mxu0 0.0
        %4952 = vmatpush2.msra.mxu0 0.0
        %4953 = vmatprep.subr.mxu0 0.0
        %4954 = vmatpush2.msra.mxu0 0.0
        %4955 = vmatprep.subr.mxu0 0.0
        %4956 = vmatpush2.msra.mxu0 0.0
        %4957 = vmatprep.mubr.f32.mxu0 0.0
        %v4958 = vand.u32 %v4542, 4294901760
        %4959 = vmatmul.mubr.f32.gmra.mxu0 %v4958
        %v4960 = vpop.f32.mrf.mxu0
        %v4961 = vadd.f32 %v4876, %v4960
        %v4962 = vpop.f32.mrf.mxu0
        %4963 = vmatprep.mubr.f32.mxu0 0.0
        %v4964 = vand.u32 %v4545, 4294901760
        %4965 = vmatmul.mubr.f32.gmra.mxu0 %v4964
        %v4966 = vpop.f32.mrf.mxu0
        %v4967 = vadd.f32 %v4884, %v4966
        %v4968 = vpop.f32.mrf.mxu0
        %4969 = vdwg.mxu0
        %4970 = vmatprep.subr.mxu0 0.0
        %4971 = vmatpush1.msra.mxu0 0.0
        %4972 = vmatprep.subr.mxu0 0.0
        %4973 = vmatpush1.msra.mxu0 0.0
        %4974 = vmatprep.subr.mxu0 0.0
        %4975 = vmatpush1.msra.mxu0 0.0
        %4976 = vmatprep.subr.mxu0 0.0
        %4977 = vmatpush1.msra.mxu0 0.0
        %4978 = vmatprep.subr.mxu0 0.0
        %4979 = vmatpush1.msra.mxu0 0.0
        %4980 = vmatprep.subr.mxu0 0.0
        %4981 = vmatpush1.msra.mxu0 0.0
        %4982 = vmatprep.subr.mxu0 0.0
        %4983 = vmatpush1.msra.mxu0 0.0
        %4984 = vmatprep.subr.mxu0 0.0
        %4985 = vmatpush1.msra.mxu0 0.0
        %4986 = vmatprep.subr.mxu0 0.0
        %4987 = vmatpush1.msra.mxu0 0.0
        %4988 = vmatprep.subr.mxu0 0.0
        %4989 = vmatpush1.msra.mxu0 0.0
        %4990 = vmatprep.subr.mxu0 0.0
        %4991 = vmatpush1.msra.mxu0 0.0
        %4992 = vmatprep.subr.mxu0 0.0
        %4993 = vmatpush1.msra.mxu0 0.0
        %4994 = vmatprep.subr.mxu0 0.0
        %4995 = vmatpush1.msra.mxu0 0.0
        %4996 = vmatprep.subr.mxu0 0.0
        %4997 = vmatpush1.msra.mxu0 0.0
        %4998 = vmatprep.subr.mxu0 0.0
        %v4999 = vand.u32 %v4538, 4294901760
        %5000 = vmatpush1.msra.mxu0 %v4999
        %5001 = vmatprep.subr.mxu0 0.0
        %v5002 = vand.u32 %v4536, 4294901760
        %5003 = vmatpush1.msra.mxu0 %v5002
        %5004 = vmatprep.subr.mxu0 0.0
        %5005 = vmatpush2.msra.mxu0 0.0
        %5006 = vmatprep.subr.mxu0 0.0
        %5007 = vmatpush2.msra.mxu0 0.0
        %5008 = vmatprep.subr.mxu0 0.0
        %5009 = vmatpush2.msra.mxu0 0.0
        %5010 = vmatprep.subr.mxu0 0.0
        %5011 = vmatpush2.msra.mxu0 0.0
        %5012 = vmatprep.subr.mxu0 0.0
        %5013 = vmatpush2.msra.mxu0 0.0
        %5014 = vmatprep.subr.mxu0 0.0
        %5015 = vmatpush2.msra.mxu0 0.0
        %5016 = vmatprep.subr.mxu0 0.0
        %5017 = vmatpush2.msra.mxu0 0.0
        %5018 = vmatprep.subr.mxu0 0.0
        %5019 = vmatpush2.msra.mxu0 0.0
        %5020 = vmatprep.subr.mxu0 0.0
        %5021 = vmatpush2.msra.mxu0 0.0
        %5022 = vmatprep.subr.mxu0 0.0
        %5023 = vmatpush2.msra.mxu0 0.0
        %5024 = vmatprep.subr.mxu0 0.0
        %5025 = vmatpush2.msra.mxu0 0.0
        %5026 = vmatprep.subr.mxu0 0.0
        %5027 = vmatpush2.msra.mxu0 0.0
        %5028 = vmatprep.subr.mxu0 0.0
        %5029 = vmatpush2.msra.mxu0 0.0
        %5030 = vmatprep.subr.mxu0 0.0
        %5031 = vmatpush2.msra.mxu0 0.0
        %5032 = vmatprep.subr.mxu0 0.0
        %5033 = vmatpush2.msra.mxu0 0.0
        %5034 = vmatprep.subr.mxu0 0.0
        %5035 = vmatpush2.msra.mxu0 0.0
        %5036 = vmatprep.mubr.f32.mxu0 0.0
        %v5037 = vand.u32 %v4542, 4294901760
        %5038 = vmatmul.mubr.f32.gmra.mxu0 %v5037
        %v5039 = vpop.f32.mrf.mxu0
        %v5040 = vadd.f32 %v4961, %v5039
        %v5041 = vpop.f32.mrf.mxu0
        %5042 = vmatprep.mubr.f32.mxu0 0.0
        %v5043 = vand.u32 %v4545, 4294901760
        %5044 = vmatmul.mubr.f32.gmra.mxu0 %v5043
        %v5045 = vpop.f32.mrf.mxu0
        %v5046 = vadd.f32 %v4967, %v5045
        %v5047 = vpop.f32.mrf.mxu0
        %5048 = vdwg.mxu0
        %5049 = vrot.lane.b32.xlu0 %v1327, 64
        %v5050 = vpop.permute.xlu0 %5049
        %5051 = vrot.lane.b32.xlu0 %v1333, 64
        %v5052 = vpop.permute.xlu0 %5051
        %v5056 = vsel %vm1352, %v3504, 0
        %v5059 = vsel %vm1352, %v3506, 0
        %5061 = vmatprep.subr.mxu0 0.0
        %5062 = vmatpush1.msra.mxu0 0.0
        %5063 = vmatprep.subr.mxu0 0.0
        %5064 = vmatpush1.msra.mxu0 0.0
        %5065 = vmatprep.subr.mxu0 0.0
        %5066 = vmatpush1.msra.mxu0 0.0
        %5067 = vmatprep.subr.mxu0 0.0
        %5068 = vmatpush1.msra.mxu0 0.0
        %5069 = vmatprep.subr.mxu0 0.0
        %5070 = vmatpush1.msra.mxu0 0.0
        %5071 = vmatprep.subr.mxu0 0.0
        %5072 = vmatpush1.msra.mxu0 0.0
        %5073 = vmatprep.subr.mxu0 0.0
        %5074 = vmatpush1.msra.mxu0 0.0
        %5075 = vmatprep.subr.mxu0 0.0
        %5076 = vmatpush1.msra.mxu0 0.0
        %5077 = vmatprep.subr.mxu0 0.0
        %5078 = vmatpush1.msra.mxu0 0.0
        %5079 = vmatprep.subr.mxu0 0.0
        %5080 = vmatpush1.msra.mxu0 0.0
        %5081 = vmatprep.subr.mxu0 0.0
        %5082 = vmatpush1.msra.mxu0 0.0
        %5083 = vmatprep.subr.mxu0 0.0
        %5084 = vmatpush1.msra.mxu0 0.0
        %5085 = vmatprep.subr.mxu0 0.0
        %5086 = vmatpush1.msra.mxu0 0.0
        %5087 = vmatprep.subr.mxu0 0.0
        %5088 = vmatpush1.msra.mxu0 0.0
        %5089 = vmatprep.subr.mxu0 0.0
        %v5090 = vand.u32 %v5052, 4294901760
        %5091 = vmatpush1.msra.mxu0 %v5090
        %5092 = vmatprep.subr.mxu0 0.0
        %v5093 = vand.u32 %v5050, 4294901760
        %5094 = vmatpush1.msra.mxu0 %v5093
        %5095 = vmatprep.subr.mxu0 0.0
        %5096 = vmatpush2.msra.mxu0 0.0
        %5097 = vmatprep.subr.mxu0 0.0
        %5098 = vmatpush2.msra.mxu0 0.0
        %5099 = vmatprep.subr.mxu0 0.0
        %5100 = vmatpush2.msra.mxu0 0.0
        %5101 = vmatprep.subr.mxu0 0.0
        %5102 = vmatpush2.msra.mxu0 0.0
        %5103 = vmatprep.subr.mxu0 0.0
        %5104 = vmatpush2.msra.mxu0 0.0
        %5105 = vmatprep.subr.mxu0 0.0
        %5106 = vmatpush2.msra.mxu0 0.0
        %5107 = vmatprep.subr.mxu0 0.0
        %5108 = vmatpush2.msra.mxu0 0.0
        %5109 = vmatprep.subr.mxu0 0.0
        %5110 = vmatpush2.msra.mxu0 0.0
        %5111 = vmatprep.subr.mxu0 0.0
        %5112 = vmatpush2.msra.mxu0 0.0
        %5113 = vmatprep.subr.mxu0 0.0
        %5114 = vmatpush2.msra.mxu0 0.0
        %5115 = vmatprep.subr.mxu0 0.0
        %5116 = vmatpush2.msra.mxu0 0.0
        %5117 = vmatprep.subr.mxu0 0.0
        %5118 = vmatpush2.msra.mxu0 0.0
        %5119 = vmatprep.subr.mxu0 0.0
        %5120 = vmatpush2.msra.mxu0 0.0
        %5121 = vmatprep.subr.mxu0 0.0
        %5122 = vmatpush2.msra.mxu0 0.0
        %5123 = vmatprep.subr.mxu0 0.0
        %5124 = vmatpush2.msra.mxu0 0.0
        %5125 = vmatprep.subr.mxu0 0.0
        %5126 = vmatpush2.msra.mxu0 0.0
        %5127 = vmatprep.mubr.f32.mxu0 0.0
        %v5128 = vand.u32 %v5056, 4294901760
        %v5129 = vsub.f32 %v5056, %v5128
        %v5130 = vand.u32 %v5129, 4294901760
        %v5131 = vsub.f32 %v5129, %v5130
        %v5132 = vand.u32 %v5131, 4294901760
        %5133 = vmatmul.mubr.f32.gmra.mxu0 %v5132
        %v5134 = vpop.f32.mrf.mxu0
        %v5135 = vadd.f32 0.0, %v5134
        %v5136 = vpop.f32.mrf.mxu0
        %5137 = vmatprep.mubr.f32.mxu0 0.0
        %v5138 = vand.u32 %v5059, 4294901760
        %v5139 = vsub.f32 %v5059, %v5138
        %v5140 = vand.u32 %v5139, 4294901760
        %v5141 = vsub.f32 %v5139, %v5140
        %v5142 = vand.u32 %v5141, 4294901760
        %5143 = vmatmul.mubr.f32.gmra.mxu0 %v5142
        %v5144 = vpop.f32.mrf.mxu0
        %v5145 = vadd.f32 0.0, %v5144
        %v5146 = vpop.f32.mrf.mxu0
        %5147 = vdwg.mxu0
        %5148 = vmatprep.subr.mxu0 0.0
        %5149 = vmatpush1.msra.mxu0 0.0
        %5150 = vmatprep.subr.mxu0 0.0
        %5151 = vmatpush1.msra.mxu0 0.0
        %5152 = vmatprep.subr.mxu0 0.0
        %5153 = vmatpush1.msra.mxu0 0.0
        %5154 = vmatprep.subr.mxu0 0.0
        %5155 = vmatpush1.msra.mxu0 0.0
        %5156 = vmatprep.subr.mxu0 0.0
        %5157 = vmatpush1.msra.mxu0 0.0
        %5158 = vmatprep.subr.mxu0 0.0
        %5159 = vmatpush1.msra.mxu0 0.0
        %5160 = vmatprep.subr.mxu0 0.0
        %5161 = vmatpush1.msra.mxu0 0.0
        %5162 = vmatprep.subr.mxu0 0.0
        %5163 = vmatpush1.msra.mxu0 0.0
        %5164 = vmatprep.subr.mxu0 0.0
        %5165 = vmatpush1.msra.mxu0 0.0
        %5166 = vmatprep.subr.mxu0 0.0
        %5167 = vmatpush1.msra.mxu0 0.0
        %5168 = vmatprep.subr.mxu0 0.0
        %5169 = vmatpush1.msra.mxu0 0.0
        %5170 = vmatprep.subr.mxu0 0.0
        %5171 = vmatpush1.msra.mxu0 0.0
        %5172 = vmatprep.subr.mxu0 0.0
        %5173 = vmatpush1.msra.mxu0 0.0
        %5174 = vmatprep.subr.mxu0 0.0
        %5175 = vmatpush1.msra.mxu0 0.0
        %5176 = vmatprep.subr.mxu0 0.0
        %v5177 = vand.u32 %v5052, 4294901760
        %v5178 = vsub.f32 %v5052, %v5177
        %v5179 = vand.u32 %v5178, 4294901760
        %v5180 = vsub.f32 %v5178, %v5179
        %v5181 = vand.u32 %v5180, 4294901760
        %5182 = vmatpush1.msra.mxu0 %v5181
        %5183 = vmatprep.subr.mxu0 0.0
        %v5184 = vand.u32 %v5050, 4294901760
        %v5185 = vsub.f32 %v5050, %v5184
        %v5186 = vand.u32 %v5185, 4294901760
        %v5187 = vsub.f32 %v5185, %v5186
        %v5188 = vand.u32 %v5187, 4294901760
        %5189 = vmatpush1.msra.mxu0 %v5188
        %5190 = vmatprep.subr.mxu0 0.0
        %5191 = vmatpush2.msra.mxu0 0.0
        %5192 = vmatprep.subr.mxu0 0.0
        %5193 = vmatpush2.msra.mxu0 0.0
        %5194 = vmatprep.subr.mxu0 0.0
        %5195 = vmatpush2.msra.mxu0 0.0
        %5196 = vmatprep.subr.mxu0 0.0
        %5197 = vmatpush2.msra.mxu0 0.0
        %5198 = vmatprep.subr.mxu0 0.0
        %5199 = vmatpush2.msra.mxu0 0.0
        %5200 = vmatprep.subr.mxu0 0.0
        %5201 = vmatpush2.msra.mxu0 0.0
        %5202 = vmatprep.subr.mxu0 0.0
        %5203 = vmatpush2.msra.mxu0 0.0
        %5204 = vmatprep.subr.mxu0 0.0
        %5205 = vmatpush2.msra.mxu0 0.0
        %5206 = vmatprep.subr.mxu0 0.0
        %5207 = vmatpush2.msra.mxu0 0.0
        %5208 = vmatprep.subr.mxu0 0.0
        %5209 = vmatpush2.msra.mxu0 0.0
        %5210 = vmatprep.subr.mxu0 0.0
        %5211 = vmatpush2.msra.mxu0 0.0
        %5212 = vmatprep.subr.mxu0 0.0
        %5213 = vmatpush2.msra.mxu0 0.0
        %5214 = vmatprep.subr.mxu0 0.0
        %5215 = vmatpush2.msra.mxu0 0.0
        %5216 = vmatprep.subr.mxu0 0.0
        %5217 = vmatpush2.msra.mxu0 0.0
        %5218 = vmatprep.subr.mxu0 0.0
        %5219 = vmatpush2.msra.mxu0 0.0
        %5220 = vmatprep.subr.mxu0 0.0
        %5221 = vmatpush2.msra.mxu0 0.0
        %5222 = vmatprep.mubr.f32.mxu0 0.0
        %v5223 = vand.u32 %v5056, 4294901760
        %5224 = vmatmul.mubr.f32.gmra.mxu0 %v5223
        %v5225 = vpop.f32.mrf.mxu0
        %v5226 = vadd.f32 %v5135, %v5225
        %v5227 = vpop.f32.mrf.mxu0
        %5228 = vmatprep.mubr.f32.mxu0 0.0
        %v5229 = vand.u32 %v5059, 4294901760
        %5230 = vmatmul.mubr.f32.gmra.mxu0 %v5229
        %v5231 = vpop.f32.mrf.mxu0
        %v5232 = vadd.f32 %v5145, %v5231
        %v5233 = vpop.f32.mrf.mxu0
        %5234 = vdwg.mxu0
        %5235 = vmatprep.subr.mxu0 0.0
        %5236 = vmatpush1.msra.mxu0 0.0
        %5237 = vmatprep.subr.mxu0 0.0
        %5238 = vmatpush1.msra.mxu0 0.0
        %5239 = vmatprep.subr.mxu0 0.0
        %5240 = vmatpush1.msra.mxu0 0.0
        %5241 = vmatprep.subr.mxu0 0.0
        %5242 = vmatpush1.msra.mxu0 0.0
        %5243 = vmatprep.subr.mxu0 0.0
        %5244 = vmatpush1.msra.mxu0 0.0
        %5245 = vmatprep.subr.mxu0 0.0
        %5246 = vmatpush1.msra.mxu0 0.0
        %5247 = vmatprep.subr.mxu0 0.0
        %5248 = vmatpush1.msra.mxu0 0.0
        %5249 = vmatprep.subr.mxu0 0.0
        %5250 = vmatpush1.msra.mxu0 0.0
        %5251 = vmatprep.subr.mxu0 0.0
        %5252 = vmatpush1.msra.mxu0 0.0
        %5253 = vmatprep.subr.mxu0 0.0
        %5254 = vmatpush1.msra.mxu0 0.0
        %5255 = vmatprep.subr.mxu0 0.0
        %5256 = vmatpush1.msra.mxu0 0.0
        %5257 = vmatprep.subr.mxu0 0.0
        %5258 = vmatpush1.msra.mxu0 0.0
        %5259 = vmatprep.subr.mxu0 0.0
        %5260 = vmatpush1.msra.mxu0 0.0
        %5261 = vmatprep.subr.mxu0 0.0
        %5262 = vmatpush1.msra.mxu0 0.0
        %5263 = vmatprep.subr.mxu0 0.0
        %v5264 = vand.u32 %v5052, 4294901760
        %v5265 = vsub.f32 %v5052, %v5264
        %5266 = vmatpush1.msra.mxu0 %v5265
        %5267 = vmatprep.subr.mxu0 0.0
        %v5268 = vand.u32 %v5050, 4294901760
        %v5269 = vsub.f32 %v5050, %v5268
        %5270 = vmatpush1.msra.mxu0 %v5269
        %5271 = vmatprep.subr.mxu0 0.0
        %5272 = vmatpush2.msra.mxu0 0.0
        %5273 = vmatprep.subr.mxu0 0.0
        %5274 = vmatpush2.msra.mxu0 0.0
        %5275 = vmatprep.subr.mxu0 0.0
        %5276 = vmatpush2.msra.mxu0 0.0
        %5277 = vmatprep.subr.mxu0 0.0
        %5278 = vmatpush2.msra.mxu0 0.0
        %5279 = vmatprep.subr.mxu0 0.0
        %5280 = vmatpush2.msra.mxu0 0.0
        %5281 = vmatprep.subr.mxu0 0.0
        %5282 = vmatpush2.msra.mxu0 0.0
        %5283 = vmatprep.subr.mxu0 0.0
        %5284 = vmatpush2.msra.mxu0 0.0
        %5285 = vmatprep.subr.mxu0 0.0
        %5286 = vmatpush2.msra.mxu0 0.0
        %5287 = vmatprep.subr.mxu0 0.0
        %5288 = vmatpush2.msra.mxu0 0.0
        %5289 = vmatprep.subr.mxu0 0.0
        %5290 = vmatpush2.msra.mxu0 0.0
        %5291 = vmatprep.subr.mxu0 0.0
        %5292 = vmatpush2.msra.mxu0 0.0
        %5293 = vmatprep.subr.mxu0 0.0
        %5294 = vmatpush2.msra.mxu0 0.0
        %5295 = vmatprep.subr.mxu0 0.0
        %5296 = vmatpush2.msra.mxu0 0.0
        %5297 = vmatprep.subr.mxu0 0.0
        %5298 = vmatpush2.msra.mxu0 0.0
        %5299 = vmatprep.subr.mxu0 0.0
        %5300 = vmatpush2.msra.mxu0 0.0
        %5301 = vmatprep.subr.mxu0 0.0
        %5302 = vmatpush2.msra.mxu0 0.0
        %5303 = vmatprep.mubr.f32.mxu0 0.0
        %v5304 = vand.u32 %v5056, 4294901760
        %v5305 = vsub.f32 %v5056, %v5304
        %5306 = vmatmul.mubr.f32.gmra.mxu0 %v5305
        %v5307 = vpop.f32.mrf.mxu0
        %v5308 = vadd.f32 %v5226, %v5307
        %v5309 = vpop.f32.mrf.mxu0
        %5310 = vmatprep.mubr.f32.mxu0 0.0
        %v5311 = vand.u32 %v5059, 4294901760
        %v5312 = vsub.f32 %v5059, %v5311
        %5313 = vmatmul.mubr.f32.gmra.mxu0 %v5312
        %v5314 = vpop.f32.mrf.mxu0
        %v5315 = vadd.f32 %v5232, %v5314
        %v5316 = vpop.f32.mrf.mxu0
        %5317 = vdwg.mxu0
        %5318 = vmatprep.subr.mxu0 0.0
        %5319 = vmatpush1.msra.mxu0 0.0
        %5320 = vmatprep.subr.mxu0 0.0
        %5321 = vmatpush1.msra.mxu0 0.0
        %5322 = vmatprep.subr.mxu0 0.0
        %5323 = vmatpush1.msra.mxu0 0.0
        %5324 = vmatprep.subr.mxu0 0.0
        %5325 = vmatpush1.msra.mxu0 0.0
        %5326 = vmatprep.subr.mxu0 0.0
        %5327 = vmatpush1.msra.mxu0 0.0
        %5328 = vmatprep.subr.mxu0 0.0
        %5329 = vmatpush1.msra.mxu0 0.0
        %5330 = vmatprep.subr.mxu0 0.0
        %5331 = vmatpush1.msra.mxu0 0.0
        %5332 = vmatprep.subr.mxu0 0.0
        %5333 = vmatpush1.msra.mxu0 0.0
        %5334 = vmatprep.subr.mxu0 0.0
        %5335 = vmatpush1.msra.mxu0 0.0
        %5336 = vmatprep.subr.mxu0 0.0
        %5337 = vmatpush1.msra.mxu0 0.0
        %5338 = vmatprep.subr.mxu0 0.0
        %5339 = vmatpush1.msra.mxu0 0.0
        %5340 = vmatprep.subr.mxu0 0.0
        %5341 = vmatpush1.msra.mxu0 0.0
        %5342 = vmatprep.subr.mxu0 0.0
        %5343 = vmatpush1.msra.mxu0 0.0
        %5344 = vmatprep.subr.mxu0 0.0
        %5345 = vmatpush1.msra.mxu0 0.0
        %5346 = vmatprep.subr.mxu0 0.0
        %v5347 = vand.u32 %v5052, 4294901760
        %5348 = vmatpush1.msra.mxu0 %v5347
        %5349 = vmatprep.subr.mxu0 0.0
        %v5350 = vand.u32 %v5050, 4294901760
        %5351 = vmatpush1.msra.mxu0 %v5350
        %5352 = vmatprep.subr.mxu0 0.0
        %5353 = vmatpush2.msra.mxu0 0.0
        %5354 = vmatprep.subr.mxu0 0.0
        %5355 = vmatpush2.msra.mxu0 0.0
        %5356 = vmatprep.subr.mxu0 0.0
        %5357 = vmatpush2.msra.mxu0 0.0
        %5358 = vmatprep.subr.mxu0 0.0
        %5359 = vmatpush2.msra.mxu0 0.0
        %5360 = vmatprep.subr.mxu0 0.0
        %5361 = vmatpush2.msra.mxu0 0.0
        %5362 = vmatprep.subr.mxu0 0.0
        %5363 = vmatpush2.msra.mxu0 0.0
        %5364 = vmatprep.subr.mxu0 0.0
        %5365 = vmatpush2.msra.mxu0 0.0
        %5366 = vmatprep.subr.mxu0 0.0
        %5367 = vmatpush2.msra.mxu0 0.0
        %5368 = vmatprep.subr.mxu0 0.0
        %5369 = vmatpush2.msra.mxu0 0.0
        %5370 = vmatprep.subr.mxu0 0.0
        %5371 = vmatpush2.msra.mxu0 0.0
        %5372 = vmatprep.subr.mxu0 0.0
        %5373 = vmatpush2.msra.mxu0 0.0
        %5374 = vmatprep.subr.mxu0 0.0
        %5375 = vmatpush2.msra.mxu0 0.0
        %5376 = vmatprep.subr.mxu0 0.0
        %5377 = vmatpush2.msra.mxu0 0.0
        %5378 = vmatprep.subr.mxu0 0.0
        %5379 = vmatpush2.msra.mxu0 0.0
        %5380 = vmatprep.subr.mxu0 0.0
        %5381 = vmatpush2.msra.mxu0 0.0
        %5382 = vmatprep.subr.mxu0 0.0
        %5383 = vmatpush2.msra.mxu0 0.0
        %5384 = vmatprep.mubr.f32.mxu0 0.0
        %v5385 = vand.u32 %v5056, 4294901760
        %v5386 = vsub.f32 %v5056, %v5385
        %v5387 = vand.u32 %v5386, 4294901760
        %5388 = vmatmul.mubr.f32.gmra.mxu0 %v5387
        %v5389 = vpop.f32.mrf.mxu0
        %v5390 = vadd.f32 %v5308, %v5389
        %v5391 = vpop.f32.mrf.mxu0
        %5392 = vmatprep.mubr.f32.mxu0 0.0
        %v5393 = vand.u32 %v5059, 4294901760
        %v5394 = vsub.f32 %v5059, %v5393
        %v5395 = vand.u32 %v5394, 4294901760
        %5396 = vmatmul.mubr.f32.gmra.mxu0 %v5395
        %v5397 = vpop.f32.mrf.mxu0
        %v5398 = vadd.f32 %v5315, %v5397
        %v5399 = vpop.f32.mrf.mxu0
        %5400 = vdwg.mxu0
        %5401 = vmatprep.subr.mxu0 0.0
        %5402 = vmatpush1.msra.mxu0 0.0
        %5403 = vmatprep.subr.mxu0 0.0
        %5404 = vmatpush1.msra.mxu0 0.0
        %5405 = vmatprep.subr.mxu0 0.0
        %5406 = vmatpush1.msra.mxu0 0.0
        %5407 = vmatprep.subr.mxu0 0.0
        %5408 = vmatpush1.msra.mxu0 0.0
        %5409 = vmatprep.subr.mxu0 0.0
        %5410 = vmatpush1.msra.mxu0 0.0
        %5411 = vmatprep.subr.mxu0 0.0
        %5412 = vmatpush1.msra.mxu0 0.0
        %5413 = vmatprep.subr.mxu0 0.0
        %5414 = vmatpush1.msra.mxu0 0.0
        %5415 = vmatprep.subr.mxu0 0.0
        %5416 = vmatpush1.msra.mxu0 0.0
        %5417 = vmatprep.subr.mxu0 0.0
        %5418 = vmatpush1.msra.mxu0 0.0
        %5419 = vmatprep.subr.mxu0 0.0
        %5420 = vmatpush1.msra.mxu0 0.0
        %5421 = vmatprep.subr.mxu0 0.0
        %5422 = vmatpush1.msra.mxu0 0.0
        %5423 = vmatprep.subr.mxu0 0.0
        %5424 = vmatpush1.msra.mxu0 0.0
        %5425 = vmatprep.subr.mxu0 0.0
        %5426 = vmatpush1.msra.mxu0 0.0
        %5427 = vmatprep.subr.mxu0 0.0
        %5428 = vmatpush1.msra.mxu0 0.0
        %5429 = vmatprep.subr.mxu0 0.0
        %v5430 = vand.u32 %v5052, 4294901760
        %v5431 = vsub.f32 %v5052, %v5430
        %v5432 = vand.u32 %v5431, 4294901760
        %5433 = vmatpush1.msra.mxu0 %v5432
        %5434 = vmatprep.subr.mxu0 0.0
        %v5435 = vand.u32 %v5050, 4294901760
        %v5436 = vsub.f32 %v5050, %v5435
        %v5437 = vand.u32 %v5436, 4294901760
        %5438 = vmatpush1.msra.mxu0 %v5437
        %5439 = vmatprep.subr.mxu0 0.0
        %5440 = vmatpush2.msra.mxu0 0.0
        %5441 = vmatprep.subr.mxu0 0.0
        %5442 = vmatpush2.msra.mxu0 0.0
        %5443 = vmatprep.subr.mxu0 0.0
        %5444 = vmatpush2.msra.mxu0 0.0
        %5445 = vmatprep.subr.mxu0 0.0
        %5446 = vmatpush2.msra.mxu0 0.0
        %5447 = vmatprep.subr.mxu0 0.0
        %5448 = vmatpush2.msra.mxu0 0.0
        %5449 = vmatprep.subr.mxu0 0.0
        %5450 = vmatpush2.msra.mxu0 0.0
        %5451 = vmatprep.subr.mxu0 0.0
        %5452 = vmatpush2.msra.mxu0 0.0
        %5453 = vmatprep.subr.mxu0 0.0
        %5454 = vmatpush2.msra.mxu0 0.0
        %5455 = vmatprep.subr.mxu0 0.0
        %5456 = vmatpush2.msra.mxu0 0.0
        %5457 = vmatprep.subr.mxu0 0.0
        %5458 = vmatpush2.msra.mxu0 0.0
        %5459 = vmatprep.subr.mxu0 0.0
        %5460 = vmatpush2.msra.mxu0 0.0
        %5461 = vmatprep.subr.mxu0 0.0
        %5462 = vmatpush2.msra.mxu0 0.0
        %5463 = vmatprep.subr.mxu0 0.0
        %5464 = vmatpush2.msra.mxu0 0.0
        %5465 = vmatprep.subr.mxu0 0.0
        %5466 = vmatpush2.msra.mxu0 0.0
        %5467 = vmatprep.subr.mxu0 0.0
        %5468 = vmatpush2.msra.mxu0 0.0
        %5469 = vmatprep.subr.mxu0 0.0
        %5470 = vmatpush2.msra.mxu0 0.0
        %5471 = vmatprep.mubr.f32.mxu0 0.0
        %v5472 = vand.u32 %v5056, 4294901760
        %5473 = vmatmul.mubr.f32.gmra.mxu0 %v5472
        %v5474 = vpop.f32.mrf.mxu0
        %v5475 = vadd.f32 %v5390, %v5474
        %v5476 = vpop.f32.mrf.mxu0
        %5477 = vmatprep.mubr.f32.mxu0 0.0
        %v5478 = vand.u32 %v5059, 4294901760
        %5479 = vmatmul.mubr.f32.gmra.mxu0 %v5478
        %v5480 = vpop.f32.mrf.mxu0
        %v5481 = vadd.f32 %v5398, %v5480
        %v5482 = vpop.f32.mrf.mxu0
        %5483 = vdwg.mxu0
        %5484 = vmatprep.subr.mxu0 0.0
        %5485 = vmatpush1.msra.mxu0 0.0
        %5486 = vmatprep.subr.mxu0 0.0
        %5487 = vmatpush1.msra.mxu0 0.0
        %5488 = vmatprep.subr.mxu0 0.0
        %5489 = vmatpush1.msra.mxu0 0.0
        %5490 = vmatprep.subr.mxu0 0.0
        %5491 = vmatpush1.msra.mxu0 0.0
        %5492 = vmatprep.subr.mxu0 0.0
        %5493 = vmatpush1.msra.mxu0 0.0
        %5494 = vmatprep.subr.mxu0 0.0
        %5495 = vmatpush1.msra.mxu0 0.0
        %5496 = vmatprep.subr.mxu0 0.0
        %5497 = vmatpush1.msra.mxu0 0.0
        %5498 = vmatprep.subr.mxu0 0.0
        %5499 = vmatpush1.msra.mxu0 0.0
        %5500 = vmatprep.subr.mxu0 0.0
        %5501 = vmatpush1.msra.mxu0 0.0
        %5502 = vmatprep.subr.mxu0 0.0
        %5503 = vmatpush1.msra.mxu0 0.0
        %5504 = vmatprep.subr.mxu0 0.0
        %5505 = vmatpush1.msra.mxu0 0.0
        %5506 = vmatprep.subr.mxu0 0.0
        %5507 = vmatpush1.msra.mxu0 0.0
        %5508 = vmatprep.subr.mxu0 0.0
        %5509 = vmatpush1.msra.mxu0 0.0
        %5510 = vmatprep.subr.mxu0 0.0
        %5511 = vmatpush1.msra.mxu0 0.0
        %5512 = vmatprep.subr.mxu0 0.0
        %v5513 = vand.u32 %v5052, 4294901760
        %5514 = vmatpush1.msra.mxu0 %v5513
        %5515 = vmatprep.subr.mxu0 0.0
        %v5516 = vand.u32 %v5050, 4294901760
        %5517 = vmatpush1.msra.mxu0 %v5516
        %5518 = vmatprep.subr.mxu0 0.0
        %5519 = vmatpush2.msra.mxu0 0.0
        %5520 = vmatprep.subr.mxu0 0.0
        %5521 = vmatpush2.msra.mxu0 0.0
        %5522 = vmatprep.subr.mxu0 0.0
        %5523 = vmatpush2.msra.mxu0 0.0
        %5524 = vmatprep.subr.mxu0 0.0
        %5525 = vmatpush2.msra.mxu0 0.0
        %5526 = vmatprep.subr.mxu0 0.0
        %5527 = vmatpush2.msra.mxu0 0.0
        %5528 = vmatprep.subr.mxu0 0.0
        %5529 = vmatpush2.msra.mxu0 0.0
        %5530 = vmatprep.subr.mxu0 0.0
        %5531 = vmatpush2.msra.mxu0 0.0
        %5532 = vmatprep.subr.mxu0 0.0
        %5533 = vmatpush2.msra.mxu0 0.0
        %5534 = vmatprep.subr.mxu0 0.0
        %5535 = vmatpush2.msra.mxu0 0.0
        %5536 = vmatprep.subr.mxu0 0.0
        %5537 = vmatpush2.msra.mxu0 0.0
        %5538 = vmatprep.subr.mxu0 0.0
        %5539 = vmatpush2.msra.mxu0 0.0
        %5540 = vmatprep.subr.mxu0 0.0
        %5541 = vmatpush2.msra.mxu0 0.0
        %5542 = vmatprep.subr.mxu0 0.0
        %5543 = vmatpush2.msra.mxu0 0.0
        %5544 = vmatprep.subr.mxu0 0.0
        %5545 = vmatpush2.msra.mxu0 0.0
        %5546 = vmatprep.subr.mxu0 0.0
        %5547 = vmatpush2.msra.mxu0 0.0
        %5548 = vmatprep.subr.mxu0 0.0
        %5549 = vmatpush2.msra.mxu0 0.0
        %5550 = vmatprep.mubr.f32.mxu0 0.0
        %v5551 = vand.u32 %v5056, 4294901760
        %5552 = vmatmul.mubr.f32.gmra.mxu0 %v5551
        %v5553 = vpop.f32.mrf.mxu0
        %v5554 = vadd.f32 %v5475, %v5553
        %v5555 = vpop.f32.mrf.mxu0
        %5556 = vmatprep.mubr.f32.mxu0 0.0
        %v5557 = vand.u32 %v5059, 4294901760
        %5558 = vmatmul.mubr.f32.gmra.mxu0 %v5557
        %v5559 = vpop.f32.mrf.mxu0
        %v5560 = vadd.f32 %v5481, %v5559
        %v5561 = vpop.f32.mrf.mxu0
        %5562 = vdwg.mxu0
        %s5563 = scalar_lea.vmem [#allocation8], 16
        %v5564 = vld [vmem:[%s5563] sm:$0xff]
        %v5565 = vld [vmem:[%s5563 + $0x8] sm:$0xff]
        %5566 = vrot.lane.b32.xlu0 %v1336, 112
        %v5567 = vpop.permute.xlu0 %5566
        %5568 = vrot.lane.b32.xlu0 %v1337, 112
        %v5569 = vpop.permute.xlu0 %5568
        %5570 = vrot.lane.b32.xlu0 %v1291, 80
        %v5571 = vpop.permute.xlu0 %5570
        %5572 = vrot.lane.b32.xlu0 %v1297, 80
        %v5573 = vpop.permute.xlu0 %5572
        %v5574 = vsel %vm1352, %v5567, 0
        %v5576 = vsel %vm1352, %v5569, 0
        %v5578 = vsel %vm1352, %v5571, 0
        %v5580 = vsel %vm1352, %v5573, 0
        %5582 = vmatprep.subr.mxu0 0.0
        %5583 = vmatpush1.xpose.msra.mxu0 0.0
        %5584 = vmatprep.subr.mxu0 0.0
        %5585 = vmatpush1.xpose.msra.mxu0 0.0
        %5586 = vmatprep.subr.mxu0 0.0
        %5587 = vmatpush1.xpose.msra.mxu0 0.0
        %5588 = vmatprep.subr.mxu0 0.0
        %5589 = vmatpush1.xpose.msra.mxu0 0.0
        %5590 = vmatprep.subr.mxu0 0.0
        %5591 = vmatpush1.xpose.msra.mxu0 0.0
        %5592 = vmatprep.subr.mxu0 0.0
        %5593 = vmatpush1.xpose.msra.mxu0 0.0
        %5594 = vmatprep.subr.mxu0 0.0
        %5595 = vmatpush1.xpose.msra.mxu0 0.0
        %5596 = vmatprep.subr.mxu0 0.0
        %5597 = vmatpush1.xpose.msra.mxu0 0.0
        %5598 = vmatprep.subr.mxu0 0.0
        %5599 = vmatpush1.xpose.msra.mxu0 0.0
        %5600 = vmatprep.subr.mxu0 0.0
        %5601 = vmatpush1.xpose.msra.mxu0 0.0
        %5602 = vmatprep.subr.mxu0 0.0
        %5603 = vmatpush1.xpose.msra.mxu0 0.0
        %5604 = vmatprep.subr.mxu0 0.0
        %5605 = vmatpush1.xpose.msra.mxu0 0.0
        %5606 = vmatprep.subr.mxu0 0.0
        %5607 = vmatpush1.xpose.msra.mxu0 0.0
        %5608 = vmatprep.subr.mxu0 0.0
        %5609 = vmatpush1.xpose.msra.mxu0 0.0
        %5610 = vmatprep.subr.mxu0 0.0
        %v5611 = vand.u32 %v5580, 4294901760
        %5612 = vmatpush1.xpose.msra.mxu0 %v5611
        %5613 = vmatprep.subr.mxu0 0.0
        %v5614 = vand.u32 %v5578, 4294901760
        %5615 = vmatpush1.xpose.msra.mxu0 %v5614
        %5616 = vmatprep.subr.mxu0 0.0
        %5617 = vmatpush2.xpose.msra.mxu0 0.0
        %5618 = vmatprep.subr.mxu0 0.0
        %5619 = vmatpush2.xpose.msra.mxu0 0.0
        %5620 = vmatprep.subr.mxu0 0.0
        %5621 = vmatpush2.xpose.msra.mxu0 0.0
        %5622 = vmatprep.subr.mxu0 0.0
        %5623 = vmatpush2.xpose.msra.mxu0 0.0
        %5624 = vmatprep.subr.mxu0 0.0
        %5625 = vmatpush2.xpose.msra.mxu0 0.0
        %5626 = vmatprep.subr.mxu0 0.0
        %5627 = vmatpush2.xpose.msra.mxu0 0.0
        %5628 = vmatprep.subr.mxu0 0.0
        %5629 = vmatpush2.xpose.msra.mxu0 0.0
        %5630 = vmatprep.subr.mxu0 0.0
        %5631 = vmatpush2.xpose.msra.mxu0 0.0
        %5632 = vmatprep.subr.mxu0 0.0
        %5633 = vmatpush2.xpose.msra.mxu0 0.0
        %5634 = vmatprep.subr.mxu0 0.0
        %5635 = vmatpush2.xpose.msra.mxu0 0.0
        %5636 = vmatprep.subr.mxu0 0.0
        %5637 = vmatpush2.xpose.msra.mxu0 0.0
        %5638 = vmatprep.subr.mxu0 0.0
        %5639 = vmatpush2.xpose.msra.mxu0 0.0
        %5640 = vmatprep.subr.mxu0 0.0
        %5641 = vmatpush2.xpose.msra.mxu0 0.0
        %5642 = vmatprep.subr.mxu0 0.0
        %5643 = vmatpush2.xpose.msra.mxu0 0.0
        %5644 = vmatprep.subr.mxu0 0.0
        %5645 = vmatpush2.xpose.msra.mxu0 0.0
        %5646 = vmatprep.subr.mxu0 0.0
        %5647 = vmatpush2.xpose.msra.mxu0 0.0
        %5648 = vmatprep.mubr.f32.mxu0 0.0
        %v5649 = vand.u32 %v5574, 4294901760
        %v5650 = vsub.f32 %v5574, %v5649
        %v5651 = vand.u32 %v5650, 4294901760
        %v5652 = vsub.f32 %v5650, %v5651
        %v5653 = vand.u32 %v5652, 4294901760
        %5654 = vmatmul.mubr.f32.gmra.mxu0 %v5653
        %v5655 = vpop.f32.mrf.mxu0
        %v5656 = vadd.f32 %v5564, %v5655
        %v5657 = vpop.f32.mrf.mxu0
        %5658 = vmatprep.mubr.f32.mxu0 0.0
        %v5659 = vand.u32 %v5576, 4294901760
        %v5660 = vsub.f32 %v5576, %v5659
        %v5661 = vand.u32 %v5660, 4294901760
        %v5662 = vsub.f32 %v5660, %v5661
        %v5663 = vand.u32 %v5662, 4294901760
        %5664 = vmatmul.mubr.f32.gmra.mxu0 %v5663
        %v5665 = vpop.f32.mrf.mxu0
        %v5666 = vadd.f32 %v5565, %v5665
        %v5667 = vpop.f32.mrf.mxu0
        %5668 = vdwg.mxu0
        %5669 = vmatprep.subr.mxu0 0.0
        %5670 = vmatpush1.xpose.msra.mxu0 0.0
        %5671 = vmatprep.subr.mxu0 0.0
        %5672 = vmatpush1.xpose.msra.mxu0 0.0
        %5673 = vmatprep.subr.mxu0 0.0
        %5674 = vmatpush1.xpose.msra.mxu0 0.0
        %5675 = vmatprep.subr.mxu0 0.0
        %5676 = vmatpush1.xpose.msra.mxu0 0.0
        %5677 = vmatprep.subr.mxu0 0.0
        %5678 = vmatpush1.xpose.msra.mxu0 0.0
        %5679 = vmatprep.subr.mxu0 0.0
        %5680 = vmatpush1.xpose.msra.mxu0 0.0
        %5681 = vmatprep.subr.mxu0 0.0
        %5682 = vmatpush1.xpose.msra.mxu0 0.0
        %5683 = vmatprep.subr.mxu0 0.0
        %5684 = vmatpush1.xpose.msra.mxu0 0.0
        %5685 = vmatprep.subr.mxu0 0.0
        %5686 = vmatpush1.xpose.msra.mxu0 0.0
        %5687 = vmatprep.subr.mxu0 0.0
        %5688 = vmatpush1.xpose.msra.mxu0 0.0
        %5689 = vmatprep.subr.mxu0 0.0
        %5690 = vmatpush1.xpose.msra.mxu0 0.0
        %5691 = vmatprep.subr.mxu0 0.0
        %5692 = vmatpush1.xpose.msra.mxu0 0.0
        %5693 = vmatprep.subr.mxu0 0.0
        %5694 = vmatpush1.xpose.msra.mxu0 0.0
        %5695 = vmatprep.subr.mxu0 0.0
        %5696 = vmatpush1.xpose.msra.mxu0 0.0
        %5697 = vmatprep.subr.mxu0 0.0
        %v5698 = vand.u32 %v5580, 4294901760
        %v5699 = vsub.f32 %v5580, %v5698
        %v5700 = vand.u32 %v5699, 4294901760
        %v5701 = vsub.f32 %v5699, %v5700
        %v5702 = vand.u32 %v5701, 4294901760
        %5703 = vmatpush1.xpose.msra.mxu0 %v5702
        %5704 = vmatprep.subr.mxu0 0.0
        %v5705 = vand.u32 %v5578, 4294901760
        %v5706 = vsub.f32 %v5578, %v5705
        %v5707 = vand.u32 %v5706, 4294901760
        %v5708 = vsub.f32 %v5706, %v5707
        %v5709 = vand.u32 %v5708, 4294901760
        %5710 = vmatpush1.xpose.msra.mxu0 %v5709
        %5711 = vmatprep.subr.mxu0 0.0
        %5712 = vmatpush2.xpose.msra.mxu0 0.0
        %5713 = vmatprep.subr.mxu0 0.0
        %5714 = vmatpush2.xpose.msra.mxu0 0.0
        %5715 = vmatprep.subr.mxu0 0.0
        %5716 = vmatpush2.xpose.msra.mxu0 0.0
        %5717 = vmatprep.subr.mxu0 0.0
        %5718 = vmatpush2.xpose.msra.mxu0 0.0
        %5719 = vmatprep.subr.mxu0 0.0
        %5720 = vmatpush2.xpose.msra.mxu0 0.0
        %5721 = vmatprep.subr.mxu0 0.0
        %5722 = vmatpush2.xpose.msra.mxu0 0.0
        %5723 = vmatprep.subr.mxu0 0.0
        %5724 = vmatpush2.xpose.msra.mxu0 0.0
        %5725 = vmatprep.subr.mxu0 0.0
        %5726 = vmatpush2.xpose.msra.mxu0 0.0
        %5727 = vmatprep.subr.mxu0 0.0
        %5728 = vmatpush2.xpose.msra.mxu0 0.0
        %5729 = vmatprep.subr.mxu0 0.0
        %5730 = vmatpush2.xpose.msra.mxu0 0.0
        %5731 = vmatprep.subr.mxu0 0.0
        %5732 = vmatpush2.xpose.msra.mxu0 0.0
        %5733 = vmatprep.subr.mxu0 0.0
        %5734 = vmatpush2.xpose.msra.mxu0 0.0
        %5735 = vmatprep.subr.mxu0 0.0
        %5736 = vmatpush2.xpose.msra.mxu0 0.0
        %5737 = vmatprep.subr.mxu0 0.0
        %5738 = vmatpush2.xpose.msra.mxu0 0.0
        %5739 = vmatprep.subr.mxu0 0.0
        %5740 = vmatpush2.xpose.msra.mxu0 0.0
        %5741 = vmatprep.subr.mxu0 0.0
        %5742 = vmatpush2.xpose.msra.mxu0 0.0
        %5743 = vmatprep.mubr.f32.mxu0 0.0
        %v5744 = vand.u32 %v5574, 4294901760
        %5745 = vmatmul.mubr.f32.gmra.mxu0 %v5744
        %v5746 = vpop.f32.mrf.mxu0
        %v5747 = vadd.f32 %v5656, %v5746
        %v5748 = vpop.f32.mrf.mxu0
        %5749 = vmatprep.mubr.f32.mxu0 0.0
        %v5750 = vand.u32 %v5576, 4294901760
        %5751 = vmatmul.mubr.f32.gmra.mxu0 %v5750
        %v5752 = vpop.f32.mrf.mxu0
        %v5753 = vadd.f32 %v5666, %v5752
        %v5754 = vpop.f32.mrf.mxu0
        %5755 = vdwg.mxu0
        %5756 = vmatprep.subr.mxu0 0.0
        %5757 = vmatpush1.xpose.msra.mxu0 0.0
        %5758 = vmatprep.subr.mxu0 0.0
        %5759 = vmatpush1.xpose.msra.mxu0 0.0
        %5760 = vmatprep.subr.mxu0 0.0
        %5761 = vmatpush1.xpose.msra.mxu0 0.0
        %5762 = vmatprep.subr.mxu0 0.0
        %5763 = vmatpush1.xpose.msra.mxu0 0.0
        %5764 = vmatprep.subr.mxu0 0.0
        %5765 = vmatpush1.xpose.msra.mxu0 0.0
        %5766 = vmatprep.subr.mxu0 0.0
        %5767 = vmatpush1.xpose.msra.mxu0 0.0
        %5768 = vmatprep.subr.mxu0 0.0
        %5769 = vmatpush1.xpose.msra.mxu0 0.0
        %5770 = vmatprep.subr.mxu0 0.0
        %5771 = vmatpush1.xpose.msra.mxu0 0.0
        %5772 = vmatprep.subr.mxu0 0.0
        %5773 = vmatpush1.xpose.msra.mxu0 0.0
        %5774 = vmatprep.subr.mxu0 0.0
        %5775 = vmatpush1.xpose.msra.mxu0 0.0
        %5776 = vmatprep.subr.mxu0 0.0
        %5777 = vmatpush1.xpose.msra.mxu0 0.0
        %5778 = vmatprep.subr.mxu0 0.0
        %5779 = vmatpush1.xpose.msra.mxu0 0.0
        %5780 = vmatprep.subr.mxu0 0.0
        %5781 = vmatpush1.xpose.msra.mxu0 0.0
        %5782 = vmatprep.subr.mxu0 0.0
        %5783 = vmatpush1.xpose.msra.mxu0 0.0
        %5784 = vmatprep.subr.mxu0 0.0
        %v5785 = vand.u32 %v5580, 4294901760
        %v5786 = vsub.f32 %v5580, %v5785
        %5787 = vmatpush1.xpose.msra.mxu0 %v5786
        %5788 = vmatprep.subr.mxu0 0.0
        %v5789 = vand.u32 %v5578, 4294901760
        %v5790 = vsub.f32 %v5578, %v5789
        %5791 = vmatpush1.xpose.msra.mxu0 %v5790
        %5792 = vmatprep.subr.mxu0 0.0
        %5793 = vmatpush2.xpose.msra.mxu0 0.0
        %5794 = vmatprep.subr.mxu0 0.0
        %5795 = vmatpush2.xpose.msra.mxu0 0.0
        %5796 = vmatprep.subr.mxu0 0.0
        %5797 = vmatpush2.xpose.msra.mxu0 0.0
        %5798 = vmatprep.subr.mxu0 0.0
        %5799 = vmatpush2.xpose.msra.mxu0 0.0
        %5800 = vmatprep.subr.mxu0 0.0
        %5801 = vmatpush2.xpose.msra.mxu0 0.0
        %5802 = vmatprep.subr.mxu0 0.0
        %5803 = vmatpush2.xpose.msra.mxu0 0.0
        %5804 = vmatprep.subr.mxu0 0.0
        %5805 = vmatpush2.xpose.msra.mxu0 0.0
        %5806 = vmatprep.subr.mxu0 0.0
        %5807 = vmatpush2.xpose.msra.mxu0 0.0
        %5808 = vmatprep.subr.mxu0 0.0
        %5809 = vmatpush2.xpose.msra.mxu0 0.0
        %5810 = vmatprep.subr.mxu0 0.0
        %5811 = vmatpush2.xpose.msra.mxu0 0.0
        %5812 = vmatprep.subr.mxu0 0.0
        %5813 = vmatpush2.xpose.msra.mxu0 0.0
        %5814 = vmatprep.subr.mxu0 0.0
        %5815 = vmatpush2.xpose.msra.mxu0 0.0
        %5816 = vmatprep.subr.mxu0 0.0
        %5817 = vmatpush2.xpose.msra.mxu0 0.0
        %5818 = vmatprep.subr.mxu0 0.0
        %5819 = vmatpush2.xpose.msra.mxu0 0.0
        %5820 = vmatprep.subr.mxu0 0.0
        %5821 = vmatpush2.xpose.msra.mxu0 0.0
        %5822 = vmatprep.subr.mxu0 0.0
        %5823 = vmatpush2.xpose.msra.mxu0 0.0
        %5824 = vmatprep.mubr.f32.mxu0 0.0
        %v5825 = vand.u32 %v5574, 4294901760
        %v5826 = vsub.f32 %v5574, %v5825
        %5827 = vmatmul.mubr.f32.gmra.mxu0 %v5826
        %v5828 = vpop.f32.mrf.mxu0
        %v5829 = vadd.f32 %v5747, %v5828
        %v5830 = vpop.f32.mrf.mxu0
        %5831 = vmatprep.mubr.f32.mxu0 0.0
        %v5832 = vand.u32 %v5576, 4294901760
        %v5833 = vsub.f32 %v5576, %v5832
        %5834 = vmatmul.mubr.f32.gmra.mxu0 %v5833
        %v5835 = vpop.f32.mrf.mxu0
        %v5836 = vadd.f32 %v5753, %v5835
        %v5837 = vpop.f32.mrf.mxu0
        %5838 = vdwg.mxu0
        %5839 = vmatprep.subr.mxu0 0.0
        %5840 = vmatpush1.xpose.msra.mxu0 0.0
        %5841 = vmatprep.subr.mxu0 0.0
        %5842 = vmatpush1.xpose.msra.mxu0 0.0
        %5843 = vmatprep.subr.mxu0 0.0
        %5844 = vmatpush1.xpose.msra.mxu0 0.0
        %5845 = vmatprep.subr.mxu0 0.0
        %5846 = vmatpush1.xpose.msra.mxu0 0.0
        %5847 = vmatprep.subr.mxu0 0.0
        %5848 = vmatpush1.xpose.msra.mxu0 0.0
        %5849 = vmatprep.subr.mxu0 0.0
        %5850 = vmatpush1.xpose.msra.mxu0 0.0
        %5851 = vmatprep.subr.mxu0 0.0
        %5852 = vmatpush1.xpose.msra.mxu0 0.0
        %5853 = vmatprep.subr.mxu0 0.0
        %5854 = vmatpush1.xpose.msra.mxu0 0.0
        %5855 = vmatprep.subr.mxu0 0.0
        %5856 = vmatpush1.xpose.msra.mxu0 0.0
        %5857 = vmatprep.subr.mxu0 0.0
        %5858 = vmatpush1.xpose.msra.mxu0 0.0
        %5859 = vmatprep.subr.mxu0 0.0
        %5860 = vmatpush1.xpose.msra.mxu0 0.0
        %5861 = vmatprep.subr.mxu0 0.0
        %5862 = vmatpush1.xpose.msra.mxu0 0.0
        %5863 = vmatprep.subr.mxu0 0.0
        %5864 = vmatpush1.xpose.msra.mxu0 0.0
        %5865 = vmatprep.subr.mxu0 0.0
        %5866 = vmatpush1.xpose.msra.mxu0 0.0
        %5867 = vmatprep.subr.mxu0 0.0
        %v5868 = vand.u32 %v5580, 4294901760
        %5869 = vmatpush1.xpose.msra.mxu0 %v5868
        %5870 = vmatprep.subr.mxu0 0.0
        %v5871 = vand.u32 %v5578, 4294901760
        %5872 = vmatpush1.xpose.msra.mxu0 %v5871
        %5873 = vmatprep.subr.mxu0 0.0
        %5874 = vmatpush2.xpose.msra.mxu0 0.0
        %5875 = vmatprep.subr.mxu0 0.0
        %5876 = vmatpush2.xpose.msra.mxu0 0.0
        %5877 = vmatprep.subr.mxu0 0.0
        %5878 = vmatpush2.xpose.msra.mxu0 0.0
        %5879 = vmatprep.subr.mxu0 0.0
        %5880 = vmatpush2.xpose.msra.mxu0 0.0
        %5881 = vmatprep.subr.mxu0 0.0
        %5882 = vmatpush2.xpose.msra.mxu0 0.0
        %5883 = vmatprep.subr.mxu0 0.0
        %5884 = vmatpush2.xpose.msra.mxu0 0.0
        %5885 = vmatprep.subr.mxu0 0.0
        %5886 = vmatpush2.xpose.msra.mxu0 0.0
        %5887 = vmatprep.subr.mxu0 0.0
        %5888 = vmatpush2.xpose.msra.mxu0 0.0
        %5889 = vmatprep.subr.mxu0 0.0
        %5890 = vmatpush2.xpose.msra.mxu0 0.0
        %5891 = vmatprep.subr.mxu0 0.0
        %5892 = vmatpush2.xpose.msra.mxu0 0.0
        %5893 = vmatprep.subr.mxu0 0.0
        %5894 = vmatpush2.xpose.msra.mxu0 0.0
        %5895 = vmatprep.subr.mxu0 0.0
        %5896 = vmatpush2.xpose.msra.mxu0 0.0
        %5897 = vmatprep.subr.mxu0 0.0
        %5898 = vmatpush2.xpose.msra.mxu0 0.0
        %5899 = vmatprep.subr.mxu0 0.0
        %5900 = vmatpush2.xpose.msra.mxu0 0.0
        %5901 = vmatprep.subr.mxu0 0.0
        %5902 = vmatpush2.xpose.msra.mxu0 0.0
        %5903 = vmatprep.subr.mxu0 0.0
        %5904 = vmatpush2.xpose.msra.mxu0 0.0
        %5905 = vmatprep.mubr.f32.mxu0 0.0
        %v5906 = vand.u32 %v5574, 4294901760
        %v5907 = vsub.f32 %v5574, %v5906
        %v5908 = vand.u32 %v5907, 4294901760
        %5909 = vmatmul.mubr.f32.gmra.mxu0 %v5908
        %v5910 = vpop.f32.mrf.mxu0
        %v5911 = vadd.f32 %v5829, %v5910
        %v5912 = vpop.f32.mrf.mxu0
        %5913 = vmatprep.mubr.f32.mxu0 0.0
        %v5914 = vand.u32 %v5576, 4294901760
        %v5915 = vsub.f32 %v5576, %v5914
        %v5916 = vand.u32 %v5915, 4294901760
        %5917 = vmatmul.mubr.f32.gmra.mxu0 %v5916
        %v5918 = vpop.f32.mrf.mxu0
        %v5919 = vadd.f32 %v5836, %v5918
        %v5920 = vpop.f32.mrf.mxu0
        %5921 = vdwg.mxu0
        %5922 = vmatprep.subr.mxu0 0.0
        %5923 = vmatpush1.xpose.msra.mxu0 0.0
        %5924 = vmatprep.subr.mxu0 0.0
        %5925 = vmatpush1.xpose.msra.mxu0 0.0
        %5926 = vmatprep.subr.mxu0 0.0
        %5927 = vmatpush1.xpose.msra.mxu0 0.0
        %5928 = vmatprep.subr.mxu0 0.0
        %5929 = vmatpush1.xpose.msra.mxu0 0.0
        %5930 = vmatprep.subr.mxu0 0.0
        %5931 = vmatpush1.xpose.msra.mxu0 0.0
        %5932 = vmatprep.subr.mxu0 0.0
        %5933 = vmatpush1.xpose.msra.mxu0 0.0
        %5934 = vmatprep.subr.mxu0 0.0
        %5935 = vmatpush1.xpose.msra.mxu0 0.0
        %5936 = vmatprep.subr.mxu0 0.0
        %5937 = vmatpush1.xpose.msra.mxu0 0.0
        %5938 = vmatprep.subr.mxu0 0.0
        %5939 = vmatpush1.xpose.msra.mxu0 0.0
        %5940 = vmatprep.subr.mxu0 0.0
        %5941 = vmatpush1.xpose.msra.mxu0 0.0
        %5942 = vmatprep.subr.mxu0 0.0
        %5943 = vmatpush1.xpose.msra.mxu0 0.0
        %5944 = vmatprep.subr.mxu0 0.0
        %5945 = vmatpush1.xpose.msra.mxu0 0.0
        %5946 = vmatprep.subr.mxu0 0.0
        %5947 = vmatpush1.xpose.msra.mxu0 0.0
        %5948 = vmatprep.subr.mxu0 0.0
        %5949 = vmatpush1.xpose.msra.mxu0 0.0
        %5950 = vmatprep.subr.mxu0 0.0
        %v5951 = vand.u32 %v5580, 4294901760
        %v5952 = vsub.f32 %v5580, %v5951
        %v5953 = vand.u32 %v5952, 4294901760
        %5954 = vmatpush1.xpose.msra.mxu0 %v5953
        %5955 = vmatprep.subr.mxu0 0.0
        %v5956 = vand.u32 %v5578, 4294901760
        %v5957 = vsub.f32 %v5578, %v5956
        %v5958 = vand.u32 %v5957, 4294901760
        %5959 = vmatpush1.xpose.msra.mxu0 %v5958
        %5960 = vmatprep.subr.mxu0 0.0
        %5961 = vmatpush2.xpose.msra.mxu0 0.0
        %5962 = vmatprep.subr.mxu0 0.0
        %5963 = vmatpush2.xpose.msra.mxu0 0.0
        %5964 = vmatprep.subr.mxu0 0.0
        %5965 = vmatpush2.xpose.msra.mxu0 0.0
        %5966 = vmatprep.subr.mxu0 0.0
        %5967 = vmatpush2.xpose.msra.mxu0 0.0
        %5968 = vmatprep.subr.mxu0 0.0
        %5969 = vmatpush2.xpose.msra.mxu0 0.0
        %5970 = vmatprep.subr.mxu0 0.0
        %5971 = vmatpush2.xpose.msra.mxu0 0.0
        %5972 = vmatprep.subr.mxu0 0.0
        %5973 = vmatpush2.xpose.msra.mxu0 0.0
        %5974 = vmatprep.subr.mxu0 0.0
        %5975 = vmatpush2.xpose.msra.mxu0 0.0
        %5976 = vmatprep.subr.mxu0 0.0
        %5977 = vmatpush2.xpose.msra.mxu0 0.0
        %5978 = vmatprep.subr.mxu0 0.0
        %5979 = vmatpush2.xpose.msra.mxu0 0.0
        %5980 = vmatprep.subr.mxu0 0.0
        %5981 = vmatpush2.xpose.msra.mxu0 0.0
        %5982 = vmatprep.subr.mxu0 0.0
        %5983 = vmatpush2.xpose.msra.mxu0 0.0
        %5984 = vmatprep.subr.mxu0 0.0
        %5985 = vmatpush2.xpose.msra.mxu0 0.0
        %5986 = vmatprep.subr.mxu0 0.0
        %5987 = vmatpush2.xpose.msra.mxu0 0.0
        %5988 = vmatprep.subr.mxu0 0.0
        %5989 = vmatpush2.xpose.msra.mxu0 0.0
        %5990 = vmatprep.subr.mxu0 0.0
        %5991 = vmatpush2.xpose.msra.mxu0 0.0
        %5992 = vmatprep.mubr.f32.mxu0 0.0
        %v5993 = vand.u32 %v5574, 4294901760
        %5994 = vmatmul.mubr.f32.gmra.mxu0 %v5993
        %v5995 = vpop.f32.mrf.mxu0
        %v5996 = vadd.f32 %v5911, %v5995
        %v5997 = vpop.f32.mrf.mxu0
        %5998 = vmatprep.mubr.f32.mxu0 0.0
        %v5999 = vand.u32 %v5576, 4294901760
        %6000 = vmatmul.mubr.f32.gmra.mxu0 %v5999
        %v6001 = vpop.f32.mrf.mxu0
        %v6002 = vadd.f32 %v5919, %v6001
        %v6003 = vpop.f32.mrf.mxu0
        %6004 = vdwg.mxu0
        %6005 = vmatprep.subr.mxu0 0.0
        %6006 = vmatpush1.xpose.msra.mxu0 0.0
        %6007 = vmatprep.subr.mxu0 0.0
        %6008 = vmatpush1.xpose.msra.mxu0 0.0
        %6009 = vmatprep.subr.mxu0 0.0
        %6010 = vmatpush1.xpose.msra.mxu0 0.0
        %6011 = vmatprep.subr.mxu0 0.0
        %6012 = vmatpush1.xpose.msra.mxu0 0.0
        %6013 = vmatprep.subr.mxu0 0.0
        %6014 = vmatpush1.xpose.msra.mxu0 0.0
        %6015 = vmatprep.subr.mxu0 0.0
        %6016 = vmatpush1.xpose.msra.mxu0 0.0
        %6017 = vmatprep.subr.mxu0 0.0
        %6018 = vmatpush1.xpose.msra.mxu0 0.0
        %6019 = vmatprep.subr.mxu0 0.0
        %6020 = vmatpush1.xpose.msra.mxu0 0.0
        %6021 = vmatprep.subr.mxu0 0.0
        %6022 = vmatpush1.xpose.msra.mxu0 0.0
        %6023 = vmatprep.subr.mxu0 0.0
        %6024 = vmatpush1.xpose.msra.mxu0 0.0
        %6025 = vmatprep.subr.mxu0 0.0
        %6026 = vmatpush1.xpose.msra.mxu0 0.0
        %6027 = vmatprep.subr.mxu0 0.0
        %6028 = vmatpush1.xpose.msra.mxu0 0.0
        %6029 = vmatprep.subr.mxu0 0.0
        %6030 = vmatpush1.xpose.msra.mxu0 0.0
        %6031 = vmatprep.subr.mxu0 0.0
        %6032 = vmatpush1.xpose.msra.mxu0 0.0
        %6033 = vmatprep.subr.mxu0 0.0
        %v6034 = vand.u32 %v5580, 4294901760
        %6035 = vmatpush1.xpose.msra.mxu0 %v6034
        %6036 = vmatprep.subr.mxu0 0.0
        %v6037 = vand.u32 %v5578, 4294901760
        %6038 = vmatpush1.xpose.msra.mxu0 %v6037
        %6039 = vmatprep.subr.mxu0 0.0
        %6040 = vmatpush2.xpose.msra.mxu0 0.0
        %6041 = vmatprep.subr.mxu0 0.0
        %6042 = vmatpush2.xpose.msra.mxu0 0.0
        %6043 = vmatprep.subr.mxu0 0.0
        %6044 = vmatpush2.xpose.msra.mxu0 0.0
        %6045 = vmatprep.subr.mxu0 0.0
        %6046 = vmatpush2.xpose.msra.mxu0 0.0
        %6047 = vmatprep.subr.mxu0 0.0
        %6048 = vmatpush2.xpose.msra.mxu0 0.0
        %6049 = vmatprep.subr.mxu0 0.0
        %6050 = vmatpush2.xpose.msra.mxu0 0.0
        %6051 = vmatprep.subr.mxu0 0.0
        %6052 = vmatpush2.xpose.msra.mxu0 0.0
        %6053 = vmatprep.subr.mxu0 0.0
        %6054 = vmatpush2.xpose.msra.mxu0 0.0
        %6055 = vmatprep.subr.mxu0 0.0
        %6056 = vmatpush2.xpose.msra.mxu0 0.0
        %6057 = vmatprep.subr.mxu0 0.0
        %6058 = vmatpush2.xpose.msra.mxu0 0.0
        %6059 = vmatprep.subr.mxu0 0.0
        %6060 = vmatpush2.xpose.msra.mxu0 0.0
        %6061 = vmatprep.subr.mxu0 0.0
        %6062 = vmatpush2.xpose.msra.mxu0 0.0
        %6063 = vmatprep.subr.mxu0 0.0
        %6064 = vmatpush2.xpose.msra.mxu0 0.0
        %6065 = vmatprep.subr.mxu0 0.0
        %6066 = vmatpush2.xpose.msra.mxu0 0.0
        %6067 = vmatprep.subr.mxu0 0.0
        %6068 = vmatpush2.xpose.msra.mxu0 0.0
        %6069 = vmatprep.subr.mxu0 0.0
        %6070 = vmatpush2.xpose.msra.mxu0 0.0
        %6071 = vmatprep.mubr.f32.mxu0 0.0
        %v6072 = vand.u32 %v5574, 4294901760
        %6073 = vmatmul.mubr.f32.gmra.mxu0 %v6072
        %v6074 = vpop.f32.mrf.mxu0
        %v6075 = vadd.f32 %v5996, %v6074
        %v6076 = vpop.f32.mrf.mxu0
        %6077 = vmatprep.mubr.f32.mxu0 0.0
        %v6078 = vand.u32 %v5576, 4294901760
        %6079 = vmatmul.mubr.f32.gmra.mxu0 %v6078
        %v6080 = vpop.f32.mrf.mxu0
        %v6081 = vadd.f32 %v6002, %v6080
        %v6082 = vpop.f32.mrf.mxu0
        %6083 = vdwg.mxu0
        %6084 = vrot.lane.b32.xlu0 %v1338, 112
        %v6085 = vpop.permute.xlu0 %6084
        %6086 = vrot.lane.b32.xlu0 %v1339, 112
        %v6087 = vpop.permute.xlu0 %6086
        %6088 = vrot.lane.b32.xlu0 %v1303, 80
        %v6089 = vpop.permute.xlu0 %6088
        %6090 = vrot.lane.b32.xlu0 %v1309, 80
        %v6091 = vpop.permute.xlu0 %6090
        %v6092 = vsel %vm1352, %v6085, 0
        %v6094 = vsel %vm1352, %v6087, 0
        %v6096 = vsel %vm1352, %v6089, 0
        %v6098 = vsel %vm1352, %v6091, 0
        %6100 = vmatprep.subr.mxu0 0.0
        %6101 = vmatpush1.xpose.msra.mxu0 0.0
        %6102 = vmatprep.subr.mxu0 0.0
        %6103 = vmatpush1.xpose.msra.mxu0 0.0
        %6104 = vmatprep.subr.mxu0 0.0
        %6105 = vmatpush1.xpose.msra.mxu0 0.0
        %6106 = vmatprep.subr.mxu0 0.0
        %6107 = vmatpush1.xpose.msra.mxu0 0.0
        %6108 = vmatprep.subr.mxu0 0.0
        %6109 = vmatpush1.xpose.msra.mxu0 0.0
        %6110 = vmatprep.subr.mxu0 0.0
        %6111 = vmatpush1.xpose.msra.mxu0 0.0
        %6112 = vmatprep.subr.mxu0 0.0
        %6113 = vmatpush1.xpose.msra.mxu0 0.0
        %6114 = vmatprep.subr.mxu0 0.0
        %6115 = vmatpush1.xpose.msra.mxu0 0.0
        %6116 = vmatprep.subr.mxu0 0.0
        %6117 = vmatpush1.xpose.msra.mxu0 0.0
        %6118 = vmatprep.subr.mxu0 0.0
        %6119 = vmatpush1.xpose.msra.mxu0 0.0
        %6120 = vmatprep.subr.mxu0 0.0
        %6121 = vmatpush1.xpose.msra.mxu0 0.0
        %6122 = vmatprep.subr.mxu0 0.0
        %6123 = vmatpush1.xpose.msra.mxu0 0.0
        %6124 = vmatprep.subr.mxu0 0.0
        %6125 = vmatpush1.xpose.msra.mxu0 0.0
        %6126 = vmatprep.subr.mxu0 0.0
        %6127 = vmatpush1.xpose.msra.mxu0 0.0
        %6128 = vmatprep.subr.mxu0 0.0
        %v6129 = vand.u32 %v6098, 4294901760
        %6130 = vmatpush1.xpose.msra.mxu0 %v6129
        %6131 = vmatprep.subr.mxu0 0.0
        %v6132 = vand.u32 %v6096, 4294901760
        %6133 = vmatpush1.xpose.msra.mxu0 %v6132
        %6134 = vmatprep.subr.mxu0 0.0
        %6135 = vmatpush2.xpose.msra.mxu0 0.0
        %6136 = vmatprep.subr.mxu0 0.0
        %6137 = vmatpush2.xpose.msra.mxu0 0.0
        %6138 = vmatprep.subr.mxu0 0.0
        %6139 = vmatpush2.xpose.msra.mxu0 0.0
        %6140 = vmatprep.subr.mxu0 0.0
        %6141 = vmatpush2.xpose.msra.mxu0 0.0
        %6142 = vmatprep.subr.mxu0 0.0
        %6143 = vmatpush2.xpose.msra.mxu0 0.0
        %6144 = vmatprep.subr.mxu0 0.0
        %6145 = vmatpush2.xpose.msra.mxu0 0.0
        %6146 = vmatprep.subr.mxu0 0.0
        %6147 = vmatpush2.xpose.msra.mxu0 0.0
        %6148 = vmatprep.subr.mxu0 0.0
        %6149 = vmatpush2.xpose.msra.mxu0 0.0
        %6150 = vmatprep.subr.mxu0 0.0
        %6151 = vmatpush2.xpose.msra.mxu0 0.0
        %6152 = vmatprep.subr.mxu0 0.0
        %6153 = vmatpush2.xpose.msra.mxu0 0.0
        %6154 = vmatprep.subr.mxu0 0.0
        %6155 = vmatpush2.xpose.msra.mxu0 0.0
        %6156 = vmatprep.subr.mxu0 0.0
        %6157 = vmatpush2.xpose.msra.mxu0 0.0
        %6158 = vmatprep.subr.mxu0 0.0
        %6159 = vmatpush2.xpose.msra.mxu0 0.0
        %6160 = vmatprep.subr.mxu0 0.0
        %6161 = vmatpush2.xpose.msra.mxu0 0.0
        %6162 = vmatprep.subr.mxu0 0.0
        %6163 = vmatpush2.xpose.msra.mxu0 0.0
        %6164 = vmatprep.subr.mxu0 0.0
        %6165 = vmatpush2.xpose.msra.mxu0 0.0
        %6166 = vmatprep.mubr.f32.mxu0 0.0
        %v6167 = vand.u32 %v6092, 4294901760
        %v6168 = vsub.f32 %v6092, %v6167
        %v6169 = vand.u32 %v6168, 4294901760
        %v6170 = vsub.f32 %v6168, %v6169
        %v6171 = vand.u32 %v6170, 4294901760
        %6172 = vmatmul.mubr.f32.gmra.mxu0 %v6171
        %v6173 = vpop.f32.mrf.mxu0
        %v6174 = vadd.f32 %v5564, %v6173
        %v6175 = vpop.f32.mrf.mxu0
        %6176 = vmatprep.mubr.f32.mxu0 0.0
        %v6177 = vand.u32 %v6094, 4294901760
        %v6178 = vsub.f32 %v6094, %v6177
        %v6179 = vand.u32 %v6178, 4294901760
        %v6180 = vsub.f32 %v6178, %v6179
        %v6181 = vand.u32 %v6180, 4294901760
        %6182 = vmatmul.mubr.f32.gmra.mxu0 %v6181
        %v6183 = vpop.f32.mrf.mxu0
        %v6184 = vadd.f32 %v5565, %v6183
        %v6185 = vpop.f32.mrf.mxu0
        %6186 = vdwg.mxu0
        %6187 = vmatprep.subr.mxu0 0.0
        %6188 = vmatpush1.xpose.msra.mxu0 0.0
        %6189 = vmatprep.subr.mxu0 0.0
        %6190 = vmatpush1.xpose.msra.mxu0 0.0
        %6191 = vmatprep.subr.mxu0 0.0
        %6192 = vmatpush1.xpose.msra.mxu0 0.0
        %6193 = vmatprep.subr.mxu0 0.0
        %6194 = vmatpush1.xpose.msra.mxu0 0.0
        %6195 = vmatprep.subr.mxu0 0.0
        %6196 = vmatpush1.xpose.msra.mxu0 0.0
        %6197 = vmatprep.subr.mxu0 0.0
        %6198 = vmatpush1.xpose.msra.mxu0 0.0
        %6199 = vmatprep.subr.mxu0 0.0
        %6200 = vmatpush1.xpose.msra.mxu0 0.0
        %6201 = vmatprep.subr.mxu0 0.0
        %6202 = vmatpush1.xpose.msra.mxu0 0.0
        %6203 = vmatprep.subr.mxu0 0.0
        %6204 = vmatpush1.xpose.msra.mxu0 0.0
        %6205 = vmatprep.subr.mxu0 0.0
        %6206 = vmatpush1.xpose.msra.mxu0 0.0
        %6207 = vmatprep.subr.mxu0 0.0
        %6208 = vmatpush1.xpose.msra.mxu0 0.0
        %6209 = vmatprep.subr.mxu0 0.0
        %6210 = vmatpush1.xpose.msra.mxu0 0.0
        %6211 = vmatprep.subr.mxu0 0.0
        %6212 = vmatpush1.xpose.msra.mxu0 0.0
        %6213 = vmatprep.subr.mxu0 0.0
        %6214 = vmatpush1.xpose.msra.mxu0 0.0
        %6215 = vmatprep.subr.mxu0 0.0
        %v6216 = vand.u32 %v6098, 4294901760
        %v6217 = vsub.f32 %v6098, %v6216
        %v6218 = vand.u32 %v6217, 4294901760
        %v6219 = vsub.f32 %v6217, %v6218
        %v6220 = vand.u32 %v6219, 4294901760
        %6221 = vmatpush1.xpose.msra.mxu0 %v6220
        %6222 = vmatprep.subr.mxu0 0.0
        %v6223 = vand.u32 %v6096, 4294901760
        %v6224 = vsub.f32 %v6096, %v6223
        %v6225 = vand.u32 %v6224, 4294901760
        %v6226 = vsub.f32 %v6224, %v6225
        %v6227 = vand.u32 %v6226, 4294901760
        %6228 = vmatpush1.xpose.msra.mxu0 %v6227
        %6229 = vmatprep.subr.mxu0 0.0
        %6230 = vmatpush2.xpose.msra.mxu0 0.0
        %6231 = vmatprep.subr.mxu0 0.0
        %6232 = vmatpush2.xpose.msra.mxu0 0.0
        %6233 = vmatprep.subr.mxu0 0.0
        %6234 = vmatpush2.xpose.msra.mxu0 0.0
        %6235 = vmatprep.subr.mxu0 0.0
        %6236 = vmatpush2.xpose.msra.mxu0 0.0
        %6237 = vmatprep.subr.mxu0 0.0
        %6238 = vmatpush2.xpose.msra.mxu0 0.0
        %6239 = vmatprep.subr.mxu0 0.0
        %6240 = vmatpush2.xpose.msra.mxu0 0.0
        %6241 = vmatprep.subr.mxu0 0.0
        %6242 = vmatpush2.xpose.msra.mxu0 0.0
        %6243 = vmatprep.subr.mxu0 0.0
        %6244 = vmatpush2.xpose.msra.mxu0 0.0
        %6245 = vmatprep.subr.mxu0 0.0
        %6246 = vmatpush2.xpose.msra.mxu0 0.0
        %6247 = vmatprep.subr.mxu0 0.0
        %6248 = vmatpush2.xpose.msra.mxu0 0.0
        %6249 = vmatprep.subr.mxu0 0.0
        %6250 = vmatpush2.xpose.msra.mxu0 0.0
        %6251 = vmatprep.subr.mxu0 0.0
        %6252 = vmatpush2.xpose.msra.mxu0 0.0
        %6253 = vmatprep.subr.mxu0 0.0
        %6254 = vmatpush2.xpose.msra.mxu0 0.0
        %6255 = vmatprep.subr.mxu0 0.0
        %6256 = vmatpush2.xpose.msra.mxu0 0.0
        %6257 = vmatprep.subr.mxu0 0.0
        %6258 = vmatpush2.xpose.msra.mxu0 0.0
        %6259 = vmatprep.subr.mxu0 0.0
        %6260 = vmatpush2.xpose.msra.mxu0 0.0
        %6261 = vmatprep.mubr.f32.mxu0 0.0
        %v6262 = vand.u32 %v6092, 4294901760
        %6263 = vmatmul.mubr.f32.gmra.mxu0 %v6262
        %v6264 = vpop.f32.mrf.mxu0
        %v6265 = vadd.f32 %v6174, %v6264
        %v6266 = vpop.f32.mrf.mxu0
        %6267 = vmatprep.mubr.f32.mxu0 0.0
        %v6268 = vand.u32 %v6094, 4294901760
        %6269 = vmatmul.mubr.f32.gmra.mxu0 %v6268
        %v6270 = vpop.f32.mrf.mxu0
        %v6271 = vadd.f32 %v6184, %v6270
        %v6272 = vpop.f32.mrf.mxu0
        %6273 = vdwg.mxu0
        %6274 = vmatprep.subr.mxu0 0.0
        %6275 = vmatpush1.xpose.msra.mxu0 0.0
        %6276 = vmatprep.subr.mxu0 0.0
        %6277 = vmatpush1.xpose.msra.mxu0 0.0
        %6278 = vmatprep.subr.mxu0 0.0
        %6279 = vmatpush1.xpose.msra.mxu0 0.0
        %6280 = vmatprep.subr.mxu0 0.0
        %6281 = vmatpush1.xpose.msra.mxu0 0.0
        %6282 = vmatprep.subr.mxu0 0.0
        %6283 = vmatpush1.xpose.msra.mxu0 0.0
        %6284 = vmatprep.subr.mxu0 0.0
        %6285 = vmatpush1.xpose.msra.mxu0 0.0
        %6286 = vmatprep.subr.mxu0 0.0
        %6287 = vmatpush1.xpose.msra.mxu0 0.0
        %6288 = vmatprep.subr.mxu0 0.0
        %6289 = vmatpush1.xpose.msra.mxu0 0.0
        %6290 = vmatprep.subr.mxu0 0.0
        %6291 = vmatpush1.xpose.msra.mxu0 0.0
        %6292 = vmatprep.subr.mxu0 0.0
        %6293 = vmatpush1.xpose.msra.mxu0 0.0
        %6294 = vmatprep.subr.mxu0 0.0
        %6295 = vmatpush1.xpose.msra.mxu0 0.0
        %6296 = vmatprep.subr.mxu0 0.0
        %6297 = vmatpush1.xpose.msra.mxu0 0.0
        %6298 = vmatprep.subr.mxu0 0.0
        %6299 = vmatpush1.xpose.msra.mxu0 0.0
        %6300 = vmatprep.subr.mxu0 0.0
        %6301 = vmatpush1.xpose.msra.mxu0 0.0
        %6302 = vmatprep.subr.mxu0 0.0
        %v6303 = vand.u32 %v6098, 4294901760
        %v6304 = vsub.f32 %v6098, %v6303
        %6305 = vmatpush1.xpose.msra.mxu0 %v6304
        %6306 = vmatprep.subr.mxu0 0.0
        %v6307 = vand.u32 %v6096, 4294901760
        %v6308 = vsub.f32 %v6096, %v6307
        %6309 = vmatpush1.xpose.msra.mxu0 %v6308
        %6310 = vmatprep.subr.mxu0 0.0
        %6311 = vmatpush2.xpose.msra.mxu0 0.0
        %6312 = vmatprep.subr.mxu0 0.0
        %6313 = vmatpush2.xpose.msra.mxu0 0.0
        %6314 = vmatprep.subr.mxu0 0.0
        %6315 = vmatpush2.xpose.msra.mxu0 0.0
        %6316 = vmatprep.subr.mxu0 0.0
        %6317 = vmatpush2.xpose.msra.mxu0 0.0
        %6318 = vmatprep.subr.mxu0 0.0
        %6319 = vmatpush2.xpose.msra.mxu0 0.0
        %6320 = vmatprep.subr.mxu0 0.0
        %6321 = vmatpush2.xpose.msra.mxu0 0.0
        %6322 = vmatprep.subr.mxu0 0.0
        %6323 = vmatpush2.xpose.msra.mxu0 0.0
        %6324 = vmatprep.subr.mxu0 0.0
        %6325 = vmatpush2.xpose.msra.mxu0 0.0
        %6326 = vmatprep.subr.mxu0 0.0
        %6327 = vmatpush2.xpose.msra.mxu0 0.0
        %6328 = vmatprep.subr.mxu0 0.0
        %6329 = vmatpush2.xpose.msra.mxu0 0.0
        %6330 = vmatprep.subr.mxu0 0.0
        %6331 = vmatpush2.xpose.msra.mxu0 0.0
        %6332 = vmatprep.subr.mxu0 0.0
        %6333 = vmatpush2.xpose.msra.mxu0 0.0
        %6334 = vmatprep.subr.mxu0 0.0
        %6335 = vmatpush2.xpose.msra.mxu0 0.0
        %6336 = vmatprep.subr.mxu0 0.0
        %6337 = vmatpush2.xpose.msra.mxu0 0.0
        %6338 = vmatprep.subr.mxu0 0.0
        %6339 = vmatpush2.xpose.msra.mxu0 0.0
        %6340 = vmatprep.subr.mxu0 0.0
        %6341 = vmatpush2.xpose.msra.mxu0 0.0
        %6342 = vmatprep.mubr.f32.mxu0 0.0
        %v6343 = vand.u32 %v6092, 4294901760
        %v6344 = vsub.f32 %v6092, %v6343
        %6345 = vmatmul.mubr.f32.gmra.mxu0 %v6344
        %v6346 = vpop.f32.mrf.mxu0
        %v6347 = vadd.f32 %v6265, %v6346
        %v6348 = vpop.f32.mrf.mxu0
        %6349 = vmatprep.mubr.f32.mxu0 0.0
        %v6350 = vand.u32 %v6094, 4294901760
        %v6351 = vsub.f32 %v6094, %v6350
        %6352 = vmatmul.mubr.f32.gmra.mxu0 %v6351
        %v6353 = vpop.f32.mrf.mxu0
        %v6354 = vadd.f32 %v6271, %v6353
        %v6355 = vpop.f32.mrf.mxu0
        %6356 = vdwg.mxu0
        %6357 = vmatprep.subr.mxu0 0.0
        %6358 = vmatpush1.xpose.msra.mxu0 0.0
        %6359 = vmatprep.subr.mxu0 0.0
        %6360 = vmatpush1.xpose.msra.mxu0 0.0
        %6361 = vmatprep.subr.mxu0 0.0
        %6362 = vmatpush1.xpose.msra.mxu0 0.0
        %6363 = vmatprep.subr.mxu0 0.0
        %6364 = vmatpush1.xpose.msra.mxu0 0.0
        %6365 = vmatprep.subr.mxu0 0.0
        %6366 = vmatpush1.xpose.msra.mxu0 0.0
        %6367 = vmatprep.subr.mxu0 0.0
        %6368 = vmatpush1.xpose.msra.mxu0 0.0
        %6369 = vmatprep.subr.mxu0 0.0
        %6370 = vmatpush1.xpose.msra.mxu0 0.0
        %6371 = vmatprep.subr.mxu0 0.0
        %6372 = vmatpush1.xpose.msra.mxu0 0.0
        %6373 = vmatprep.subr.mxu0 0.0
        %6374 = vmatpush1.xpose.msra.mxu0 0.0
        %6375 = vmatprep.subr.mxu0 0.0
        %6376 = vmatpush1.xpose.msra.mxu0 0.0
        %6377 = vmatprep.subr.mxu0 0.0
        %6378 = vmatpush1.xpose.msra.mxu0 0.0
        %6379 = vmatprep.subr.mxu0 0.0
        %6380 = vmatpush1.xpose.msra.mxu0 0.0
        %6381 = vmatprep.subr.mxu0 0.0
        %6382 = vmatpush1.xpose.msra.mxu0 0.0
        %6383 = vmatprep.subr.mxu0 0.0
        %6384 = vmatpush1.xpose.msra.mxu0 0.0
        %6385 = vmatprep.subr.mxu0 0.0
        %v6386 = vand.u32 %v6098, 4294901760
        %6387 = vmatpush1.xpose.msra.mxu0 %v6386
        %6388 = vmatprep.subr.mxu0 0.0
        %v6389 = vand.u32 %v6096, 4294901760
        %6390 = vmatpush1.xpose.msra.mxu0 %v6389
        %6391 = vmatprep.subr.mxu0 0.0
        %6392 = vmatpush2.xpose.msra.mxu0 0.0
        %6393 = vmatprep.subr.mxu0 0.0
        %6394 = vmatpush2.xpose.msra.mxu0 0.0
        %6395 = vmatprep.subr.mxu0 0.0
        %6396 = vmatpush2.xpose.msra.mxu0 0.0
        %6397 = vmatprep.subr.mxu0 0.0
        %6398 = vmatpush2.xpose.msra.mxu0 0.0
        %6399 = vmatprep.subr.mxu0 0.0
        %6400 = vmatpush2.xpose.msra.mxu0 0.0
        %6401 = vmatprep.subr.mxu0 0.0
        %6402 = vmatpush2.xpose.msra.mxu0 0.0
        %6403 = vmatprep.subr.mxu0 0.0
        %6404 = vmatpush2.xpose.msra.mxu0 0.0
        %6405 = vmatprep.subr.mxu0 0.0
        %6406 = vmatpush2.xpose.msra.mxu0 0.0
        %6407 = vmatprep.subr.mxu0 0.0
        %6408 = vmatpush2.xpose.msra.mxu0 0.0
        %6409 = vmatprep.subr.mxu0 0.0
        %6410 = vmatpush2.xpose.msra.mxu0 0.0
        %6411 = vmatprep.subr.mxu0 0.0
        %6412 = vmatpush2.xpose.msra.mxu0 0.0
        %6413 = vmatprep.subr.mxu0 0.0
        %6414 = vmatpush2.xpose.msra.mxu0 0.0
        %6415 = vmatprep.subr.mxu0 0.0
        %6416 = vmatpush2.xpose.msra.mxu0 0.0
        %6417 = vmatprep.subr.mxu0 0.0
        %6418 = vmatpush2.xpose.msra.mxu0 0.0
        %6419 = vmatprep.subr.mxu0 0.0
        %6420 = vmatpush2.xpose.msra.mxu0 0.0
        %6421 = vmatprep.subr.mxu0 0.0
        %6422 = vmatpush2.xpose.msra.mxu0 0.0
        %6423 = vmatprep.mubr.f32.mxu0 0.0
        %v6424 = vand.u32 %v6092, 4294901760
        %v6425 = vsub.f32 %v6092, %v6424
        %v6426 = vand.u32 %v6425, 4294901760
        %6427 = vmatmul.mubr.f32.gmra.mxu0 %v6426
        %v6428 = vpop.f32.mrf.mxu0
        %v6429 = vadd.f32 %v6347, %v6428
        %v6430 = vpop.f32.mrf.mxu0
        %6431 = vmatprep.mubr.f32.mxu0 0.0
        %v6432 = vand.u32 %v6094, 4294901760
        %v6433 = vsub.f32 %v6094, %v6432
        %v6434 = vand.u32 %v6433, 4294901760
        %6435 = vmatmul.mubr.f32.gmra.mxu0 %v6434
        %v6436 = vpop.f32.mrf.mxu0
        %v6437 = vadd.f32 %v6354, %v6436
        %v6438 = vpop.f32.mrf.mxu0
        %6439 = vdwg.mxu0
        %6440 = vmatprep.subr.mxu0 0.0
        %6441 = vmatpush1.xpose.msra.mxu0 0.0
        %6442 = vmatprep.subr.mxu0 0.0
        %6443 = vmatpush1.xpose.msra.mxu0 0.0
        %6444 = vmatprep.subr.mxu0 0.0
        %6445 = vmatpush1.xpose.msra.mxu0 0.0
        %6446 = vmatprep.subr.mxu0 0.0
        %6447 = vmatpush1.xpose.msra.mxu0 0.0
        %6448 = vmatprep.subr.mxu0 0.0
        %6449 = vmatpush1.xpose.msra.mxu0 0.0
        %6450 = vmatprep.subr.mxu0 0.0
        %6451 = vmatpush1.xpose.msra.mxu0 0.0
        %6452 = vmatprep.subr.mxu0 0.0
        %6453 = vmatpush1.xpose.msra.mxu0 0.0
        %6454 = vmatprep.subr.mxu0 0.0
        %6455 = vmatpush1.xpose.msra.mxu0 0.0
        %6456 = vmatprep.subr.mxu0 0.0
        %6457 = vmatpush1.xpose.msra.mxu0 0.0
        %6458 = vmatprep.subr.mxu0 0.0
        %6459 = vmatpush1.xpose.msra.mxu0 0.0
        %6460 = vmatprep.subr.mxu0 0.0
        %6461 = vmatpush1.xpose.msra.mxu0 0.0
        %6462 = vmatprep.subr.mxu0 0.0
        %6463 = vmatpush1.xpose.msra.mxu0 0.0
        %6464 = vmatprep.subr.mxu0 0.0
        %6465 = vmatpush1.xpose.msra.mxu0 0.0
        %6466 = vmatprep.subr.mxu0 0.0
        %6467 = vmatpush1.xpose.msra.mxu0 0.0
        %6468 = vmatprep.subr.mxu0 0.0
        %v6469 = vand.u32 %v6098, 4294901760
        %v6470 = vsub.f32 %v6098, %v6469
        %v6471 = vand.u32 %v6470, 4294901760
        %6472 = vmatpush1.xpose.msra.mxu0 %v6471
        %6473 = vmatprep.subr.mxu0 0.0
        %v6474 = vand.u32 %v6096, 4294901760
        %v6475 = vsub.f32 %v6096, %v6474
        %v6476 = vand.u32 %v6475, 4294901760
        %6477 = vmatpush1.xpose.msra.mxu0 %v6476
        %6478 = vmatprep.subr.mxu0 0.0
        %6479 = vmatpush2.xpose.msra.mxu0 0.0
        %6480 = vmatprep.subr.mxu0 0.0
        %6481 = vmatpush2.xpose.msra.mxu0 0.0
        %6482 = vmatprep.subr.mxu0 0.0
        %6483 = vmatpush2.xpose.msra.mxu0 0.0
        %6484 = vmatprep.subr.mxu0 0.0
        %6485 = vmatpush2.xpose.msra.mxu0 0.0
        %6486 = vmatprep.subr.mxu0 0.0
        %6487 = vmatpush2.xpose.msra.mxu0 0.0
        %6488 = vmatprep.subr.mxu0 0.0
        %6489 = vmatpush2.xpose.msra.mxu0 0.0
        %6490 = vmatprep.subr.mxu0 0.0
        %6491 = vmatpush2.xpose.msra.mxu0 0.0
        %6492 = vmatprep.subr.mxu0 0.0
        %6493 = vmatpush2.xpose.msra.mxu0 0.0
        %6494 = vmatprep.subr.mxu0 0.0
        %6495 = vmatpush2.xpose.msra.mxu0 0.0
        %6496 = vmatprep.subr.mxu0 0.0
        %6497 = vmatpush2.xpose.msra.mxu0 0.0
        %6498 = vmatprep.subr.mxu0 0.0
        %6499 = vmatpush2.xpose.msra.mxu0 0.0
        %6500 = vmatprep.subr.mxu0 0.0
        %6501 = vmatpush2.xpose.msra.mxu0 0.0
        %6502 = vmatprep.subr.mxu0 0.0
        %6503 = vmatpush2.xpose.msra.mxu0 0.0
        %6504 = vmatprep.subr.mxu0 0.0
        %6505 = vmatpush2.xpose.msra.mxu0 0.0
        %6506 = vmatprep.subr.mxu0 0.0
        %6507 = vmatpush2.xpose.msra.mxu0 0.0
        %6508 = vmatprep.subr.mxu0 0.0
        %6509 = vmatpush2.xpose.msra.mxu0 0.0
        %6510 = vmatprep.mubr.f32.mxu0 0.0
        %v6511 = vand.u32 %v6092, 4294901760
        %6512 = vmatmul.mubr.f32.gmra.mxu0 %v6511
        %v6513 = vpop.f32.mrf.mxu0
        %v6514 = vadd.f32 %v6429, %v6513
        %v6515 = vpop.f32.mrf.mxu0
        %6516 = vmatprep.mubr.f32.mxu0 0.0
        %v6517 = vand.u32 %v6094, 4294901760
        %6518 = vmatmul.mubr.f32.gmra.mxu0 %v6517
        %v6519 = vpop.f32.mrf.mxu0
        %v6520 = vadd.f32 %v6437, %v6519
        %v6521 = vpop.f32.mrf.mxu0
        %6522 = vdwg.mxu0
        %6523 = vmatprep.subr.mxu0 0.0
        %6524 = vmatpush1.xpose.msra.mxu0 0.0
        %6525 = vmatprep.subr.mxu0 0.0
        %6526 = vmatpush1.xpose.msra.mxu0 0.0
        %6527 = vmatprep.subr.mxu0 0.0
        %6528 = vmatpush1.xpose.msra.mxu0 0.0
        %6529 = vmatprep.subr.mxu0 0.0
        %6530 = vmatpush1.xpose.msra.mxu0 0.0
        %6531 = vmatprep.subr.mxu0 0.0
        %6532 = vmatpush1.xpose.msra.mxu0 0.0
        %6533 = vmatprep.subr.mxu0 0.0
        %6534 = vmatpush1.xpose.msra.mxu0 0.0
        %6535 = vmatprep.subr.mxu0 0.0
        %6536 = vmatpush1.xpose.msra.mxu0 0.0
        %6537 = vmatprep.subr.mxu0 0.0
        %6538 = vmatpush1.xpose.msra.mxu0 0.0
        %6539 = vmatprep.subr.mxu0 0.0
        %6540 = vmatpush1.xpose.msra.mxu0 0.0
        %6541 = vmatprep.subr.mxu0 0.0
        %6542 = vmatpush1.xpose.msra.mxu0 0.0
        %6543 = vmatprep.subr.mxu0 0.0
        %6544 = vmatpush1.xpose.msra.mxu0 0.0
        %6545 = vmatprep.subr.mxu0 0.0
        %6546 = vmatpush1.xpose.msra.mxu0 0.0
        %6547 = vmatprep.subr.mxu0 0.0
        %6548 = vmatpush1.xpose.msra.mxu0 0.0
        %6549 = vmatprep.subr.mxu0 0.0
        %6550 = vmatpush1.xpose.msra.mxu0 0.0
        %6551 = vmatprep.subr.mxu0 0.0
        %v6552 = vand.u32 %v6098, 4294901760
        %6553 = vmatpush1.xpose.msra.mxu0 %v6552
        %6554 = vmatprep.subr.mxu0 0.0
        %v6555 = vand.u32 %v6096, 4294901760
        %6556 = vmatpush1.xpose.msra.mxu0 %v6555
        %6557 = vmatprep.subr.mxu0 0.0
        %6558 = vmatpush2.xpose.msra.mxu0 0.0
        %6559 = vmatprep.subr.mxu0 0.0
        %6560 = vmatpush2.xpose.msra.mxu0 0.0
        %6561 = vmatprep.subr.mxu0 0.0
        %6562 = vmatpush2.xpose.msra.mxu0 0.0
        %6563 = vmatprep.subr.mxu0 0.0
        %6564 = vmatpush2.xpose.msra.mxu0 0.0
        %6565 = vmatprep.subr.mxu0 0.0
        %6566 = vmatpush2.xpose.msra.mxu0 0.0
        %6567 = vmatprep.subr.mxu0 0.0
        %6568 = vmatpush2.xpose.msra.mxu0 0.0
        %6569 = vmatprep.subr.mxu0 0.0
        %6570 = vmatpush2.xpose.msra.mxu0 0.0
        %6571 = vmatprep.subr.mxu0 0.0
        %6572 = vmatpush2.xpose.msra.mxu0 0.0
        %6573 = vmatprep.subr.mxu0 0.0
        %6574 = vmatpush2.xpose.msra.mxu0 0.0
        %6575 = vmatprep.subr.mxu0 0.0
        %6576 = vmatpush2.xpose.msra.mxu0 0.0
        %6577 = vmatprep.subr.mxu0 0.0
        %6578 = vmatpush2.xpose.msra.mxu0 0.0
        %6579 = vmatprep.subr.mxu0 0.0
        %6580 = vmatpush2.xpose.msra.mxu0 0.0
        %6581 = vmatprep.subr.mxu0 0.0
        %6582 = vmatpush2.xpose.msra.mxu0 0.0
        %6583 = vmatprep.subr.mxu0 0.0
        %6584 = vmatpush2.xpose.msra.mxu0 0.0
        %6585 = vmatprep.subr.mxu0 0.0
        %6586 = vmatpush2.xpose.msra.mxu0 0.0
        %6587 = vmatprep.subr.mxu0 0.0
        %6588 = vmatpush2.xpose.msra.mxu0 0.0
        %6589 = vmatprep.mubr.f32.mxu0 0.0
        %v6590 = vand.u32 %v6092, 4294901760
        %6591 = vmatmul.mubr.f32.gmra.mxu0 %v6590
        %v6592 = vpop.f32.mrf.mxu0
        %v6593 = vadd.f32 %v6514, %v6592
        %v6594 = vpop.f32.mrf.mxu0
        %6595 = vmatprep.mubr.f32.mxu0 0.0
        %v6596 = vand.u32 %v6094, 4294901760
        %6597 = vmatmul.mubr.f32.gmra.mxu0 %v6596
        %v6598 = vpop.f32.mrf.mxu0
        %v6599 = vadd.f32 %v6520, %v6598
        %v6600 = vpop.f32.mrf.mxu0
        %6601 = vdwg.mxu0
        %6602 = vrot.lane.b32.xlu0 %v1340, 112
        %v6603 = vpop.permute.xlu0 %6602
        %6604 = vrot.lane.b32.xlu0 %v1341, 112
        %v6605 = vpop.permute.xlu0 %6604
        %6606 = vrot.lane.b32.xlu0 %v1315, 80
        %v6607 = vpop.permute.xlu0 %6606
        %6608 = vrot.lane.b32.xlu0 %v1321, 80
        %v6609 = vpop.permute.xlu0 %6608
        %v6610 = vsel %vm1352, %v6603, 0
        %v6612 = vsel %vm1352, %v6605, 0
        %v6614 = vsel %vm1352, %v6607, 0
        %v6616 = vsel %vm1352, %v6609, 0
        %6618 = vmatprep.subr.mxu0 0.0
        %6619 = vmatpush1.xpose.msra.mxu0 0.0
        %6620 = vmatprep.subr.mxu0 0.0
        %6621 = vmatpush1.xpose.msra.mxu0 0.0
        %6622 = vmatprep.subr.mxu0 0.0
        %6623 = vmatpush1.xpose.msra.mxu0 0.0
        %6624 = vmatprep.subr.mxu0 0.0
        %6625 = vmatpush1.xpose.msra.mxu0 0.0
        %6626 = vmatprep.subr.mxu0 0.0
        %6627 = vmatpush1.xpose.msra.mxu0 0.0
        %6628 = vmatprep.subr.mxu0 0.0
        %6629 = vmatpush1.xpose.msra.mxu0 0.0
        %6630 = vmatprep.subr.mxu0 0.0
        %6631 = vmatpush1.xpose.msra.mxu0 0.0
        %6632 = vmatprep.subr.mxu0 0.0
        %6633 = vmatpush1.xpose.msra.mxu0 0.0
        %6634 = vmatprep.subr.mxu0 0.0
        %6635 = vmatpush1.xpose.msra.mxu0 0.0
        %6636 = vmatprep.subr.mxu0 0.0
        %6637 = vmatpush1.xpose.msra.mxu0 0.0
        %6638 = vmatprep.subr.mxu0 0.0
        %6639 = vmatpush1.xpose.msra.mxu0 0.0
        %6640 = vmatprep.subr.mxu0 0.0
        %6641 = vmatpush1.xpose.msra.mxu0 0.0
        %6642 = vmatprep.subr.mxu0 0.0
        %6643 = vmatpush1.xpose.msra.mxu0 0.0
        %6644 = vmatprep.subr.mxu0 0.0
        %6645 = vmatpush1.xpose.msra.mxu0 0.0
        %6646 = vmatprep.subr.mxu0 0.0
        %v6647 = vand.u32 %v6616, 4294901760
        %6648 = vmatpush1.xpose.msra.mxu0 %v6647
        %6649 = vmatprep.subr.mxu0 0.0
        %v6650 = vand.u32 %v6614, 4294901760
        %6651 = vmatpush1.xpose.msra.mxu0 %v6650
        %6652 = vmatprep.subr.mxu0 0.0
        %6653 = vmatpush2.xpose.msra.mxu0 0.0
        %6654 = vmatprep.subr.mxu0 0.0
        %6655 = vmatpush2.xpose.msra.mxu0 0.0
        %6656 = vmatprep.subr.mxu0 0.0
        %6657 = vmatpush2.xpose.msra.mxu0 0.0
        %6658 = vmatprep.subr.mxu0 0.0
        %6659 = vmatpush2.xpose.msra.mxu0 0.0
        %6660 = vmatprep.subr.mxu0 0.0
        %6661 = vmatpush2.xpose.msra.mxu0 0.0
        %6662 = vmatprep.subr.mxu0 0.0
        %6663 = vmatpush2.xpose.msra.mxu0 0.0
        %6664 = vmatprep.subr.mxu0 0.0
        %6665 = vmatpush2.xpose.msra.mxu0 0.0
        %6666 = vmatprep.subr.mxu0 0.0
        %6667 = vmatpush2.xpose.msra.mxu0 0.0
        %6668 = vmatprep.subr.mxu0 0.0
        %6669 = vmatpush2.xpose.msra.mxu0 0.0
        %6670 = vmatprep.subr.mxu0 0.0
        %6671 = vmatpush2.xpose.msra.mxu0 0.0
        %6672 = vmatprep.subr.mxu0 0.0
        %6673 = vmatpush2.xpose.msra.mxu0 0.0
        %6674 = vmatprep.subr.mxu0 0.0
        %6675 = vmatpush2.xpose.msra.mxu0 0.0
        %6676 = vmatprep.subr.mxu0 0.0
        %6677 = vmatpush2.xpose.msra.mxu0 0.0
        %6678 = vmatprep.subr.mxu0 0.0
        %6679 = vmatpush2.xpose.msra.mxu0 0.0
        %6680 = vmatprep.subr.mxu0 0.0
        %6681 = vmatpush2.xpose.msra.mxu0 0.0
        %6682 = vmatprep.subr.mxu0 0.0
        %6683 = vmatpush2.xpose.msra.mxu0 0.0
        %6684 = vmatprep.mubr.f32.mxu0 0.0
        %v6685 = vand.u32 %v6610, 4294901760
        %v6686 = vsub.f32 %v6610, %v6685
        %v6687 = vand.u32 %v6686, 4294901760
        %v6688 = vsub.f32 %v6686, %v6687
        %v6689 = vand.u32 %v6688, 4294901760
        %6690 = vmatmul.mubr.f32.gmra.mxu0 %v6689
        %v6691 = vpop.f32.mrf.mxu0
        %v6692 = vadd.f32 %v5564, %v6691
        %v6693 = vpop.f32.mrf.mxu0
        %6694 = vmatprep.mubr.f32.mxu0 0.0
        %v6695 = vand.u32 %v6612, 4294901760
        %v6696 = vsub.f32 %v6612, %v6695
        %v6697 = vand.u32 %v6696, 4294901760
        %v6698 = vsub.f32 %v6696, %v6697
        %v6699 = vand.u32 %v6698, 4294901760
        %6700 = vmatmul.mubr.f32.gmra.mxu0 %v6699
        %v6701 = vpop.f32.mrf.mxu0
        %v6702 = vadd.f32 %v5565, %v6701
        %v6703 = vpop.f32.mrf.mxu0
        %6704 = vdwg.mxu0
        %6705 = vmatprep.subr.mxu0 0.0
        %6706 = vmatpush1.xpose.msra.mxu0 0.0
        %6707 = vmatprep.subr.mxu0 0.0
        %6708 = vmatpush1.xpose.msra.mxu0 0.0
        %6709 = vmatprep.subr.mxu0 0.0
        %6710 = vmatpush1.xpose.msra.mxu0 0.0
        %6711 = vmatprep.subr.mxu0 0.0
        %6712 = vmatpush1.xpose.msra.mxu0 0.0
        %6713 = vmatprep.subr.mxu0 0.0
        %6714 = vmatpush1.xpose.msra.mxu0 0.0
        %6715 = vmatprep.subr.mxu0 0.0
        %6716 = vmatpush1.xpose.msra.mxu0 0.0
        %6717 = vmatprep.subr.mxu0 0.0
        %6718 = vmatpush1.xpose.msra.mxu0 0.0
        %6719 = vmatprep.subr.mxu0 0.0
        %6720 = vmatpush1.xpose.msra.mxu0 0.0
        %6721 = vmatprep.subr.mxu0 0.0
        %6722 = vmatpush1.xpose.msra.mxu0 0.0
        %6723 = vmatprep.subr.mxu0 0.0
        %6724 = vmatpush1.xpose.msra.mxu0 0.0
        %6725 = vmatprep.subr.mxu0 0.0
        %6726 = vmatpush1.xpose.msra.mxu0 0.0
        %6727 = vmatprep.subr.mxu0 0.0
        %6728 = vmatpush1.xpose.msra.mxu0 0.0
        %6729 = vmatprep.subr.mxu0 0.0
        %6730 = vmatpush1.xpose.msra.mxu0 0.0
        %6731 = vmatprep.subr.mxu0 0.0
        %6732 = vmatpush1.xpose.msra.mxu0 0.0
        %6733 = vmatprep.subr.mxu0 0.0
        %v6734 = vand.u32 %v6616, 4294901760
        %v6735 = vsub.f32 %v6616, %v6734
        %v6736 = vand.u32 %v6735, 4294901760
        %v6737 = vsub.f32 %v6735, %v6736
        %v6738 = vand.u32 %v6737, 4294901760
        %6739 = vmatpush1.xpose.msra.mxu0 %v6738
        %6740 = vmatprep.subr.mxu0 0.0
        %v6741 = vand.u32 %v6614, 4294901760
        %v6742 = vsub.f32 %v6614, %v6741
        %v6743 = vand.u32 %v6742, 4294901760
        %v6744 = vsub.f32 %v6742, %v6743
        %v6745 = vand.u32 %v6744, 4294901760
        %6746 = vmatpush1.xpose.msra.mxu0 %v6745
        %6747 = vmatprep.subr.mxu0 0.0
        %6748 = vmatpush2.xpose.msra.mxu0 0.0
        %6749 = vmatprep.subr.mxu0 0.0
        %6750 = vmatpush2.xpose.msra.mxu0 0.0
        %6751 = vmatprep.subr.mxu0 0.0
        %6752 = vmatpush2.xpose.msra.mxu0 0.0
        %6753 = vmatprep.subr.mxu0 0.0
        %6754 = vmatpush2.xpose.msra.mxu0 0.0
        %6755 = vmatprep.subr.mxu0 0.0
        %6756 = vmatpush2.xpose.msra.mxu0 0.0
        %6757 = vmatprep.subr.mxu0 0.0
        %6758 = vmatpush2.xpose.msra.mxu0 0.0
        %6759 = vmatprep.subr.mxu0 0.0
        %6760 = vmatpush2.xpose.msra.mxu0 0.0
        %6761 = vmatprep.subr.mxu0 0.0
        %6762 = vmatpush2.xpose.msra.mxu0 0.0
        %6763 = vmatprep.subr.mxu0 0.0
        %6764 = vmatpush2.xpose.msra.mxu0 0.0
        %6765 = vmatprep.subr.mxu0 0.0
        %6766 = vmatpush2.xpose.msra.mxu0 0.0
        %6767 = vmatprep.subr.mxu0 0.0
        %6768 = vmatpush2.xpose.msra.mxu0 0.0
        %6769 = vmatprep.subr.mxu0 0.0
        %6770 = vmatpush2.xpose.msra.mxu0 0.0
        %6771 = vmatprep.subr.mxu0 0.0
        %6772 = vmatpush2.xpose.msra.mxu0 0.0
        %6773 = vmatprep.subr.mxu0 0.0
        %6774 = vmatpush2.xpose.msra.mxu0 0.0
        %6775 = vmatprep.subr.mxu0 0.0
        %6776 = vmatpush2.xpose.msra.mxu0 0.0
        %6777 = vmatprep.subr.mxu0 0.0
        %6778 = vmatpush2.xpose.msra.mxu0 0.0
        %6779 = vmatprep.mubr.f32.mxu0 0.0
        %v6780 = vand.u32 %v6610, 4294901760
        %6781 = vmatmul.mubr.f32.gmra.mxu0 %v6780
        %v6782 = vpop.f32.mrf.mxu0
        %v6783 = vadd.f32 %v6692, %v6782
        %v6784 = vpop.f32.mrf.mxu0
        %6785 = vmatprep.mubr.f32.mxu0 0.0
        %v6786 = vand.u32 %v6612, 4294901760
        %6787 = vmatmul.mubr.f32.gmra.mxu0 %v6786
        %v6788 = vpop.f32.mrf.mxu0
        %v6789 = vadd.f32 %v6702, %v6788
        %v6790 = vpop.f32.mrf.mxu0
        %6791 = vdwg.mxu0
        %6792 = vmatprep.subr.mxu0 0.0
        %6793 = vmatpush1.xpose.msra.mxu0 0.0
        %6794 = vmatprep.subr.mxu0 0.0
        %6795 = vmatpush1.xpose.msra.mxu0 0.0
        %6796 = vmatprep.subr.mxu0 0.0
        %6797 = vmatpush1.xpose.msra.mxu0 0.0
        %6798 = vmatprep.subr.mxu0 0.0
        %6799 = vmatpush1.xpose.msra.mxu0 0.0
        %6800 = vmatprep.subr.mxu0 0.0
        %6801 = vmatpush1.xpose.msra.mxu0 0.0
        %6802 = vmatprep.subr.mxu0 0.0
        %6803 = vmatpush1.xpose.msra.mxu0 0.0
        %6804 = vmatprep.subr.mxu0 0.0
        %6805 = vmatpush1.xpose.msra.mxu0 0.0
        %6806 = vmatprep.subr.mxu0 0.0
        %6807 = vmatpush1.xpose.msra.mxu0 0.0
        %6808 = vmatprep.subr.mxu0 0.0
        %6809 = vmatpush1.xpose.msra.mxu0 0.0
        %6810 = vmatprep.subr.mxu0 0.0
        %6811 = vmatpush1.xpose.msra.mxu0 0.0
        %6812 = vmatprep.subr.mxu0 0.0
        %6813 = vmatpush1.xpose.msra.mxu0 0.0
        %6814 = vmatprep.subr.mxu0 0.0
        %6815 = vmatpush1.xpose.msra.mxu0 0.0
        %6816 = vmatprep.subr.mxu0 0.0
        %6817 = vmatpush1.xpose.msra.mxu0 0.0
        %6818 = vmatprep.subr.mxu0 0.0
        %6819 = vmatpush1.xpose.msra.mxu0 0.0
        %6820 = vmatprep.subr.mxu0 0.0
        %v6821 = vand.u32 %v6616, 4294901760
        %v6822 = vsub.f32 %v6616, %v6821
        %6823 = vmatpush1.xpose.msra.mxu0 %v6822
        %6824 = vmatprep.subr.mxu0 0.0
        %v6825 = vand.u32 %v6614, 4294901760
        %v6826 = vsub.f32 %v6614, %v6825
        %6827 = vmatpush1.xpose.msra.mxu0 %v6826
        %6828 = vmatprep.subr.mxu0 0.0
        %6829 = vmatpush2.xpose.msra.mxu0 0.0
        %6830 = vmatprep.subr.mxu0 0.0
        %6831 = vmatpush2.xpose.msra.mxu0 0.0
        %6832 = vmatprep.subr.mxu0 0.0
        %6833 = vmatpush2.xpose.msra.mxu0 0.0
        %6834 = vmatprep.subr.mxu0 0.0
        %6835 = vmatpush2.xpose.msra.mxu0 0.0
        %6836 = vmatprep.subr.mxu0 0.0
        %6837 = vmatpush2.xpose.msra.mxu0 0.0
        %6838 = vmatprep.subr.mxu0 0.0
        %6839 = vmatpush2.xpose.msra.mxu0 0.0
        %6840 = vmatprep.subr.mxu0 0.0
        %6841 = vmatpush2.xpose.msra.mxu0 0.0
        %6842 = vmatprep.subr.mxu0 0.0
        %6843 = vmatpush2.xpose.msra.mxu0 0.0
        %6844 = vmatprep.subr.mxu0 0.0
        %6845 = vmatpush2.xpose.msra.mxu0 0.0
        %6846 = vmatprep.subr.mxu0 0.0
        %6847 = vmatpush2.xpose.msra.mxu0 0.0
        %6848 = vmatprep.subr.mxu0 0.0
        %6849 = vmatpush2.xpose.msra.mxu0 0.0
        %6850 = vmatprep.subr.mxu0 0.0
        %6851 = vmatpush2.xpose.msra.mxu0 0.0
        %6852 = vmatprep.subr.mxu0 0.0
        %6853 = vmatpush2.xpose.msra.mxu0 0.0
        %6854 = vmatprep.subr.mxu0 0.0
        %6855 = vmatpush2.xpose.msra.mxu0 0.0
        %6856 = vmatprep.subr.mxu0 0.0
        %6857 = vmatpush2.xpose.msra.mxu0 0.0
        %6858 = vmatprep.subr.mxu0 0.0
        %6859 = vmatpush2.xpose.msra.mxu0 0.0
        %6860 = vmatprep.mubr.f32.mxu0 0.0
        %v6861 = vand.u32 %v6610, 4294901760
        %v6862 = vsub.f32 %v6610, %v6861
        %6863 = vmatmul.mubr.f32.gmra.mxu0 %v6862
        %v6864 = vpop.f32.mrf.mxu0
        %v6865 = vadd.f32 %v6783, %v6864
        %v6866 = vpop.f32.mrf.mxu0
        %6867 = vmatprep.mubr.f32.mxu0 0.0
        %v6868 = vand.u32 %v6612, 4294901760
        %v6869 = vsub.f32 %v6612, %v6868
        %6870 = vmatmul.mubr.f32.gmra.mxu0 %v6869
        %v6871 = vpop.f32.mrf.mxu0
        %v6872 = vadd.f32 %v6789, %v6871
        %v6873 = vpop.f32.mrf.mxu0
        %6874 = vdwg.mxu0
        %6875 = vmatprep.subr.mxu0 0.0
        %6876 = vmatpush1.xpose.msra.mxu0 0.0
        %6877 = vmatprep.subr.mxu0 0.0
        %6878 = vmatpush1.xpose.msra.mxu0 0.0
        %6879 = vmatprep.subr.mxu0 0.0
        %6880 = vmatpush1.xpose.msra.mxu0 0.0
        %6881 = vmatprep.subr.mxu0 0.0
        %6882 = vmatpush1.xpose.msra.mxu0 0.0
        %6883 = vmatprep.subr.mxu0 0.0
        %6884 = vmatpush1.xpose.msra.mxu0 0.0
        %6885 = vmatprep.subr.mxu0 0.0
        %6886 = vmatpush1.xpose.msra.mxu0 0.0
        %6887 = vmatprep.subr.mxu0 0.0
        %6888 = vmatpush1.xpose.msra.mxu0 0.0
        %6889 = vmatprep.subr.mxu0 0.0
        %6890 = vmatpush1.xpose.msra.mxu0 0.0
        %6891 = vmatprep.subr.mxu0 0.0
        %6892 = vmatpush1.xpose.msra.mxu0 0.0
        %6893 = vmatprep.subr.mxu0 0.0
        %6894 = vmatpush1.xpose.msra.mxu0 0.0
        %6895 = vmatprep.subr.mxu0 0.0
        %6896 = vmatpush1.xpose.msra.mxu0 0.0
        %6897 = vmatprep.subr.mxu0 0.0
        %6898 = vmatpush1.xpose.msra.mxu0 0.0
        %6899 = vmatprep.subr.mxu0 0.0
        %6900 = vmatpush1.xpose.msra.mxu0 0.0
        %6901 = vmatprep.subr.mxu0 0.0
        %6902 = vmatpush1.xpose.msra.mxu0 0.0
        %6903 = vmatprep.subr.mxu0 0.0
        %v6904 = vand.u32 %v6616, 4294901760
        %6905 = vmatpush1.xpose.msra.mxu0 %v6904
        %6906 = vmatprep.subr.mxu0 0.0
        %v6907 = vand.u32 %v6614, 4294901760
        %6908 = vmatpush1.xpose.msra.mxu0 %v6907
        %6909 = vmatprep.subr.mxu0 0.0
        %6910 = vmatpush2.xpose.msra.mxu0 0.0
        %6911 = vmatprep.subr.mxu0 0.0
        %6912 = vmatpush2.xpose.msra.mxu0 0.0
        %6913 = vmatprep.subr.mxu0 0.0
        %6914 = vmatpush2.xpose.msra.mxu0 0.0
        %6915 = vmatprep.subr.mxu0 0.0
        %6916 = vmatpush2.xpose.msra.mxu0 0.0
        %6917 = vmatprep.subr.mxu0 0.0
        %6918 = vmatpush2.xpose.msra.mxu0 0.0
        %6919 = vmatprep.subr.mxu0 0.0
        %6920 = vmatpush2.xpose.msra.mxu0 0.0
        %6921 = vmatprep.subr.mxu0 0.0
        %6922 = vmatpush2.xpose.msra.mxu0 0.0
        %6923 = vmatprep.subr.mxu0 0.0
        %6924 = vmatpush2.xpose.msra.mxu0 0.0
        %6925 = vmatprep.subr.mxu0 0.0
        %6926 = vmatpush2.xpose.msra.mxu0 0.0
        %6927 = vmatprep.subr.mxu0 0.0
        %6928 = vmatpush2.xpose.msra.mxu0 0.0
        %6929 = vmatprep.subr.mxu0 0.0
        %6930 = vmatpush2.xpose.msra.mxu0 0.0
        %6931 = vmatprep.subr.mxu0 0.0
        %6932 = vmatpush2.xpose.msra.mxu0 0.0
        %6933 = vmatprep.subr.mxu0 0.0
        %6934 = vmatpush2.xpose.msra.mxu0 0.0
        %6935 = vmatprep.subr.mxu0 0.0
        %6936 = vmatpush2.xpose.msra.mxu0 0.0
        %6937 = vmatprep.subr.mxu0 0.0
        %6938 = vmatpush2.xpose.msra.mxu0 0.0
        %6939 = vmatprep.subr.mxu0 0.0
        %6940 = vmatpush2.xpose.msra.mxu0 0.0
        %6941 = vmatprep.mubr.f32.mxu0 0.0
        %v6942 = vand.u32 %v6610, 4294901760
        %v6943 = vsub.f32 %v6610, %v6942
        %v6944 = vand.u32 %v6943, 4294901760
        %6945 = vmatmul.mubr.f32.gmra.mxu0 %v6944
        %v6946 = vpop.f32.mrf.mxu0
        %v6947 = vadd.f32 %v6865, %v6946
        %v6948 = vpop.f32.mrf.mxu0
        %6949 = vmatprep.mubr.f32.mxu0 0.0
        %v6950 = vand.u32 %v6612, 4294901760
        %v6951 = vsub.f32 %v6612, %v6950
        %v6952 = vand.u32 %v6951, 4294901760
        %6953 = vmatmul.mubr.f32.gmra.mxu0 %v6952
        %v6954 = vpop.f32.mrf.mxu0
        %v6955 = vadd.f32 %v6872, %v6954
        %v6956 = vpop.f32.mrf.mxu0
        %6957 = vdwg.mxu0
        %6958 = vmatprep.subr.mxu0 0.0
        %6959 = vmatpush1.xpose.msra.mxu0 0.0
        %6960 = vmatprep.subr.mxu0 0.0
        %6961 = vmatpush1.xpose.msra.mxu0 0.0
        %6962 = vmatprep.subr.mxu0 0.0
        %6963 = vmatpush1.xpose.msra.mxu0 0.0
        %6964 = vmatprep.subr.mxu0 0.0
        %6965 = vmatpush1.xpose.msra.mxu0 0.0
        %6966 = vmatprep.subr.mxu0 0.0
        %6967 = vmatpush1.xpose.msra.mxu0 0.0
        %6968 = vmatprep.subr.mxu0 0.0
        %6969 = vmatpush1.xpose.msra.mxu0 0.0
        %6970 = vmatprep.subr.mxu0 0.0
        %6971 = vmatpush1.xpose.msra.mxu0 0.0
        %6972 = vmatprep.subr.mxu0 0.0
        %6973 = vmatpush1.xpose.msra.mxu0 0.0
        %6974 = vmatprep.subr.mxu0 0.0
        %6975 = vmatpush1.xpose.msra.mxu0 0.0
        %6976 = vmatprep.subr.mxu0 0.0
        %6977 = vmatpush1.xpose.msra.mxu0 0.0
        %6978 = vmatprep.subr.mxu0 0.0
        %6979 = vmatpush1.xpose.msra.mxu0 0.0
        %6980 = vmatprep.subr.mxu0 0.0
        %6981 = vmatpush1.xpose.msra.mxu0 0.0
        %6982 = vmatprep.subr.mxu0 0.0
        %6983 = vmatpush1.xpose.msra.mxu0 0.0
        %6984 = vmatprep.subr.mxu0 0.0
        %6985 = vmatpush1.xpose.msra.mxu0 0.0
        %6986 = vmatprep.subr.mxu0 0.0
        %v6987 = vand.u32 %v6616, 4294901760
        %v6988 = vsub.f32 %v6616, %v6987
        %v6989 = vand.u32 %v6988, 4294901760
        %6990 = vmatpush1.xpose.msra.mxu0 %v6989
        %6991 = vmatprep.subr.mxu0 0.0
        %v6992 = vand.u32 %v6614, 4294901760
        %v6993 = vsub.f32 %v6614, %v6992
        %v6994 = vand.u32 %v6993, 4294901760
        %6995 = vmatpush1.xpose.msra.mxu0 %v6994
        %6996 = vmatprep.subr.mxu0 0.0
        %6997 = vmatpush2.xpose.msra.mxu0 0.0
        %6998 = vmatprep.subr.mxu0 0.0
        %6999 = vmatpush2.xpose.msra.mxu0 0.0
        %7000 = vmatprep.subr.mxu0 0.0
        %7001 = vmatpush2.xpose.msra.mxu0 0.0
        %7002 = vmatprep.subr.mxu0 0.0
        %7003 = vmatpush2.xpose.msra.mxu0 0.0
        %7004 = vmatprep.subr.mxu0 0.0
        %7005 = vmatpush2.xpose.msra.mxu0 0.0
        %7006 = vmatprep.subr.mxu0 0.0
        %7007 = vmatpush2.xpose.msra.mxu0 0.0
        %7008 = vmatprep.subr.mxu0 0.0
        %7009 = vmatpush2.xpose.msra.mxu0 0.0
        %7010 = vmatprep.subr.mxu0 0.0
        %7011 = vmatpush2.xpose.msra.mxu0 0.0
        %7012 = vmatprep.subr.mxu0 0.0
        %7013 = vmatpush2.xpose.msra.mxu0 0.0
        %7014 = vmatprep.subr.mxu0 0.0
        %7015 = vmatpush2.xpose.msra.mxu0 0.0
        %7016 = vmatprep.subr.mxu0 0.0
        %7017 = vmatpush2.xpose.msra.mxu0 0.0
        %7018 = vmatprep.subr.mxu0 0.0
        %7019 = vmatpush2.xpose.msra.mxu0 0.0
        %7020 = vmatprep.subr.mxu0 0.0
        %7021 = vmatpush2.xpose.msra.mxu0 0.0
        %7022 = vmatprep.subr.mxu0 0.0
        %7023 = vmatpush2.xpose.msra.mxu0 0.0
        %7024 = vmatprep.subr.mxu0 0.0
        %7025 = vmatpush2.xpose.msra.mxu0 0.0
        %7026 = vmatprep.subr.mxu0 0.0
        %7027 = vmatpush2.xpose.msra.mxu0 0.0
        %7028 = vmatprep.mubr.f32.mxu0 0.0
        %v7029 = vand.u32 %v6610, 4294901760
        %7030 = vmatmul.mubr.f32.gmra.mxu0 %v7029
        %v7031 = vpop.f32.mrf.mxu0
        %v7032 = vadd.f32 %v6947, %v7031
        %v7033 = vpop.f32.mrf.mxu0
        %7034 = vmatprep.mubr.f32.mxu0 0.0
        %v7035 = vand.u32 %v6612, 4294901760
        %7036 = vmatmul.mubr.f32.gmra.mxu0 %v7035
        %v7037 = vpop.f32.mrf.mxu0
        %v7038 = vadd.f32 %v6955, %v7037
        %v7039 = vpop.f32.mrf.mxu0
        %7040 = vdwg.mxu0
        %7041 = vmatprep.subr.mxu0 0.0
        %7042 = vmatpush1.xpose.msra.mxu0 0.0
        %7043 = vmatprep.subr.mxu0 0.0
        %7044 = vmatpush1.xpose.msra.mxu0 0.0
        %7045 = vmatprep.subr.mxu0 0.0
        %7046 = vmatpush1.xpose.msra.mxu0 0.0
        %7047 = vmatprep.subr.mxu0 0.0
        %7048 = vmatpush1.xpose.msra.mxu0 0.0
        %7049 = vmatprep.subr.mxu0 0.0
        %7050 = vmatpush1.xpose.msra.mxu0 0.0
        %7051 = vmatprep.subr.mxu0 0.0
        %7052 = vmatpush1.xpose.msra.mxu0 0.0
        %7053 = vmatprep.subr.mxu0 0.0
        %7054 = vmatpush1.xpose.msra.mxu0 0.0
        %7055 = vmatprep.subr.mxu0 0.0
        %7056 = vmatpush1.xpose.msra.mxu0 0.0
        %7057 = vmatprep.subr.mxu0 0.0
        %7058 = vmatpush1.xpose.msra.mxu0 0.0
        %7059 = vmatprep.subr.mxu0 0.0
        %7060 = vmatpush1.xpose.msra.mxu0 0.0
        %7061 = vmatprep.subr.mxu0 0.0
        %7062 = vmatpush1.xpose.msra.mxu0 0.0
        %7063 = vmatprep.subr.mxu0 0.0
        %7064 = vmatpush1.xpose.msra.mxu0 0.0
        %7065 = vmatprep.subr.mxu0 0.0
        %7066 = vmatpush1.xpose.msra.mxu0 0.0
        %7067 = vmatprep.subr.mxu0 0.0
        %7068 = vmatpush1.xpose.msra.mxu0 0.0
        %7069 = vmatprep.subr.mxu0 0.0
        %v7070 = vand.u32 %v6616, 4294901760
        %7071 = vmatpush1.xpose.msra.mxu0 %v7070
        %7072 = vmatprep.subr.mxu0 0.0
        %v7073 = vand.u32 %v6614, 4294901760
        %7074 = vmatpush1.xpose.msra.mxu0 %v7073
        %7075 = vmatprep.subr.mxu0 0.0
        %7076 = vmatpush2.xpose.msra.mxu0 0.0
        %7077 = vmatprep.subr.mxu0 0.0
        %7078 = vmatpush2.xpose.msra.mxu0 0.0
        %7079 = vmatprep.subr.mxu0 0.0
        %7080 = vmatpush2.xpose.msra.mxu0 0.0
        %7081 = vmatprep.subr.mxu0 0.0
        %7082 = vmatpush2.xpose.msra.mxu0 0.0
        %7083 = vmatprep.subr.mxu0 0.0
        %7084 = vmatpush2.xpose.msra.mxu0 0.0
        %7085 = vmatprep.subr.mxu0 0.0
        %7086 = vmatpush2.xpose.msra.mxu0 0.0
        %7087 = vmatprep.subr.mxu0 0.0
        %7088 = vmatpush2.xpose.msra.mxu0 0.0
        %7089 = vmatprep.subr.mxu0 0.0
        %7090 = vmatpush2.xpose.msra.mxu0 0.0
        %7091 = vmatprep.subr.mxu0 0.0
        %7092 = vmatpush2.xpose.msra.mxu0 0.0
        %7093 = vmatprep.subr.mxu0 0.0
        %7094 = vmatpush2.xpose.msra.mxu0 0.0
        %7095 = vmatprep.subr.mxu0 0.0
        %7096 = vmatpush2.xpose.msra.mxu0 0.0
        %7097 = vmatprep.subr.mxu0 0.0
        %7098 = vmatpush2.xpose.msra.mxu0 0.0
        %7099 = vmatprep.subr.mxu0 0.0
        %7100 = vmatpush2.xpose.msra.mxu0 0.0
        %7101 = vmatprep.subr.mxu0 0.0
        %7102 = vmatpush2.xpose.msra.mxu0 0.0
        %7103 = vmatprep.subr.mxu0 0.0
        %7104 = vmatpush2.xpose.msra.mxu0 0.0
        %7105 = vmatprep.subr.mxu0 0.0
        %7106 = vmatpush2.xpose.msra.mxu0 0.0
        %7107 = vmatprep.mubr.f32.mxu0 0.0
        %v7108 = vand.u32 %v6610, 4294901760
        %7109 = vmatmul.mubr.f32.gmra.mxu0 %v7108
        %v7110 = vpop.f32.mrf.mxu0
        %v7111 = vadd.f32 %v7032, %v7110
        %v7112 = vpop.f32.mrf.mxu0
        %7113 = vmatprep.mubr.f32.mxu0 0.0
        %v7114 = vand.u32 %v6612, 4294901760
        %7115 = vmatmul.mubr.f32.gmra.mxu0 %v7114
        %v7116 = vpop.f32.mrf.mxu0
        %v7117 = vadd.f32 %v7038, %v7116
        %v7118 = vpop.f32.mrf.mxu0
        %7119 = vdwg.mxu0
        %7120 = vrot.lane.b32.xlu0 %v1342, 112
        %v7121 = vpop.permute.xlu0 %7120
        %7122 = vrot.lane.b32.xlu0 %v1343, 112
        %v7123 = vpop.permute.xlu0 %7122
        %7124 = vrot.lane.b32.xlu0 %v1327, 80
        %v7125 = vpop.permute.xlu0 %7124
        %7126 = vrot.lane.b32.xlu0 %v1333, 80
        %v7127 = vpop.permute.xlu0 %7126
        %v7128 = vsel %vm1352, %v7121, 0
        %v7130 = vsel %vm1352, %v7123, 0
        %v7132 = vsel %vm1352, %v7125, 0
        %v7134 = vsel %vm1352, %v7127, 0
        %7136 = vmatprep.subr.mxu0 0.0
        %7137 = vmatpush1.xpose.msra.mxu0 0.0
        %7138 = vmatprep.subr.mxu0 0.0
        %7139 = vmatpush1.xpose.msra.mxu0 0.0
        %7140 = vmatprep.subr.mxu0 0.0
        %7141 = vmatpush1.xpose.msra.mxu0 0.0
        %7142 = vmatprep.subr.mxu0 0.0
        %7143 = vmatpush1.xpose.msra.mxu0 0.0
        %7144 = vmatprep.subr.mxu0 0.0
        %7145 = vmatpush1.xpose.msra.mxu0 0.0
        %7146 = vmatprep.subr.mxu0 0.0
        %7147 = vmatpush1.xpose.msra.mxu0 0.0
        %7148 = vmatprep.subr.mxu0 0.0
        %7149 = vmatpush1.xpose.msra.mxu0 0.0
        %7150 = vmatprep.subr.mxu0 0.0
        %7151 = vmatpush1.xpose.msra.mxu0 0.0
        %7152 = vmatprep.subr.mxu0 0.0
        %7153 = vmatpush1.xpose.msra.mxu0 0.0
        %7154 = vmatprep.subr.mxu0 0.0
        %7155 = vmatpush1.xpose.msra.mxu0 0.0
        %7156 = vmatprep.subr.mxu0 0.0
        %7157 = vmatpush1.xpose.msra.mxu0 0.0
        %7158 = vmatprep.subr.mxu0 0.0
        %7159 = vmatpush1.xpose.msra.mxu0 0.0
        %7160 = vmatprep.subr.mxu0 0.0
        %7161 = vmatpush1.xpose.msra.mxu0 0.0
        %7162 = vmatprep.subr.mxu0 0.0
        %7163 = vmatpush1.xpose.msra.mxu0 0.0
        %7164 = vmatprep.subr.mxu0 0.0
        %v7165 = vand.u32 %v7134, 4294901760
        %7166 = vmatpush1.xpose.msra.mxu0 %v7165
        %7167 = vmatprep.subr.mxu0 0.0
        %v7168 = vand.u32 %v7132, 4294901760
        %7169 = vmatpush1.xpose.msra.mxu0 %v7168
        %7170 = vmatprep.subr.mxu0 0.0
        %7171 = vmatpush2.xpose.msra.mxu0 0.0
        %7172 = vmatprep.subr.mxu0 0.0
        %7173 = vmatpush2.xpose.msra.mxu0 0.0
        %7174 = vmatprep.subr.mxu0 0.0
        %7175 = vmatpush2.xpose.msra.mxu0 0.0
        %7176 = vmatprep.subr.mxu0 0.0
        %7177 = vmatpush2.xpose.msra.mxu0 0.0
        %7178 = vmatprep.subr.mxu0 0.0
        %7179 = vmatpush2.xpose.msra.mxu0 0.0
        %7180 = vmatprep.subr.mxu0 0.0
        %7181 = vmatpush2.xpose.msra.mxu0 0.0
        %7182 = vmatprep.subr.mxu0 0.0
        %7183 = vmatpush2.xpose.msra.mxu0 0.0
        %7184 = vmatprep.subr.mxu0 0.0
        %7185 = vmatpush2.xpose.msra.mxu0 0.0
        %7186 = vmatprep.subr.mxu0 0.0
        %7187 = vmatpush2.xpose.msra.mxu0 0.0
        %7188 = vmatprep.subr.mxu0 0.0
        %7189 = vmatpush2.xpose.msra.mxu0 0.0
        %7190 = vmatprep.subr.mxu0 0.0
        %7191 = vmatpush2.xpose.msra.mxu0 0.0
        %7192 = vmatprep.subr.mxu0 0.0
        %7193 = vmatpush2.xpose.msra.mxu0 0.0
        %7194 = vmatprep.subr.mxu0 0.0
        %7195 = vmatpush2.xpose.msra.mxu0 0.0
        %7196 = vmatprep.subr.mxu0 0.0
        %7197 = vmatpush2.xpose.msra.mxu0 0.0
        %7198 = vmatprep.subr.mxu0 0.0
        %7199 = vmatpush2.xpose.msra.mxu0 0.0
        %7200 = vmatprep.subr.mxu0 0.0
        %7201 = vmatpush2.xpose.msra.mxu0 0.0
        %7202 = vmatprep.mubr.f32.mxu0 0.0
        %v7203 = vand.u32 %v7128, 4294901760
        %v7204 = vsub.f32 %v7128, %v7203
        %v7205 = vand.u32 %v7204, 4294901760
        %v7206 = vsub.f32 %v7204, %v7205
        %v7207 = vand.u32 %v7206, 4294901760
        %7208 = vmatmul.mubr.f32.gmra.mxu0 %v7207
        %v7209 = vpop.f32.mrf.mxu0
        %v7210 = vadd.f32 %v5564, %v7209
        %v7211 = vpop.f32.mrf.mxu0
        %7212 = vmatprep.mubr.f32.mxu0 0.0
        %v7213 = vand.u32 %v7130, 4294901760
        %v7214 = vsub.f32 %v7130, %v7213
        %v7215 = vand.u32 %v7214, 4294901760
        %v7216 = vsub.f32 %v7214, %v7215
        %v7217 = vand.u32 %v7216, 4294901760
        %7218 = vmatmul.mubr.f32.gmra.mxu0 %v7217
        %v7219 = vpop.f32.mrf.mxu0
        %v7220 = vadd.f32 %v5565, %v7219
        %v7221 = vpop.f32.mrf.mxu0
        %7222 = vdwg.mxu0
        %7223 = vmatprep.subr.mxu0 0.0
        %7224 = vmatpush1.xpose.msra.mxu0 0.0
        %7225 = vmatprep.subr.mxu0 0.0
        %7226 = vmatpush1.xpose.msra.mxu0 0.0
        %7227 = vmatprep.subr.mxu0 0.0
        %7228 = vmatpush1.xpose.msra.mxu0 0.0
        %7229 = vmatprep.subr.mxu0 0.0
        %7230 = vmatpush1.xpose.msra.mxu0 0.0
        %7231 = vmatprep.subr.mxu0 0.0
        %7232 = vmatpush1.xpose.msra.mxu0 0.0
        %7233 = vmatprep.subr.mxu0 0.0
        %7234 = vmatpush1.xpose.msra.mxu0 0.0
        %7235 = vmatprep.subr.mxu0 0.0
        %7236 = vmatpush1.xpose.msra.mxu0 0.0
        %7237 = vmatprep.subr.mxu0 0.0
        %7238 = vmatpush1.xpose.msra.mxu0 0.0
        %7239 = vmatprep.subr.mxu0 0.0
        %7240 = vmatpush1.xpose.msra.mxu0 0.0
        %7241 = vmatprep.subr.mxu0 0.0
        %7242 = vmatpush1.xpose.msra.mxu0 0.0
        %7243 = vmatprep.subr.mxu0 0.0
        %7244 = vmatpush1.xpose.msra.mxu0 0.0
        %7245 = vmatprep.subr.mxu0 0.0
        %7246 = vmatpush1.xpose.msra.mxu0 0.0
        %7247 = vmatprep.subr.mxu0 0.0
        %7248 = vmatpush1.xpose.msra.mxu0 0.0
        %7249 = vmatprep.subr.mxu0 0.0
        %7250 = vmatpush1.xpose.msra.mxu0 0.0
        %7251 = vmatprep.subr.mxu0 0.0
        %v7252 = vand.u32 %v7134, 4294901760
        %v7253 = vsub.f32 %v7134, %v7252
        %v7254 = vand.u32 %v7253, 4294901760
        %v7255 = vsub.f32 %v7253, %v7254
        %v7256 = vand.u32 %v7255, 4294901760
        %7257 = vmatpush1.xpose.msra.mxu0 %v7256
        %7258 = vmatprep.subr.mxu0 0.0
        %v7259 = vand.u32 %v7132, 4294901760
        %v7260 = vsub.f32 %v7132, %v7259
        %v7261 = vand.u32 %v7260, 4294901760
        %v7262 = vsub.f32 %v7260, %v7261
        %v7263 = vand.u32 %v7262, 4294901760
        %7264 = vmatpush1.xpose.msra.mxu0 %v7263
        %7265 = vmatprep.subr.mxu0 0.0
        %7266 = vmatpush2.xpose.msra.mxu0 0.0
        %7267 = vmatprep.subr.mxu0 0.0
        %7268 = vmatpush2.xpose.msra.mxu0 0.0
        %7269 = vmatprep.subr.mxu0 0.0
        %7270 = vmatpush2.xpose.msra.mxu0 0.0
        %7271 = vmatprep.subr.mxu0 0.0
        %7272 = vmatpush2.xpose.msra.mxu0 0.0
        %7273 = vmatprep.subr.mxu0 0.0
        %7274 = vmatpush2.xpose.msra.mxu0 0.0
        %7275 = vmatprep.subr.mxu0 0.0
        %7276 = vmatpush2.xpose.msra.mxu0 0.0
        %7277 = vmatprep.subr.mxu0 0.0
        %7278 = vmatpush2.xpose.msra.mxu0 0.0
        %7279 = vmatprep.subr.mxu0 0.0
        %7280 = vmatpush2.xpose.msra.mxu0 0.0
        %7281 = vmatprep.subr.mxu0 0.0
        %7282 = vmatpush2.xpose.msra.mxu0 0.0
        %7283 = vmatprep.subr.mxu0 0.0
        %7284 = vmatpush2.xpose.msra.mxu0 0.0
        %7285 = vmatprep.subr.mxu0 0.0
        %7286 = vmatpush2.xpose.msra.mxu0 0.0
        %7287 = vmatprep.subr.mxu0 0.0
        %7288 = vmatpush2.xpose.msra.mxu0 0.0
        %7289 = vmatprep.subr.mxu0 0.0
        %7290 = vmatpush2.xpose.msra.mxu0 0.0
        %7291 = vmatprep.subr.mxu0 0.0
        %7292 = vmatpush2.xpose.msra.mxu0 0.0
        %7293 = vmatprep.subr.mxu0 0.0
        %7294 = vmatpush2.xpose.msra.mxu0 0.0
        %7295 = vmatprep.subr.mxu0 0.0
        %7296 = vmatpush2.xpose.msra.mxu0 0.0
        %7297 = vmatprep.mubr.f32.mxu0 0.0
        %v7298 = vand.u32 %v7128, 4294901760
        %7299 = vmatmul.mubr.f32.gmra.mxu0 %v7298
        %v7300 = vpop.f32.mrf.mxu0
        %v7301 = vadd.f32 %v7210, %v7300
        %v7302 = vpop.f32.mrf.mxu0
        %7303 = vmatprep.mubr.f32.mxu0 0.0
        %v7304 = vand.u32 %v7130, 4294901760
        %7305 = vmatmul.mubr.f32.gmra.mxu0 %v7304
        %v7306 = vpop.f32.mrf.mxu0
        %v7307 = vadd.f32 %v7220, %v7306
        %v7308 = vpop.f32.mrf.mxu0
        %7309 = vdwg.mxu0
        %7310 = vmatprep.subr.mxu0 0.0
        %7311 = vmatpush1.xpose.msra.mxu0 0.0
        %7312 = vmatprep.subr.mxu0 0.0
        %7313 = vmatpush1.xpose.msra.mxu0 0.0
        %7314 = vmatprep.subr.mxu0 0.0
        %7315 = vmatpush1.xpose.msra.mxu0 0.0
        %7316 = vmatprep.subr.mxu0 0.0
        %7317 = vmatpush1.xpose.msra.mxu0 0.0
        %7318 = vmatprep.subr.mxu0 0.0
        %7319 = vmatpush1.xpose.msra.mxu0 0.0
        %7320 = vmatprep.subr.mxu0 0.0
        %7321 = vmatpush1.xpose.msra.mxu0 0.0
        %7322 = vmatprep.subr.mxu0 0.0
        %7323 = vmatpush1.xpose.msra.mxu0 0.0
        %7324 = vmatprep.subr.mxu0 0.0
        %7325 = vmatpush1.xpose.msra.mxu0 0.0
        %7326 = vmatprep.subr.mxu0 0.0
        %7327 = vmatpush1.xpose.msra.mxu0 0.0
        %7328 = vmatprep.subr.mxu0 0.0
        %7329 = vmatpush1.xpose.msra.mxu0 0.0
        %7330 = vmatprep.subr.mxu0 0.0
        %7331 = vmatpush1.xpose.msra.mxu0 0.0
        %7332 = vmatprep.subr.mxu0 0.0
        %7333 = vmatpush1.xpose.msra.mxu0 0.0
        %7334 = vmatprep.subr.mxu0 0.0
        %7335 = vmatpush1.xpose.msra.mxu0 0.0
        %7336 = vmatprep.subr.mxu0 0.0
        %7337 = vmatpush1.xpose.msra.mxu0 0.0
        %7338 = vmatprep.subr.mxu0 0.0
        %v7339 = vand.u32 %v7134, 4294901760
        %v7340 = vsub.f32 %v7134, %v7339
        %7341 = vmatpush1.xpose.msra.mxu0 %v7340
        %7342 = vmatprep.subr.mxu0 0.0
        %v7343 = vand.u32 %v7132, 4294901760
        %v7344 = vsub.f32 %v7132, %v7343
        %7345 = vmatpush1.xpose.msra.mxu0 %v7344
        %7346 = vmatprep.subr.mxu0 0.0
        %7347 = vmatpush2.xpose.msra.mxu0 0.0
        %7348 = vmatprep.subr.mxu0 0.0
        %7349 = vmatpush2.xpose.msra.mxu0 0.0
        %7350 = vmatprep.subr.mxu0 0.0
        %7351 = vmatpush2.xpose.msra.mxu0 0.0
        %7352 = vmatprep.subr.mxu0 0.0
        %7353 = vmatpush2.xpose.msra.mxu0 0.0
        %7354 = vmatprep.subr.mxu0 0.0
        %7355 = vmatpush2.xpose.msra.mxu0 0.0
        %7356 = vmatprep.subr.mxu0 0.0
        %7357 = vmatpush2.xpose.msra.mxu0 0.0
        %7358 = vmatprep.subr.mxu0 0.0
        %7359 = vmatpush2.xpose.msra.mxu0 0.0
        %7360 = vmatprep.subr.mxu0 0.0
        %7361 = vmatpush2.xpose.msra.mxu0 0.0
        %7362 = vmatprep.subr.mxu0 0.0
        %7363 = vmatpush2.xpose.msra.mxu0 0.0
        %7364 = vmatprep.subr.mxu0 0.0
        %7365 = vmatpush2.xpose.msra.mxu0 0.0
        %7366 = vmatprep.subr.mxu0 0.0
        %7367 = vmatpush2.xpose.msra.mxu0 0.0
        %7368 = vmatprep.subr.mxu0 0.0
        %7369 = vmatpush2.xpose.msra.mxu0 0.0
        %7370 = vmatprep.subr.mxu0 0.0
        %7371 = vmatpush2.xpose.msra.mxu0 0.0
        %7372 = vmatprep.subr.mxu0 0.0
        %7373 = vmatpush2.xpose.msra.mxu0 0.0
        %7374 = vmatprep.subr.mxu0 0.0
        %7375 = vmatpush2.xpose.msra.mxu0 0.0
        %7376 = vmatprep.subr.mxu0 0.0
        %7377 = vmatpush2.xpose.msra.mxu0 0.0
        %7378 = vmatprep.mubr.f32.mxu0 0.0
        %v7379 = vand.u32 %v7128, 4294901760
        %v7380 = vsub.f32 %v7128, %v7379
        %7381 = vmatmul.mubr.f32.gmra.mxu0 %v7380
        %v7382 = vpop.f32.mrf.mxu0
        %v7383 = vadd.f32 %v7301, %v7382
        %v7384 = vpop.f32.mrf.mxu0
        %7385 = vmatprep.mubr.f32.mxu0 0.0
        %v7386 = vand.u32 %v7130, 4294901760
        %v7387 = vsub.f32 %v7130, %v7386
        %7388 = vmatmul.mubr.f32.gmra.mxu0 %v7387
        %v7389 = vpop.f32.mrf.mxu0
        %v7390 = vadd.f32 %v7307, %v7389
        %v7391 = vpop.f32.mrf.mxu0
        %7392 = vdwg.mxu0
        %7393 = vmatprep.subr.mxu0 0.0
        %7394 = vmatpush1.xpose.msra.mxu0 0.0
        %7395 = vmatprep.subr.mxu0 0.0
        %7396 = vmatpush1.xpose.msra.mxu0 0.0
        %7397 = vmatprep.subr.mxu0 0.0
        %7398 = vmatpush1.xpose.msra.mxu0 0.0
        %7399 = vmatprep.subr.mxu0 0.0
        %7400 = vmatpush1.xpose.msra.mxu0 0.0
        %7401 = vmatprep.subr.mxu0 0.0
        %7402 = vmatpush1.xpose.msra.mxu0 0.0
        %7403 = vmatprep.subr.mxu0 0.0
        %7404 = vmatpush1.xpose.msra.mxu0 0.0
        %7405 = vmatprep.subr.mxu0 0.0
        %7406 = vmatpush1.xpose.msra.mxu0 0.0
        %7407 = vmatprep.subr.mxu0 0.0
        %7408 = vmatpush1.xpose.msra.mxu0 0.0
        %7409 = vmatprep.subr.mxu0 0.0
        %7410 = vmatpush1.xpose.msra.mxu0 0.0
        %7411 = vmatprep.subr.mxu0 0.0
        %7412 = vmatpush1.xpose.msra.mxu0 0.0
        %7413 = vmatprep.subr.mxu0 0.0
        %7414 = vmatpush1.xpose.msra.mxu0 0.0
        %7415 = vmatprep.subr.mxu0 0.0
        %7416 = vmatpush1.xpose.msra.mxu0 0.0
        %7417 = vmatprep.subr.mxu0 0.0
        %7418 = vmatpush1.xpose.msra.mxu0 0.0
        %7419 = vmatprep.subr.mxu0 0.0
        %7420 = vmatpush1.xpose.msra.mxu0 0.0
        %7421 = vmatprep.subr.mxu0 0.0
        %v7422 = vand.u32 %v7134, 4294901760
        %7423 = vmatpush1.xpose.msra.mxu0 %v7422
        %7424 = vmatprep.subr.mxu0 0.0
        %v7425 = vand.u32 %v7132, 4294901760
        %7426 = vmatpush1.xpose.msra.mxu0 %v7425
        %7427 = vmatprep.subr.mxu0 0.0
        %7428 = vmatpush2.xpose.msra.mxu0 0.0
        %7429 = vmatprep.subr.mxu0 0.0
        %7430 = vmatpush2.xpose.msra.mxu0 0.0
        %7431 = vmatprep.subr.mxu0 0.0
        %7432 = vmatpush2.xpose.msra.mxu0 0.0
        %7433 = vmatprep.subr.mxu0 0.0
        %7434 = vmatpush2.xpose.msra.mxu0 0.0
        %7435 = vmatprep.subr.mxu0 0.0
        %7436 = vmatpush2.xpose.msra.mxu0 0.0
        %7437 = vmatprep.subr.mxu0 0.0
        %7438 = vmatpush2.xpose.msra.mxu0 0.0
        %7439 = vmatprep.subr.mxu0 0.0
        %7440 = vmatpush2.xpose.msra.mxu0 0.0
        %7441 = vmatprep.subr.mxu0 0.0
        %7442 = vmatpush2.xpose.msra.mxu0 0.0
        %7443 = vmatprep.subr.mxu0 0.0
        %7444 = vmatpush2.xpose.msra.mxu0 0.0
        %7445 = vmatprep.subr.mxu0 0.0
        %7446 = vmatpush2.xpose.msra.mxu0 0.0
        %7447 = vmatprep.subr.mxu0 0.0
        %7448 = vmatpush2.xpose.msra.mxu0 0.0
        %7449 = vmatprep.subr.mxu0 0.0
        %7450 = vmatpush2.xpose.msra.mxu0 0.0
        %7451 = vmatprep.subr.mxu0 0.0
        %7452 = vmatpush2.xpose.msra.mxu0 0.0
        %7453 = vmatprep.subr.mxu0 0.0
        %7454 = vmatpush2.xpose.msra.mxu0 0.0
        %7455 = vmatprep.subr.mxu0 0.0
        %7456 = vmatpush2.xpose.msra.mxu0 0.0
        %7457 = vmatprep.subr.mxu0 0.0
        %7458 = vmatpush2.xpose.msra.mxu0 0.0
        %7459 = vmatprep.mubr.f32.mxu0 0.0
        %v7460 = vand.u32 %v7128, 4294901760
        %v7461 = vsub.f32 %v7128, %v7460
        %v7462 = vand.u32 %v7461, 4294901760
        %7463 = vmatmul.mubr.f32.gmra.mxu0 %v7462
        %v7464 = vpop.f32.mrf.mxu0
        %v7465 = vadd.f32 %v7383, %v7464
        %v7466 = vpop.f32.mrf.mxu0
        %7467 = vmatprep.mubr.f32.mxu0 0.0
        %v7468 = vand.u32 %v7130, 4294901760
        %v7469 = vsub.f32 %v7130, %v7468
        %v7470 = vand.u32 %v7469, 4294901760
        %7471 = vmatmul.mubr.f32.gmra.mxu0 %v7470
        %v7472 = vpop.f32.mrf.mxu0
        %v7473 = vadd.f32 %v7390, %v7472
        %v7474 = vpop.f32.mrf.mxu0
        %7475 = vdwg.mxu0
        %7476 = vmatprep.subr.mxu0 0.0
        %7477 = vmatpush1.xpose.msra.mxu0 0.0
        %7478 = vmatprep.subr.mxu0 0.0
        %7479 = vmatpush1.xpose.msra.mxu0 0.0
        %7480 = vmatprep.subr.mxu0 0.0
        %7481 = vmatpush1.xpose.msra.mxu0 0.0
        %7482 = vmatprep.subr.mxu0 0.0
        %7483 = vmatpush1.xpose.msra.mxu0 0.0
        %7484 = vmatprep.subr.mxu0 0.0
        %7485 = vmatpush1.xpose.msra.mxu0 0.0
        %7486 = vmatprep.subr.mxu0 0.0
        %7487 = vmatpush1.xpose.msra.mxu0 0.0
        %7488 = vmatprep.subr.mxu0 0.0
        %7489 = vmatpush1.xpose.msra.mxu0 0.0
        %7490 = vmatprep.subr.mxu0 0.0
        %7491 = vmatpush1.xpose.msra.mxu0 0.0
        %7492 = vmatprep.subr.mxu0 0.0
        %7493 = vmatpush1.xpose.msra.mxu0 0.0
        %7494 = vmatprep.subr.mxu0 0.0
        %7495 = vmatpush1.xpose.msra.mxu0 0.0
        %7496 = vmatprep.subr.mxu0 0.0
        %7497 = vmatpush1.xpose.msra.mxu0 0.0
        %7498 = vmatprep.subr.mxu0 0.0
        %7499 = vmatpush1.xpose.msra.mxu0 0.0
        %7500 = vmatprep.subr.mxu0 0.0
        %7501 = vmatpush1.xpose.msra.mxu0 0.0
        %7502 = vmatprep.subr.mxu0 0.0
        %7503 = vmatpush1.xpose.msra.mxu0 0.0
        %7504 = vmatprep.subr.mxu0 0.0
        %v7505 = vand.u32 %v7134, 4294901760
        %v7506 = vsub.f32 %v7134, %v7505
        %v7507 = vand.u32 %v7506, 4294901760
        %7508 = vmatpush1.xpose.msra.mxu0 %v7507
        %7509 = vmatprep.subr.mxu0 0.0
        %v7510 = vand.u32 %v7132, 4294901760
        %v7511 = vsub.f32 %v7132, %v7510
        %v7512 = vand.u32 %v7511, 4294901760
        %7513 = vmatpush1.xpose.msra.mxu0 %v7512
        %7514 = vmatprep.subr.mxu0 0.0
        %7515 = vmatpush2.xpose.msra.mxu0 0.0
        %7516 = vmatprep.subr.mxu0 0.0
        %7517 = vmatpush2.xpose.msra.mxu0 0.0
        %7518 = vmatprep.subr.mxu0 0.0
        %7519 = vmatpush2.xpose.msra.mxu0 0.0
        %7520 = vmatprep.subr.mxu0 0.0
        %7521 = vmatpush2.xpose.msra.mxu0 0.0
        %7522 = vmatprep.subr.mxu0 0.0
        %7523 = vmatpush2.xpose.msra.mxu0 0.0
        %7524 = vmatprep.subr.mxu0 0.0
        %7525 = vmatpush2.xpose.msra.mxu0 0.0
        %7526 = vmatprep.subr.mxu0 0.0
        %7527 = vmatpush2.xpose.msra.mxu0 0.0
        %7528 = vmatprep.subr.mxu0 0.0
        %7529 = vmatpush2.xpose.msra.mxu0 0.0
        %7530 = vmatprep.subr.mxu0 0.0
        %7531 = vmatpush2.xpose.msra.mxu0 0.0
        %7532 = vmatprep.subr.mxu0 0.0
        %7533 = vmatpush2.xpose.msra.mxu0 0.0
        %7534 = vmatprep.subr.mxu0 0.0
        %7535 = vmatpush2.xpose.msra.mxu0 0.0
        %7536 = vmatprep.subr.mxu0 0.0
        %7537 = vmatpush2.xpose.msra.mxu0 0.0
        %7538 = vmatprep.subr.mxu0 0.0
        %7539 = vmatpush2.xpose.msra.mxu0 0.0
        %7540 = vmatprep.subr.mxu0 0.0
        %7541 = vmatpush2.xpose.msra.mxu0 0.0
        %7542 = vmatprep.subr.mxu0 0.0
        %7543 = vmatpush2.xpose.msra.mxu0 0.0
        %7544 = vmatprep.subr.mxu0 0.0
        %7545 = vmatpush2.xpose.msra.mxu0 0.0
        %7546 = vmatprep.mubr.f32.mxu0 0.0
        %v7547 = vand.u32 %v7128, 4294901760
        %7548 = vmatmul.mubr.f32.gmra.mxu0 %v7547
        %v7549 = vpop.f32.mrf.mxu0
        %v7550 = vadd.f32 %v7465, %v7549
        %v7551 = vpop.f32.mrf.mxu0
        %7552 = vmatprep.mubr.f32.mxu0 0.0
        %v7553 = vand.u32 %v7130, 4294901760
        %7554 = vmatmul.mubr.f32.gmra.mxu0 %v7553
        %v7555 = vpop.f32.mrf.mxu0
        %v7556 = vadd.f32 %v7473, %v7555
        %v7557 = vpop.f32.mrf.mxu0
        %7558 = vdwg.mxu0
        %7559 = vmatprep.subr.mxu0 0.0
        %7560 = vmatpush1.xpose.msra.mxu0 0.0
        %7561 = vmatprep.subr.mxu0 0.0
        %7562 = vmatpush1.xpose.msra.mxu0 0.0
        %7563 = vmatprep.subr.mxu0 0.0
        %7564 = vmatpush1.xpose.msra.mxu0 0.0
        %7565 = vmatprep.subr.mxu0 0.0
        %7566 = vmatpush1.xpose.msra.mxu0 0.0
        %7567 = vmatprep.subr.mxu0 0.0
        %7568 = vmatpush1.xpose.msra.mxu0 0.0
        %7569 = vmatprep.subr.mxu0 0.0
        %7570 = vmatpush1.xpose.msra.mxu0 0.0
        %7571 = vmatprep.subr.mxu0 0.0
        %7572 = vmatpush1.xpose.msra.mxu0 0.0
        %7573 = vmatprep.subr.mxu0 0.0
        %7574 = vmatpush1.xpose.msra.mxu0 0.0
        %7575 = vmatprep.subr.mxu0 0.0
        %7576 = vmatpush1.xpose.msra.mxu0 0.0
        %7577 = vmatprep.subr.mxu0 0.0
        %7578 = vmatpush1.xpose.msra.mxu0 0.0
        %7579 = vmatprep.subr.mxu0 0.0
        %7580 = vmatpush1.xpose.msra.mxu0 0.0
        %7581 = vmatprep.subr.mxu0 0.0
        %7582 = vmatpush1.xpose.msra.mxu0 0.0
        %7583 = vmatprep.subr.mxu0 0.0
        %7584 = vmatpush1.xpose.msra.mxu0 0.0
        %7585 = vmatprep.subr.mxu0 0.0
        %7586 = vmatpush1.xpose.msra.mxu0 0.0
        %7587 = vmatprep.subr.mxu0 0.0
        %v7588 = vand.u32 %v7134, 4294901760
        %7589 = vmatpush1.xpose.msra.mxu0 %v7588
        %7590 = vmatprep.subr.mxu0 0.0
        %v7591 = vand.u32 %v7132, 4294901760
        %7592 = vmatpush1.xpose.msra.mxu0 %v7591
        %7593 = vmatprep.subr.mxu0 0.0
        %7594 = vmatpush2.xpose.msra.mxu0 0.0
        %7595 = vmatprep.subr.mxu0 0.0
        %7596 = vmatpush2.xpose.msra.mxu0 0.0
        %7597 = vmatprep.subr.mxu0 0.0
        %7598 = vmatpush2.xpose.msra.mxu0 0.0
        %7599 = vmatprep.subr.mxu0 0.0
        %7600 = vmatpush2.xpose.msra.mxu0 0.0
        %7601 = vmatprep.subr.mxu0 0.0
        %7602 = vmatpush2.xpose.msra.mxu0 0.0
        %7603 = vmatprep.subr.mxu0 0.0
        %7604 = vmatpush2.xpose.msra.mxu0 0.0
        %7605 = vmatprep.subr.mxu0 0.0
        %7606 = vmatpush2.xpose.msra.mxu0 0.0
        %7607 = vmatprep.subr.mxu0 0.0
        %7608 = vmatpush2.xpose.msra.mxu0 0.0
        %7609 = vmatprep.subr.mxu0 0.0
        %7610 = vmatpush2.xpose.msra.mxu0 0.0
        %7611 = vmatprep.subr.mxu0 0.0
        %7612 = vmatpush2.xpose.msra.mxu0 0.0
        %7613 = vmatprep.subr.mxu0 0.0
        %7614 = vmatpush2.xpose.msra.mxu0 0.0
        %7615 = vmatprep.subr.mxu0 0.0
        %7616 = vmatpush2.xpose.msra.mxu0 0.0
        %7617 = vmatprep.subr.mxu0 0.0
        %7618 = vmatpush2.xpose.msra.mxu0 0.0
        %7619 = vmatprep.subr.mxu0 0.0
        %7620 = vmatpush2.xpose.msra.mxu0 0.0
        %7621 = vmatprep.subr.mxu0 0.0
        %7622 = vmatpush2.xpose.msra.mxu0 0.0
        %7623 = vmatprep.subr.mxu0 0.0
        %7624 = vmatpush2.xpose.msra.mxu0 0.0
        %7625 = vmatprep.mubr.f32.mxu0 0.0
        %v7626 = vand.u32 %v7128, 4294901760
        %7627 = vmatmul.mubr.f32.gmra.mxu0 %v7626
        %v7628 = vpop.f32.mrf.mxu0
        %v7629 = vadd.f32 %v7550, %v7628
        %v7630 = vpop.f32.mrf.mxu0
        %7631 = vmatprep.mubr.f32.mxu0 0.0
        %v7632 = vand.u32 %v7130, 4294901760
        %7633 = vmatmul.mubr.f32.gmra.mxu0 %v7632
        %v7634 = vpop.f32.mrf.mxu0
        %v7635 = vadd.f32 %v7556, %v7634
        %v7636 = vpop.f32.mrf.mxu0
        %7637 = vdwg.mxu0
        %v7638 = vsel %vm1352, %v6075, -inf
        %7639 = vmax.xlane.f32.xlu0 %v7638
        %v7640 = vpop.xlane.xlu0 %7639
        %v7641 = vsel %vm1352, %v6081, -inf
        %7642 = vmax.xlane.f32.xlu0 %v7641
        %v7643 = vpop.xlane.xlu0 %7642
        %v7644 = vsel %vm1352, %v6593, -inf
        %7645 = vmax.xlane.f32.xlu0 %v7644
        %v7646 = vpop.xlane.xlu0 %7645
        %v7647 = vsel %vm1352, %v6599, -inf
        %7648 = vmax.xlane.f32.xlu0 %v7647
        %v7649 = vpop.xlane.xlu0 %7648
        %v7650 = vsel %vm1352, %v7111, -inf
        %7651 = vmax.xlane.f32.xlu0 %v7650
        %v7652 = vpop.xlane.xlu0 %7651
        %v7653 = vsel %vm1352, %v7117, -inf
        %7654 = vmax.xlane.f32.xlu0 %v7653
        %v7655 = vpop.xlane.xlu0 %7654
        %v7656 = vsel %vm1352, %v7629, -inf
        %7657 = vmax.xlane.f32.xlu0 %v7656
        %v7658 = vpop.xlane.xlu0 %7657
        %v7659 = vsel %vm1352, %v7635, -inf
        %7660 = vmax.xlane.f32.xlu0 %v7659
        %v7661 = vpop.xlane.xlu0 %7660
        %v7662 = vsub.f32 %v6075, %v7640
        %v7663 = vsub.f32 %v6081, %v7643
        %v7664 = vsub.f32 %v6593, %v7646
        %v7665 = vsub.f32 %v6599, %v7649
        %v7666 = vsub.f32 %v7111, %v7652
        %v7667 = vsub.f32 %v7117, %v7655
        %v7668 = vsub.f32 %v7629, %v7658
        %v7669 = vsub.f32 %v7635, %v7661
        %v7670 = vmul.f32 %v7662, 1.442695
        %v7671 = vpow.pop %v7670
        %v7672 = vmul.f32 %v7663, 1.442695
        %v7673 = vpow.pop %v7672
        %v7674 = vmul.f32 %v7664, 1.442695
        %v7675 = vpow.pop %v7674
        %v7676 = vmul.f32 %v7665, 1.442695
        %v7677 = vpow.pop %v7676
        %v7678 = vmul.f32 %v7666, 1.442695
        %v7679 = vpow.pop %v7678
        %v7680 = vmul.f32 %v7667, 1.442695
        %v7681 = vpow.pop %v7680
        %v7682 = vmul.f32 %v7668, 1.442695
        %v7683 = vpow.pop %v7682
        %v7684 = vmul.f32 %v7669, 1.442695
        %v7685 = vpow.pop %v7684
        %v7686 = vsel %vm1352, %v7671, 0.0
        %7687 = vadd.xlane.f32.xlu0 %v7686
        %v7688 = vpop.xlane.xlu0 %7687
        %v7689 = vsel %vm1352, %v7673, 0.0
        %7690 = vadd.xlane.f32.xlu0 %v7689
        %v7691 = vpop.xlane.xlu0 %7690
        %v7692 = vsel %vm1352, %v7675, 0.0
        %7693 = vadd.xlane.f32.xlu0 %v7692
        %v7694 = vpop.xlane.xlu0 %7693
        %v7695 = vsel %vm1352, %v7677, 0.0
        %7696 = vadd.xlane.f32.xlu0 %v7695
        %v7697 = vpop.xlane.xlu0 %7696
        %v7698 = vsel %vm1352, %v7679, 0.0
        %7699 = vadd.xlane.f32.xlu0 %v7698
        %v7700 = vpop.xlane.xlu0 %7699
        %v7701 = vsel %vm1352, %v7681, 0.0
        %7702 = vadd.xlane.f32.xlu0 %v7701
        %v7703 = vpop.xlane.xlu0 %7702
        %v7704 = vsel %vm1352, %v7683, 0.0
        %7705 = vadd.xlane.f32.xlu0 %v7704
        %v7706 = vpop.xlane.xlu0 %7705
        %v7707 = vsel %vm1352, %v7685, 0.0
        %7708 = vadd.xlane.f32.xlu0 %v7707
        %v7709 = vpop.xlane.xlu0 %7708
        %v7710 = vrcp.pop %v7688
        %v7711 = vmul.f32 %v7671, %v7710
        %v7712 = vrcp.pop %v7691
        %v7713 = vmul.f32 %v7673, %v7712
        %v7714 = vrcp.pop %v7694
        %v7715 = vmul.f32 %v7675, %v7714
        %v7716 = vrcp.pop %v7697
        %v7717 = vmul.f32 %v7677, %v7716
        %v7718 = vrcp.pop %v7700
        %v7719 = vmul.f32 %v7679, %v7718
        %v7720 = vrcp.pop %v7703
        %v7721 = vmul.f32 %v7681, %v7720
        %v7722 = vrcp.pop %v7706
        %v7723 = vmul.f32 %v7683, %v7722
        %v7724 = vrcp.pop %v7709
        %v7725 = vmul.f32 %v7685, %v7724
        %7726 = vrot.lane.b32.xlu0 %v1291, 48
        %v7727 = vpop.permute.xlu0 %7726
        %7728 = vrot.lane.b32.xlu0 %v1297, 48
        %v7729 = vpop.permute.xlu0 %7728
        %v7733 = vsel %vm1352, %v7711, 0
        %v7736 = vsel %vm1352, %v7713, 0
        %7738 = vmatprep.subr.mxu0 0.0
        %7739 = vmatpush1.msra.mxu0 0.0
        %7740 = vmatprep.subr.mxu0 0.0
        %7741 = vmatpush1.msra.mxu0 0.0
        %7742 = vmatprep.subr.mxu0 0.0
        %7743 = vmatpush1.msra.mxu0 0.0
        %7744 = vmatprep.subr.mxu0 0.0
        %7745 = vmatpush1.msra.mxu0 0.0
        %7746 = vmatprep.subr.mxu0 0.0
        %7747 = vmatpush1.msra.mxu0 0.0
        %7748 = vmatprep.subr.mxu0 0.0
        %7749 = vmatpush1.msra.mxu0 0.0
        %7750 = vmatprep.subr.mxu0 0.0
        %7751 = vmatpush1.msra.mxu0 0.0
        %7752 = vmatprep.subr.mxu0 0.0
        %7753 = vmatpush1.msra.mxu0 0.0
        %7754 = vmatprep.subr.mxu0 0.0
        %7755 = vmatpush1.msra.mxu0 0.0
        %7756 = vmatprep.subr.mxu0 0.0
        %7757 = vmatpush1.msra.mxu0 0.0
        %7758 = vmatprep.subr.mxu0 0.0
        %7759 = vmatpush1.msra.mxu0 0.0
        %7760 = vmatprep.subr.mxu0 0.0
        %7761 = vmatpush1.msra.mxu0 0.0
        %7762 = vmatprep.subr.mxu0 0.0
        %7763 = vmatpush1.msra.mxu0 0.0
        %7764 = vmatprep.subr.mxu0 0.0
        %7765 = vmatpush1.msra.mxu0 0.0
        %7766 = vmatprep.subr.mxu0 0.0
        %v7767 = vand.u32 %v7729, 4294901760
        %7768 = vmatpush1.msra.mxu0 %v7767
        %7769 = vmatprep.subr.mxu0 0.0
        %v7770 = vand.u32 %v7727, 4294901760
        %7771 = vmatpush1.msra.mxu0 %v7770
        %7772 = vmatprep.subr.mxu0 0.0
        %7773 = vmatpush2.msra.mxu0 0.0
        %7774 = vmatprep.subr.mxu0 0.0
        %7775 = vmatpush2.msra.mxu0 0.0
        %7776 = vmatprep.subr.mxu0 0.0
        %7777 = vmatpush2.msra.mxu0 0.0
        %7778 = vmatprep.subr.mxu0 0.0
        %7779 = vmatpush2.msra.mxu0 0.0
        %7780 = vmatprep.subr.mxu0 0.0
        %7781 = vmatpush2.msra.mxu0 0.0
        %7782 = vmatprep.subr.mxu0 0.0
        %7783 = vmatpush2.msra.mxu0 0.0
        %7784 = vmatprep.subr.mxu0 0.0
        %7785 = vmatpush2.msra.mxu0 0.0
        %7786 = vmatprep.subr.mxu0 0.0
        %7787 = vmatpush2.msra.mxu0 0.0
        %7788 = vmatprep.subr.mxu0 0.0
        %7789 = vmatpush2.msra.mxu0 0.0
        %7790 = vmatprep.subr.mxu0 0.0
        %7791 = vmatpush2.msra.mxu0 0.0
        %7792 = vmatprep.subr.mxu0 0.0
        %7793 = vmatpush2.msra.mxu0 0.0
        %7794 = vmatprep.subr.mxu0 0.0
        %7795 = vmatpush2.msra.mxu0 0.0
        %7796 = vmatprep.subr.mxu0 0.0
        %7797 = vmatpush2.msra.mxu0 0.0
        %7798 = vmatprep.subr.mxu0 0.0
        %7799 = vmatpush2.msra.mxu0 0.0
        %7800 = vmatprep.subr.mxu0 0.0
        %7801 = vmatpush2.msra.mxu0 0.0
        %7802 = vmatprep.subr.mxu0 0.0
        %7803 = vmatpush2.msra.mxu0 0.0
        %7804 = vmatprep.mubr.f32.mxu0 0.0
        %v7805 = vand.u32 %v7733, 4294901760
        %v7806 = vsub.f32 %v7733, %v7805
        %v7807 = vand.u32 %v7806, 4294901760
        %v7808 = vsub.f32 %v7806, %v7807
        %v7809 = vand.u32 %v7808, 4294901760
        %7810 = vmatmul.mubr.f32.gmra.mxu0 %v7809
        %v7811 = vpop.f32.mrf.mxu0
        %v7812 = vadd.f32 0.0, %v7811
        %v7813 = vpop.f32.mrf.mxu0
        %7814 = vmatprep.mubr.f32.mxu0 0.0
        %v7815 = vand.u32 %v7736, 4294901760
        %v7816 = vsub.f32 %v7736, %v7815
        %v7817 = vand.u32 %v7816, 4294901760
        %v7818 = vsub.f32 %v7816, %v7817
        %v7819 = vand.u32 %v7818, 4294901760
        %7820 = vmatmul.mubr.f32.gmra.mxu0 %v7819
        %v7821 = vpop.f32.mrf.mxu0
        %v7822 = vadd.f32 0.0, %v7821
        %v7823 = vpop.f32.mrf.mxu0
        %7824 = vdwg.mxu0
        %7825 = vmatprep.subr.mxu0 0.0
        %7826 = vmatpush1.msra.mxu0 0.0
        %7827 = vmatprep.subr.mxu0 0.0
        %7828 = vmatpush1.msra.mxu0 0.0
        %7829 = vmatprep.subr.mxu0 0.0
        %7830 = vmatpush1.msra.mxu0 0.0
        %7831 = vmatprep.subr.mxu0 0.0
        %7832 = vmatpush1.msra.mxu0 0.0
        %7833 = vmatprep.subr.mxu0 0.0
        %7834 = vmatpush1.msra.mxu0 0.0
        %7835 = vmatprep.subr.mxu0 0.0
        %7836 = vmatpush1.msra.mxu0 0.0
        %7837 = vmatprep.subr.mxu0 0.0
        %7838 = vmatpush1.msra.mxu0 0.0
        %7839 = vmatprep.subr.mxu0 0.0
        %7840 = vmatpush1.msra.mxu0 0.0
        %7841 = vmatprep.subr.mxu0 0.0
        %7842 = vmatpush1.msra.mxu0 0.0
        %7843 = vmatprep.subr.mxu0 0.0
        %7844 = vmatpush1.msra.mxu0 0.0
        %7845 = vmatprep.subr.mxu0 0.0
        %7846 = vmatpush1.msra.mxu0 0.0
        %7847 = vmatprep.subr.mxu0 0.0
        %7848 = vmatpush1.msra.mxu0 0.0
        %7849 = vmatprep.subr.mxu0 0.0
        %7850 = vmatpush1.msra.mxu0 0.0
        %7851 = vmatprep.subr.mxu0 0.0
        %7852 = vmatpush1.msra.mxu0 0.0
        %7853 = vmatprep.subr.mxu0 0.0
        %v7854 = vand.u32 %v7729, 4294901760
        %v7855 = vsub.f32 %v7729, %v7854
        %v7856 = vand.u32 %v7855, 4294901760
        %v7857 = vsub.f32 %v7855, %v7856
        %v7858 = vand.u32 %v7857, 4294901760
        %7859 = vmatpush1.msra.mxu0 %v7858
        %7860 = vmatprep.subr.mxu0 0.0
        %v7861 = vand.u32 %v7727, 4294901760
        %v7862 = vsub.f32 %v7727, %v7861
        %v7863 = vand.u32 %v7862, 4294901760
        %v7864 = vsub.f32 %v7862, %v7863
        %v7865 = vand.u32 %v7864, 4294901760
        %7866 = vmatpush1.msra.mxu0 %v7865
        %7867 = vmatprep.subr.mxu0 0.0
        %7868 = vmatpush2.msra.mxu0 0.0
        %7869 = vmatprep.subr.mxu0 0.0
        %7870 = vmatpush2.msra.mxu0 0.0
        %7871 = vmatprep.subr.mxu0 0.0
        %7872 = vmatpush2.msra.mxu0 0.0
        %7873 = vmatprep.subr.mxu0 0.0
        %7874 = vmatpush2.msra.mxu0 0.0
        %7875 = vmatprep.subr.mxu0 0.0
        %7876 = vmatpush2.msra.mxu0 0.0
        %7877 = vmatprep.subr.mxu0 0.0
        %7878 = vmatpush2.msra.mxu0 0.0
        %7879 = vmatprep.subr.mxu0 0.0
        %7880 = vmatpush2.msra.mxu0 0.0
        %7881 = vmatprep.subr.mxu0 0.0
        %7882 = vmatpush2.msra.mxu0 0.0
        %7883 = vmatprep.subr.mxu0 0.0
        %7884 = vmatpush2.msra.mxu0 0.0
        %7885 = vmatprep.subr.mxu0 0.0
        %7886 = vmatpush2.msra.mxu0 0.0
        %7887 = vmatprep.subr.mxu0 0.0
        %7888 = vmatpush2.msra.mxu0 0.0
        %7889 = vmatprep.subr.mxu0 0.0
        %7890 = vmatpush2.msra.mxu0 0.0
        %7891 = vmatprep.subr.mxu0 0.0
        %7892 = vmatpush2.msra.mxu0 0.0
        %7893 = vmatprep.subr.mxu0 0.0
        %7894 = vmatpush2.msra.mxu0 0.0
        %7895 = vmatprep.subr.mxu0 0.0
        %7896 = vmatpush2.msra.mxu0 0.0
        %7897 = vmatprep.subr.mxu0 0.0
        %7898 = vmatpush2.msra.mxu0 0.0
        %7899 = vmatprep.mubr.f32.mxu0 0.0
        %v7900 = vand.u32 %v7733, 4294901760
        %7901 = vmatmul.mubr.f32.gmra.mxu0 %v7900
        %v7902 = vpop.f32.mrf.mxu0
        %v7903 = vadd.f32 %v7812, %v7902
        %v7904 = vpop.f32.mrf.mxu0
        %7905 = vmatprep.mubr.f32.mxu0 0.0
        %v7906 = vand.u32 %v7736, 4294901760
        %7907 = vmatmul.mubr.f32.gmra.mxu0 %v7906
        %v7908 = vpop.f32.mrf.mxu0
        %v7909 = vadd.f32 %v7822, %v7908
        %v7910 = vpop.f32.mrf.mxu0
        %7911 = vdwg.mxu0
        %7912 = vmatprep.subr.mxu0 0.0
        %7913 = vmatpush1.msra.mxu0 0.0
        %7914 = vmatprep.subr.mxu0 0.0
        %7915 = vmatpush1.msra.mxu0 0.0
        %7916 = vmatprep.subr.mxu0 0.0
        %7917 = vmatpush1.msra.mxu0 0.0
        %7918 = vmatprep.subr.mxu0 0.0
        %7919 = vmatpush1.msra.mxu0 0.0
        %7920 = vmatprep.subr.mxu0 0.0
        %7921 = vmatpush1.msra.mxu0 0.0
        %7922 = vmatprep.subr.mxu0 0.0
        %7923 = vmatpush1.msra.mxu0 0.0
        %7924 = vmatprep.subr.mxu0 0.0
        %7925 = vmatpush1.msra.mxu0 0.0
        %7926 = vmatprep.subr.mxu0 0.0
        %7927 = vmatpush1.msra.mxu0 0.0
        %7928 = vmatprep.subr.mxu0 0.0
        %7929 = vmatpush1.msra.mxu0 0.0
        %7930 = vmatprep.subr.mxu0 0.0
        %7931 = vmatpush1.msra.mxu0 0.0
        %7932 = vmatprep.subr.mxu0 0.0
        %7933 = vmatpush1.msra.mxu0 0.0
        %7934 = vmatprep.subr.mxu0 0.0
        %7935 = vmatpush1.msra.mxu0 0.0
        %7936 = vmatprep.subr.mxu0 0.0
        %7937 = vmatpush1.msra.mxu0 0.0
        %7938 = vmatprep.subr.mxu0 0.0
        %7939 = vmatpush1.msra.mxu0 0.0
        %7940 = vmatprep.subr.mxu0 0.0
        %v7941 = vand.u32 %v7729, 4294901760
        %v7942 = vsub.f32 %v7729, %v7941
        %7943 = vmatpush1.msra.mxu0 %v7942
        %7944 = vmatprep.subr.mxu0 0.0
        %v7945 = vand.u32 %v7727, 4294901760
        %v7946 = vsub.f32 %v7727, %v7945
        %7947 = vmatpush1.msra.mxu0 %v7946
        %7948 = vmatprep.subr.mxu0 0.0
        %7949 = vmatpush2.msra.mxu0 0.0
        %7950 = vmatprep.subr.mxu0 0.0
        %7951 = vmatpush2.msra.mxu0 0.0
        %7952 = vmatprep.subr.mxu0 0.0
        %7953 = vmatpush2.msra.mxu0 0.0
        %7954 = vmatprep.subr.mxu0 0.0
        %7955 = vmatpush2.msra.mxu0 0.0
        %7956 = vmatprep.subr.mxu0 0.0
        %7957 = vmatpush2.msra.mxu0 0.0
        %7958 = vmatprep.subr.mxu0 0.0
        %7959 = vmatpush2.msra.mxu0 0.0
        %7960 = vmatprep.subr.mxu0 0.0
        %7961 = vmatpush2.msra.mxu0 0.0
        %7962 = vmatprep.subr.mxu0 0.0
        %7963 = vmatpush2.msra.mxu0 0.0
        %7964 = vmatprep.subr.mxu0 0.0
        %7965 = vmatpush2.msra.mxu0 0.0
        %7966 = vmatprep.subr.mxu0 0.0
        %7967 = vmatpush2.msra.mxu0 0.0
        %7968 = vmatprep.subr.mxu0 0.0
        %7969 = vmatpush2.msra.mxu0 0.0
        %7970 = vmatprep.subr.mxu0 0.0
        %7971 = vmatpush2.msra.mxu0 0.0
        %7972 = vmatprep.subr.mxu0 0.0
        %7973 = vmatpush2.msra.mxu0 0.0
        %7974 = vmatprep.subr.mxu0 0.0
        %7975 = vmatpush2.msra.mxu0 0.0
        %7976 = vmatprep.subr.mxu0 0.0
        %7977 = vmatpush2.msra.mxu0 0.0
        %7978 = vmatprep.subr.mxu0 0.0
        %7979 = vmatpush2.msra.mxu0 0.0
        %7980 = vmatprep.mubr.f32.mxu0 0.0
        %v7981 = vand.u32 %v7733, 4294901760
        %v7982 = vsub.f32 %v7733, %v7981
        %7983 = vmatmul.mubr.f32.gmra.mxu0 %v7982
        %v7984 = vpop.f32.mrf.mxu0
        %v7985 = vadd.f32 %v7903, %v7984
        %v7986 = vpop.f32.mrf.mxu0
        %7987 = vmatprep.mubr.f32.mxu0 0.0
        %v7988 = vand.u32 %v7736, 4294901760
        %v7989 = vsub.f32 %v7736, %v7988
        %7990 = vmatmul.mubr.f32.gmra.mxu0 %v7989
        %v7991 = vpop.f32.mrf.mxu0
        %v7992 = vadd.f32 %v7909, %v7991
        %v7993 = vpop.f32.mrf.mxu0
        %7994 = vdwg.mxu0
        %7995 = vmatprep.subr.mxu0 0.0
        %7996 = vmatpush1.msra.mxu0 0.0
        %7997 = vmatprep.subr.mxu0 0.0
        %7998 = vmatpush1.msra.mxu0 0.0
        %7999 = vmatprep.subr.mxu0 0.0
        %8000 = vmatpush1.msra.mxu0 0.0
        %8001 = vmatprep.subr.mxu0 0.0
        %8002 = vmatpush1.msra.mxu0 0.0
        %8003 = vmatprep.subr.mxu0 0.0
        %8004 = vmatpush1.msra.mxu0 0.0
        %8005 = vmatprep.subr.mxu0 0.0
        %8006 = vmatpush1.msra.mxu0 0.0
        %8007 = vmatprep.subr.mxu0 0.0
        %8008 = vmatpush1.msra.mxu0 0.0
        %8009 = vmatprep.subr.mxu0 0.0
        %8010 = vmatpush1.msra.mxu0 0.0
        %8011 = vmatprep.subr.mxu0 0.0
        %8012 = vmatpush1.msra.mxu0 0.0
        %8013 = vmatprep.subr.mxu0 0.0
        %8014 = vmatpush1.msra.mxu0 0.0
        %8015 = vmatprep.subr.mxu0 0.0
        %8016 = vmatpush1.msra.mxu0 0.0
        %8017 = vmatprep.subr.mxu0 0.0
        %8018 = vmatpush1.msra.mxu0 0.0
        %8019 = vmatprep.subr.mxu0 0.0
        %8020 = vmatpush1.msra.mxu0 0.0
        %8021 = vmatprep.subr.mxu0 0.0
        %8022 = vmatpush1.msra.mxu0 0.0
        %8023 = vmatprep.subr.mxu0 0.0
        %v8024 = vand.u32 %v7729, 4294901760
        %8025 = vmatpush1.msra.mxu0 %v8024
        %8026 = vmatprep.subr.mxu0 0.0
        %v8027 = vand.u32 %v7727, 4294901760
        %8028 = vmatpush1.msra.mxu0 %v8027
        %8029 = vmatprep.subr.mxu0 0.0
        %8030 = vmatpush2.msra.mxu0 0.0
        %8031 = vmatprep.subr.mxu0 0.0
        %8032 = vmatpush2.msra.mxu0 0.0
        %8033 = vmatprep.subr.mxu0 0.0
        %8034 = vmatpush2.msra.mxu0 0.0
        %8035 = vmatprep.subr.mxu0 0.0
        %8036 = vmatpush2.msra.mxu0 0.0
        %8037 = vmatprep.subr.mxu0 0.0
        %8038 = vmatpush2.msra.mxu0 0.0
        %8039 = vmatprep.subr.mxu0 0.0
        %8040 = vmatpush2.msra.mxu0 0.0
        %8041 = vmatprep.subr.mxu0 0.0
        %8042 = vmatpush2.msra.mxu0 0.0
        %8043 = vmatprep.subr.mxu0 0.0
        %8044 = vmatpush2.msra.mxu0 0.0
        %8045 = vmatprep.subr.mxu0 0.0
        %8046 = vmatpush2.msra.mxu0 0.0
        %8047 = vmatprep.subr.mxu0 0.0
        %8048 = vmatpush2.msra.mxu0 0.0
        %8049 = vmatprep.subr.mxu0 0.0
        %8050 = vmatpush2.msra.mxu0 0.0
        %8051 = vmatprep.subr.mxu0 0.0
        %8052 = vmatpush2.msra.mxu0 0.0
        %8053 = vmatprep.subr.mxu0 0.0
        %8054 = vmatpush2.msra.mxu0 0.0
        %8055 = vmatprep.subr.mxu0 0.0
        %8056 = vmatpush2.msra.mxu0 0.0
        %8057 = vmatprep.subr.mxu0 0.0
        %8058 = vmatpush2.msra.mxu0 0.0
        %8059 = vmatprep.subr.mxu0 0.0
        %8060 = vmatpush2.msra.mxu0 0.0
        %8061 = vmatprep.mubr.f32.mxu0 0.0
        %v8062 = vand.u32 %v7733, 4294901760
        %v8063 = vsub.f32 %v7733, %v8062
        %v8064 = vand.u32 %v8063, 4294901760
        %8065 = vmatmul.mubr.f32.gmra.mxu0 %v8064
        %v8066 = vpop.f32.mrf.mxu0
        %v8067 = vadd.f32 %v7985, %v8066
        %v8068 = vpop.f32.mrf.mxu0
        %8069 = vmatprep.mubr.f32.mxu0 0.0
        %v8070 = vand.u32 %v7736, 4294901760
        %v8071 = vsub.f32 %v7736, %v8070
        %v8072 = vand.u32 %v8071, 4294901760
        %8073 = vmatmul.mubr.f32.gmra.mxu0 %v8072
        %v8074 = vpop.f32.mrf.mxu0
        %v8075 = vadd.f32 %v7992, %v8074
        %v8076 = vpop.f32.mrf.mxu0
        %8077 = vdwg.mxu0
        %8078 = vmatprep.subr.mxu0 0.0
        %8079 = vmatpush1.msra.mxu0 0.0
        %8080 = vmatprep.subr.mxu0 0.0
        %8081 = vmatpush1.msra.mxu0 0.0
        %8082 = vmatprep.subr.mxu0 0.0
        %8083 = vmatpush1.msra.mxu0 0.0
        %8084 = vmatprep.subr.mxu0 0.0
        %8085 = vmatpush1.msra.mxu0 0.0
        %8086 = vmatprep.subr.mxu0 0.0
        %8087 = vmatpush1.msra.mxu0 0.0
        %8088 = vmatprep.subr.mxu0 0.0
        %8089 = vmatpush1.msra.mxu0 0.0
        %8090 = vmatprep.subr.mxu0 0.0
        %8091 = vmatpush1.msra.mxu0 0.0
        %8092 = vmatprep.subr.mxu0 0.0
        %8093 = vmatpush1.msra.mxu0 0.0
        %8094 = vmatprep.subr.mxu0 0.0
        %8095 = vmatpush1.msra.mxu0 0.0
        %8096 = vmatprep.subr.mxu0 0.0
        %8097 = vmatpush1.msra.mxu0 0.0
        %8098 = vmatprep.subr.mxu0 0.0
        %8099 = vmatpush1.msra.mxu0 0.0
        %8100 = vmatprep.subr.mxu0 0.0
        %8101 = vmatpush1.msra.mxu0 0.0
        %8102 = vmatprep.subr.mxu0 0.0
        %8103 = vmatpush1.msra.mxu0 0.0
        %8104 = vmatprep.subr.mxu0 0.0
        %8105 = vmatpush1.msra.mxu0 0.0
        %8106 = vmatprep.subr.mxu0 0.0
        %v8107 = vand.u32 %v7729, 4294901760
        %v8108 = vsub.f32 %v7729, %v8107
        %v8109 = vand.u32 %v8108, 4294901760
        %8110 = vmatpush1.msra.mxu0 %v8109
        %8111 = vmatprep.subr.mxu0 0.0
        %v8112 = vand.u32 %v7727, 4294901760
        %v8113 = vsub.f32 %v7727, %v8112
        %v8114 = vand.u32 %v8113, 4294901760
        %8115 = vmatpush1.msra.mxu0 %v8114
        %8116 = vmatprep.subr.mxu0 0.0
        %8117 = vmatpush2.msra.mxu0 0.0
        %8118 = vmatprep.subr.mxu0 0.0
        %8119 = vmatpush2.msra.mxu0 0.0
        %8120 = vmatprep.subr.mxu0 0.0
        %8121 = vmatpush2.msra.mxu0 0.0
        %8122 = vmatprep.subr.mxu0 0.0
        %8123 = vmatpush2.msra.mxu0 0.0
        %8124 = vmatprep.subr.mxu0 0.0
        %8125 = vmatpush2.msra.mxu0 0.0
        %8126 = vmatprep.subr.mxu0 0.0
        %8127 = vmatpush2.msra.mxu0 0.0
        %8128 = vmatprep.subr.mxu0 0.0
        %8129 = vmatpush2.msra.mxu0 0.0
        %8130 = vmatprep.subr.mxu0 0.0
        %8131 = vmatpush2.msra.mxu0 0.0
        %8132 = vmatprep.subr.mxu0 0.0
        %8133 = vmatpush2.msra.mxu0 0.0
        %8134 = vmatprep.subr.mxu0 0.0
        %8135 = vmatpush2.msra.mxu0 0.0
        %8136 = vmatprep.subr.mxu0 0.0
        %8137 = vmatpush2.msra.mxu0 0.0
        %8138 = vmatprep.subr.mxu0 0.0
        %8139 = vmatpush2.msra.mxu0 0.0
        %8140 = vmatprep.subr.mxu0 0.0
        %8141 = vmatpush2.msra.mxu0 0.0
        %8142 = vmatprep.subr.mxu0 0.0
        %8143 = vmatpush2.msra.mxu0 0.0
        %8144 = vmatprep.subr.mxu0 0.0
        %8145 = vmatpush2.msra.mxu0 0.0
        %8146 = vmatprep.subr.mxu0 0.0
        %8147 = vmatpush2.msra.mxu0 0.0
        %8148 = vmatprep.mubr.f32.mxu0 0.0
        %v8149 = vand.u32 %v7733, 4294901760
        %8150 = vmatmul.mubr.f32.gmra.mxu0 %v8149
        %v8151 = vpop.f32.mrf.mxu0
        %v8152 = vadd.f32 %v8067, %v8151
        %v8153 = vpop.f32.mrf.mxu0
        %8154 = vmatprep.mubr.f32.mxu0 0.0
        %v8155 = vand.u32 %v7736, 4294901760
        %8156 = vmatmul.mubr.f32.gmra.mxu0 %v8155
        %v8157 = vpop.f32.mrf.mxu0
        %v8158 = vadd.f32 %v8075, %v8157
        %v8159 = vpop.f32.mrf.mxu0
        %8160 = vdwg.mxu0
        %8161 = vmatprep.subr.mxu0 0.0
        %8162 = vmatpush1.msra.mxu0 0.0
        %8163 = vmatprep.subr.mxu0 0.0
        %8164 = vmatpush1.msra.mxu0 0.0
        %8165 = vmatprep.subr.mxu0 0.0
        %8166 = vmatpush1.msra.mxu0 0.0
        %8167 = vmatprep.subr.mxu0 0.0
        %8168 = vmatpush1.msra.mxu0 0.0
        %8169 = vmatprep.subr.mxu0 0.0
        %8170 = vmatpush1.msra.mxu0 0.0
        %8171 = vmatprep.subr.mxu0 0.0
        %8172 = vmatpush1.msra.mxu0 0.0
        %8173 = vmatprep.subr.mxu0 0.0
        %8174 = vmatpush1.msra.mxu0 0.0
        %8175 = vmatprep.subr.mxu0 0.0
        %8176 = vmatpush1.msra.mxu0 0.0
        %8177 = vmatprep.subr.mxu0 0.0
        %8178 = vmatpush1.msra.mxu0 0.0
        %8179 = vmatprep.subr.mxu0 0.0
        %8180 = vmatpush1.msra.mxu0 0.0
        %8181 = vmatprep.subr.mxu0 0.0
        %8182 = vmatpush1.msra.mxu0 0.0
        %8183 = vmatprep.subr.mxu0 0.0
        %8184 = vmatpush1.msra.mxu0 0.0
        %8185 = vmatprep.subr.mxu0 0.0
        %8186 = vmatpush1.msra.mxu0 0.0
        %8187 = vmatprep.subr.mxu0 0.0
        %8188 = vmatpush1.msra.mxu0 0.0
        %8189 = vmatprep.subr.mxu0 0.0
        %v8190 = vand.u32 %v7729, 4294901760
        %8191 = vmatpush1.msra.mxu0 %v8190
        %8192 = vmatprep.subr.mxu0 0.0
        %v8193 = vand.u32 %v7727, 4294901760
        %8194 = vmatpush1.msra.mxu0 %v8193
        %8195 = vmatprep.subr.mxu0 0.0
        %8196 = vmatpush2.msra.mxu0 0.0
        %8197 = vmatprep.subr.mxu0 0.0
        %8198 = vmatpush2.msra.mxu0 0.0
        %8199 = vmatprep.subr.mxu0 0.0
        %8200 = vmatpush2.msra.mxu0 0.0
        %8201 = vmatprep.subr.mxu0 0.0
        %8202 = vmatpush2.msra.mxu0 0.0
        %8203 = vmatprep.subr.mxu0 0.0
        %8204 = vmatpush2.msra.mxu0 0.0
        %8205 = vmatprep.subr.mxu0 0.0
        %8206 = vmatpush2.msra.mxu0 0.0
        %8207 = vmatprep.subr.mxu0 0.0
        %8208 = vmatpush2.msra.mxu0 0.0
        %8209 = vmatprep.subr.mxu0 0.0
        %8210 = vmatpush2.msra.mxu0 0.0
        %8211 = vmatprep.subr.mxu0 0.0
        %8212 = vmatpush2.msra.mxu0 0.0
        %8213 = vmatprep.subr.mxu0 0.0
        %8214 = vmatpush2.msra.mxu0 0.0
        %8215 = vmatprep.subr.mxu0 0.0
        %8216 = vmatpush2.msra.mxu0 0.0
        %8217 = vmatprep.subr.mxu0 0.0
        %8218 = vmatpush2.msra.mxu0 0.0
        %8219 = vmatprep.subr.mxu0 0.0
        %8220 = vmatpush2.msra.mxu0 0.0
        %8221 = vmatprep.subr.mxu0 0.0
        %8222 = vmatpush2.msra.mxu0 0.0
        %8223 = vmatprep.subr.mxu0 0.0
        %8224 = vmatpush2.msra.mxu0 0.0
        %8225 = vmatprep.subr.mxu0 0.0
        %8226 = vmatpush2.msra.mxu0 0.0
        %8227 = vmatprep.mubr.f32.mxu0 0.0
        %v8228 = vand.u32 %v7733, 4294901760
        %8229 = vmatmul.mubr.f32.gmra.mxu0 %v8228
        %v8230 = vpop.f32.mrf.mxu0
        %v8231 = vadd.f32 %v8152, %v8230
        %v8232 = vpop.f32.mrf.mxu0
        %8233 = vmatprep.mubr.f32.mxu0 0.0
        %v8234 = vand.u32 %v7736, 4294901760
        %8235 = vmatmul.mubr.f32.gmra.mxu0 %v8234
        %v8236 = vpop.f32.mrf.mxu0
        %v8237 = vadd.f32 %v8158, %v8236
        %v8238 = vpop.f32.mrf.mxu0
        %8239 = vdwg.mxu0
        %8240 = vrot.lane.b32.xlu0 %v1303, 48
        %v8241 = vpop.permute.xlu0 %8240
        %8242 = vrot.lane.b32.xlu0 %v1309, 48
        %v8243 = vpop.permute.xlu0 %8242
        %v8247 = vsel %vm1352, %v7715, 0
        %v8250 = vsel %vm1352, %v7717, 0
        %8252 = vmatprep.subr.mxu0 0.0
        %8253 = vmatpush1.msra.mxu0 0.0
        %8254 = vmatprep.subr.mxu0 0.0
        %8255 = vmatpush1.msra.mxu0 0.0
        %8256 = vmatprep.subr.mxu0 0.0
        %8257 = vmatpush1.msra.mxu0 0.0
        %8258 = vmatprep.subr.mxu0 0.0
        %8259 = vmatpush1.msra.mxu0 0.0
        %8260 = vmatprep.subr.mxu0 0.0
        %8261 = vmatpush1.msra.mxu0 0.0
        %8262 = vmatprep.subr.mxu0 0.0
        %8263 = vmatpush1.msra.mxu0 0.0
        %8264 = vmatprep.subr.mxu0 0.0
        %8265 = vmatpush1.msra.mxu0 0.0
        %8266 = vmatprep.subr.mxu0 0.0
        %8267 = vmatpush1.msra.mxu0 0.0
        %8268 = vmatprep.subr.mxu0 0.0
        %8269 = vmatpush1.msra.mxu0 0.0
        %8270 = vmatprep.subr.mxu0 0.0
        %8271 = vmatpush1.msra.mxu0 0.0
        %8272 = vmatprep.subr.mxu0 0.0
        %8273 = vmatpush1.msra.mxu0 0.0
        %8274 = vmatprep.subr.mxu0 0.0
        %8275 = vmatpush1.msra.mxu0 0.0
        %8276 = vmatprep.subr.mxu0 0.0
        %8277 = vmatpush1.msra.mxu0 0.0
        %8278 = vmatprep.subr.mxu0 0.0
        %8279 = vmatpush1.msra.mxu0 0.0
        %8280 = vmatprep.subr.mxu0 0.0
        %v8281 = vand.u32 %v8243, 4294901760
        %8282 = vmatpush1.msra.mxu0 %v8281
        %8283 = vmatprep.subr.mxu0 0.0
        %v8284 = vand.u32 %v8241, 4294901760
        %8285 = vmatpush1.msra.mxu0 %v8284
        %8286 = vmatprep.subr.mxu0 0.0
        %8287 = vmatpush2.msra.mxu0 0.0
        %8288 = vmatprep.subr.mxu0 0.0
        %8289 = vmatpush2.msra.mxu0 0.0
        %8290 = vmatprep.subr.mxu0 0.0
        %8291 = vmatpush2.msra.mxu0 0.0
        %8292 = vmatprep.subr.mxu0 0.0
        %8293 = vmatpush2.msra.mxu0 0.0
        %8294 = vmatprep.subr.mxu0 0.0
        %8295 = vmatpush2.msra.mxu0 0.0
        %8296 = vmatprep.subr.mxu0 0.0
        %8297 = vmatpush2.msra.mxu0 0.0
        %8298 = vmatprep.subr.mxu0 0.0
        %8299 = vmatpush2.msra.mxu0 0.0
        %8300 = vmatprep.subr.mxu0 0.0
        %8301 = vmatpush2.msra.mxu0 0.0
        %8302 = vmatprep.subr.mxu0 0.0
        %8303 = vmatpush2.msra.mxu0 0.0
        %8304 = vmatprep.subr.mxu0 0.0
        %8305 = vmatpush2.msra.mxu0 0.0
        %8306 = vmatprep.subr.mxu0 0.0
        %8307 = vmatpush2.msra.mxu0 0.0
        %8308 = vmatprep.subr.mxu0 0.0
        %8309 = vmatpush2.msra.mxu0 0.0
        %8310 = vmatprep.subr.mxu0 0.0
        %8311 = vmatpush2.msra.mxu0 0.0
        %8312 = vmatprep.subr.mxu0 0.0
        %8313 = vmatpush2.msra.mxu0 0.0
        %8314 = vmatprep.subr.mxu0 0.0
        %8315 = vmatpush2.msra.mxu0 0.0
        %8316 = vmatprep.subr.mxu0 0.0
        %8317 = vmatpush2.msra.mxu0 0.0
        %8318 = vmatprep.mubr.f32.mxu0 0.0
        %v8319 = vand.u32 %v8247, 4294901760
        %v8320 = vsub.f32 %v8247, %v8319
        %v8321 = vand.u32 %v8320, 4294901760
        %v8322 = vsub.f32 %v8320, %v8321
        %v8323 = vand.u32 %v8322, 4294901760
        %8324 = vmatmul.mubr.f32.gmra.mxu0 %v8323
        %v8325 = vpop.f32.mrf.mxu0
        %v8326 = vadd.f32 0.0, %v8325
        %v8327 = vpop.f32.mrf.mxu0
        %8328 = vmatprep.mubr.f32.mxu0 0.0
        %v8329 = vand.u32 %v8250, 4294901760
        %v8330 = vsub.f32 %v8250, %v8329
        %v8331 = vand.u32 %v8330, 4294901760
        %v8332 = vsub.f32 %v8330, %v8331
        %v8333 = vand.u32 %v8332, 4294901760
        %8334 = vmatmul.mubr.f32.gmra.mxu0 %v8333
        %v8335 = vpop.f32.mrf.mxu0
        %v8336 = vadd.f32 0.0, %v8335
        %v8337 = vpop.f32.mrf.mxu0
        %8338 = vdwg.mxu0
        %8339 = vmatprep.subr.mxu0 0.0
        %8340 = vmatpush1.msra.mxu0 0.0
        %8341 = vmatprep.subr.mxu0 0.0
        %8342 = vmatpush1.msra.mxu0 0.0
        %8343 = vmatprep.subr.mxu0 0.0
        %8344 = vmatpush1.msra.mxu0 0.0
        %8345 = vmatprep.subr.mxu0 0.0
        %8346 = vmatpush1.msra.mxu0 0.0
        %8347 = vmatprep.subr.mxu0 0.0
        %8348 = vmatpush1.msra.mxu0 0.0
        %8349 = vmatprep.subr.mxu0 0.0
        %8350 = vmatpush1.msra.mxu0 0.0
        %8351 = vmatprep.subr.mxu0 0.0
        %8352 = vmatpush1.msra.mxu0 0.0
        %8353 = vmatprep.subr.mxu0 0.0
        %8354 = vmatpush1.msra.mxu0 0.0
        %8355 = vmatprep.subr.mxu0 0.0
        %8356 = vmatpush1.msra.mxu0 0.0
        %8357 = vmatprep.subr.mxu0 0.0
        %8358 = vmatpush1.msra.mxu0 0.0
        %8359 = vmatprep.subr.mxu0 0.0
        %8360 = vmatpush1.msra.mxu0 0.0
        %8361 = vmatprep.subr.mxu0 0.0
        %8362 = vmatpush1.msra.mxu0 0.0
        %8363 = vmatprep.subr.mxu0 0.0
        %8364 = vmatpush1.msra.mxu0 0.0
        %8365 = vmatprep.subr.mxu0 0.0
        %8366 = vmatpush1.msra.mxu0 0.0
        %8367 = vmatprep.subr.mxu0 0.0
        %v8368 = vand.u32 %v8243, 4294901760
        %v8369 = vsub.f32 %v8243, %v8368
        %v8370 = vand.u32 %v8369, 4294901760
        %v8371 = vsub.f32 %v8369, %v8370
        %v8372 = vand.u32 %v8371, 4294901760
        %8373 = vmatpush1.msra.mxu0 %v8372
        %8374 = vmatprep.subr.mxu0 0.0
        %v8375 = vand.u32 %v8241, 4294901760
        %v8376 = vsub.f32 %v8241, %v8375
        %v8377 = vand.u32 %v8376, 4294901760
        %v8378 = vsub.f32 %v8376, %v8377
        %v8379 = vand.u32 %v8378, 4294901760
        %8380 = vmatpush1.msra.mxu0 %v8379
        %8381 = vmatprep.subr.mxu0 0.0
        %8382 = vmatpush2.msra.mxu0 0.0
        %8383 = vmatprep.subr.mxu0 0.0
        %8384 = vmatpush2.msra.mxu0 0.0
        %8385 = vmatprep.subr.mxu0 0.0
        %8386 = vmatpush2.msra.mxu0 0.0
        %8387 = vmatprep.subr.mxu0 0.0
        %8388 = vmatpush2.msra.mxu0 0.0
        %8389 = vmatprep.subr.mxu0 0.0
        %8390 = vmatpush2.msra.mxu0 0.0
        %8391 = vmatprep.subr.mxu0 0.0
        %8392 = vmatpush2.msra.mxu0 0.0
        %8393 = vmatprep.subr.mxu0 0.0
        %8394 = vmatpush2.msra.mxu0 0.0
        %8395 = vmatprep.subr.mxu0 0.0
        %8396 = vmatpush2.msra.mxu0 0.0
        %8397 = vmatprep.subr.mxu0 0.0
        %8398 = vmatpush2.msra.mxu0 0.0
        %8399 = vmatprep.subr.mxu0 0.0
        %8400 = vmatpush2.msra.mxu0 0.0
        %8401 = vmatprep.subr.mxu0 0.0
        %8402 = vmatpush2.msra.mxu0 0.0
        %8403 = vmatprep.subr.mxu0 0.0
        %8404 = vmatpush2.msra.mxu0 0.0
        %8405 = vmatprep.subr.mxu0 0.0
        %8406 = vmatpush2.msra.mxu0 0.0
        %8407 = vmatprep.subr.mxu0 0.0
        %8408 = vmatpush2.msra.mxu0 0.0
        %8409 = vmatprep.subr.mxu0 0.0
        %8410 = vmatpush2.msra.mxu0 0.0
        %8411 = vmatprep.subr.mxu0 0.0
        %8412 = vmatpush2.msra.mxu0 0.0
        %8413 = vmatprep.mubr.f32.mxu0 0.0
        %v8414 = vand.u32 %v8247, 4294901760
        %8415 = vmatmul.mubr.f32.gmra.mxu0 %v8414
        %v8416 = vpop.f32.mrf.mxu0
        %v8417 = vadd.f32 %v8326, %v8416
        %v8418 = vpop.f32.mrf.mxu0
        %8419 = vmatprep.mubr.f32.mxu0 0.0
        %v8420 = vand.u32 %v8250, 4294901760
        %8421 = vmatmul.mubr.f32.gmra.mxu0 %v8420
        %v8422 = vpop.f32.mrf.mxu0
        %v8423 = vadd.f32 %v8336, %v8422
        %v8424 = vpop.f32.mrf.mxu0
        %8425 = vdwg.mxu0
        %8426 = vmatprep.subr.mxu0 0.0
        %8427 = vmatpush1.msra.mxu0 0.0
        %8428 = vmatprep.subr.mxu0 0.0
        %8429 = vmatpush1.msra.mxu0 0.0
        %8430 = vmatprep.subr.mxu0 0.0
        %8431 = vmatpush1.msra.mxu0 0.0
        %8432 = vmatprep.subr.mxu0 0.0
        %8433 = vmatpush1.msra.mxu0 0.0
        %8434 = vmatprep.subr.mxu0 0.0
        %8435 = vmatpush1.msra.mxu0 0.0
        %8436 = vmatprep.subr.mxu0 0.0
        %8437 = vmatpush1.msra.mxu0 0.0
        %8438 = vmatprep.subr.mxu0 0.0
        %8439 = vmatpush1.msra.mxu0 0.0
        %8440 = vmatprep.subr.mxu0 0.0
        %8441 = vmatpush1.msra.mxu0 0.0
        %8442 = vmatprep.subr.mxu0 0.0
        %8443 = vmatpush1.msra.mxu0 0.0
        %8444 = vmatprep.subr.mxu0 0.0
        %8445 = vmatpush1.msra.mxu0 0.0
        %8446 = vmatprep.subr.mxu0 0.0
        %8447 = vmatpush1.msra.mxu0 0.0
        %8448 = vmatprep.subr.mxu0 0.0
        %8449 = vmatpush1.msra.mxu0 0.0
        %8450 = vmatprep.subr.mxu0 0.0
        %8451 = vmatpush1.msra.mxu0 0.0
        %8452 = vmatprep.subr.mxu0 0.0
        %8453 = vmatpush1.msra.mxu0 0.0
        %8454 = vmatprep.subr.mxu0 0.0
        %v8455 = vand.u32 %v8243, 4294901760
        %v8456 = vsub.f32 %v8243, %v8455
        %8457 = vmatpush1.msra.mxu0 %v8456
        %8458 = vmatprep.subr.mxu0 0.0
        %v8459 = vand.u32 %v8241, 4294901760
        %v8460 = vsub.f32 %v8241, %v8459
        %8461 = vmatpush1.msra.mxu0 %v8460
        %8462 = vmatprep.subr.mxu0 0.0
        %8463 = vmatpush2.msra.mxu0 0.0
        %8464 = vmatprep.subr.mxu0 0.0
        %8465 = vmatpush2.msra.mxu0 0.0
        %8466 = vmatprep.subr.mxu0 0.0
        %8467 = vmatpush2.msra.mxu0 0.0
        %8468 = vmatprep.subr.mxu0 0.0
        %8469 = vmatpush2.msra.mxu0 0.0
        %8470 = vmatprep.subr.mxu0 0.0
        %8471 = vmatpush2.msra.mxu0 0.0
        %8472 = vmatprep.subr.mxu0 0.0
        %8473 = vmatpush2.msra.mxu0 0.0
        %8474 = vmatprep.subr.mxu0 0.0
        %8475 = vmatpush2.msra.mxu0 0.0
        %8476 = vmatprep.subr.mxu0 0.0
        %8477 = vmatpush2.msra.mxu0 0.0
        %8478 = vmatprep.subr.mxu0 0.0
        %8479 = vmatpush2.msra.mxu0 0.0
        %8480 = vmatprep.subr.mxu0 0.0
        %8481 = vmatpush2.msra.mxu0 0.0
        %8482 = vmatprep.subr.mxu0 0.0
        %8483 = vmatpush2.msra.mxu0 0.0
        %8484 = vmatprep.subr.mxu0 0.0
        %8485 = vmatpush2.msra.mxu0 0.0
        %8486 = vmatprep.subr.mxu0 0.0
        %8487 = vmatpush2.msra.mxu0 0.0
        %8488 = vmatprep.subr.mxu0 0.0
        %8489 = vmatpush2.msra.mxu0 0.0
        %8490 = vmatprep.subr.mxu0 0.0
        %8491 = vmatpush2.msra.mxu0 0.0
        %8492 = vmatprep.subr.mxu0 0.0
        %8493 = vmatpush2.msra.mxu0 0.0
        %8494 = vmatprep.mubr.f32.mxu0 0.0
        %v8495 = vand.u32 %v8247, 4294901760
        %v8496 = vsub.f32 %v8247, %v8495
        %8497 = vmatmul.mubr.f32.gmra.mxu0 %v8496
        %v8498 = vpop.f32.mrf.mxu0
        %v8499 = vadd.f32 %v8417, %v8498
        %v8500 = vpop.f32.mrf.mxu0
        %8501 = vmatprep.mubr.f32.mxu0 0.0
        %v8502 = vand.u32 %v8250, 4294901760
        %v8503 = vsub.f32 %v8250, %v8502
        %8504 = vmatmul.mubr.f32.gmra.mxu0 %v8503
        %v8505 = vpop.f32.mrf.mxu0
        %v8506 = vadd.f32 %v8423, %v8505
        %v8507 = vpop.f32.mrf.mxu0
        %8508 = vdwg.mxu0
        %8509 = vmatprep.subr.mxu0 0.0
        %8510 = vmatpush1.msra.mxu0 0.0
        %8511 = vmatprep.subr.mxu0 0.0
        %8512 = vmatpush1.msra.mxu0 0.0
        %8513 = vmatprep.subr.mxu0 0.0
        %8514 = vmatpush1.msra.mxu0 0.0
        %8515 = vmatprep.subr.mxu0 0.0
        %8516 = vmatpush1.msra.mxu0 0.0
        %8517 = vmatprep.subr.mxu0 0.0
        %8518 = vmatpush1.msra.mxu0 0.0
        %8519 = vmatprep.subr.mxu0 0.0
        %8520 = vmatpush1.msra.mxu0 0.0
        %8521 = vmatprep.subr.mxu0 0.0
        %8522 = vmatpush1.msra.mxu0 0.0
        %8523 = vmatprep.subr.mxu0 0.0
        %8524 = vmatpush1.msra.mxu0 0.0
        %8525 = vmatprep.subr.mxu0 0.0
        %8526 = vmatpush1.msra.mxu0 0.0
        %8527 = vmatprep.subr.mxu0 0.0
        %8528 = vmatpush1.msra.mxu0 0.0
        %8529 = vmatprep.subr.mxu0 0.0
        %8530 = vmatpush1.msra.mxu0 0.0
        %8531 = vmatprep.subr.mxu0 0.0
        %8532 = vmatpush1.msra.mxu0 0.0
        %8533 = vmatprep.subr.mxu0 0.0
        %8534 = vmatpush1.msra.mxu0 0.0
        %8535 = vmatprep.subr.mxu0 0.0
        %8536 = vmatpush1.msra.mxu0 0.0
        %8537 = vmatprep.subr.mxu0 0.0
        %v8538 = vand.u32 %v8243, 4294901760
        %8539 = vmatpush1.msra.mxu0 %v8538
        %8540 = vmatprep.subr.mxu0 0.0
        %v8541 = vand.u32 %v8241, 4294901760
        %8542 = vmatpush1.msra.mxu0 %v8541
        %8543 = vmatprep.subr.mxu0 0.0
        %8544 = vmatpush2.msra.mxu0 0.0
        %8545 = vmatprep.subr.mxu0 0.0
        %8546 = vmatpush2.msra.mxu0 0.0
        %8547 = vmatprep.subr.mxu0 0.0
        %8548 = vmatpush2.msra.mxu0 0.0
        %8549 = vmatprep.subr.mxu0 0.0
        %8550 = vmatpush2.msra.mxu0 0.0
        %8551 = vmatprep.subr.mxu0 0.0
        %8552 = vmatpush2.msra.mxu0 0.0
        %8553 = vmatprep.subr.mxu0 0.0
        %8554 = vmatpush2.msra.mxu0 0.0
        %8555 = vmatprep.subr.mxu0 0.0
        %8556 = vmatpush2.msra.mxu0 0.0
        %8557 = vmatprep.subr.mxu0 0.0
        %8558 = vmatpush2.msra.mxu0 0.0
        %8559 = vmatprep.subr.mxu0 0.0
        %8560 = vmatpush2.msra.mxu0 0.0
        %8561 = vmatprep.subr.mxu0 0.0
        %8562 = vmatpush2.msra.mxu0 0.0
        %8563 = vmatprep.subr.mxu0 0.0
        %8564 = vmatpush2.msra.mxu0 0.0
        %8565 = vmatprep.subr.mxu0 0.0
        %8566 = vmatpush2.msra.mxu0 0.0
        %8567 = vmatprep.subr.mxu0 0.0
        %8568 = vmatpush2.msra.mxu0 0.0
        %8569 = vmatprep.subr.mxu0 0.0
        %8570 = vmatpush2.msra.mxu0 0.0
        %8571 = vmatprep.subr.mxu0 0.0
        %8572 = vmatpush2.msra.mxu0 0.0
        %8573 = vmatprep.subr.mxu0 0.0
        %8574 = vmatpush2.msra.mxu0 0.0
        %8575 = vmatprep.mubr.f32.mxu0 0.0
        %v8576 = vand.u32 %v8247, 4294901760
        %v8577 = vsub.f32 %v8247, %v8576
        %v8578 = vand.u32 %v8577, 4294901760
        %8579 = vmatmul.mubr.f32.gmra.mxu0 %v8578
        %v8580 = vpop.f32.mrf.mxu0
        %v8581 = vadd.f32 %v8499, %v8580
        %v8582 = vpop.f32.mrf.mxu0
        %8583 = vmatprep.mubr.f32.mxu0 0.0
        %v8584 = vand.u32 %v8250, 4294901760
        %v8585 = vsub.f32 %v8250, %v8584
        %v8586 = vand.u32 %v8585, 4294901760
        %8587 = vmatmul.mubr.f32.gmra.mxu0 %v8586
        %v8588 = vpop.f32.mrf.mxu0
        %v8589 = vadd.f32 %v8506, %v8588
        %v8590 = vpop.f32.mrf.mxu0
        %8591 = vdwg.mxu0
        %8592 = vmatprep.subr.mxu0 0.0
        %8593 = vmatpush1.msra.mxu0 0.0
        %8594 = vmatprep.subr.mxu0 0.0
        %8595 = vmatpush1.msra.mxu0 0.0
        %8596 = vmatprep.subr.mxu0 0.0
        %8597 = vmatpush1.msra.mxu0 0.0
        %8598 = vmatprep.subr.mxu0 0.0
        %8599 = vmatpush1.msra.mxu0 0.0
        %8600 = vmatprep.subr.mxu0 0.0
        %8601 = vmatpush1.msra.mxu0 0.0
        %8602 = vmatprep.subr.mxu0 0.0
        %8603 = vmatpush1.msra.mxu0 0.0
        %8604 = vmatprep.subr.mxu0 0.0
        %8605 = vmatpush1.msra.mxu0 0.0
        %8606 = vmatprep.subr.mxu0 0.0
        %8607 = vmatpush1.msra.mxu0 0.0
        %8608 = vmatprep.subr.mxu0 0.0
        %8609 = vmatpush1.msra.mxu0 0.0
        %8610 = vmatprep.subr.mxu0 0.0
        %8611 = vmatpush1.msra.mxu0 0.0
        %8612 = vmatprep.subr.mxu0 0.0
        %8613 = vmatpush1.msra.mxu0 0.0
        %8614 = vmatprep.subr.mxu0 0.0
        %8615 = vmatpush1.msra.mxu0 0.0
        %8616 = vmatprep.subr.mxu0 0.0
        %8617 = vmatpush1.msra.mxu0 0.0
        %8618 = vmatprep.subr.mxu0 0.0
        %8619 = vmatpush1.msra.mxu0 0.0
        %8620 = vmatprep.subr.mxu0 0.0
        %v8621 = vand.u32 %v8243, 4294901760
        %v8622 = vsub.f32 %v8243, %v8621
        %v8623 = vand.u32 %v8622, 4294901760
        %8624 = vmatpush1.msra.mxu0 %v8623
        %8625 = vmatprep.subr.mxu0 0.0
        %v8626 = vand.u32 %v8241, 4294901760
        %v8627 = vsub.f32 %v8241, %v8626
        %v8628 = vand.u32 %v8627, 4294901760
        %8629 = vmatpush1.msra.mxu0 %v8628
        %8630 = vmatprep.subr.mxu0 0.0
        %8631 = vmatpush2.msra.mxu0 0.0
        %8632 = vmatprep.subr.mxu0 0.0
        %8633 = vmatpush2.msra.mxu0 0.0
        %8634 = vmatprep.subr.mxu0 0.0
        %8635 = vmatpush2.msra.mxu0 0.0
        %8636 = vmatprep.subr.mxu0 0.0
        %8637 = vmatpush2.msra.mxu0 0.0
        %8638 = vmatprep.subr.mxu0 0.0
        %8639 = vmatpush2.msra.mxu0 0.0
        %8640 = vmatprep.subr.mxu0 0.0
        %8641 = vmatpush2.msra.mxu0 0.0
        %8642 = vmatprep.subr.mxu0 0.0
        %8643 = vmatpush2.msra.mxu0 0.0
        %8644 = vmatprep.subr.mxu0 0.0
        %8645 = vmatpush2.msra.mxu0 0.0
        %8646 = vmatprep.subr.mxu0 0.0
        %8647 = vmatpush2.msra.mxu0 0.0
        %8648 = vmatprep.subr.mxu0 0.0
        %8649 = vmatpush2.msra.mxu0 0.0
        %8650 = vmatprep.subr.mxu0 0.0
        %8651 = vmatpush2.msra.mxu0 0.0
        %8652 = vmatprep.subr.mxu0 0.0
        %8653 = vmatpush2.msra.mxu0 0.0
        %8654 = vmatprep.subr.mxu0 0.0
        %8655 = vmatpush2.msra.mxu0 0.0
        %8656 = vmatprep.subr.mxu0 0.0
        %8657 = vmatpush2.msra.mxu0 0.0
        %8658 = vmatprep.subr.mxu0 0.0
        %8659 = vmatpush2.msra.mxu0 0.0
        %8660 = vmatprep.subr.mxu0 0.0
        %8661 = vmatpush2.msra.mxu0 0.0
        %8662 = vmatprep.mubr.f32.mxu0 0.0
        %v8663 = vand.u32 %v8247, 4294901760
        %8664 = vmatmul.mubr.f32.gmra.mxu0 %v8663
        %v8665 = vpop.f32.mrf.mxu0
        %v8666 = vadd.f32 %v8581, %v8665
        %v8667 = vpop.f32.mrf.mxu0
        %8668 = vmatprep.mubr.f32.mxu0 0.0
        %v8669 = vand.u32 %v8250, 4294901760
        %8670 = vmatmul.mubr.f32.gmra.mxu0 %v8669
        %v8671 = vpop.f32.mrf.mxu0
        %v8672 = vadd.f32 %v8589, %v8671
        %v8673 = vpop.f32.mrf.mxu0
        %8674 = vdwg.mxu0
        %8675 = vmatprep.subr.mxu0 0.0
        %8676 = vmatpush1.msra.mxu0 0.0
        %8677 = vmatprep.subr.mxu0 0.0
        %8678 = vmatpush1.msra.mxu0 0.0
        %8679 = vmatprep.subr.mxu0 0.0
        %8680 = vmatpush1.msra.mxu0 0.0
        %8681 = vmatprep.subr.mxu0 0.0
        %8682 = vmatpush1.msra.mxu0 0.0
        %8683 = vmatprep.subr.mxu0 0.0
        %8684 = vmatpush1.msra.mxu0 0.0
        %8685 = vmatprep.subr.mxu0 0.0
        %8686 = vmatpush1.msra.mxu0 0.0
        %8687 = vmatprep.subr.mxu0 0.0
        %8688 = vmatpush1.msra.mxu0 0.0
        %8689 = vmatprep.subr.mxu0 0.0
        %8690 = vmatpush1.msra.mxu0 0.0
        %8691 = vmatprep.subr.mxu0 0.0
        %8692 = vmatpush1.msra.mxu0 0.0
        %8693 = vmatprep.subr.mxu0 0.0
        %8694 = vmatpush1.msra.mxu0 0.0
        %8695 = vmatprep.subr.mxu0 0.0
        %8696 = vmatpush1.msra.mxu0 0.0
        %8697 = vmatprep.subr.mxu0 0.0
        %8698 = vmatpush1.msra.mxu0 0.0
        %8699 = vmatprep.subr.mxu0 0.0
        %8700 = vmatpush1.msra.mxu0 0.0
        %8701 = vmatprep.subr.mxu0 0.0
        %8702 = vmatpush1.msra.mxu0 0.0
        %8703 = vmatprep.subr.mxu0 0.0
        %v8704 = vand.u32 %v8243, 4294901760
        %8705 = vmatpush1.msra.mxu0 %v8704
        %8706 = vmatprep.subr.mxu0 0.0
        %v8707 = vand.u32 %v8241, 4294901760
        %8708 = vmatpush1.msra.mxu0 %v8707
        %8709 = vmatprep.subr.mxu0 0.0
        %8710 = vmatpush2.msra.mxu0 0.0
        %8711 = vmatprep.subr.mxu0 0.0
        %8712 = vmatpush2.msra.mxu0 0.0
        %8713 = vmatprep.subr.mxu0 0.0
        %8714 = vmatpush2.msra.mxu0 0.0
        %8715 = vmatprep.subr.mxu0 0.0
        %8716 = vmatpush2.msra.mxu0 0.0
        %8717 = vmatprep.subr.mxu0 0.0
        %8718 = vmatpush2.msra.mxu0 0.0
        %8719 = vmatprep.subr.mxu0 0.0
        %8720 = vmatpush2.msra.mxu0 0.0
        %8721 = vmatprep.subr.mxu0 0.0
        %8722 = vmatpush2.msra.mxu0 0.0
        %8723 = vmatprep.subr.mxu0 0.0
        %8724 = vmatpush2.msra.mxu0 0.0
        %8725 = vmatprep.subr.mxu0 0.0
        %8726 = vmatpush2.msra.mxu0 0.0
        %8727 = vmatprep.subr.mxu0 0.0
        %8728 = vmatpush2.msra.mxu0 0.0
        %8729 = vmatprep.subr.mxu0 0.0
        %8730 = vmatpush2.msra.mxu0 0.0
        %8731 = vmatprep.subr.mxu0 0.0
        %8732 = vmatpush2.msra.mxu0 0.0
        %8733 = vmatprep.subr.mxu0 0.0
        %8734 = vmatpush2.msra.mxu0 0.0
        %8735 = vmatprep.subr.mxu0 0.0
        %8736 = vmatpush2.msra.mxu0 0.0
        %8737 = vmatprep.subr.mxu0 0.0
        %8738 = vmatpush2.msra.mxu0 0.0
        %8739 = vmatprep.subr.mxu0 0.0
        %8740 = vmatpush2.msra.mxu0 0.0
        %8741 = vmatprep.mubr.f32.mxu0 0.0
        %v8742 = vand.u32 %v8247, 4294901760
        %8743 = vmatmul.mubr.f32.gmra.mxu0 %v8742
        %v8744 = vpop.f32.mrf.mxu0
        %v8745 = vadd.f32 %v8666, %v8744
        %v8746 = vpop.f32.mrf.mxu0
        %8747 = vmatprep.mubr.f32.mxu0 0.0
        %v8748 = vand.u32 %v8250, 4294901760
        %8749 = vmatmul.mubr.f32.gmra.mxu0 %v8748
        %v8750 = vpop.f32.mrf.mxu0
        %v8751 = vadd.f32 %v8672, %v8750
        %v8752 = vpop.f32.mrf.mxu0
        %8753 = vdwg.mxu0
        %8754 = vrot.lane.b32.xlu0 %v1315, 48
        %v8755 = vpop.permute.xlu0 %8754
        %8756 = vrot.lane.b32.xlu0 %v1321, 48
        %v8757 = vpop.permute.xlu0 %8756
        %v8761 = vsel %vm1352, %v7719, 0
        %v8764 = vsel %vm1352, %v7721, 0
        %8766 = vmatprep.subr.mxu0 0.0
        %8767 = vmatpush1.msra.mxu0 0.0
        %8768 = vmatprep.subr.mxu0 0.0
        %8769 = vmatpush1.msra.mxu0 0.0
        %8770 = vmatprep.subr.mxu0 0.0
        %8771 = vmatpush1.msra.mxu0 0.0
        %8772 = vmatprep.subr.mxu0 0.0
        %8773 = vmatpush1.msra.mxu0 0.0
        %8774 = vmatprep.subr.mxu0 0.0
        %8775 = vmatpush1.msra.mxu0 0.0
        %8776 = vmatprep.subr.mxu0 0.0
        %8777 = vmatpush1.msra.mxu0 0.0
        %8778 = vmatprep.subr.mxu0 0.0
        %8779 = vmatpush1.msra.mxu0 0.0
        %8780 = vmatprep.subr.mxu0 0.0
        %8781 = vmatpush1.msra.mxu0 0.0
        %8782 = vmatprep.subr.mxu0 0.0
        %8783 = vmatpush1.msra.mxu0 0.0
        %8784 = vmatprep.subr.mxu0 0.0
        %8785 = vmatpush1.msra.mxu0 0.0
        %8786 = vmatprep.subr.mxu0 0.0
        %8787 = vmatpush1.msra.mxu0 0.0
        %8788 = vmatprep.subr.mxu0 0.0
        %8789 = vmatpush1.msra.mxu0 0.0
        %8790 = vmatprep.subr.mxu0 0.0
        %8791 = vmatpush1.msra.mxu0 0.0
        %8792 = vmatprep.subr.mxu0 0.0
        %8793 = vmatpush1.msra.mxu0 0.0
        %8794 = vmatprep.subr.mxu0 0.0
        %v8795 = vand.u32 %v8757, 4294901760
        %8796 = vmatpush1.msra.mxu0 %v8795
        %8797 = vmatprep.subr.mxu0 0.0
        %v8798 = vand.u32 %v8755, 4294901760
        %8799 = vmatpush1.msra.mxu0 %v8798
        %8800 = vmatprep.subr.mxu0 0.0
        %8801 = vmatpush2.msra.mxu0 0.0
        %8802 = vmatprep.subr.mxu0 0.0
        %8803 = vmatpush2.msra.mxu0 0.0
        %8804 = vmatprep.subr.mxu0 0.0
        %8805 = vmatpush2.msra.mxu0 0.0
        %8806 = vmatprep.subr.mxu0 0.0
        %8807 = vmatpush2.msra.mxu0 0.0
        %8808 = vmatprep.subr.mxu0 0.0
        %8809 = vmatpush2.msra.mxu0 0.0
        %8810 = vmatprep.subr.mxu0 0.0
        %8811 = vmatpush2.msra.mxu0 0.0
        %8812 = vmatprep.subr.mxu0 0.0
        %8813 = vmatpush2.msra.mxu0 0.0
        %8814 = vmatprep.subr.mxu0 0.0
        %8815 = vmatpush2.msra.mxu0 0.0
        %8816 = vmatprep.subr.mxu0 0.0
        %8817 = vmatpush2.msra.mxu0 0.0
        %8818 = vmatprep.subr.mxu0 0.0
        %8819 = vmatpush2.msra.mxu0 0.0
        %8820 = vmatprep.subr.mxu0 0.0
        %8821 = vmatpush2.msra.mxu0 0.0
        %8822 = vmatprep.subr.mxu0 0.0
        %8823 = vmatpush2.msra.mxu0 0.0
        %8824 = vmatprep.subr.mxu0 0.0
        %8825 = vmatpush2.msra.mxu0 0.0
        %8826 = vmatprep.subr.mxu0 0.0
        %8827 = vmatpush2.msra.mxu0 0.0
        %8828 = vmatprep.subr.mxu0 0.0
        %8829 = vmatpush2.msra.mxu0 0.0
        %8830 = vmatprep.subr.mxu0 0.0
        %8831 = vmatpush2.msra.mxu0 0.0
        %8832 = vmatprep.mubr.f32.mxu0 0.0
        %v8833 = vand.u32 %v8761, 4294901760
        %v8834 = vsub.f32 %v8761, %v8833
        %v8835 = vand.u32 %v8834, 4294901760
        %v8836 = vsub.f32 %v8834, %v8835
        %v8837 = vand.u32 %v8836, 4294901760
        %8838 = vmatmul.mubr.f32.gmra.mxu0 %v8837
        %v8839 = vpop.f32.mrf.mxu0
        %v8840 = vadd.f32 0.0, %v8839
        %v8841 = vpop.f32.mrf.mxu0
        %8842 = vmatprep.mubr.f32.mxu0 0.0
        %v8843 = vand.u32 %v8764, 4294901760
        %v8844 = vsub.f32 %v8764, %v8843
        %v8845 = vand.u32 %v8844, 4294901760
        %v8846 = vsub.f32 %v8844, %v8845
        %v8847 = vand.u32 %v8846, 4294901760
        %8848 = vmatmul.mubr.f32.gmra.mxu0 %v8847
        %v8849 = vpop.f32.mrf.mxu0
        %v8850 = vadd.f32 0.0, %v8849
        %v8851 = vpop.f32.mrf.mxu0
        %8852 = vdwg.mxu0
        %8853 = vmatprep.subr.mxu0 0.0
        %8854 = vmatpush1.msra.mxu0 0.0
        %8855 = vmatprep.subr.mxu0 0.0
        %8856 = vmatpush1.msra.mxu0 0.0
        %8857 = vmatprep.subr.mxu0 0.0
        %8858 = vmatpush1.msra.mxu0 0.0
        %8859 = vmatprep.subr.mxu0 0.0
        %8860 = vmatpush1.msra.mxu0 0.0
        %8861 = vmatprep.subr.mxu0 0.0
        %8862 = vmatpush1.msra.mxu0 0.0
        %8863 = vmatprep.subr.mxu0 0.0
        %8864 = vmatpush1.msra.mxu0 0.0
        %8865 = vmatprep.subr.mxu0 0.0
        %8866 = vmatpush1.msra.mxu0 0.0
        %8867 = vmatprep.subr.mxu0 0.0
        %8868 = vmatpush1.msra.mxu0 0.0
        %8869 = vmatprep.subr.mxu0 0.0
        %8870 = vmatpush1.msra.mxu0 0.0
        %8871 = vmatprep.subr.mxu0 0.0
        %8872 = vmatpush1.msra.mxu0 0.0
        %8873 = vmatprep.subr.mxu0 0.0
        %8874 = vmatpush1.msra.mxu0 0.0
        %8875 = vmatprep.subr.mxu0 0.0
        %8876 = vmatpush1.msra.mxu0 0.0
        %8877 = vmatprep.subr.mxu0 0.0
        %8878 = vmatpush1.msra.mxu0 0.0
        %8879 = vmatprep.subr.mxu0 0.0
        %8880 = vmatpush1.msra.mxu0 0.0
        %8881 = vmatprep.subr.mxu0 0.0
        %v8882 = vand.u32 %v8757, 4294901760
        %v8883 = vsub.f32 %v8757, %v8882
        %v8884 = vand.u32 %v8883, 4294901760
        %v8885 = vsub.f32 %v8883, %v8884
        %v8886 = vand.u32 %v8885, 4294901760
        %8887 = vmatpush1.msra.mxu0 %v8886
        %8888 = vmatprep.subr.mxu0 0.0
        %v8889 = vand.u32 %v8755, 4294901760
        %v8890 = vsub.f32 %v8755, %v8889
        %v8891 = vand.u32 %v8890, 4294901760
        %v8892 = vsub.f32 %v8890, %v8891
        %v8893 = vand.u32 %v8892, 4294901760
        %8894 = vmatpush1.msra.mxu0 %v8893
        %8895 = vmatprep.subr.mxu0 0.0
        %8896 = vmatpush2.msra.mxu0 0.0
        %8897 = vmatprep.subr.mxu0 0.0
        %8898 = vmatpush2.msra.mxu0 0.0
        %8899 = vmatprep.subr.mxu0 0.0
        %8900 = vmatpush2.msra.mxu0 0.0
        %8901 = vmatprep.subr.mxu0 0.0
        %8902 = vmatpush2.msra.mxu0 0.0
        %8903 = vmatprep.subr.mxu0 0.0
        %8904 = vmatpush2.msra.mxu0 0.0
        %8905 = vmatprep.subr.mxu0 0.0
        %8906 = vmatpush2.msra.mxu0 0.0
        %8907 = vmatprep.subr.mxu0 0.0
        %8908 = vmatpush2.msra.mxu0 0.0
        %8909 = vmatprep.subr.mxu0 0.0
        %8910 = vmatpush2.msra.mxu0 0.0
        %8911 = vmatprep.subr.mxu0 0.0
        %8912 = vmatpush2.msra.mxu0 0.0
        %8913 = vmatprep.subr.mxu0 0.0
        %8914 = vmatpush2.msra.mxu0 0.0
        %8915 = vmatprep.subr.mxu0 0.0
        %8916 = vmatpush2.msra.mxu0 0.0
        %8917 = vmatprep.subr.mxu0 0.0
        %8918 = vmatpush2.msra.mxu0 0.0
        %8919 = vmatprep.subr.mxu0 0.0
        %8920 = vmatpush2.msra.mxu0 0.0
        %8921 = vmatprep.subr.mxu0 0.0
        %8922 = vmatpush2.msra.mxu0 0.0
        %8923 = vmatprep.subr.mxu0 0.0
        %8924 = vmatpush2.msra.mxu0 0.0
        %8925 = vmatprep.subr.mxu0 0.0
        %8926 = vmatpush2.msra.mxu0 0.0
        %8927 = vmatprep.mubr.f32.mxu0 0.0
        %v8928 = vand.u32 %v8761, 4294901760
        %8929 = vmatmul.mubr.f32.gmra.mxu0 %v8928
        %v8930 = vpop.f32.mrf.mxu0
        %v8931 = vadd.f32 %v8840, %v8930
        %v8932 = vpop.f32.mrf.mxu0
        %8933 = vmatprep.mubr.f32.mxu0 0.0
        %v8934 = vand.u32 %v8764, 4294901760
        %8935 = vmatmul.mubr.f32.gmra.mxu0 %v8934
        %v8936 = vpop.f32.mrf.mxu0
        %v8937 = vadd.f32 %v8850, %v8936
        %v8938 = vpop.f32.mrf.mxu0
        %8939 = vdwg.mxu0
        %8940 = vmatprep.subr.mxu0 0.0
        %8941 = vmatpush1.msra.mxu0 0.0
        %8942 = vmatprep.subr.mxu0 0.0
        %8943 = vmatpush1.msra.mxu0 0.0
        %8944 = vmatprep.subr.mxu0 0.0
        %8945 = vmatpush1.msra.mxu0 0.0
        %8946 = vmatprep.subr.mxu0 0.0
        %8947 = vmatpush1.msra.mxu0 0.0
        %8948 = vmatprep.subr.mxu0 0.0
        %8949 = vmatpush1.msra.mxu0 0.0
        %8950 = vmatprep.subr.mxu0 0.0
        %8951 = vmatpush1.msra.mxu0 0.0
        %8952 = vmatprep.subr.mxu0 0.0
        %8953 = vmatpush1.msra.mxu0 0.0
        %8954 = vmatprep.subr.mxu0 0.0
        %8955 = vmatpush1.msra.mxu0 0.0
        %8956 = vmatprep.subr.mxu0 0.0
        %8957 = vmatpush1.msra.mxu0 0.0
        %8958 = vmatprep.subr.mxu0 0.0
        %8959 = vmatpush1.msra.mxu0 0.0
        %8960 = vmatprep.subr.mxu0 0.0
        %8961 = vmatpush1.msra.mxu0 0.0
        %8962 = vmatprep.subr.mxu0 0.0
        %8963 = vmatpush1.msra.mxu0 0.0
        %8964 = vmatprep.subr.mxu0 0.0
        %8965 = vmatpush1.msra.mxu0 0.0
        %8966 = vmatprep.subr.mxu0 0.0
        %8967 = vmatpush1.msra.mxu0 0.0
        %8968 = vmatprep.subr.mxu0 0.0
        %v8969 = vand.u32 %v8757, 4294901760
        %v8970 = vsub.f32 %v8757, %v8969
        %8971 = vmatpush1.msra.mxu0 %v8970
        %8972 = vmatprep.subr.mxu0 0.0
        %v8973 = vand.u32 %v8755, 4294901760
        %v8974 = vsub.f32 %v8755, %v8973
        %8975 = vmatpush1.msra.mxu0 %v8974
        %8976 = vmatprep.subr.mxu0 0.0
        %8977 = vmatpush2.msra.mxu0 0.0
        %8978 = vmatprep.subr.mxu0 0.0
        %8979 = vmatpush2.msra.mxu0 0.0
        %8980 = vmatprep.subr.mxu0 0.0
        %8981 = vmatpush2.msra.mxu0 0.0
        %8982 = vmatprep.subr.mxu0 0.0
        %8983 = vmatpush2.msra.mxu0 0.0
        %8984 = vmatprep.subr.mxu0 0.0
        %8985 = vmatpush2.msra.mxu0 0.0
        %8986 = vmatprep.subr.mxu0 0.0
        %8987 = vmatpush2.msra.mxu0 0.0
        %8988 = vmatprep.subr.mxu0 0.0
        %8989 = vmatpush2.msra.mxu0 0.0
        %8990 = vmatprep.subr.mxu0 0.0
        %8991 = vmatpush2.msra.mxu0 0.0
        %8992 = vmatprep.subr.mxu0 0.0
        %8993 = vmatpush2.msra.mxu0 0.0
        %8994 = vmatprep.subr.mxu0 0.0
        %8995 = vmatpush2.msra.mxu0 0.0
        %8996 = vmatprep.subr.mxu0 0.0
        %8997 = vmatpush2.msra.mxu0 0.0
        %8998 = vmatprep.subr.mxu0 0.0
        %8999 = vmatpush2.msra.mxu0 0.0
        %9000 = vmatprep.subr.mxu0 0.0
        %9001 = vmatpush2.msra.mxu0 0.0
        %9002 = vmatprep.subr.mxu0 0.0
        %9003 = vmatpush2.msra.mxu0 0.0
        %9004 = vmatprep.subr.mxu0 0.0
        %9005 = vmatpush2.msra.mxu0 0.0
        %9006 = vmatprep.subr.mxu0 0.0
        %9007 = vmatpush2.msra.mxu0 0.0
        %9008 = vmatprep.mubr.f32.mxu0 0.0
        %v9009 = vand.u32 %v8761, 4294901760
        %v9010 = vsub.f32 %v8761, %v9009
        %9011 = vmatmul.mubr.f32.gmra.mxu0 %v9010
        %v9012 = vpop.f32.mrf.mxu0
        %v9013 = vadd.f32 %v8931, %v9012
        %v9014 = vpop.f32.mrf.mxu0
        %9015 = vmatprep.mubr.f32.mxu0 0.0
        %v9016 = vand.u32 %v8764, 4294901760
        %v9017 = vsub.f32 %v8764, %v9016
        %9018 = vmatmul.mubr.f32.gmra.mxu0 %v9017
        %v9019 = vpop.f32.mrf.mxu0
        %v9020 = vadd.f32 %v8937, %v9019
        %v9021 = vpop.f32.mrf.mxu0
        %9022 = vdwg.mxu0
        %9023 = vmatprep.subr.mxu0 0.0
        %9024 = vmatpush1.msra.mxu0 0.0
        %9025 = vmatprep.subr.mxu0 0.0
        %9026 = vmatpush1.msra.mxu0 0.0
        %9027 = vmatprep.subr.mxu0 0.0
        %9028 = vmatpush1.msra.mxu0 0.0
        %9029 = vmatprep.subr.mxu0 0.0
        %9030 = vmatpush1.msra.mxu0 0.0
        %9031 = vmatprep.subr.mxu0 0.0
        %9032 = vmatpush1.msra.mxu0 0.0
        %9033 = vmatprep.subr.mxu0 0.0
        %9034 = vmatpush1.msra.mxu0 0.0
        %9035 = vmatprep.subr.mxu0 0.0
        %9036 = vmatpush1.msra.mxu0 0.0
        %9037 = vmatprep.subr.mxu0 0.0
        %9038 = vmatpush1.msra.mxu0 0.0
        %9039 = vmatprep.subr.mxu0 0.0
        %9040 = vmatpush1.msra.mxu0 0.0
        %9041 = vmatprep.subr.mxu0 0.0
        %9042 = vmatpush1.msra.mxu0 0.0
        %9043 = vmatprep.subr.mxu0 0.0
        %9044 = vmatpush1.msra.mxu0 0.0
        %9045 = vmatprep.subr.mxu0 0.0
        %9046 = vmatpush1.msra.mxu0 0.0
        %9047 = vmatprep.subr.mxu0 0.0
        %9048 = vmatpush1.msra.mxu0 0.0
        %9049 = vmatprep.subr.mxu0 0.0
        %9050 = vmatpush1.msra.mxu0 0.0
        %9051 = vmatprep.subr.mxu0 0.0
        %v9052 = vand.u32 %v8757, 4294901760
        %9053 = vmatpush1.msra.mxu0 %v9052
        %9054 = vmatprep.subr.mxu0 0.0
        %v9055 = vand.u32 %v8755, 4294901760
        %9056 = vmatpush1.msra.mxu0 %v9055
        %9057 = vmatprep.subr.mxu0 0.0
        %9058 = vmatpush2.msra.mxu0 0.0
        %9059 = vmatprep.subr.mxu0 0.0
        %9060 = vmatpush2.msra.mxu0 0.0
        %9061 = vmatprep.subr.mxu0 0.0
        %9062 = vmatpush2.msra.mxu0 0.0
        %9063 = vmatprep.subr.mxu0 0.0
        %9064 = vmatpush2.msra.mxu0 0.0
        %9065 = vmatprep.subr.mxu0 0.0
        %9066 = vmatpush2.msra.mxu0 0.0
        %9067 = vmatprep.subr.mxu0 0.0
        %9068 = vmatpush2.msra.mxu0 0.0
        %9069 = vmatprep.subr.mxu0 0.0
        %9070 = vmatpush2.msra.mxu0 0.0
        %9071 = vmatprep.subr.mxu0 0.0
        %9072 = vmatpush2.msra.mxu0 0.0
        %9073 = vmatprep.subr.mxu0 0.0
        %9074 = vmatpush2.msra.mxu0 0.0
        %9075 = vmatprep.subr.mxu0 0.0
        %9076 = vmatpush2.msra.mxu0 0.0
        %9077 = vmatprep.subr.mxu0 0.0
        %9078 = vmatpush2.msra.mxu0 0.0
        %9079 = vmatprep.subr.mxu0 0.0
        %9080 = vmatpush2.msra.mxu0 0.0
        %9081 = vmatprep.subr.mxu0 0.0
        %9082 = vmatpush2.msra.mxu0 0.0
        %9083 = vmatprep.subr.mxu0 0.0
        %9084 = vmatpush2.msra.mxu0 0.0
        %9085 = vmatprep.subr.mxu0 0.0
        %9086 = vmatpush2.msra.mxu0 0.0
        %9087 = vmatprep.subr.mxu0 0.0
        %9088 = vmatpush2.msra.mxu0 0.0
        %9089 = vmatprep.mubr.f32.mxu0 0.0
        %v9090 = vand.u32 %v8761, 4294901760
        %v9091 = vsub.f32 %v8761, %v9090
        %v9092 = vand.u32 %v9091, 4294901760
        %9093 = vmatmul.mubr.f32.gmra.mxu0 %v9092
        %v9094 = vpop.f32.mrf.mxu0
        %v9095 = vadd.f32 %v9013, %v9094
        %v9096 = vpop.f32.mrf.mxu0
        %9097 = vmatprep.mubr.f32.mxu0 0.0
        %v9098 = vand.u32 %v8764, 4294901760
        %v9099 = vsub.f32 %v8764, %v9098
        %v9100 = vand.u32 %v9099, 4294901760
        %9101 = vmatmul.mubr.f32.gmra.mxu0 %v9100
        %v9102 = vpop.f32.mrf.mxu0
        %v9103 = vadd.f32 %v9020, %v9102
        %v9104 = vpop.f32.mrf.mxu0
        %9105 = vdwg.mxu0
        %9106 = vmatprep.subr.mxu0 0.0
        %9107 = vmatpush1.msra.mxu0 0.0
        %9108 = vmatprep.subr.mxu0 0.0
        %9109 = vmatpush1.msra.mxu0 0.0
        %9110 = vmatprep.subr.mxu0 0.0
        %9111 = vmatpush1.msra.mxu0 0.0
        %9112 = vmatprep.subr.mxu0 0.0
        %9113 = vmatpush1.msra.mxu0 0.0
        %9114 = vmatprep.subr.mxu0 0.0
        %9115 = vmatpush1.msra.mxu0 0.0
        %9116 = vmatprep.subr.mxu0 0.0
        %9117 = vmatpush1.msra.mxu0 0.0
        %9118 = vmatprep.subr.mxu0 0.0
        %9119 = vmatpush1.msra.mxu0 0.0
        %9120 = vmatprep.subr.mxu0 0.0
        %9121 = vmatpush1.msra.mxu0 0.0
        %9122 = vmatprep.subr.mxu0 0.0
        %9123 = vmatpush1.msra.mxu0 0.0
        %9124 = vmatprep.subr.mxu0 0.0
        %9125 = vmatpush1.msra.mxu0 0.0
        %9126 = vmatprep.subr.mxu0 0.0
        %9127 = vmatpush1.msra.mxu0 0.0
        %9128 = vmatprep.subr.mxu0 0.0
        %9129 = vmatpush1.msra.mxu0 0.0
        %9130 = vmatprep.subr.mxu0 0.0
        %9131 = vmatpush1.msra.mxu0 0.0
        %9132 = vmatprep.subr.mxu0 0.0
        %9133 = vmatpush1.msra.mxu0 0.0
        %9134 = vmatprep.subr.mxu0 0.0
        %v9135 = vand.u32 %v8757, 4294901760
        %v9136 = vsub.f32 %v8757, %v9135
        %v9137 = vand.u32 %v9136, 4294901760
        %9138 = vmatpush1.msra.mxu0 %v9137
        %9139 = vmatprep.subr.mxu0 0.0
        %v9140 = vand.u32 %v8755, 4294901760
        %v9141 = vsub.f32 %v8755, %v9140
        %v9142 = vand.u32 %v9141, 4294901760
        %9143 = vmatpush1.msra.mxu0 %v9142
        %9144 = vmatprep.subr.mxu0 0.0
        %9145 = vmatpush2.msra.mxu0 0.0
        %9146 = vmatprep.subr.mxu0 0.0
        %9147 = vmatpush2.msra.mxu0 0.0
        %9148 = vmatprep.subr.mxu0 0.0
        %9149 = vmatpush2.msra.mxu0 0.0
        %9150 = vmatprep.subr.mxu0 0.0
        %9151 = vmatpush2.msra.mxu0 0.0
        %9152 = vmatprep.subr.mxu0 0.0
        %9153 = vmatpush2.msra.mxu0 0.0
        %9154 = vmatprep.subr.mxu0 0.0
        %9155 = vmatpush2.msra.mxu0 0.0
        %9156 = vmatprep.subr.mxu0 0.0
        %9157 = vmatpush2.msra.mxu0 0.0
        %9158 = vmatprep.subr.mxu0 0.0
        %9159 = vmatpush2.msra.mxu0 0.0
        %9160 = vmatprep.subr.mxu0 0.0
        %9161 = vmatpush2.msra.mxu0 0.0
        %9162 = vmatprep.subr.mxu0 0.0
        %9163 = vmatpush2.msra.mxu0 0.0
        %9164 = vmatprep.subr.mxu0 0.0
        %9165 = vmatpush2.msra.mxu0 0.0
        %9166 = vmatprep.subr.mxu0 0.0
        %9167 = vmatpush2.msra.mxu0 0.0
        %9168 = vmatprep.subr.mxu0 0.0
        %9169 = vmatpush2.msra.mxu0 0.0
        %9170 = vmatprep.subr.mxu0 0.0
        %9171 = vmatpush2.msra.mxu0 0.0
        %9172 = vmatprep.subr.mxu0 0.0
        %9173 = vmatpush2.msra.mxu0 0.0
        %9174 = vmatprep.subr.mxu0 0.0
        %9175 = vmatpush2.msra.mxu0 0.0
        %9176 = vmatprep.mubr.f32.mxu0 0.0
        %v9177 = vand.u32 %v8761, 4294901760
        %9178 = vmatmul.mubr.f32.gmra.mxu0 %v9177
        %v9179 = vpop.f32.mrf.mxu0
        %v9180 = vadd.f32 %v9095, %v9179
        %v9181 = vpop.f32.mrf.mxu0
        %9182 = vmatprep.mubr.f32.mxu0 0.0
        %v9183 = vand.u32 %v8764, 4294901760
        %9184 = vmatmul.mubr.f32.gmra.mxu0 %v9183
        %v9185 = vpop.f32.mrf.mxu0
        %v9186 = vadd.f32 %v9103, %v9185
        %v9187 = vpop.f32.mrf.mxu0
        %9188 = vdwg.mxu0
        %9189 = vmatprep.subr.mxu0 0.0
        %9190 = vmatpush1.msra.mxu0 0.0
        %9191 = vmatprep.subr.mxu0 0.0
        %9192 = vmatpush1.msra.mxu0 0.0
        %9193 = vmatprep.subr.mxu0 0.0
        %9194 = vmatpush1.msra.mxu0 0.0
        %9195 = vmatprep.subr.mxu0 0.0
        %9196 = vmatpush1.msra.mxu0 0.0
        %9197 = vmatprep.subr.mxu0 0.0
        %9198 = vmatpush1.msra.mxu0 0.0
        %9199 = vmatprep.subr.mxu0 0.0
        %9200 = vmatpush1.msra.mxu0 0.0
        %9201 = vmatprep.subr.mxu0 0.0
        %9202 = vmatpush1.msra.mxu0 0.0
        %9203 = vmatprep.subr.mxu0 0.0
        %9204 = vmatpush1.msra.mxu0 0.0
        %9205 = vmatprep.subr.mxu0 0.0
        %9206 = vmatpush1.msra.mxu0 0.0
        %9207 = vmatprep.subr.mxu0 0.0
        %9208 = vmatpush1.msra.mxu0 0.0
        %9209 = vmatprep.subr.mxu0 0.0
        %9210 = vmatpush1.msra.mxu0 0.0
        %9211 = vmatprep.subr.mxu0 0.0
        %9212 = vmatpush1.msra.mxu0 0.0
        %9213 = vmatprep.subr.mxu0 0.0
        %9214 = vmatpush1.msra.mxu0 0.0
        %9215 = vmatprep.subr.mxu0 0.0
        %9216 = vmatpush1.msra.mxu0 0.0
        %9217 = vmatprep.subr.mxu0 0.0
        %v9218 = vand.u32 %v8757, 4294901760
        %9219 = vmatpush1.msra.mxu0 %v9218
        %9220 = vmatprep.subr.mxu0 0.0
        %v9221 = vand.u32 %v8755, 4294901760
        %9222 = vmatpush1.msra.mxu0 %v9221
        %9223 = vmatprep.subr.mxu0 0.0
        %9224 = vmatpush2.msra.mxu0 0.0
        %9225 = vmatprep.subr.mxu0 0.0
        %9226 = vmatpush2.msra.mxu0 0.0
        %9227 = vmatprep.subr.mxu0 0.0
        %9228 = vmatpush2.msra.mxu0 0.0
        %9229 = vmatprep.subr.mxu0 0.0
        %9230 = vmatpush2.msra.mxu0 0.0
        %9231 = vmatprep.subr.mxu0 0.0
        %9232 = vmatpush2.msra.mxu0 0.0
        %9233 = vmatprep.subr.mxu0 0.0
        %9234 = vmatpush2.msra.mxu0 0.0
        %9235 = vmatprep.subr.mxu0 0.0
        %9236 = vmatpush2.msra.mxu0 0.0
        %9237 = vmatprep.subr.mxu0 0.0
        %9238 = vmatpush2.msra.mxu0 0.0
        %9239 = vmatprep.subr.mxu0 0.0
        %9240 = vmatpush2.msra.mxu0 0.0
        %9241 = vmatprep.subr.mxu0 0.0
        %9242 = vmatpush2.msra.mxu0 0.0
        %9243 = vmatprep.subr.mxu0 0.0
        %9244 = vmatpush2.msra.mxu0 0.0
        %9245 = vmatprep.subr.mxu0 0.0
        %9246 = vmatpush2.msra.mxu0 0.0
        %9247 = vmatprep.subr.mxu0 0.0
        %9248 = vmatpush2.msra.mxu0 0.0
        %9249 = vmatprep.subr.mxu0 0.0
        %9250 = vmatpush2.msra.mxu0 0.0
        %9251 = vmatprep.subr.mxu0 0.0
        %9252 = vmatpush2.msra.mxu0 0.0
        %9253 = vmatprep.subr.mxu0 0.0
        %9254 = vmatpush2.msra.mxu0 0.0
        %9255 = vmatprep.mubr.f32.mxu0 0.0
        %v9256 = vand.u32 %v8761, 4294901760
        %9257 = vmatmul.mubr.f32.gmra.mxu0 %v9256
        %v9258 = vpop.f32.mrf.mxu0
        %v9259 = vadd.f32 %v9180, %v9258
        %v9260 = vpop.f32.mrf.mxu0
        %9261 = vmatprep.mubr.f32.mxu0 0.0
        %v9262 = vand.u32 %v8764, 4294901760
        %9263 = vmatmul.mubr.f32.gmra.mxu0 %v9262
        %v9264 = vpop.f32.mrf.mxu0
        %v9265 = vadd.f32 %v9186, %v9264
        %v9266 = vpop.f32.mrf.mxu0
        %9267 = vdwg.mxu0
        %9268 = vrot.lane.b32.xlu0 %v1327, 48
        %v9269 = vpop.permute.xlu0 %9268
        %9270 = vrot.lane.b32.xlu0 %v1333, 48
        %v9271 = vpop.permute.xlu0 %9270
        %v9275 = vsel %vm1352, %v7723, 0
        %v9278 = vsel %vm1352, %v7725, 0
        %9280 = vmatprep.subr.mxu0 0.0
        %9281 = vmatpush1.msra.mxu0 0.0
        %9282 = vmatprep.subr.mxu0 0.0
        %9283 = vmatpush1.msra.mxu0 0.0
        %9284 = vmatprep.subr.mxu0 0.0
        %9285 = vmatpush1.msra.mxu0 0.0
        %9286 = vmatprep.subr.mxu0 0.0
        %9287 = vmatpush1.msra.mxu0 0.0
        %9288 = vmatprep.subr.mxu0 0.0
        %9289 = vmatpush1.msra.mxu0 0.0
        %9290 = vmatprep.subr.mxu0 0.0
        %9291 = vmatpush1.msra.mxu0 0.0
        %9292 = vmatprep.subr.mxu0 0.0
        %9293 = vmatpush1.msra.mxu0 0.0
        %9294 = vmatprep.subr.mxu0 0.0
        %9295 = vmatpush1.msra.mxu0 0.0
        %9296 = vmatprep.subr.mxu0 0.0
        %9297 = vmatpush1.msra.mxu0 0.0
        %9298 = vmatprep.subr.mxu0 0.0
        %9299 = vmatpush1.msra.mxu0 0.0
        %9300 = vmatprep.subr.mxu0 0.0
        %9301 = vmatpush1.msra.mxu0 0.0
        %9302 = vmatprep.subr.mxu0 0.0
        %9303 = vmatpush1.msra.mxu0 0.0
        %9304 = vmatprep.subr.mxu0 0.0
        %9305 = vmatpush1.msra.mxu0 0.0
        %9306 = vmatprep.subr.mxu0 0.0
        %9307 = vmatpush1.msra.mxu0 0.0
        %9308 = vmatprep.subr.mxu0 0.0
        %v9309 = vand.u32 %v9271, 4294901760
        %9310 = vmatpush1.msra.mxu0 %v9309
        %9311 = vmatprep.subr.mxu0 0.0
        %v9312 = vand.u32 %v9269, 4294901760
        %9313 = vmatpush1.msra.mxu0 %v9312
        %9314 = vmatprep.subr.mxu0 0.0
        %9315 = vmatpush2.msra.mxu0 0.0
        %9316 = vmatprep.subr.mxu0 0.0
        %9317 = vmatpush2.msra.mxu0 0.0
        %9318 = vmatprep.subr.mxu0 0.0
        %9319 = vmatpush2.msra.mxu0 0.0
        %9320 = vmatprep.subr.mxu0 0.0
        %9321 = vmatpush2.msra.mxu0 0.0
        %9322 = vmatprep.subr.mxu0 0.0
        %9323 = vmatpush2.msra.mxu0 0.0
        %9324 = vmatprep.subr.mxu0 0.0
        %9325 = vmatpush2.msra.mxu0 0.0
        %9326 = vmatprep.subr.mxu0 0.0
        %9327 = vmatpush2.msra.mxu0 0.0
        %9328 = vmatprep.subr.mxu0 0.0
        %9329 = vmatpush2.msra.mxu0 0.0
        %9330 = vmatprep.subr.mxu0 0.0
        %9331 = vmatpush2.msra.mxu0 0.0
        %9332 = vmatprep.subr.mxu0 0.0
        %9333 = vmatpush2.msra.mxu0 0.0
        %9334 = vmatprep.subr.mxu0 0.0
        %9335 = vmatpush2.msra.mxu0 0.0
        %9336 = vmatprep.subr.mxu0 0.0
        %9337 = vmatpush2.msra.mxu0 0.0
        %9338 = vmatprep.subr.mxu0 0.0
        %9339 = vmatpush2.msra.mxu0 0.0
        %9340 = vmatprep.subr.mxu0 0.0
        %9341 = vmatpush2.msra.mxu0 0.0
        %9342 = vmatprep.subr.mxu0 0.0
        %9343 = vmatpush2.msra.mxu0 0.0
        %9344 = vmatprep.subr.mxu0 0.0
        %9345 = vmatpush2.msra.mxu0 0.0
        %9346 = vmatprep.mubr.f32.mxu0 0.0
        %v9347 = vand.u32 %v9275, 4294901760
        %v9348 = vsub.f32 %v9275, %v9347
        %v9349 = vand.u32 %v9348, 4294901760
        %v9350 = vsub.f32 %v9348, %v9349
        %v9351 = vand.u32 %v9350, 4294901760
        %9352 = vmatmul.mubr.f32.gmra.mxu0 %v9351
        %v9353 = vpop.f32.mrf.mxu0
        %v9354 = vadd.f32 0.0, %v9353
        %v9355 = vpop.f32.mrf.mxu0
        %9356 = vmatprep.mubr.f32.mxu0 0.0
        %v9357 = vand.u32 %v9278, 4294901760
        %v9358 = vsub.f32 %v9278, %v9357
        %v9359 = vand.u32 %v9358, 4294901760
        %v9360 = vsub.f32 %v9358, %v9359
        %v9361 = vand.u32 %v9360, 4294901760
        %9362 = vmatmul.mubr.f32.gmra.mxu0 %v9361
        %v9363 = vpop.f32.mrf.mxu0
        %v9364 = vadd.f32 0.0, %v9363
        %v9365 = vpop.f32.mrf.mxu0
        %9366 = vdwg.mxu0
        %9367 = vmatprep.subr.mxu0 0.0
        %9368 = vmatpush1.msra.mxu0 0.0
        %9369 = vmatprep.subr.mxu0 0.0
        %9370 = vmatpush1.msra.mxu0 0.0
        %9371 = vmatprep.subr.mxu0 0.0
        %9372 = vmatpush1.msra.mxu0 0.0
        %9373 = vmatprep.subr.mxu0 0.0
        %9374 = vmatpush1.msra.mxu0 0.0
        %9375 = vmatprep.subr.mxu0 0.0
        %9376 = vmatpush1.msra.mxu0 0.0
        %9377 = vmatprep.subr.mxu0 0.0
        %9378 = vmatpush1.msra.mxu0 0.0
        %9379 = vmatprep.subr.mxu0 0.0
        %9380 = vmatpush1.msra.mxu0 0.0
        %9381 = vmatprep.subr.mxu0 0.0
        %9382 = vmatpush1.msra.mxu0 0.0
        %9383 = vmatprep.subr.mxu0 0.0
        %9384 = vmatpush1.msra.mxu0 0.0
        %9385 = vmatprep.subr.mxu0 0.0
        %9386 = vmatpush1.msra.mxu0 0.0
        %9387 = vmatprep.subr.mxu0 0.0
        %9388 = vmatpush1.msra.mxu0 0.0
        %9389 = vmatprep.subr.mxu0 0.0
        %9390 = vmatpush1.msra.mxu0 0.0
        %9391 = vmatprep.subr.mxu0 0.0
        %9392 = vmatpush1.msra.mxu0 0.0
        %9393 = vmatprep.subr.mxu0 0.0
        %9394 = vmatpush1.msra.mxu0 0.0
        %9395 = vmatprep.subr.mxu0 0.0
        %v9396 = vand.u32 %v9271, 4294901760
        %v9397 = vsub.f32 %v9271, %v9396
        %v9398 = vand.u32 %v9397, 4294901760
        %v9399 = vsub.f32 %v9397, %v9398
        %v9400 = vand.u32 %v9399, 4294901760
        %9401 = vmatpush1.msra.mxu0 %v9400
        %9402 = vmatprep.subr.mxu0 0.0
        %v9403 = vand.u32 %v9269, 4294901760
        %v9404 = vsub.f32 %v9269, %v9403
        %v9405 = vand.u32 %v9404, 4294901760
        %v9406 = vsub.f32 %v9404, %v9405
        %v9407 = vand.u32 %v9406, 4294901760
        %9408 = vmatpush1.msra.mxu0 %v9407
        %9409 = vmatprep.subr.mxu0 0.0
        %9410 = vmatpush2.msra.mxu0 0.0
        %9411 = vmatprep.subr.mxu0 0.0
        %9412 = vmatpush2.msra.mxu0 0.0
        %9413 = vmatprep.subr.mxu0 0.0
        %9414 = vmatpush2.msra.mxu0 0.0
        %9415 = vmatprep.subr.mxu0 0.0
        %9416 = vmatpush2.msra.mxu0 0.0
        %9417 = vmatprep.subr.mxu0 0.0
        %9418 = vmatpush2.msra.mxu0 0.0
        %9419 = vmatprep.subr.mxu0 0.0
        %9420 = vmatpush2.msra.mxu0 0.0
        %9421 = vmatprep.subr.mxu0 0.0
        %9422 = vmatpush2.msra.mxu0 0.0
        %9423 = vmatprep.subr.mxu0 0.0
        %9424 = vmatpush2.msra.mxu0 0.0
        %9425 = vmatprep.subr.mxu0 0.0
        %9426 = vmatpush2.msra.mxu0 0.0
        %9427 = vmatprep.subr.mxu0 0.0
        %9428 = vmatpush2.msra.mxu0 0.0
        %9429 = vmatprep.subr.mxu0 0.0
        %9430 = vmatpush2.msra.mxu0 0.0
        %9431 = vmatprep.subr.mxu0 0.0
        %9432 = vmatpush2.msra.mxu0 0.0
        %9433 = vmatprep.subr.mxu0 0.0
        %9434 = vmatpush2.msra.mxu0 0.0
        %9435 = vmatprep.subr.mxu0 0.0
        %9436 = vmatpush2.msra.mxu0 0.0
        %9437 = vmatprep.subr.mxu0 0.0
        %9438 = vmatpush2.msra.mxu0 0.0
        %9439 = vmatprep.subr.mxu0 0.0
        %9440 = vmatpush2.msra.mxu0 0.0
        %9441 = vmatprep.mubr.f32.mxu0 0.0
        %v9442 = vand.u32 %v9275, 4294901760
        %9443 = vmatmul.mubr.f32.gmra.mxu0 %v9442
        %v9444 = vpop.f32.mrf.mxu0
        %v9445 = vadd.f32 %v9354, %v9444
        %v9446 = vpop.f32.mrf.mxu0
        %9447 = vmatprep.mubr.f32.mxu0 0.0
        %v9448 = vand.u32 %v9278, 4294901760
        %9449 = vmatmul.mubr.f32.gmra.mxu0 %v9448
        %v9450 = vpop.f32.mrf.mxu0
        %v9451 = vadd.f32 %v9364, %v9450
        %v9452 = vpop.f32.mrf.mxu0
        %9453 = vdwg.mxu0
        %9454 = vmatprep.subr.mxu0 0.0
        %9455 = vmatpush1.msra.mxu0 0.0
        %9456 = vmatprep.subr.mxu0 0.0
        %9457 = vmatpush1.msra.mxu0 0.0
        %9458 = vmatprep.subr.mxu0 0.0
        %9459 = vmatpush1.msra.mxu0 0.0
        %9460 = vmatprep.subr.mxu0 0.0
        %9461 = vmatpush1.msra.mxu0 0.0
        %9462 = vmatprep.subr.mxu0 0.0
        %9463 = vmatpush1.msra.mxu0 0.0
        %9464 = vmatprep.subr.mxu0 0.0
        %9465 = vmatpush1.msra.mxu0 0.0
        %9466 = vmatprep.subr.mxu0 0.0
        %9467 = vmatpush1.msra.mxu0 0.0
        %9468 = vmatprep.subr.mxu0 0.0
        %9469 = vmatpush1.msra.mxu0 0.0
        %9470 = vmatprep.subr.mxu0 0.0
        %9471 = vmatpush1.msra.mxu0 0.0
        %9472 = vmatprep.subr.mxu0 0.0
        %9473 = vmatpush1.msra.mxu0 0.0
        %9474 = vmatprep.subr.mxu0 0.0
        %9475 = vmatpush1.msra.mxu0 0.0
        %9476 = vmatprep.subr.mxu0 0.0
        %9477 = vmatpush1.msra.mxu0 0.0
        %9478 = vmatprep.subr.mxu0 0.0
        %9479 = vmatpush1.msra.mxu0 0.0
        %9480 = vmatprep.subr.mxu0 0.0
        %9481 = vmatpush1.msra.mxu0 0.0
        %9482 = vmatprep.subr.mxu0 0.0
        %v9483 = vand.u32 %v9271, 4294901760
        %v9484 = vsub.f32 %v9271, %v9483
        %9485 = vmatpush1.msra.mxu0 %v9484
        %9486 = vmatprep.subr.mxu0 0.0
        %v9487 = vand.u32 %v9269, 4294901760
        %v9488 = vsub.f32 %v9269, %v9487
        %9489 = vmatpush1.msra.mxu0 %v9488
        %9490 = vmatprep.subr.mxu0 0.0
        %9491 = vmatpush2.msra.mxu0 0.0
        %9492 = vmatprep.subr.mxu0 0.0
        %9493 = vmatpush2.msra.mxu0 0.0
        %9494 = vmatprep.subr.mxu0 0.0
        %9495 = vmatpush2.msra.mxu0 0.0
        %9496 = vmatprep.subr.mxu0 0.0
        %9497 = vmatpush2.msra.mxu0 0.0
        %9498 = vmatprep.subr.mxu0 0.0
        %9499 = vmatpush2.msra.mxu0 0.0
        %9500 = vmatprep.subr.mxu0 0.0
        %9501 = vmatpush2.msra.mxu0 0.0
        %9502 = vmatprep.subr.mxu0 0.0
        %9503 = vmatpush2.msra.mxu0 0.0
        %9504 = vmatprep.subr.mxu0 0.0
        %9505 = vmatpush2.msra.mxu0 0.0
        %9506 = vmatprep.subr.mxu0 0.0
        %9507 = vmatpush2.msra.mxu0 0.0
        %9508 = vmatprep.subr.mxu0 0.0
        %9509 = vmatpush2.msra.mxu0 0.0
        %9510 = vmatprep.subr.mxu0 0.0
        %9511 = vmatpush2.msra.mxu0 0.0
        %9512 = vmatprep.subr.mxu0 0.0
        %9513 = vmatpush2.msra.mxu0 0.0
        %9514 = vmatprep.subr.mxu0 0.0
        %9515 = vmatpush2.msra.mxu0 0.0
        %9516 = vmatprep.subr.mxu0 0.0
        %9517 = vmatpush2.msra.mxu0 0.0
        %9518 = vmatprep.subr.mxu0 0.0
        %9519 = vmatpush2.msra.mxu0 0.0
        %9520 = vmatprep.subr.mxu0 0.0
        %9521 = vmatpush2.msra.mxu0 0.0
        %9522 = vmatprep.mubr.f32.mxu0 0.0
        %v9523 = vand.u32 %v9275, 4294901760
        %v9524 = vsub.f32 %v9275, %v9523
        %9525 = vmatmul.mubr.f32.gmra.mxu0 %v9524
        %v9526 = vpop.f32.mrf.mxu0
        %v9527 = vadd.f32 %v9445, %v9526
        %v9528 = vpop.f32.mrf.mxu0
        %9529 = vmatprep.mubr.f32.mxu0 0.0
        %v9530 = vand.u32 %v9278, 4294901760
        %v9531 = vsub.f32 %v9278, %v9530
        %9532 = vmatmul.mubr.f32.gmra.mxu0 %v9531
        %v9533 = vpop.f32.mrf.mxu0
        %v9534 = vadd.f32 %v9451, %v9533
        %v9535 = vpop.f32.mrf.mxu0
        %9536 = vdwg.mxu0
        %9537 = vmatprep.subr.mxu0 0.0
        %9538 = vmatpush1.msra.mxu0 0.0
        %9539 = vmatprep.subr.mxu0 0.0
        %9540 = vmatpush1.msra.mxu0 0.0
        %9541 = vmatprep.subr.mxu0 0.0
        %9542 = vmatpush1.msra.mxu0 0.0
        %9543 = vmatprep.subr.mxu0 0.0
        %9544 = vmatpush1.msra.mxu0 0.0
        %9545 = vmatprep.subr.mxu0 0.0
        %9546 = vmatpush1.msra.mxu0 0.0
        %9547 = vmatprep.subr.mxu0 0.0
        %9548 = vmatpush1.msra.mxu0 0.0
        %9549 = vmatprep.subr.mxu0 0.0
        %9550 = vmatpush1.msra.mxu0 0.0
        %9551 = vmatprep.subr.mxu0 0.0
        %9552 = vmatpush1.msra.mxu0 0.0
        %9553 = vmatprep.subr.mxu0 0.0
        %9554 = vmatpush1.msra.mxu0 0.0
        %9555 = vmatprep.subr.mxu0 0.0
        %9556 = vmatpush1.msra.mxu0 0.0
        %9557 = vmatprep.subr.mxu0 0.0
        %9558 = vmatpush1.msra.mxu0 0.0
        %9559 = vmatprep.subr.mxu0 0.0
        %9560 = vmatpush1.msra.mxu0 0.0
        %9561 = vmatprep.subr.mxu0 0.0
        %9562 = vmatpush1.msra.mxu0 0.0
        %9563 = vmatprep.subr.mxu0 0.0
        %9564 = vmatpush1.msra.mxu0 0.0
        %9565 = vmatprep.subr.mxu0 0.0
        %v9566 = vand.u32 %v9271, 4294901760
        %9567 = vmatpush1.msra.mxu0 %v9566
        %9568 = vmatprep.subr.mxu0 0.0
        %v9569 = vand.u32 %v9269, 4294901760
        %9570 = vmatpush1.msra.mxu0 %v9569
        %9571 = vmatprep.subr.mxu0 0.0
        %9572 = vmatpush2.msra.mxu0 0.0
        %9573 = vmatprep.subr.mxu0 0.0
        %9574 = vmatpush2.msra.mxu0 0.0
        %9575 = vmatprep.subr.mxu0 0.0
        %9576 = vmatpush2.msra.mxu0 0.0
        %9577 = vmatprep.subr.mxu0 0.0
        %9578 = vmatpush2.msra.mxu0 0.0
        %9579 = vmatprep.subr.mxu0 0.0
        %9580 = vmatpush2.msra.mxu0 0.0
        %9581 = vmatprep.subr.mxu0 0.0
        %9582 = vmatpush2.msra.mxu0 0.0
        %9583 = vmatprep.subr.mxu0 0.0
        %9584 = vmatpush2.msra.mxu0 0.0
        %9585 = vmatprep.subr.mxu0 0.0
        %9586 = vmatpush2.msra.mxu0 0.0
        %9587 = vmatprep.subr.mxu0 0.0
        %9588 = vmatpush2.msra.mxu0 0.0
        %9589 = vmatprep.subr.mxu0 0.0
        %9590 = vmatpush2.msra.mxu0 0.0
        %9591 = vmatprep.subr.mxu0 0.0
        %9592 = vmatpush2.msra.mxu0 0.0
        %9593 = vmatprep.subr.mxu0 0.0
        %9594 = vmatpush2.msra.mxu0 0.0
        %9595 = vmatprep.subr.mxu0 0.0
        %9596 = vmatpush2.msra.mxu0 0.0
        %9597 = vmatprep.subr.mxu0 0.0
        %9598 = vmatpush2.msra.mxu0 0.0
        %9599 = vmatprep.subr.mxu0 0.0
        %9600 = vmatpush2.msra.mxu0 0.0
        %9601 = vmatprep.subr.mxu0 0.0
        %9602 = vmatpush2.msra.mxu0 0.0
        %9603 = vmatprep.mubr.f32.mxu0 0.0
        %v9604 = vand.u32 %v9275, 4294901760
        %v9605 = vsub.f32 %v9275, %v9604
        %v9606 = vand.u32 %v9605, 4294901760
        %9607 = vmatmul.mubr.f32.gmra.mxu0 %v9606
        %v9608 = vpop.f32.mrf.mxu0
        %v9609 = vadd.f32 %v9527, %v9608
        %v9610 = vpop.f32.mrf.mxu0
        %9611 = vmatprep.mubr.f32.mxu0 0.0
        %v9612 = vand.u32 %v9278, 4294901760
        %v9613 = vsub.f32 %v9278, %v9612
        %v9614 = vand.u32 %v9613, 4294901760
        %9615 = vmatmul.mubr.f32.gmra.mxu0 %v9614
        %v9616 = vpop.f32.mrf.mxu0
        %v9617 = vadd.f32 %v9534, %v9616
        %v9618 = vpop.f32.mrf.mxu0
        %9619 = vdwg.mxu0
        %9620 = vmatprep.subr.mxu0 0.0
        %9621 = vmatpush1.msra.mxu0 0.0
        %9622 = vmatprep.subr.mxu0 0.0
        %9623 = vmatpush1.msra.mxu0 0.0
        %9624 = vmatprep.subr.mxu0 0.0
        %9625 = vmatpush1.msra.mxu0 0.0
        %9626 = vmatprep.subr.mxu0 0.0
        %9627 = vmatpush1.msra.mxu0 0.0
        %9628 = vmatprep.subr.mxu0 0.0
        %9629 = vmatpush1.msra.mxu0 0.0
        %9630 = vmatprep.subr.mxu0 0.0
        %9631 = vmatpush1.msra.mxu0 0.0
        %9632 = vmatprep.subr.mxu0 0.0
        %9633 = vmatpush1.msra.mxu0 0.0
        %9634 = vmatprep.subr.mxu0 0.0
        %9635 = vmatpush1.msra.mxu0 0.0
        %9636 = vmatprep.subr.mxu0 0.0
        %9637 = vmatpush1.msra.mxu0 0.0
        %9638 = vmatprep.subr.mxu0 0.0
        %9639 = vmatpush1.msra.mxu0 0.0
        %9640 = vmatprep.subr.mxu0 0.0
        %9641 = vmatpush1.msra.mxu0 0.0
        %9642 = vmatprep.subr.mxu0 0.0
        %9643 = vmatpush1.msra.mxu0 0.0
        %9644 = vmatprep.subr.mxu0 0.0
        %9645 = vmatpush1.msra.mxu0 0.0
        %9646 = vmatprep.subr.mxu0 0.0
        %9647 = vmatpush1.msra.mxu0 0.0
        %9648 = vmatprep.subr.mxu0 0.0
        %v9649 = vand.u32 %v9271, 4294901760
        %v9650 = vsub.f32 %v9271, %v9649
        %v9651 = vand.u32 %v9650, 4294901760
        %9652 = vmatpush1.msra.mxu0 %v9651
        %9653 = vmatprep.subr.mxu0 0.0
        %v9654 = vand.u32 %v9269, 4294901760
        %v9655 = vsub.f32 %v9269, %v9654
        %v9656 = vand.u32 %v9655, 4294901760
        %9657 = vmatpush1.msra.mxu0 %v9656
        %9658 = vmatprep.subr.mxu0 0.0
        %9659 = vmatpush2.msra.mxu0 0.0
        %9660 = vmatprep.subr.mxu0 0.0
        %9661 = vmatpush2.msra.mxu0 0.0
        %9662 = vmatprep.subr.mxu0 0.0
        %9663 = vmatpush2.msra.mxu0 0.0
        %9664 = vmatprep.subr.mxu0 0.0
        %9665 = vmatpush2.msra.mxu0 0.0
        %9666 = vmatprep.subr.mxu0 0.0
        %9667 = vmatpush2.msra.mxu0 0.0
        %9668 = vmatprep.subr.mxu0 0.0
        %9669 = vmatpush2.msra.mxu0 0.0
        %9670 = vmatprep.subr.mxu0 0.0
        %9671 = vmatpush2.msra.mxu0 0.0
        %9672 = vmatprep.subr.mxu0 0.0
        %9673 = vmatpush2.msra.mxu0 0.0
        %9674 = vmatprep.subr.mxu0 0.0
        %9675 = vmatpush2.msra.mxu0 0.0
        %9676 = vmatprep.subr.mxu0 0.0
        %9677 = vmatpush2.msra.mxu0 0.0
        %9678 = vmatprep.subr.mxu0 0.0
        %9679 = vmatpush2.msra.mxu0 0.0
        %9680 = vmatprep.subr.mxu0 0.0
        %9681 = vmatpush2.msra.mxu0 0.0
        %9682 = vmatprep.subr.mxu0 0.0
        %9683 = vmatpush2.msra.mxu0 0.0
        %9684 = vmatprep.subr.mxu0 0.0
        %9685 = vmatpush2.msra.mxu0 0.0
        %9686 = vmatprep.subr.mxu0 0.0
        %9687 = vmatpush2.msra.mxu0 0.0
        %9688 = vmatprep.subr.mxu0 0.0
        %9689 = vmatpush2.msra.mxu0 0.0
        %9690 = vmatprep.mubr.f32.mxu0 0.0
        %v9691 = vand.u32 %v9275, 4294901760
        %9692 = vmatmul.mubr.f32.gmra.mxu0 %v9691
        %v9693 = vpop.f32.mrf.mxu0
        %v9694 = vadd.f32 %v9609, %v9693
        %v9695 = vpop.f32.mrf.mxu0
        %9696 = vmatprep.mubr.f32.mxu0 0.0
        %v9697 = vand.u32 %v9278, 4294901760
        %9698 = vmatmul.mubr.f32.gmra.mxu0 %v9697
        %v9699 = vpop.f32.mrf.mxu0
        %v9700 = vadd.f32 %v9617, %v9699
        %v9701 = vpop.f32.mrf.mxu0
        %9702 = vdwg.mxu0
        %9703 = vmatprep.subr.mxu0 0.0
        %9704 = vmatpush1.msra.mxu0 0.0
        %9705 = vmatprep.subr.mxu0 0.0
        %9706 = vmatpush1.msra.mxu0 0.0
        %9707 = vmatprep.subr.mxu0 0.0
        %9708 = vmatpush1.msra.mxu0 0.0
        %9709 = vmatprep.subr.mxu0 0.0
        %9710 = vmatpush1.msra.mxu0 0.0
        %9711 = vmatprep.subr.mxu0 0.0
        %9712 = vmatpush1.msra.mxu0 0.0
        %9713 = vmatprep.subr.mxu0 0.0
        %9714 = vmatpush1.msra.mxu0 0.0
        %9715 = vmatprep.subr.mxu0 0.0
        %9716 = vmatpush1.msra.mxu0 0.0
        %9717 = vmatprep.subr.mxu0 0.0
        %9718 = vmatpush1.msra.mxu0 0.0
        %9719 = vmatprep.subr.mxu0 0.0
        %9720 = vmatpush1.msra.mxu0 0.0
        %9721 = vmatprep.subr.mxu0 0.0
        %9722 = vmatpush1.msra.mxu0 0.0
        %9723 = vmatprep.subr.mxu0 0.0
        %9724 = vmatpush1.msra.mxu0 0.0
        %9725 = vmatprep.subr.mxu0 0.0
        %9726 = vmatpush1.msra.mxu0 0.0
        %9727 = vmatprep.subr.mxu0 0.0
        %9728 = vmatpush1.msra.mxu0 0.0
        %9729 = vmatprep.subr.mxu0 0.0
        %9730 = vmatpush1.msra.mxu0 0.0
        %9731 = vmatprep.subr.mxu0 0.0
        %v9732 = vand.u32 %v9271, 4294901760
        %9733 = vmatpush1.msra.mxu0 %v9732
        %9734 = vmatprep.subr.mxu0 0.0
        %v9735 = vand.u32 %v9269, 4294901760
        %9736 = vmatpush1.msra.mxu0 %v9735
        %9737 = vmatprep.subr.mxu0 0.0
        %9738 = vmatpush2.msra.mxu0 0.0
        %9739 = vmatprep.subr.mxu0 0.0
        %9740 = vmatpush2.msra.mxu0 0.0
        %9741 = vmatprep.subr.mxu0 0.0
        %9742 = vmatpush2.msra.mxu0 0.0
        %9743 = vmatprep.subr.mxu0 0.0
        %9744 = vmatpush2.msra.mxu0 0.0
        %9745 = vmatprep.subr.mxu0 0.0
        %9746 = vmatpush2.msra.mxu0 0.0
        %9747 = vmatprep.subr.mxu0 0.0
        %9748 = vmatpush2.msra.mxu0 0.0
        %9749 = vmatprep.subr.mxu0 0.0
        %9750 = vmatpush2.msra.mxu0 0.0
        %9751 = vmatprep.subr.mxu0 0.0
        %9752 = vmatpush2.msra.mxu0 0.0
        %9753 = vmatprep.subr.mxu0 0.0
        %9754 = vmatpush2.msra.mxu0 0.0
        %9755 = vmatprep.subr.mxu0 0.0
        %9756 = vmatpush2.msra.mxu0 0.0
        %9757 = vmatprep.subr.mxu0 0.0
        %9758 = vmatpush2.msra.mxu0 0.0
        %9759 = vmatprep.subr.mxu0 0.0
        %9760 = vmatpush2.msra.mxu0 0.0
        %9761 = vmatprep.subr.mxu0 0.0
        %9762 = vmatpush2.msra.mxu0 0.0
        %9763 = vmatprep.subr.mxu0 0.0
        %9764 = vmatpush2.msra.mxu0 0.0
        %9765 = vmatprep.subr.mxu0 0.0
        %9766 = vmatpush2.msra.mxu0 0.0
        %9767 = vmatprep.subr.mxu0 0.0
        %9768 = vmatpush2.msra.mxu0 0.0
        %9769 = vmatprep.mubr.f32.mxu0 0.0
        %v9770 = vand.u32 %v9275, 4294901760
        %9771 = vmatmul.mubr.f32.gmra.mxu0 %v9770
        %v9772 = vpop.f32.mrf.mxu0
        %v9773 = vadd.f32 %v9694, %v9772
        %v9774 = vpop.f32.mrf.mxu0
        %9775 = vmatprep.mubr.f32.mxu0 0.0
        %v9776 = vand.u32 %v9278, 4294901760
        %9777 = vmatmul.mubr.f32.gmra.mxu0 %v9776
        %v9778 = vpop.f32.mrf.mxu0
        %v9779 = vadd.f32 %v9700, %v9778
        %v9780 = vpop.f32.mrf.mxu0
        %9781 = vdwg.mxu0
        %9790 = vrot.lane.b32.xlu0 %v8231, 16
        %v9791 = vpop.permute.xlu0 %9790
        %9792 = vrot.lane.b32.xlu0 %v8237, 16
        %v9793 = vpop.permute.xlu0 %9792
        %9794 = vrot.lane.b32.xlu0 %v8745, 16
        %v9795 = vpop.permute.xlu0 %9794
        %9796 = vrot.lane.b32.xlu0 %v8751, 16
        %v9797 = vpop.permute.xlu0 %9796
        %9798 = vrot.lane.b32.xlu0 %v9259, 16
        %v9799 = vpop.permute.xlu0 %9798
        %9800 = vrot.lane.b32.xlu0 %v9265, 16
        %v9801 = vpop.permute.xlu0 %9800
        %9802 = vrot.lane.b32.xlu0 %v9773, 16
        %v9803 = vpop.permute.xlu0 %9802
        %9804 = vrot.lane.b32.xlu0 %v9779, 16
        %v9805 = vpop.permute.xlu0 %9804
        %v9814 = vsel %vm1352, %v4012, %v9791
        %v9815 = vsel %vm1352, %v4018, %v9793
        %v9816 = vsel %vm1352, %v4526, %v9795
        %v9817 = vsel %vm1352, %v4532, %v9797
        %v9818 = vsel %vm1352, %v5040, %v9799
        %v9819 = vsel %vm1352, %v5046, %v9801
        %v9820 = vsel %vm1352, %v5554, %v9803
        %v9821 = vsel %vm1352, %v5560, %v9805
        %v9822 = vld [vmem:[#allocation7] sm:$0xff]
        %v9823 = vld [vmem:[#allocation7 + $0x8] sm:$0xff]
        %v9824 = vld [vmem:[#allocation7 + $0x10] sm:$0xff]
        %v9825 = vld [vmem:[#allocation7 + $0x18] sm:$0xff]
        %v9826 = vld [vmem:[%s6] sm:$0x1]
        %v9828 = vlaneseq
        %v9829 = vshrl.u32 %v9828, 7
        %v9830 = vsub.s32 0, %v9829
        %v9831 = vrot.slane %v9826, %v9830
        %v9834 = vsel %vm379, %v9814, 0
        %v9837 = vsel %vm379, %v9815, 0
        %v9840 = vsel %vm379, %v9816, 0
        %v9843 = vsel %vm379, %v9817, 0
        %v9846 = vsel %vm379, %v9818, 0
        %v9849 = vsel %vm379, %v9819, 0
        %v9852 = vsel %vm379, %v9820, 0
        %v9855 = vsel %vm379, %v9821, 0
        %9857 = vmatprep.subr.mxu0 0.0
        %9858 = vmatpush1.msra.mxu0 0.0
        %9859 = vmatprep.subr.mxu0 0.0
        %9860 = vmatpush1.msra.mxu0 0.0
        %9861 = vmatprep.subr.mxu0 0.0
        %9862 = vmatpush1.msra.mxu0 0.0
        %9863 = vmatprep.subr.mxu0 0.0
        %9864 = vmatpush1.msra.mxu0 0.0
        %9865 = vmatprep.subr.mxu0 0.0
        %9866 = vmatpush1.msra.mxu0 0.0
        %9867 = vmatprep.subr.mxu0 0.0
        %9868 = vmatpush1.msra.mxu0 0.0
        %9869 = vmatprep.subr.mxu0 0.0
        %9870 = vmatpush1.msra.mxu0 0.0
        %9871 = vmatprep.subr.mxu0 0.0
        %9872 = vmatpush1.msra.mxu0 0.0
        %9873 = vmatprep.subr.mxu0 0.0
        %9874 = vmatpush1.msra.mxu0 0.0
        %9875 = vmatprep.subr.mxu0 0.0
        %9876 = vmatpush1.msra.mxu0 0.0
        %9877 = vmatprep.subr.mxu0 0.0
        %9878 = vmatpush1.msra.mxu0 0.0
        %9879 = vmatprep.subr.mxu0 0.0
        %9880 = vmatpush1.msra.mxu0 0.0
        %9881 = vmatprep.subr.mxu0 0.0
        %v9882 = vand.u32 %v9825, 4294901760
        %9883 = vmatpush1.msra.mxu0 %v9882
        %9884 = vmatprep.subr.mxu0 0.0
        %v9885 = vand.u32 %v9824, 4294901760
        %9886 = vmatpush1.msra.mxu0 %v9885
        %9887 = vmatprep.subr.mxu0 0.0
        %v9888 = vand.u32 %v9823, 4294901760
        %9889 = vmatpush1.msra.mxu0 %v9888
        %9890 = vmatprep.subr.mxu0 0.0
        %v9891 = vand.u32 %v9822, 4294901760
        %9892 = vmatpush1.msra.mxu0 %v9891
        %9893 = vmatprep.subr.mxu0 0.0
        %9894 = vmatpush2.msra.mxu0 0.0
        %9895 = vmatprep.subr.mxu0 0.0
        %9896 = vmatpush2.msra.mxu0 0.0
        %9897 = vmatprep.subr.mxu0 0.0
        %9898 = vmatpush2.msra.mxu0 0.0
        %9899 = vmatprep.subr.mxu0 0.0
        %9900 = vmatpush2.msra.mxu0 0.0
        %9901 = vmatprep.subr.mxu0 0.0
        %9902 = vmatpush2.msra.mxu0 0.0
        %9903 = vmatprep.subr.mxu0 0.0
        %9904 = vmatpush2.msra.mxu0 0.0
        %9905 = vmatprep.subr.mxu0 0.0
        %9906 = vmatpush2.msra.mxu0 0.0
        %9907 = vmatprep.subr.mxu0 0.0
        %9908 = vmatpush2.msra.mxu0 0.0
        %9909 = vmatprep.subr.mxu0 0.0
        %9910 = vmatpush2.msra.mxu0 0.0
        %9911 = vmatprep.subr.mxu0 0.0
        %9912 = vmatpush2.msra.mxu0 0.0
        %9913 = vmatprep.subr.mxu0 0.0
        %9914 = vmatpush2.msra.mxu0 0.0
        %9915 = vmatprep.subr.mxu0 0.0
        %9916 = vmatpush2.msra.mxu0 0.0
        %9917 = vmatprep.subr.mxu0 0.0
        %9918 = vmatpush2.msra.mxu0 0.0
        %9919 = vmatprep.subr.mxu0 0.0
        %9920 = vmatpush2.msra.mxu0 0.0
        %9921 = vmatprep.subr.mxu0 0.0
        %9922 = vmatpush2.msra.mxu0 0.0
        %9923 = vmatprep.subr.mxu0 0.0
        %9924 = vmatpush2.msra.mxu0 0.0
        %9925 = vmatprep.mubr.f32.mxu0 0.0
        %v9926 = vand.u32 %v9834, 4294901760
        %v9927 = vsub.f32 %v9834, %v9926
        %v9928 = vand.u32 %v9927, 4294901760
        %v9929 = vsub.f32 %v9927, %v9928
        %v9930 = vand.u32 %v9929, 4294901760
        %9931 = vmatmul.mubr.f32.gmra.mxu0 %v9930
        %v9932 = vpop.f32.mrf.mxu0
        %v9933 = vadd.f32 %v9831, %v9932
        %v9934 = vpop.f32.mrf.mxu0
        %9935 = vmatprep.mubr.f32.mxu0 0.0
        %v9936 = vand.u32 %v9837, 4294901760
        %v9937 = vsub.f32 %v9837, %v9936
        %v9938 = vand.u32 %v9937, 4294901760
        %v9939 = vsub.f32 %v9937, %v9938
        %v9940 = vand.u32 %v9939, 4294901760
        %9941 = vmatmul.mubr.f32.gmra.mxu0 %v9940
        %v9942 = vpop.f32.mrf.mxu0
        %v9943 = vadd.f32 %v9831, %v9942
        %v9944 = vpop.f32.mrf.mxu0
        %9945 = vmatprep.mubr.f32.mxu0 0.0
        %v9946 = vand.u32 %v9840, 4294901760
        %v9947 = vsub.f32 %v9840, %v9946
        %v9948 = vand.u32 %v9947, 4294901760
        %v9949 = vsub.f32 %v9947, %v9948
        %v9950 = vand.u32 %v9949, 4294901760
        %9951 = vmatmul.mubr.f32.gmra.mxu0 %v9950
        %v9952 = vpop.f32.mrf.mxu0
        %v9953 = vadd.f32 %v9831, %v9952
        %v9954 = vpop.f32.mrf.mxu0
        %9955 = vmatprep.mubr.f32.mxu0 0.0
        %v9956 = vand.u32 %v9843, 4294901760
        %v9957 = vsub.f32 %v9843, %v9956
        %v9958 = vand.u32 %v9957, 4294901760
        %v9959 = vsub.f32 %v9957, %v9958
        %v9960 = vand.u32 %v9959, 4294901760
        %9961 = vmatmul.mubr.f32.gmra.mxu0 %v9960
        %v9962 = vpop.f32.mrf.mxu0
        %v9963 = vadd.f32 %v9831, %v9962
        %v9964 = vpop.f32.mrf.mxu0
        %9965 = vmatprep.mubr.f32.mxu0 0.0
        %v9966 = vand.u32 %v9846, 4294901760
        %v9967 = vsub.f32 %v9846, %v9966
        %v9968 = vand.u32 %v9967, 4294901760
        %v9969 = vsub.f32 %v9967, %v9968
        %v9970 = vand.u32 %v9969, 4294901760
        %9971 = vmatmul.mubr.f32.gmra.mxu0 %v9970
        %v9972 = vpop.f32.mrf.mxu0
        %v9973 = vadd.f32 %v9831, %v9972
        %v9974 = vpop.f32.mrf.mxu0
        %9975 = vmatprep.mubr.f32.mxu0 0.0
        %v9976 = vand.u32 %v9849, 4294901760
        %v9977 = vsub.f32 %v9849, %v9976
        %v9978 = vand.u32 %v9977, 4294901760
        %v9979 = vsub.f32 %v9977, %v9978
        %v9980 = vand.u32 %v9979, 4294901760
        %9981 = vmatmul.mubr.f32.gmra.mxu0 %v9980
        %v9982 = vpop.f32.mrf.mxu0
        %v9983 = vadd.f32 %v9831, %v9982
        %v9984 = vpop.f32.mrf.mxu0
        %9985 = vmatprep.mubr.f32.mxu0 0.0
        %v9986 = vand.u32 %v9852, 4294901760
        %v9987 = vsub.f32 %v9852, %v9986
        %v9988 = vand.u32 %v9987, 4294901760
        %v9989 = vsub.f32 %v9987, %v9988
        %v9990 = vand.u32 %v9989, 4294901760
        %9991 = vmatmul.mubr.f32.gmra.mxu0 %v9990
        %v9992 = vpop.f32.mrf.mxu0
        %v9993 = vadd.f32 %v9831, %v9992
        %v9994 = vpop.f32.mrf.mxu0
        %9995 = vmatprep.mubr.f32.mxu0 0.0
        %v9996 = vand.u32 %v9855, 4294901760
        %v9997 = vsub.f32 %v9855, %v9996
        %v9998 = vand.u32 %v9997, 4294901760
        %v9999 = vsub.f32 %v9997, %v9998
        %v10000 = vand.u32 %v9999, 4294901760
        %10001 = vmatmul.mubr.f32.gmra.mxu0 %v10000
        %v10002 = vpop.f32.mrf.mxu0
        %v10003 = vadd.f32 %v9831, %v10002
        %v10004 = vpop.f32.mrf.mxu0
        %10005 = vdwg.mxu0
        %10006 = vmatprep.subr.mxu0 0.0
        %10007 = vmatpush1.msra.mxu0 0.0
        %10008 = vmatprep.subr.mxu0 0.0
        %10009 = vmatpush1.msra.mxu0 0.0
        %10010 = vmatprep.subr.mxu0 0.0
        %10011 = vmatpush1.msra.mxu0 0.0
        %10012 = vmatprep.subr.mxu0 0.0
        %10013 = vmatpush1.msra.mxu0 0.0
        %10014 = vmatprep.subr.mxu0 0.0
        %10015 = vmatpush1.msra.mxu0 0.0
        %10016 = vmatprep.subr.mxu0 0.0
        %10017 = vmatpush1.msra.mxu0 0.0
        %10018 = vmatprep.subr.mxu0 0.0
        %10019 = vmatpush1.msra.mxu0 0.0
        %10020 = vmatprep.subr.mxu0 0.0
        %10021 = vmatpush1.msra.mxu0 0.0
        %10022 = vmatprep.subr.mxu0 0.0
        %10023 = vmatpush1.msra.mxu0 0.0
        %10024 = vmatprep.subr.mxu0 0.0
        %10025 = vmatpush1.msra.mxu0 0.0
        %10026 = vmatprep.subr.mxu0 0.0
        %10027 = vmatpush1.msra.mxu0 0.0
        %10028 = vmatprep.subr.mxu0 0.0
        %10029 = vmatpush1.msra.mxu0 0.0
        %10030 = vmatprep.subr.mxu0 0.0
        %v10031 = vand.u32 %v9825, 4294901760
        %v10032 = vsub.f32 %v9825, %v10031
        %v10033 = vand.u32 %v10032, 4294901760
        %v10034 = vsub.f32 %v10032, %v10033
        %v10035 = vand.u32 %v10034, 4294901760
        %10036 = vmatpush1.msra.mxu0 %v10035
        %10037 = vmatprep.subr.mxu0 0.0
        %v10038 = vand.u32 %v9824, 4294901760
        %v10039 = vsub.f32 %v9824, %v10038
        %v10040 = vand.u32 %v10039, 4294901760
        %v10041 = vsub.f32 %v10039, %v10040
        %v10042 = vand.u32 %v10041, 4294901760
        %10043 = vmatpush1.msra.mxu0 %v10042
        %10044 = vmatprep.subr.mxu0 0.0
        %v10045 = vand.u32 %v9823, 4294901760
        %v10046 = vsub.f32 %v9823, %v10045
        %v10047 = vand.u32 %v10046, 4294901760
        %v10048 = vsub.f32 %v10046, %v10047
        %v10049 = vand.u32 %v10048, 4294901760
        %10050 = vmatpush1.msra.mxu0 %v10049
        %10051 = vmatprep.subr.mxu0 0.0
        %v10052 = vand.u32 %v9822, 4294901760
        %v10053 = vsub.f32 %v9822, %v10052
        %v10054 = vand.u32 %v10053, 4294901760
        %v10055 = vsub.f32 %v10053, %v10054
        %v10056 = vand.u32 %v10055, 4294901760
        %10057 = vmatpush1.msra.mxu0 %v10056
        %10058 = vmatprep.subr.mxu0 0.0
        %10059 = vmatpush2.msra.mxu0 0.0
        %10060 = vmatprep.subr.mxu0 0.0
        %10061 = vmatpush2.msra.mxu0 0.0
        %10062 = vmatprep.subr.mxu0 0.0
        %10063 = vmatpush2.msra.mxu0 0.0
        %10064 = vmatprep.subr.mxu0 0.0
        %10065 = vmatpush2.msra.mxu0 0.0
        %10066 = vmatprep.subr.mxu0 0.0
        %10067 = vmatpush2.msra.mxu0 0.0
        %10068 = vmatprep.subr.mxu0 0.0
        %10069 = vmatpush2.msra.mxu0 0.0
        %10070 = vmatprep.subr.mxu0 0.0
        %10071 = vmatpush2.msra.mxu0 0.0
        %10072 = vmatprep.subr.mxu0 0.0
        %10073 = vmatpush2.msra.mxu0 0.0
        %10074 = vmatprep.subr.mxu0 0.0
        %10075 = vmatpush2.msra.mxu0 0.0
        %10076 = vmatprep.subr.mxu0 0.0
        %10077 = vmatpush2.msra.mxu0 0.0
        %10078 = vmatprep.subr.mxu0 0.0
        %10079 = vmatpush2.msra.mxu0 0.0
        %10080 = vmatprep.subr.mxu0 0.0
        %10081 = vmatpush2.msra.mxu0 0.0
        %10082 = vmatprep.subr.mxu0 0.0
        %10083 = vmatpush2.msra.mxu0 0.0
        %10084 = vmatprep.subr.mxu0 0.0
        %10085 = vmatpush2.msra.mxu0 0.0
        %10086 = vmatprep.subr.mxu0 0.0
        %10087 = vmatpush2.msra.mxu0 0.0
        %10088 = vmatprep.subr.mxu0 0.0
        %10089 = vmatpush2.msra.mxu0 0.0
        %10090 = vmatprep.mubr.f32.mxu0 0.0
        %v10091 = vand.u32 %v9834, 4294901760
        %10092 = vmatmul.mubr.f32.gmra.mxu0 %v10091
        %v10093 = vpop.f32.mrf.mxu0
        %v10094 = vadd.f32 %v9933, %v10093
        %v10095 = vpop.f32.mrf.mxu0
        %10096 = vmatprep.mubr.f32.mxu0 0.0
        %v10097 = vand.u32 %v9837, 4294901760
        %10098 = vmatmul.mubr.f32.gmra.mxu0 %v10097
        %v10099 = vpop.f32.mrf.mxu0
        %v10100 = vadd.f32 %v9943, %v10099
        %v10101 = vpop.f32.mrf.mxu0
        %10102 = vmatprep.mubr.f32.mxu0 0.0
        %v10103 = vand.u32 %v9840, 4294901760
        %10104 = vmatmul.mubr.f32.gmra.mxu0 %v10103
        %v10105 = vpop.f32.mrf.mxu0
        %v10106 = vadd.f32 %v9953, %v10105
        %v10107 = vpop.f32.mrf.mxu0
        %10108 = vmatprep.mubr.f32.mxu0 0.0
        %v10109 = vand.u32 %v9843, 4294901760
        %10110 = vmatmul.mubr.f32.gmra.mxu0 %v10109
        %v10111 = vpop.f32.mrf.mxu0
        %v10112 = vadd.f32 %v9963, %v10111
        %v10113 = vpop.f32.mrf.mxu0
        %10114 = vmatprep.mubr.f32.mxu0 0.0
        %v10115 = vand.u32 %v9846, 4294901760
        %10116 = vmatmul.mubr.f32.gmra.mxu0 %v10115
        %v10117 = vpop.f32.mrf.mxu0
        %v10118 = vadd.f32 %v9973, %v10117
        %v10119 = vpop.f32.mrf.mxu0
        %10120 = vmatprep.mubr.f32.mxu0 0.0
        %v10121 = vand.u32 %v9849, 4294901760
        %10122 = vmatmul.mubr.f32.gmra.mxu0 %v10121
        %v10123 = vpop.f32.mrf.mxu0
        %v10124 = vadd.f32 %v9983, %v10123
        %v10125 = vpop.f32.mrf.mxu0
        %10126 = vmatprep.mubr.f32.mxu0 0.0
        %v10127 = vand.u32 %v9852, 4294901760
        %10128 = vmatmul.mubr.f32.gmra.mxu0 %v10127
        %v10129 = vpop.f32.mrf.mxu0
        %v10130 = vadd.f32 %v9993, %v10129
        %v10131 = vpop.f32.mrf.mxu0
        %10132 = vmatprep.mubr.f32.mxu0 0.0
        %v10133 = vand.u32 %v9855, 4294901760
        %10134 = vmatmul.mubr.f32.gmra.mxu0 %v10133
        %v10135 = vpop.f32.mrf.mxu0
        %v10136 = vadd.f32 %v10003, %v10135
        %v10137 = vpop.f32.mrf.mxu0
        %10138 = vdwg.mxu0
        %10139 = vmatprep.subr.mxu0 0.0
        %10140 = vmatpush1.msra.mxu0 0.0
        %10141 = vmatprep.subr.mxu0 0.0
        %10142 = vmatpush1.msra.mxu0 0.0
        %10143 = vmatprep.subr.mxu0 0.0
        %10144 = vmatpush1.msra.mxu0 0.0
        %10145 = vmatprep.subr.mxu0 0.0
        %10146 = vmatpush1.msra.mxu0 0.0
        %10147 = vmatprep.subr.mxu0 0.0
        %10148 = vmatpush1.msra.mxu0 0.0
        %10149 = vmatprep.subr.mxu0 0.0
        %10150 = vmatpush1.msra.mxu0 0.0
        %10151 = vmatprep.subr.mxu0 0.0
        %10152 = vmatpush1.msra.mxu0 0.0
        %10153 = vmatprep.subr.mxu0 0.0
        %10154 = vmatpush1.msra.mxu0 0.0
        %10155 = vmatprep.subr.mxu0 0.0
        %10156 = vmatpush1.msra.mxu0 0.0
        %10157 = vmatprep.subr.mxu0 0.0
        %10158 = vmatpush1.msra.mxu0 0.0
        %10159 = vmatprep.subr.mxu0 0.0
        %10160 = vmatpush1.msra.mxu0 0.0
        %10161 = vmatprep.subr.mxu0 0.0
        %10162 = vmatpush1.msra.mxu0 0.0
        %10163 = vmatprep.subr.mxu0 0.0
        %v10164 = vand.u32 %v9825, 4294901760
        %v10165 = vsub.f32 %v9825, %v10164
        %10166 = vmatpush1.msra.mxu0 %v10165
        %10167 = vmatprep.subr.mxu0 0.0
        %v10168 = vand.u32 %v9824, 4294901760
        %v10169 = vsub.f32 %v9824, %v10168
        %10170 = vmatpush1.msra.mxu0 %v10169
        %10171 = vmatprep.subr.mxu0 0.0
        %v10172 = vand.u32 %v9823, 4294901760
        %v10173 = vsub.f32 %v9823, %v10172
        %10174 = vmatpush1.msra.mxu0 %v10173
        %10175 = vmatprep.subr.mxu0 0.0
        %v10176 = vand.u32 %v9822, 4294901760
        %v10177 = vsub.f32 %v9822, %v10176
        %10178 = vmatpush1.msra.mxu0 %v10177
        %10179 = vmatprep.subr.mxu0 0.0
        %10180 = vmatpush2.msra.mxu0 0.0
        %10181 = vmatprep.subr.mxu0 0.0
        %10182 = vmatpush2.msra.mxu0 0.0
        %10183 = vmatprep.subr.mxu0 0.0
        %10184 = vmatpush2.msra.mxu0 0.0
        %10185 = vmatprep.subr.mxu0 0.0
        %10186 = vmatpush2.msra.mxu0 0.0
        %10187 = vmatprep.subr.mxu0 0.0
        %10188 = vmatpush2.msra.mxu0 0.0
        %10189 = vmatprep.subr.mxu0 0.0
        %10190 = vmatpush2.msra.mxu0 0.0
        %10191 = vmatprep.subr.mxu0 0.0
        %10192 = vmatpush2.msra.mxu0 0.0
        %10193 = vmatprep.subr.mxu0 0.0
        %10194 = vmatpush2.msra.mxu0 0.0
        %10195 = vmatprep.subr.mxu0 0.0
        %10196 = vmatpush2.msra.mxu0 0.0
        %10197 = vmatprep.subr.mxu0 0.0
        %10198 = vmatpush2.msra.mxu0 0.0
        %10199 = vmatprep.subr.mxu0 0.0
        %10200 = vmatpush2.msra.mxu0 0.0
        %10201 = vmatprep.subr.mxu0 0.0
        %10202 = vmatpush2.msra.mxu0 0.0
        %10203 = vmatprep.subr.mxu0 0.0
        %10204 = vmatpush2.msra.mxu0 0.0
        %10205 = vmatprep.subr.mxu0 0.0
        %10206 = vmatpush2.msra.mxu0 0.0
        %10207 = vmatprep.subr.mxu0 0.0
        %10208 = vmatpush2.msra.mxu0 0.0
        %10209 = vmatprep.subr.mxu0 0.0
        %10210 = vmatpush2.msra.mxu0 0.0
        %10211 = vmatprep.mubr.f32.mxu0 0.0
        %v10212 = vand.u32 %v9834, 4294901760
        %v10213 = vsub.f32 %v9834, %v10212
        %10214 = vmatmul.mubr.f32.gmra.mxu0 %v10213
        %v10215 = vpop.f32.mrf.mxu0
        %v10216 = vadd.f32 %v10094, %v10215
        %v10217 = vpop.f32.mrf.mxu0
        %10218 = vmatprep.mubr.f32.mxu0 0.0
        %v10219 = vand.u32 %v9837, 4294901760
        %v10220 = vsub.f32 %v9837, %v10219
        %10221 = vmatmul.mubr.f32.gmra.mxu0 %v10220
        %v10222 = vpop.f32.mrf.mxu0
        %v10223 = vadd.f32 %v10100, %v10222
        %v10224 = vpop.f32.mrf.mxu0
        %10225 = vmatprep.mubr.f32.mxu0 0.0
        %v10226 = vand.u32 %v9840, 4294901760
        %v10227 = vsub.f32 %v9840, %v10226
        %10228 = vmatmul.mubr.f32.gmra.mxu0 %v10227
        %v10229 = vpop.f32.mrf.mxu0
        %v10230 = vadd.f32 %v10106, %v10229
        %v10231 = vpop.f32.mrf.mxu0
        %10232 = vmatprep.mubr.f32.mxu0 0.0
        %v10233 = vand.u32 %v9843, 4294901760
        %v10234 = vsub.f32 %v9843, %v10233
        %10235 = vmatmul.mubr.f32.gmra.mxu0 %v10234
        %v10236 = vpop.f32.mrf.mxu0
        %v10237 = vadd.f32 %v10112, %v10236
        %v10238 = vpop.f32.mrf.mxu0
        %10239 = vmatprep.mubr.f32.mxu0 0.0
        %v10240 = vand.u32 %v9846, 4294901760
        %v10241 = vsub.f32 %v9846, %v10240
        %10242 = vmatmul.mubr.f32.gmra.mxu0 %v10241
        %v10243 = vpop.f32.mrf.mxu0
        %v10244 = vadd.f32 %v10118, %v10243
        %v10245 = vpop.f32.mrf.mxu0
        %10246 = vmatprep.mubr.f32.mxu0 0.0
        %v10247 = vand.u32 %v9849, 4294901760
        %v10248 = vsub.f32 %v9849, %v10247
        %10249 = vmatmul.mubr.f32.gmra.mxu0 %v10248
        %v10250 = vpop.f32.mrf.mxu0
        %v10251 = vadd.f32 %v10124, %v10250
        %v10252 = vpop.f32.mrf.mxu0
        %10253 = vmatprep.mubr.f32.mxu0 0.0
        %v10254 = vand.u32 %v9852, 4294901760
        %v10255 = vsub.f32 %v9852, %v10254
        %10256 = vmatmul.mubr.f32.gmra.mxu0 %v10255
        %v10257 = vpop.f32.mrf.mxu0
        %v10258 = vadd.f32 %v10130, %v10257
        %v10259 = vpop.f32.mrf.mxu0
        %10260 = vmatprep.mubr.f32.mxu0 0.0
        %v10261 = vand.u32 %v9855, 4294901760
        %v10262 = vsub.f32 %v9855, %v10261
        %10263 = vmatmul.mubr.f32.gmra.mxu0 %v10262
        %v10264 = vpop.f32.mrf.mxu0
        %v10265 = vadd.f32 %v10136, %v10264
        %v10266 = vpop.f32.mrf.mxu0
        %10267 = vdwg.mxu0
        %10268 = vmatprep.subr.mxu0 0.0
        %10269 = vmatpush1.msra.mxu0 0.0
        %10270 = vmatprep.subr.mxu0 0.0
        %10271 = vmatpush1.msra.mxu0 0.0
        %10272 = vmatprep.subr.mxu0 0.0
        %10273 = vmatpush1.msra.mxu0 0.0
        %10274 = vmatprep.subr.mxu0 0.0
        %10275 = vmatpush1.msra.mxu0 0.0
        %10276 = vmatprep.subr.mxu0 0.0
        %10277 = vmatpush1.msra.mxu0 0.0
        %10278 = vmatprep.subr.mxu0 0.0
        %10279 = vmatpush1.msra.mxu0 0.0
        %10280 = vmatprep.subr.mxu0 0.0
        %10281 = vmatpush1.msra.mxu0 0.0
        %10282 = vmatprep.subr.mxu0 0.0
        %10283 = vmatpush1.msra.mxu0 0.0
        %10284 = vmatprep.subr.mxu0 0.0
        %10285 = vmatpush1.msra.mxu0 0.0
        %10286 = vmatprep.subr.mxu0 0.0
        %10287 = vmatpush1.msra.mxu0 0.0
        %10288 = vmatprep.subr.mxu0 0.0
        %10289 = vmatpush1.msra.mxu0 0.0
        %10290 = vmatprep.subr.mxu0 0.0
        %10291 = vmatpush1.msra.mxu0 0.0
        %10292 = vmatprep.subr.mxu0 0.0
        %v10293 = vand.u32 %v9825, 4294901760
        %10294 = vmatpush1.msra.mxu0 %v10293
        %10295 = vmatprep.subr.mxu0 0.0
        %v10296 = vand.u32 %v9824, 4294901760
        %10297 = vmatpush1.msra.mxu0 %v10296
        %10298 = vmatprep.subr.mxu0 0.0
        %v10299 = vand.u32 %v9823, 4294901760
        %10300 = vmatpush1.msra.mxu0 %v10299
        %10301 = vmatprep.subr.mxu0 0.0
        %v10302 = vand.u32 %v9822, 4294901760
        %10303 = vmatpush1.msra.mxu0 %v10302
        %10304 = vmatprep.subr.mxu0 0.0
        %10305 = vmatpush2.msra.mxu0 0.0
        %10306 = vmatprep.subr.mxu0 0.0
        %10307 = vmatpush2.msra.mxu0 0.0
        %10308 = vmatprep.subr.mxu0 0.0
        %10309 = vmatpush2.msra.mxu0 0.0
        %10310 = vmatprep.subr.mxu0 0.0
        %10311 = vmatpush2.msra.mxu0 0.0
        %10312 = vmatprep.subr.mxu0 0.0
        %10313 = vmatpush2.msra.mxu0 0.0
        %10314 = vmatprep.subr.mxu0 0.0
        %10315 = vmatpush2.msra.mxu0 0.0
        %10316 = vmatprep.subr.mxu0 0.0
        %10317 = vmatpush2.msra.mxu0 0.0
        %10318 = vmatprep.subr.mxu0 0.0
        %10319 = vmatpush2.msra.mxu0 0.0
        %10320 = vmatprep.subr.mxu0 0.0
        %10321 = vmatpush2.msra.mxu0 0.0
        %10322 = vmatprep.subr.mxu0 0.0
        %10323 = vmatpush2.msra.mxu0 0.0
        %10324 = vmatprep.subr.mxu0 0.0
        %10325 = vmatpush2.msra.mxu0 0.0
        %10326 = vmatprep.subr.mxu0 0.0
        %10327 = vmatpush2.msra.mxu0 0.0
        %10328 = vmatprep.subr.mxu0 0.0
        %10329 = vmatpush2.msra.mxu0 0.0
        %10330 = vmatprep.subr.mxu0 0.0
        %10331 = vmatpush2.msra.mxu0 0.0
        %10332 = vmatprep.subr.mxu0 0.0
        %10333 = vmatpush2.msra.mxu0 0.0
        %10334 = vmatprep.subr.mxu0 0.0
        %10335 = vmatpush2.msra.mxu0 0.0
        %10336 = vmatprep.mubr.f32.mxu0 0.0
        %v10337 = vand.u32 %v9834, 4294901760
        %v10338 = vsub.f32 %v9834, %v10337
        %v10339 = vand.u32 %v10338, 4294901760
        %10340 = vmatmul.mubr.f32.gmra.mxu0 %v10339
        %v10341 = vpop.f32.mrf.mxu0
        %v10342 = vadd.f32 %v10216, %v10341
        %v10343 = vpop.f32.mrf.mxu0
        %10344 = vmatprep.mubr.f32.mxu0 0.0
        %v10345 = vand.u32 %v9837, 4294901760
        %v10346 = vsub.f32 %v9837, %v10345
        %v10347 = vand.u32 %v10346, 4294901760
        %10348 = vmatmul.mubr.f32.gmra.mxu0 %v10347
        %v10349 = vpop.f32.mrf.mxu0
        %v10350 = vadd.f32 %v10223, %v10349
        %v10351 = vpop.f32.mrf.mxu0
        %10352 = vmatprep.mubr.f32.mxu0 0.0
        %v10353 = vand.u32 %v9840, 4294901760
        %v10354 = vsub.f32 %v9840, %v10353
        %v10355 = vand.u32 %v10354, 4294901760
        %10356 = vmatmul.mubr.f32.gmra.mxu0 %v10355
        %v10357 = vpop.f32.mrf.mxu0
        %v10358 = vadd.f32 %v10230, %v10357
        %v10359 = vpop.f32.mrf.mxu0
        %10360 = vmatprep.mubr.f32.mxu0 0.0
        %v10361 = vand.u32 %v9843, 4294901760
        %v10362 = vsub.f32 %v9843, %v10361
        %v10363 = vand.u32 %v10362, 4294901760
        %10364 = vmatmul.mubr.f32.gmra.mxu0 %v10363
        %v10365 = vpop.f32.mrf.mxu0
        %v10366 = vadd.f32 %v10237, %v10365
        %v10367 = vpop.f32.mrf.mxu0
        %10368 = vmatprep.mubr.f32.mxu0 0.0
        %v10369 = vand.u32 %v9846, 4294901760
        %v10370 = vsub.f32 %v9846, %v10369
        %v10371 = vand.u32 %v10370, 4294901760
        %10372 = vmatmul.mubr.f32.gmra.mxu0 %v10371
        %v10373 = vpop.f32.mrf.mxu0
        %v10374 = vadd.f32 %v10244, %v10373
        %v10375 = vpop.f32.mrf.mxu0
        %10376 = vmatprep.mubr.f32.mxu0 0.0
        %v10377 = vand.u32 %v9849, 4294901760
        %v10378 = vsub.f32 %v9849, %v10377
        %v10379 = vand.u32 %v10378, 4294901760
        %10380 = vmatmul.mubr.f32.gmra.mxu0 %v10379
        %v10381 = vpop.f32.mrf.mxu0
        %v10382 = vadd.f32 %v10251, %v10381
        %v10383 = vpop.f32.mrf.mxu0
        %10384 = vmatprep.mubr.f32.mxu0 0.0
        %v10385 = vand.u32 %v9852, 4294901760
        %v10386 = vsub.f32 %v9852, %v10385
        %v10387 = vand.u32 %v10386, 4294901760
        %10388 = vmatmul.mubr.f32.gmra.mxu0 %v10387
        %v10389 = vpop.f32.mrf.mxu0
        %v10390 = vadd.f32 %v10258, %v10389
        %v10391 = vpop.f32.mrf.mxu0
        %10392 = vmatprep.mubr.f32.mxu0 0.0
        %v10393 = vand.u32 %v9855, 4294901760
        %v10394 = vsub.f32 %v9855, %v10393
        %v10395 = vand.u32 %v10394, 4294901760
        %10396 = vmatmul.mubr.f32.gmra.mxu0 %v10395
        %v10397 = vpop.f32.mrf.mxu0
        %v10398 = vadd.f32 %v10265, %v10397
        %v10399 = vpop.f32.mrf.mxu0
        %10400 = vdwg.mxu0
        %10401 = vmatprep.subr.mxu0 0.0
        %10402 = vmatpush1.msra.mxu0 0.0
        %10403 = vmatprep.subr.mxu0 0.0
        %10404 = vmatpush1.msra.mxu0 0.0
        %10405 = vmatprep.subr.mxu0 0.0
        %10406 = vmatpush1.msra.mxu0 0.0
        %10407 = vmatprep.subr.mxu0 0.0
        %10408 = vmatpush1.msra.mxu0 0.0
        %10409 = vmatprep.subr.mxu0 0.0
        %10410 = vmatpush1.msra.mxu0 0.0
        %10411 = vmatprep.subr.mxu0 0.0
        %10412 = vmatpush1.msra.mxu0 0.0
        %10413 = vmatprep.subr.mxu0 0.0
        %10414 = vmatpush1.msra.mxu0 0.0
        %10415 = vmatprep.subr.mxu0 0.0
        %10416 = vmatpush1.msra.mxu0 0.0
        %10417 = vmatprep.subr.mxu0 0.0
        %10418 = vmatpush1.msra.mxu0 0.0
        %10419 = vmatprep.subr.mxu0 0.0
        %10420 = vmatpush1.msra.mxu0 0.0
        %10421 = vmatprep.subr.mxu0 0.0
        %10422 = vmatpush1.msra.mxu0 0.0
        %10423 = vmatprep.subr.mxu0 0.0
        %10424 = vmatpush1.msra.mxu0 0.0
        %10425 = vmatprep.subr.mxu0 0.0
        %v10426 = vand.u32 %v9825, 4294901760
        %v10427 = vsub.f32 %v9825, %v10426
        %v10428 = vand.u32 %v10427, 4294901760
        %10429 = vmatpush1.msra.mxu0 %v10428
        %10430 = vmatprep.subr.mxu0 0.0
        %v10431 = vand.u32 %v9824, 4294901760
        %v10432 = vsub.f32 %v9824, %v10431
        %v10433 = vand.u32 %v10432, 4294901760
        %10434 = vmatpush1.msra.mxu0 %v10433
        %10435 = vmatprep.subr.mxu0 0.0
        %v10436 = vand.u32 %v9823, 4294901760
        %v10437 = vsub.f32 %v9823, %v10436
        %v10438 = vand.u32 %v10437, 4294901760
        %10439 = vmatpush1.msra.mxu0 %v10438
        %10440 = vmatprep.subr.mxu0 0.0
        %v10441 = vand.u32 %v9822, 4294901760
        %v10442 = vsub.f32 %v9822, %v10441
        %v10443 = vand.u32 %v10442, 4294901760
        %10444 = vmatpush1.msra.mxu0 %v10443
        %10445 = vmatprep.subr.mxu0 0.0
        %10446 = vmatpush2.msra.mxu0 0.0
        %10447 = vmatprep.subr.mxu0 0.0
        %10448 = vmatpush2.msra.mxu0 0.0
        %10449 = vmatprep.subr.mxu0 0.0
        %10450 = vmatpush2.msra.mxu0 0.0
        %10451 = vmatprep.subr.mxu0 0.0
        %10452 = vmatpush2.msra.mxu0 0.0
        %10453 = vmatprep.subr.mxu0 0.0
        %10454 = vmatpush2.msra.mxu0 0.0
        %10455 = vmatprep.subr.mxu0 0.0
        %10456 = vmatpush2.msra.mxu0 0.0
        %10457 = vmatprep.subr.mxu0 0.0
        %10458 = vmatpush2.msra.mxu0 0.0
        %10459 = vmatprep.subr.mxu0 0.0
        %10460 = vmatpush2.msra.mxu0 0.0
        %10461 = vmatprep.subr.mxu0 0.0
        %10462 = vmatpush2.msra.mxu0 0.0
        %10463 = vmatprep.subr.mxu0 0.0
        %10464 = vmatpush2.msra.mxu0 0.0
        %10465 = vmatprep.subr.mxu0 0.0
        %10466 = vmatpush2.msra.mxu0 0.0
        %10467 = vmatprep.subr.mxu0 0.0
        %10468 = vmatpush2.msra.mxu0 0.0
        %10469 = vmatprep.subr.mxu0 0.0
        %10470 = vmatpush2.msra.mxu0 0.0
        %10471 = vmatprep.subr.mxu0 0.0
        %10472 = vmatpush2.msra.mxu0 0.0
        %10473 = vmatprep.subr.mxu0 0.0
        %10474 = vmatpush2.msra.mxu0 0.0
        %10475 = vmatprep.subr.mxu0 0.0
        %10476 = vmatpush2.msra.mxu0 0.0
        %10477 = vmatprep.mubr.f32.mxu0 0.0
        %v10478 = vand.u32 %v9834, 4294901760
        %10479 = vmatmul.mubr.f32.gmra.mxu0 %v10478
        %v10480 = vpop.f32.mrf.mxu0
        %v10481 = vadd.f32 %v10342, %v10480
        %v10482 = vpop.f32.mrf.mxu0
        %10483 = vmatprep.mubr.f32.mxu0 0.0
        %v10484 = vand.u32 %v9837, 4294901760
        %10485 = vmatmul.mubr.f32.gmra.mxu0 %v10484
        %v10486 = vpop.f32.mrf.mxu0
        %v10487 = vadd.f32 %v10350, %v10486
        %v10488 = vpop.f32.mrf.mxu0
        %10489 = vmatprep.mubr.f32.mxu0 0.0
        %v10490 = vand.u32 %v9840, 4294901760
        %10491 = vmatmul.mubr.f32.gmra.mxu0 %v10490
        %v10492 = vpop.f32.mrf.mxu0
        %v10493 = vadd.f32 %v10358, %v10492
        %v10494 = vpop.f32.mrf.mxu0
        %10495 = vmatprep.mubr.f32.mxu0 0.0
        %v10496 = vand.u32 %v9843, 4294901760
        %10497 = vmatmul.mubr.f32.gmra.mxu0 %v10496
        %v10498 = vpop.f32.mrf.mxu0
        %v10499 = vadd.f32 %v10366, %v10498
        %v10500 = vpop.f32.mrf.mxu0
        %10501 = vmatprep.mubr.f32.mxu0 0.0
        %v10502 = vand.u32 %v9846, 4294901760
        %10503 = vmatmul.mubr.f32.gmra.mxu0 %v10502
        %v10504 = vpop.f32.mrf.mxu0
        %v10505 = vadd.f32 %v10374, %v10504
        %v10506 = vpop.f32.mrf.mxu0
        %10507 = vmatprep.mubr.f32.mxu0 0.0
        %v10508 = vand.u32 %v9849, 4294901760
        %10509 = vmatmul.mubr.f32.gmra.mxu0 %v10508
        %v10510 = vpop.f32.mrf.mxu0
        %v10511 = vadd.f32 %v10382, %v10510
        %v10512 = vpop.f32.mrf.mxu0
        %10513 = vmatprep.mubr.f32.mxu0 0.0
        %v10514 = vand.u32 %v9852, 4294901760
        %10515 = vmatmul.mubr.f32.gmra.mxu0 %v10514
        %v10516 = vpop.f32.mrf.mxu0
        %v10517 = vadd.f32 %v10390, %v10516
        %v10518 = vpop.f32.mrf.mxu0
        %10519 = vmatprep.mubr.f32.mxu0 0.0
        %v10520 = vand.u32 %v9855, 4294901760
        %10521 = vmatmul.mubr.f32.gmra.mxu0 %v10520
        %v10522 = vpop.f32.mrf.mxu0
        %v10523 = vadd.f32 %v10398, %v10522
        %v10524 = vpop.f32.mrf.mxu0
        %10525 = vdwg.mxu0
        %10526 = vmatprep.subr.mxu0 0.0
        %10527 = vmatpush1.msra.mxu0 0.0
        %10528 = vmatprep.subr.mxu0 0.0
        %10529 = vmatpush1.msra.mxu0 0.0
        %10530 = vmatprep.subr.mxu0 0.0
        %10531 = vmatpush1.msra.mxu0 0.0
        %10532 = vmatprep.subr.mxu0 0.0
        %10533 = vmatpush1.msra.mxu0 0.0
        %10534 = vmatprep.subr.mxu0 0.0
        %10535 = vmatpush1.msra.mxu0 0.0
        %10536 = vmatprep.subr.mxu0 0.0
        %10537 = vmatpush1.msra.mxu0 0.0
        %10538 = vmatprep.subr.mxu0 0.0
        %10539 = vmatpush1.msra.mxu0 0.0
        %10540 = vmatprep.subr.mxu0 0.0
        %10541 = vmatpush1.msra.mxu0 0.0
        %10542 = vmatprep.subr.mxu0 0.0
        %10543 = vmatpush1.msra.mxu0 0.0
        %10544 = vmatprep.subr.mxu0 0.0
        %10545 = vmatpush1.msra.mxu0 0.0
        %10546 = vmatprep.subr.mxu0 0.0
        %10547 = vmatpush1.msra.mxu0 0.0
        %10548 = vmatprep.subr.mxu0 0.0
        %10549 = vmatpush1.msra.mxu0 0.0
        %10550 = vmatprep.subr.mxu0 0.0
        %v10551 = vand.u32 %v9825, 4294901760
        %10552 = vmatpush1.msra.mxu0 %v10551
        %10553 = vmatprep.subr.mxu0 0.0
        %v10554 = vand.u32 %v9824, 4294901760
        %10555 = vmatpush1.msra.mxu0 %v10554
        %10556 = vmatprep.subr.mxu0 0.0
        %v10557 = vand.u32 %v9823, 4294901760
        %10558 = vmatpush1.msra.mxu0 %v10557
        %10559 = vmatprep.subr.mxu0 0.0
        %v10560 = vand.u32 %v9822, 4294901760
        %10561 = vmatpush1.msra.mxu0 %v10560
        %10562 = vmatprep.subr.mxu0 0.0
        %10563 = vmatpush2.msra.mxu0 0.0
        %10564 = vmatprep.subr.mxu0 0.0
        %10565 = vmatpush2.msra.mxu0 0.0
        %10566 = vmatprep.subr.mxu0 0.0
        %10567 = vmatpush2.msra.mxu0 0.0
        %10568 = vmatprep.subr.mxu0 0.0
        %10569 = vmatpush2.msra.mxu0 0.0
        %10570 = vmatprep.subr.mxu0 0.0
        %10571 = vmatpush2.msra.mxu0 0.0
        %10572 = vmatprep.subr.mxu0 0.0
        %10573 = vmatpush2.msra.mxu0 0.0
        %10574 = vmatprep.subr.mxu0 0.0
        %10575 = vmatpush2.msra.mxu0 0.0
        %10576 = vmatprep.subr.mxu0 0.0
        %10577 = vmatpush2.msra.mxu0 0.0
        %10578 = vmatprep.subr.mxu0 0.0
        %10579 = vmatpush2.msra.mxu0 0.0
        %10580 = vmatprep.subr.mxu0 0.0
        %10581 = vmatpush2.msra.mxu0 0.0
        %10582 = vmatprep.subr.mxu0 0.0
        %10583 = vmatpush2.msra.mxu0 0.0
        %10584 = vmatprep.subr.mxu0 0.0
        %10585 = vmatpush2.msra.mxu0 0.0
        %10586 = vmatprep.subr.mxu0 0.0
        %10587 = vmatpush2.msra.mxu0 0.0
        %10588 = vmatprep.subr.mxu0 0.0
        %10589 = vmatpush2.msra.mxu0 0.0
        %10590 = vmatprep.subr.mxu0 0.0
        %10591 = vmatpush2.msra.mxu0 0.0
        %10592 = vmatprep.subr.mxu0 0.0
        %10593 = vmatpush2.msra.mxu0 0.0
        %10594 = vmatprep.mubr.f32.mxu0 0.0
        %v10595 = vand.u32 %v9834, 4294901760
        %10596 = vmatmul.mubr.f32.gmra.mxu0 %v10595
        %v10597 = vpop.f32.mrf.mxu0
        %v10598 = vadd.f32 %v10481, %v10597
        %v10599 = vpop.f32.mrf.mxu0
        %10600 = vmatprep.mubr.f32.mxu0 0.0
        %v10601 = vand.u32 %v9837, 4294901760
        %10602 = vmatmul.mubr.f32.gmra.mxu0 %v10601
        %v10603 = vpop.f32.mrf.mxu0
        %v10604 = vadd.f32 %v10487, %v10603
        %v10605 = vpop.f32.mrf.mxu0
        %10606 = vmatprep.mubr.f32.mxu0 0.0
        %v10607 = vand.u32 %v9840, 4294901760
        %10608 = vmatmul.mubr.f32.gmra.mxu0 %v10607
        %v10609 = vpop.f32.mrf.mxu0
        %v10610 = vadd.f32 %v10493, %v10609
        %v10611 = vpop.f32.mrf.mxu0
        %10612 = vmatprep.mubr.f32.mxu0 0.0
        %v10613 = vand.u32 %v9843, 4294901760
        %10614 = vmatmul.mubr.f32.gmra.mxu0 %v10613
        %v10615 = vpop.f32.mrf.mxu0
        %v10616 = vadd.f32 %v10499, %v10615
        %v10617 = vpop.f32.mrf.mxu0
        %10618 = vmatprep.mubr.f32.mxu0 0.0
        %v10619 = vand.u32 %v9846, 4294901760
        %10620 = vmatmul.mubr.f32.gmra.mxu0 %v10619
        %v10621 = vpop.f32.mrf.mxu0
        %v10622 = vadd.f32 %v10505, %v10621
        %v10623 = vpop.f32.mrf.mxu0
        %10624 = vmatprep.mubr.f32.mxu0 0.0
        %v10625 = vand.u32 %v9849, 4294901760
        %10626 = vmatmul.mubr.f32.gmra.mxu0 %v10625
        %v10627 = vpop.f32.mrf.mxu0
        %v10628 = vadd.f32 %v10511, %v10627
        %v10629 = vpop.f32.mrf.mxu0
        %10630 = vmatprep.mubr.f32.mxu0 0.0
        %v10631 = vand.u32 %v9852, 4294901760
        %10632 = vmatmul.mubr.f32.gmra.mxu0 %v10631
        %v10633 = vpop.f32.mrf.mxu0
        %v10634 = vadd.f32 %v10517, %v10633
        %v10635 = vpop.f32.mrf.mxu0
        %10636 = vmatprep.mubr.f32.mxu0 0.0
        %v10637 = vand.u32 %v9855, 4294901760
        %10638 = vmatmul.mubr.f32.gmra.mxu0 %v10637
        %v10639 = vpop.f32.mrf.mxu0
        %v10640 = vadd.f32 %v10523, %v10639
        %v10641 = vpop.f32.mrf.mxu0
        %10642 = vdwg.mxu0
        %10643 = vst.msk [vmem:[%s368] sm:$0xff] %vm379, %v10598
        %10644 = vst.msk [vmem:[%s368 + $0x8] sm:$0xff] %vm379, %v10604
        %10645 = vst.msk [vmem:[%s368 + $0x10] sm:$0xff] %vm379, %v10610
        %10646 = vst.msk [vmem:[%s368 + $0x18] sm:$0xff] %vm379, %v10616
        %10647 = vst.msk [vmem:[%s368 + $0x20] sm:$0xff] %vm379, %v10622
        %10648 = vst.msk [vmem:[%s368 + $0x28] sm:$0xff] %vm379, %v10628
        %10649 = vst.msk [vmem:[%s368 + $0x30] sm:$0xff] %vm379, %v10634
        %10650 = vst.msk [vmem:[%s368 + $0x38] sm:$0xff] %vm379, %v10640
        %s10651 = sand.u32 %s208, 1
        %s10652 = scalar_lea.sflag [#allocation4], %s10651
        %s10653 = sand.u32 %s208, 1
        %s10654 = smul.addr %s10653, 64
        %s10655 = scalar_lea.vmem [#allocation10], %s10654
        // Predicated region
        $region69: #{tpu_custom_call.1} parent=51 // pred_check
          %p10656 = pneg %p218
        $region70: #{tpu_custom_call.1} parent=51 // pred_check_branch
          %10658 = sbr.rel (%p10656) target = $region72
        $region71: #{tpu_custom_call.1} parent=51 // pred_region
          %s10659 = smul.u32 4, %s27
          %s10661 = ssub.s32 1024, 1024
          %10662 = vsyncadd %s10652, %s10661
          %s10663 = smul.addr %s10659, 2
          %s10664 = smul.addr %s10663, 128
          %s10665 = scalar_lea.hbm %s8, %s10664
          %s10666 = sshll.u32 %s10655, 4
          %s10667 = int_to_ptr.vmem [resolvable:$true] %s10666
          %10672 = dma.vmem_to_hbm [thread:$0]  %s10667, 1024, %s10665, %s10652, 128, 128, 8
        $region72: #{tpu_custom_call.1} parent=51 // pred_fallthru
          _
      $region52: #{tpu_custom_call.1} parent=5 // pred_fallthru
        _
      %p10673 = scmp.le.s32.totalorder 2, %s22
      // Predicated region
      $region73: #{tpu_custom_call.1} parent=5 // pred_check
        %p10674 = pneg %p10673
      $region74: #{tpu_custom_call.1} parent=5 // pred_check_branch
        %10676 = sbr.rel (%p10674) target = $region76
      $region75: #{tpu_custom_call.1} parent=5 // pred_region
        %s10677 = ssub.s32 %s22, 2
        // Predicated region
        $region77: #{tpu_custom_call.1} parent=75 // pred_check
          %p10678 = pneg %p224
        $region78: #{tpu_custom_call.1} parent=75 // pred_check_branch
          %10680 = sbr.rel (%p10678) target = $region80
        $region79: #{tpu_custom_call.1} parent=75 // pred_region
          %s10681 = sand.u32 %s209, 1
          %s10682 = scalar_lea.sflag [#allocation4], %s10681
          %s10683 = sand.u32 %s209, 1
          %s10684 = smul.addr %s10683, 64
          %s10685 = scalar_lea.vmem [#allocation10], %s10684
          %10686 = dma.done %s10682, 1024
        $region80: #{tpu_custom_call.1} parent=75 // pred_fallthru
          _
      $region76: #{tpu_custom_call.1} parent=5 // pred_fallthru
        _
    $region6: #{tpu_custom_call.1} parent=1 // loop_footer
      %s26 = sadd.s32 1, %s22
    $region7: #{tpu_custom_call.1} parent=1 // loop_footer_branch
      %21 = sbr.rel target = $region3
    $region8: #{tpu_custom_call.1} parent=1 // loop_exit
      _
    %10687 = vsyncpa [#allocation3], 1
    %s10688 = scalar_lea.sflag [#allocation3], 1
    %10689 = vsyncpa %s10688, 1
    %10690 = vsyncpa [#allocation6], 1
    %10691 = vsyncpa [#allocation9], 1
    %10692 = vsyncpa [#allocation4], 1
    %s10693 = scalar_lea.sflag [#allocation4], 1
    %10694 = vsyncpa %s10693, 1

</llo_original>
